<compile_context>
chip_gen: v6e
topology: v6e:2x2x1
jax: 0.10.0
libtpu: 0.0.40
codegen_flags: <defaults>
</compile_context>

<pallas_src>
import functools
import math

import jax
import jax.numpy as jnp
from jax.experimental import pallas as pl
from jax.experimental.pallas import tpu as pltpu

# -----------------------------------------------------------------------------
# Config (small, deterministic)
# -----------------------------------------------------------------------------
BATCH           = 2
LANG_LEN        = 8
IMG_LEN         = 8
LANG_TOKEN_DIM  = 32
IMG_TOKEN_DIM   = 48
STATE_TOKEN_DIM = 16           # == action_dim
ACTION_DIM      = 16
PRED_HORIZON    = 8
HIDDEN          = 64
DEPTH           = 2
NUM_HEADS       = 4
HEAD_DIM        = HIDDEN // NUM_HEADS
FFN_DIM         = 4 * HIDDEN
TIME_FREQ_DIM   = 256
NUM_TRAIN_TIMESTEPS = 100
PREDICTION_TYPE = "sample"     # -> target = action_gt
PARAM_DTYPE     = jnp.bfloat16

ACTION_OUT_DIM  = ACTION_DIM
SA_TOKENS       = 1 + PRED_HORIZON        # [state, action * horizon]
X_TOKENS        = 2 + SA_TOKENS           # [t, freq, state, actions]
X_TOTAL         = BATCH * X_TOKENS        # batch folded into token axis
L_TOTAL         = BATCH * LANG_LEN
I_TOTAL         = BATCH * IMG_LEN


# -----------------------------------------------------------------------------
# Packed weight-blob layout (single (R, 64) bf16 blob, static row offsets)
# -----------------------------------------------------------------------------
def _build_layout():
    layout = {}
    off = 0

    def add(name, rows):
        nonlocal off
        layout[name] = (off, rows)
        off += rows

    def pad16():
        nonlocal off
        off = ((off + 15) // 16) * 16

    # --- weight matrices (row counts all multiples of 16 -> tile aligned) ---
    add("lang0_w", LANG_TOKEN_DIM); add("lang1_w", HIDDEN)
    add("img0_w",  IMG_TOKEN_DIM);  add("img1_w",  HIDDEN)
    add("st0a_w",  STATE_TOKEN_DIM); add("st0b_w", STATE_TOKEN_DIM)
    add("st1_w",   HIDDEN);          add("st2_w",  HIDDEN)
    add("t0_w", TIME_FREQ_DIM); add("t1_w", HIDDEN)
    add("f0_w", TIME_FREQ_DIM); add("f1_w", HIDDEN)
    for d in range(DEPTH):
        for p in ("sa_q", "sa_k", "sa_v", "sa_o", "ca_q", "ca_k", "ca_v", "ca_o"):
            add(f"{p}_w_{d}", HIDDEN)
        add(f"ffn2_w_{d}", FFN_DIM)
    add("fin_w", HIDDEN)          # cols 0:ACTION_DIM meaningful, rest zero
    # --- multi-row blocks (kept 16-row aligned) ---
    pad16(); add("x_pos", X_TOTAL)
    pad16(); add("lang_pos", L_TOTAL)
    pad16(); add("img_pos", I_TOTAL)
    pad16(); add("aux", X_TOTAL)  # col0: sa-row keep, col1: supervised rows,
                                  # cols 4:4+2B: t/freq token placement matrix
    pad16()
    # --- single-row biases / LayerNorm params ---
    for n in ("lang0_b", "lang1_b", "img0_b", "img1_b", "st0_b", "st1_b",
              "st2_b", "t0_b", "t1_b", "f0_b", "f1_b"):
        add(n, 1)
    for d in range(DEPTH):
        for n in ("ln1_g", "ln1_b", "sa_q_b", "sa_k_b", "sa_v_b", "sa_o_b",
                  "ln2_g", "ln2_b", "ca_q_b", "ca_k_b", "ca_v_b", "ca_o_b",
                  "ln3_g", "ln3_b", "ffn2_b"):
            add(f"{n}_{d}", 1)
    add("lnf_g", 1); add("lnf_b", 1); add("fin_b", 1)
    pad16()
    return layout, off


LAYOUT, WBLOB_ROWS = _build_layout()


# -----------------------------------------------------------------------------
# Small math helpers (used inside the kernel)
# -----------------------------------------------------------------------------
def _gelu_tanh(x):
    # matches torch.nn.GELU(approximate='tanh')
    return 0.5 * x * (1.0 + jnp.tanh(0.7978845608028654 * (x + 0.044715 * x * x * x)))


def _silu(x):
    return x * (1.0 / (1.0 + jnp.exp(-x)))


# -----------------------------------------------------------------------------
# The fused forward kernel (single grid step, batch folded into the token axis)
# -----------------------------------------------------------------------------
def _rdt_fused_kernel(data16_ref, coef_ref, lang_ref, img_ref, tf_ref,
                      bias_ref, w_ref, ffn1_ref, sse_ref):
    F32, DT = jnp.float32, PARAM_DTYPE

    def w_mat(name, d=None):
        key = name if d is None else f"{name}_{d}"
        off, rows = LAYOUT[key]
        return w_ref[off:off + rows, :]                   # (rows, 64) bf16

    def w_row(name, d=None):
        key = name if d is None else f"{name}_{d}"
        off, _ = LAYOUT[key]
        return w_ref[off:off + 1, :].astype(F32)          # (1, 64) f32

    def mm(x, wname, bname=None, d=None, act=None):
        # bf16 x bf16 MXU matmul with f32 accumulation; bias/activation in f32.
        y = jnp.dot(x.astype(DT), w_mat(wname, d), preferred_element_type=F32)
        if bname is not None:
            y = y + w_row(bname, d)
        if act == "gelu":
            y = _gelu_tanh(y)
        elif act == "silu":
            y = _silu(y)
        return y

    def ln(x_f32, gname, bname, d=None):
        mu = jnp.mean(x_f32, axis=-1, keepdims=True)
        var = jnp.mean((x_f32 - mu) ** 2, axis=-1, keepdims=True)
        y = (x_f32 - mu) * jax.lax.rsqrt(var + 1e-5)      # torch LayerNorm eps
        return y * w_row(gname, d) + w_row(bname, d)

    # ---- DDPM add_noise on the x-layout rows (t/f rows are zero either way) ----
    gt  = data16_ref[0].astype(F32)                       # (X_TOTAL, 16)
    nz  = data16_ref[1].astype(F32)
    msk = data16_ref[2]                                   # (X_TOTAL, 16) bf16
    tgt = data16_ref[3].astype(F32)
    coef = coef_ref[...]                                  # (X_TOTAL, 2) f32
    sa_rows = (coef[:, 0:1] * gt + coef[:, 1:2] * nz).astype(DT)

    # ---- state adaptor (mlp3x_gelu); the feature-axis concat with the action
    #      mask is folded into a split first-layer matmul (no in-kernel concat) --
    y = (jnp.dot(sa_rows, w_mat("st0a_w"), preferred_element_type=F32)
         + jnp.dot(msk, w_mat("st0b_w"), preferred_element_type=F32)
         + w_row("st0_b"))
    y = _gelu_tanh(y)
    y = mm(y, "st1_w", "st1_b", act="gelu")
    sa_tok = mm(y, "st2_w", "st2_b")                      # (X_TOTAL, 64) f32

    # ---- lang / img adaptors (mlp2x_gelu) + positional embeddings (KV side,
    #      stored once as bf16 since they only feed the MXU) ----
    lc = mm(lang_ref[...], "lang0_w", "lang0_b", act="gelu")
    lang_c = (mm(lc, "lang1_w", "lang1_b")
              + w_mat("lang_pos").astype(F32)).astype(DT)            # (L_TOTAL, 64)
    ic = mm(img_ref[...], "img0_w", "img0_b", act="gelu")
    img_c = (mm(ic, "img1_w", "img1_b")
             + w_mat("img_pos").astype(F32)).astype(DT)              # (I_TOTAL, 64)

    # ---- timestep / ctrl-freq embedders (Linear -> SiLU -> Linear) ----
    t_tok = mm(mm(tf_ref[0:BATCH, :], "t0_w", "t0_b", act="silu"),
               "t1_w", "t1_b")                                        # (B, 64) f32
    f_tok = mm(mm(tf_ref[BATCH:2 * BATCH, :], "f0_w", "f0_b", act="silu"),
               "f1_w", "f1_b")                                        # (B, 64) f32

    # ---- assemble the sequence [t, freq, state, actions] per batch with the
    #      precomputed placement / keep masks from the aux block ----
    aux = w_mat("aux")                                                # (X_TOTAL, 64)
    sa_keep   = aux[:, 0:1].astype(F32)                               # (X_TOTAL, 1)
    loss_rows = aux[:, 1:2].astype(F32)                               # (X_TOTAL, 1)
    p_t = aux[:, 4:4 + BATCH]                                         # (X_TOTAL, B)
    p_f = aux[:, 4 + BATCH:4 + 2 * BATCH]
    tf_placed = (jnp.dot(p_t, t_tok.astype(DT), preferred_element_type=F32)
                 + jnp.dot(p_f, f_tok.astype(DT), preferred_element_type=F32))
    x = sa_tok * sa_keep + tf_placed + w_mat("x_pos").astype(F32)     # f32 residual

    # ---- attention biases (block-diagonal over batch; lang mask folded in) ----
    bias_all = bias_ref[...]                                          # (X_TOTAL, 54)
    b_self = bias_all[:, 0:X_TOTAL]
    b_lang = bias_all[:, X_TOTAL:X_TOTAL + L_TOTAL]
    b_img  = bias_all[:, X_TOTAL + L_TOTAL:X_TOTAL + L_TOTAL + I_TOTAL]

    scale = 1.0 / math.sqrt(HEAD_DIM)

    def attend(xq_dt, kv_dt, pfx, d, bias):
        # fused Q/K/V projections (one matmul each), head-batched softmax,
        # lane-concat of head outputs -> single output projection.
        q = (mm(xq_dt, f"{pfx}_q_w", f"{pfx}_q_b", d) * scale).astype(DT)
        k = mm(kv_dt, f"{pfx}_k_w", f"{pfx}_k_b", d).astype(DT)
        v = mm(kv_dt, f"{pfx}_v_w", f"{pfx}_v_b", d).astype(DT)
        s_heads = []
        for h in range(NUM_HEADS):
            sl = slice(h * HEAD_DIM, (h + 1) * HEAD_DIM)
            s_heads.append(jax.lax.dot_general(
                q[:, sl], k[:, sl], (((1,), (1,)), ((), ())),
                preferred_element_type=F32))
        s = jnp.stack(s_heads, axis=0) + bias[None, :, :]             # (H, Tq, Tk)
        m = jnp.max(s, axis=-1, keepdims=True)
        p = jnp.exp(s - m)
        # approx reciprocal keeps softmax off the VALU critical path (EUP slot)
        p = (p * pl.reciprocal(jnp.sum(p, axis=-1, keepdims=True),
                               approx=True)).astype(DT)
        o_heads = [jnp.dot(p[h], v[:, h * HEAD_DIM:(h + 1) * HEAD_DIM],
                           preferred_element_type=F32)
                   for h in range(NUM_HEADS)]
        o = jnp.concatenate(o_heads, axis=-1).astype(DT)              # (Tq, 64)
        return mm(o, f"{pfx}_o_w", f"{pfx}_o_b", d)                   # (Tq, 64) f32

    # ---- transformer blocks (static unroll; cond alternates lang / img) ----
    for d in range(DEPTH):
        h1 = ln(x, "ln1_g", "ln1_b", d).astype(DT)
        x = x + attend(h1, h1, "sa", d, b_self)

        cond, cbias = (lang_c, b_lang) if d % 2 == 0 else (img_c, b_img)
        h2 = ln(x, "ln2_g", "ln2_b", d).astype(DT)
        x = x + attend(h2, cond, "ca", d, cbias)

        h3 = ln(x, "ln3_g", "ln3_b", d).astype(DT)
        hh = (jnp.dot(h3, ffn1_ref[d, 0:HIDDEN, :], preferred_element_type=F32)
              + ffn1_ref[d, HIDDEN:HIDDEN + 1, :].astype(F32))
        hh = _gelu_tanh(hh).astype(DT)
        x = x + mm(hh, "ffn2_w", "ffn2_b", d)

    # ---- final LN + projection + per-sample squared error over the
    #      supervised (last PRED_HORIZON) rows ----
    hf = ln(x, "lnf_g", "lnf_b").astype(DT)
    out = mm(hf, "fin_w", "fin_b")                         # (X_TOTAL, 64) f32
    out = out.astype(DT).astype(F32)                       # bf16-rounded model output
    dlt = (out[:, 0:ACTION_OUT_DIM] - tgt) * loss_rows
    sse_ref[...] = jnp.broadcast_to(jnp.sum(dlt * dlt), (1, 1))


# -----------------------------------------------------------------------------
# Plain-JAX glue (input prep only: sinusoidal embedding, scheduler table, RNG)
# -----------------------------------------------------------------------------
def timestep_embedding(t, dim, max_period=10000.0):
    half = dim // 2
    freqs = jnp.exp(-math.log(max_period) * jnp.arange(half, dtype=jnp.float32) / half)
    args = t.astype(jnp.float32)[:, None] * freqs[None, :]
    return jnp.concatenate([jnp.cos(args), jnp.sin(args)], axis=-1)   # (N, dim)


def squaredcos_cap_v2_alphas_cumprod(num_timesteps):
    # DDPMScheduler(beta_schedule='squaredcos_cap_v2')
    def alpha_bar(t):
        return math.cos((t + 0.008) / 1.008 * math.pi / 2.0) ** 2
    betas = []
    for i in range(num_timesteps):
        t1 = i / num_timesteps
        t2 = (i + 1) / num_timesteps
        betas.append(min(1.0 - alpha_bar(t2) / alpha_bar(t1), 0.999))
    betas = jnp.asarray(betas, dtype=jnp.float32)
    return jnp.cumprod(1.0 - betas)


# -----------------------------------------------------------------------------
# Parameter init: everything packed into two bf16 blobs
# -----------------------------------------------------------------------------
def init_packed_params(key):
    keys = iter(jax.random.split(key, 64))
    blob = jnp.zeros((WBLOB_ROWS, HIDDEN), jnp.float32)

    def put(name, arr):
        nonlocal blob
        off, _ = LAYOUT[name]
        arr = jnp.asarray(arr, jnp.float32)
        blob = blob.at[off:off + arr.shape[0], :arr.shape[1]].set(arr)

    def rnd(shape, scale=0.02):
        return jax.random.normal(next(keys), shape, jnp.float32) * scale

    put("lang0_w", rnd((LANG_TOKEN_DIM, HIDDEN))); put("lang1_w", rnd((HIDDEN, HIDDEN)))
    put("img0_w",  rnd((IMG_TOKEN_DIM, HIDDEN)));  put("img1_w",  rnd((HIDDEN, HIDDEN)))
    put("st0a_w",  rnd((STATE_TOKEN_DIM, HIDDEN)))
    put("st0b_w",  rnd((STATE_TOKEN_DIM, HIDDEN)))
    put("st1_w",   rnd((HIDDEN, HIDDEN)));         put("st2_w",  rnd((HIDDEN, HIDDEN)))
    put("t0_w", rnd((TIME_FREQ_DIM, HIDDEN)));     put("t1_w", rnd((HIDDEN, HIDDEN)))
    put("f0_w", rnd((TIME_FREQ_DIM, HIDDEN)));     put("f1_w", rnd((HIDDEN, HIDDEN)))
    for d in range(DEPTH):
        for p in ("sa_q", "sa_k", "sa_v", "sa_o", "ca_q", "ca_k", "ca_v", "ca_o"):
            put(f"{p}_w_{d}", rnd((HIDDEN, HIDDEN)))
        put(f"ffn2_w_{d}", rnd((FFN_DIM, HIDDEN)))
    put("fin_w", rnd((HIDDEN, ACTION_OUT_DIM)))    # zero-padded to 64 output cols

    # positional embeddings (shared across batch -> tiled into folded layout)
    put("x_pos",    jnp.tile(rnd((X_TOKENS, HIDDEN)), (BATCH, 1)))
    put("lang_pos", jnp.tile(rnd((LANG_LEN, HIDDEN)), (BATCH, 1)))
    put("img_pos",  jnp.tile(rnd((IMG_LEN, HIDDEN)), (BATCH, 1)))

    # aux block: precomputed 0/1 selection / placement constants
    aux = jnp.zeros((X_TOTAL, HIDDEN), jnp.float32)
    for b in range(BATCH):
        r0 = b * X_TOKENS
        aux = aux.at[r0 + 2:r0 + X_TOKENS, 0].set(1.0)     # state+action rows
        aux = aux.at[r0 + 3:r0 + X_TOKENS, 1].set(1.0)     # supervised rows
        aux = aux.at[r0 + 0, 4 + b].set(1.0)               # timestep token slot
        aux = aux.at[r0 + 1, 4 + BATCH + b].set(1.0)       # ctrl-freq token slot
    put("aux", aux)

    # LayerNorm gammas (all betas / biases stay zero)
    ones = jnp.ones((1, HIDDEN), jnp.float32)
    for d in range(DEPTH):
        for n in ("ln1_g", "ln2_g", "ln3_g"):
            put(f"{n}_{d}", ones)
    put("lnf_g", ones)
    wblob = blob.astype(PARAM_DTYPE)

    ffn1 = jnp.zeros((DEPTH, HIDDEN + 1, FFN_DIM), jnp.float32)
    for d in range(DEPTH):
        ffn1 = ffn1.at[d, :HIDDEN, :].set(rnd((HIDDEN, FFN_DIM)))
    ffn1_blob = ffn1.astype(PARAM_DTYPE)

    # TODO(synk): the torch module also builds an effort_adaptor; it is unused on
    #             the compute_loss path exercised here (efforts is None), so omitted.
    return wblob, ffn1_blob


# -----------------------------------------------------------------------------
# RDTRunner.compute_loss (== forward)
# -----------------------------------------------------------------------------
def _zero_block(ndim, *_):
    return (0,) * ndim


def compute_loss(wblob, ffn1_blob, alphas_cumprod, lang_tokens, lang_attn_mask,
                 img_tokens, state_tokens, action_gt, action_mask, ctrl_freqs, rng):
    B = lang_tokens.shape[0]
    k_noise, k_t = jax.random.split(rng)
    noise = jax.random.normal(k_noise, action_gt.shape, jnp.float32)
    timesteps = jax.random.randint(k_t, (B,), 0, NUM_TRAIN_TIMESTEPS)
    ac_t = alphas_cumprod[timesteps]
    sqrt_ac = jnp.sqrt(ac_t)
    sqrt_1mac = jnp.sqrt(1.0 - ac_t)

    # per-batch x-layout planes: row 0=t, 1=freq, 2=state, 3..10=actions
    f32 = jnp.float32
    gt_plane = jnp.zeros((B, X_TOKENS, ACTION_DIM), f32)
    gt_plane = gt_plane.at[:, 2:3].set(state_tokens.astype(f32))
    gt_plane = gt_plane.at[:, 3:].set(action_gt.astype(f32))
    noise_plane = jnp.zeros_like(gt_plane).at[:, 3:].set(noise)
    mask_plane = jnp.zeros_like(gt_plane).at[:, 2:].set(
        jnp.broadcast_to(action_mask.astype(f32), (B, SA_TOKENS, ACTION_DIM)))
    tgt_src = action_gt if PREDICTION_TYPE == "sample" else noise
    tgt_plane = jnp.zeros_like(gt_plane).at[:, 3:].set(tgt_src.astype(f32))
    data16 = jnp.stack([gt_plane, noise_plane, mask_plane, tgt_plane], axis=0)
    data16 = data16.reshape(4, X_TOTAL, ACTION_DIM).astype(PARAM_DTYPE)

    coef_a = jnp.zeros((B, X_TOKENS), f32).at[:, 2].set(1.0)
    coef_a = coef_a.at[:, 3:].set(jnp.broadcast_to(sqrt_ac[:, None], (B, PRED_HORIZON)))
    coef_b = jnp.zeros((B, X_TOKENS), f32).at[:, 3:].set(
        jnp.broadcast_to(sqrt_1mac[:, None], (B, PRED_HORIZON)))
    coef_ab = jnp.stack([coef_a.reshape(X_TOTAL), coef_b.reshape(X_TOTAL)], axis=-1)

    lang_flat = lang_tokens.reshape(L_TOTAL, LANG_TOKEN_DIM).astype(PARAM_DTYPE)
    img_flat = img_tokens.reshape(I_TOTAL, IMG_TOKEN_DIM).astype(PARAM_DTYPE)

    t_emb = timestep_embedding(timesteps.astype(f32), TIME_FREQ_DIM)
    f_emb = timestep_embedding(ctrl_freqs.astype(f32), TIME_FREQ_DIM)
    tf_emb = jnp.concatenate([t_emb, f_emb], axis=0).astype(PARAM_DTYPE)   # (2B, 256)

    # block-diagonal attention biases (batch separation; lang mask folded in)
    x_b = jnp.arange(X_TOTAL) // X_TOKENS
    l_b = jnp.arange(L_TOTAL) // LANG_LEN
    i_b = jnp.arange(I_TOTAL) // IMG_LEN
    neg = jnp.float32(-1e9)
    b_self = jnp.where(x_b[:, None] == x_b[None, :], 0.0, neg)
    lang_valid = lang_attn_mask.reshape(L_TOTAL)
    b_lang = jnp.where((x_b[:, None] == l_b[None, :]) & lang_valid[None, :], 0.0, neg)
    b_img = jnp.where(x_b[:, None] == i_b[None, :], 0.0, neg)
    attn_bias = jnp.concatenate([b_self, b_lang, b_img], axis=1).astype(f32)

    arrays = (data16, coef_ab, lang_flat, img_flat, tf_emb, attn_bias, wblob, ffn1_blob)
    in_specs = [pl.BlockSpec(a.shape, functools.partial(_zero_block, a.ndim))
                for a in arrays]

    sse = pl.pallas_call(
        _rdt_fused_kernel,
        out_shape=jax.ShapeDtypeStruct((1, 1), jnp.float32),
        grid=(1,),
        in_specs=in_specs,
        out_specs=pl.BlockSpec((1, 1), lambda i: (0, 0)),
        compiler_params=pltpu.CompilerParams(dimension_semantics=("arbitrary",)),
    )(*arrays)

    # mean over all predicted elements (F.mse_loss); loss stays float32.
    return sse[0, 0] / float(B * PRED_HORIZON * ACTION_OUT_DIM)


# -----------------------------------------------------------------------------
# main
# -----------------------------------------------------------------------------
if __name__ == "__main__":
    root = jax.random.PRNGKey(0)
    k_params, k_lang, k_img, k_state, k_act, k_fwd = jax.random.split(root, 6)

    wblob, ffn1_blob = init_packed_params(k_params)
    alphas_cumprod = squaredcos_cap_v2_alphas_cumprod(NUM_TRAIN_TIMESTEPS)

    lang_tokens = jax.random.normal(k_lang, (BATCH, LANG_LEN, LANG_TOKEN_DIM),
                                    jnp.float32).astype(PARAM_DTYPE)
    img_tokens = jax.random.normal(k_img, (BATCH, IMG_LEN, IMG_TOKEN_DIM),
                                   jnp.float32).astype(PARAM_DTYPE)
    state_tokens = jax.random.normal(k_state, (BATCH, 1, STATE_TOKEN_DIM),
                                     jnp.float32).astype(PARAM_DTYPE)
    action_gt = jax.random.normal(k_act, (BATCH, PRED_HORIZON, STATE_TOKEN_DIM),
                                  jnp.float32).astype(PARAM_DTYPE)
    action_mask = jnp.ones((BATCH, 1, ACTION_DIM), PARAM_DTYPE)
    lang_attn_mask = jnp.array([[True] * LANG_LEN,
                                [True] * (LANG_LEN - 2) + [False] * 2], dtype=bool)
    ctrl_freqs = jnp.array([25.0, 30.0], jnp.float32)

    loss_fn = jax.jit(compute_loss)
    loss = loss_fn(wblob, ffn1_blob, alphas_cumprod, lang_tokens, lang_attn_mask,
                   img_tokens, state_tokens, action_gt, action_mask, ctrl_freqs, k_fwd)
    loss = jax.block_until_ready(loss)
    assert loss.shape == () and bool(jnp.isfinite(loss))
    print("KERNEL_OK")
</pallas_src>

<mosaic_0001>
module attributes {stable_mosaic.version = 11 : i64} {
  func.func @_rdt_fused_kernel(%arg0: i32, %arg1: memref<4x22x16xbf16, #tpu.memory_space<vmem>>, %arg2: memref<22x2xf32, #tpu.memory_space<vmem>>, %arg3: memref<16x32xbf16, #tpu.memory_space<vmem>>, %arg4: memref<16x48xbf16, #tpu.memory_space<vmem>>, %arg5: memref<4x256xbf16, #tpu.memory_space<vmem>>, %arg6: memref<22x54xf32, #tpu.memory_space<vmem>>, %arg7: memref<2752x64xbf16, #tpu.memory_space<vmem>>, %arg8: memref<2x65x256xbf16, #tpu.memory_space<vmem>>, %arg9: memref<1x1xf32, #tpu.memory_space<vmem>>) attributes {dimension_semantics = [#tpu.dimension_semantics<arbitrary>], iteration_bounds = array<i64: 1>, scalar_prefetch = 0 : i64, scratch_operands = 0 : i64, tpu.core_type = #tpu.core_type<tc>, window_params = [{pipeline_mode = #tpu.pipeline_mode<synchronous>, transform_indices = @transform_0, window_bounds = array<i64: 4, 22, 16>}, {pipeline_mode = #tpu.pipeline_mode<synchronous>, transform_indices = @transform_1, window_bounds = array<i64: 22, 2>}, {pipeline_mode = #tpu.pipeline_mode<synchronous>, transform_indices = @transform_2, window_bounds = array<i64: 16, 32>}, {pipeline_mode = #tpu.pipeline_mode<synchronous>, transform_indices = @transform_3, window_bounds = array<i64: 16, 48>}, {pipeline_mode = #tpu.pipeline_mode<synchronous>, transform_indices = @transform_4, window_bounds = array<i64: 4, 256>}, {pipeline_mode = #tpu.pipeline_mode<synchronous>, transform_indices = @transform_5, window_bounds = array<i64: 22, 54>}, {pipeline_mode = #tpu.pipeline_mode<synchronous>, transform_indices = @transform_6, window_bounds = array<i64: 2752, 64>}, {pipeline_mode = #tpu.pipeline_mode<synchronous>, transform_indices = @transform_7, window_bounds = array<i64: 2, 65, 256>}, {pipeline_mode = #tpu.pipeline_mode<synchronous>, transform_indices = @transform_8, window_bounds = array<i64: 1, 1>}]} {
    %c0 = arith.constant 0 : index
    %c0_0 = arith.constant 0 : index
    %c0_1 = arith.constant 0 : index
    %0 = vector.load %arg1[%c0, %c0_0, %c0_1] : memref<4x22x16xbf16, #tpu.memory_space<vmem>>, vector<1x22x16xbf16>
    %1 = vector.shape_cast %0 : vector<1x22x16xbf16> to vector<22x16xbf16>
    %2 = arith.extf %1 : vector<22x16xbf16> to vector<22x16xf32>
    %c1 = arith.constant 1 : index
    %c0_2 = arith.constant 0 : index
    %c0_3 = arith.constant 0 : index
    %3 = vector.load %arg1[%c1, %c0_2, %c0_3] : memref<4x22x16xbf16, #tpu.memory_space<vmem>>, vector<1x22x16xbf16>
    %4 = vector.shape_cast %3 : vector<1x22x16xbf16> to vector<22x16xbf16>
    %5 = arith.extf %4 : vector<22x16xbf16> to vector<22x16xf32>
    %c2 = arith.constant 2 : index
    %c0_4 = arith.constant 0 : index
    %c0_5 = arith.constant 0 : index
    %6 = vector.load %arg1[%c2, %c0_4, %c0_5] : memref<4x22x16xbf16, #tpu.memory_space<vmem>>, vector<1x22x16xbf16>
    %7 = vector.shape_cast %6 : vector<1x22x16xbf16> to vector<22x16xbf16>
    %c3 = arith.constant 3 : index
    %c0_6 = arith.constant 0 : index
    %c0_7 = arith.constant 0 : index
    %8 = vector.load %arg1[%c3, %c0_6, %c0_7] : memref<4x22x16xbf16, #tpu.memory_space<vmem>>, vector<1x22x16xbf16>
    %9 = vector.shape_cast %8 : vector<1x22x16xbf16> to vector<22x16xbf16>
    %10 = arith.extf %9 : vector<22x16xbf16> to vector<22x16xf32>
    %c0_8 = arith.constant 0 : index
    %c0_9 = arith.constant 0 : index
    %11 = vector.load %arg2[%c0_8, %c0_9] : memref<22x2xf32, #tpu.memory_space<vmem>>, vector<22x2xf32>
    %12 = vector.extract_strided_slice %11 {offsets = [0, 0], sizes = [22, 1], strides = [1, 1]} : vector<22x2xf32> to vector<22x1xf32>
    %13 = vector.broadcast %12 : vector<22x1xf32> to vector<22x16xf32>
    %14 = arith.mulf %13, %2 : vector<22x16xf32>
    %15 = vector.extract_strided_slice %11 {offsets = [0, 1], sizes = [22, 1], strides = [1, 1]} : vector<22x2xf32> to vector<22x1xf32>
    %16 = vector.broadcast %15 : vector<22x1xf32> to vector<22x16xf32>
    %17 = arith.mulf %16, %5 : vector<22x16xf32>
    %18 = arith.addf %14, %17 : vector<22x16xf32>
    %19 = arith.truncf %18 : vector<22x16xf32> to vector<22x16xbf16>
    %c208 = arith.constant 208 : index
    %c0_10 = arith.constant 0 : index
    %20 = vector.load %arg7[%c208, %c0_10] : memref<2752x64xbf16, #tpu.memory_space<vmem>>, vector<16x64xbf16>
    %cst = arith.constant dense<0.000000e+00> : vector<22x64xf32>
    %21 = tpu.matmul %19, %20, %cst {dimension_numbers = #tpu.dot_dimension_numbers<[1], [0], [0], [1], [0, 0, 1, 1], [], []>} : vector<22x16xbf16>, vector<16x64xbf16>, vector<22x64xf32> -> vector<22x64xf32>
    %c224 = arith.constant 224 : index
    %c0_11 = arith.constant 0 : index
    %22 = vector.load %arg7[%c224, %c0_11] : memref<2752x64xbf16, #tpu.memory_space<vmem>>, vector<16x64xbf16>
    %cst_12 = arith.constant dense<0.000000e+00> : vector<22x64xf32>
    %23 = tpu.matmul %7, %22, %cst_12 {dimension_numbers = #tpu.dot_dimension_numbers<[1], [0], [0], [1], [0, 0, 1, 1], [], []>} : vector<22x16xbf16>, vector<16x64xbf16>, vector<22x64xf32> -> vector<22x64xf32>
    %24 = arith.addf %21, %23 : vector<22x64xf32>
    %c2708 = arith.constant 2708 : index
    %c0_13 = arith.constant 0 : index
    %25 = vector.load %arg7[%c2708, %c0_13] : memref<2752x64xbf16, #tpu.memory_space<vmem>>, vector<1x64xbf16>
    %26 = arith.extf %25 : vector<1x64xbf16> to vector<1x64xf32>
    %27 = vector.broadcast %26 : vector<1x64xf32> to vector<22x64xf32>
    %28 = arith.addf %24, %27 : vector<22x64xf32>
    %cst_14 = arith.constant 5.000000e-01 : f32
    %29 = vector.broadcast %cst_14 : f32 to vector<22x64xf32>
    %30 = arith.mulf %29, %28 : vector<22x64xf32>
    %cst_15 = arith.constant 4.471500e-02 : f32
    %31 = vector.broadcast %cst_15 : f32 to vector<22x64xf32>
    %32 = arith.mulf %31, %28 : vector<22x64xf32>
    %33 = arith.mulf %32, %28 : vector<22x64xf32>
    %34 = arith.mulf %33, %28 : vector<22x64xf32>
    %35 = arith.addf %28, %34 : vector<22x64xf32>
    %cst_16 = arith.constant 0.797884583 : f32
    %36 = vector.broadcast %cst_16 : f32 to vector<22x64xf32>
    %37 = arith.mulf %36, %35 : vector<22x64xf32>
    %38 = math.tanh %37 : vector<22x64xf32>
    %cst_17 = arith.constant 1.000000e+00 : f32
    %39 = vector.broadcast %cst_17 : f32 to vector<22x64xf32>
    %40 = arith.addf %39, %38 : vector<22x64xf32>
    %41 = arith.mulf %30, %40 : vector<22x64xf32>
    %42 = arith.truncf %41 : vector<22x64xf32> to vector<22x64xbf16>
    %c240 = arith.constant 240 : index
    %c0_18 = arith.constant 0 : index
    %43 = vector.load %arg7[%c240, %c0_18] : memref<2752x64xbf16, #tpu.memory_space<vmem>>, vector<64x64xbf16>
    %cst_19 = arith.constant dense<0.000000e+00> : vector<22x64xf32>
    %44 = tpu.matmul %42, %43, %cst_19 {dimension_numbers = #tpu.dot_dimension_numbers<[1], [0], [0], [1], [0, 0, 1, 1], [], []>} : vector<22x64xbf16>, vector<64x64xbf16>, vector<22x64xf32> -> vector<22x64xf32>
    %c2709 = arith.constant 2709 : index
    %c0_20 = arith.constant 0 : index
    %45 = vector.load %arg7[%c2709, %c0_20] : memref<2752x64xbf16, #tpu.memory_space<vmem>>, vector<1x64xbf16>
    %46 = arith.extf %45 : vector<1x64xbf16> to vector<1x64xf32>
    %47 = vector.broadcast %46 : vector<1x64xf32> to vector<22x64xf32>
    %48 = arith.addf %44, %47 : vector<22x64xf32>
    %cst_21 = arith.constant 5.000000e-01 : f32
    %49 = vector.broadcast %cst_21 : f32 to vector<22x64xf32>
    %50 = arith.mulf %49, %48 : vector<22x64xf32>
    %cst_22 = arith.constant 4.471500e-02 : f32
    %51 = vector.broadcast %cst_22 : f32 to vector<22x64xf32>
    %52 = arith.mulf %51, %48 : vector<22x64xf32>
    %53 = arith.mulf %52, %48 : vector<22x64xf32>
    %54 = arith.mulf %53, %48 : vector<22x64xf32>
    %55 = arith.addf %48, %54 : vector<22x64xf32>
    %cst_23 = arith.constant 0.797884583 : f32
    %56 = vector.broadcast %cst_23 : f32 to vector<22x64xf32>
    %57 = arith.mulf %56, %55 : vector<22x64xf32>
    %58 = math.tanh %57 : vector<22x64xf32>
    %cst_24 = arith.constant 1.000000e+00 : f32
    %59 = vector.broadcast %cst_24 : f32 to vector<22x64xf32>
    %60 = arith.addf %59, %58 : vector<22x64xf32>
    %61 = arith.mulf %50, %60 : vector<22x64xf32>
    %62 = arith.truncf %61 : vector<22x64xf32> to vector<22x64xbf16>
    %c304 = arith.constant 304 : index
    %c0_25 = arith.constant 0 : index
    %63 = vector.load %arg7[%c304, %c0_25] : memref<2752x64xbf16, #tpu.memory_space<vmem>>, vector<64x64xbf16>
    %cst_26 = arith.constant dense<0.000000e+00> : vector<22x64xf32>
    %64 = tpu.matmul %62, %63, %cst_26 {dimension_numbers = #tpu.dot_dimension_numbers<[1], [0], [0], [1], [0, 0, 1, 1], [], []>} : vector<22x64xbf16>, vector<64x64xbf16>, vector<22x64xf32> -> vector<22x64xf32>
    %c2710 = arith.constant 2710 : index
    %c0_27 = arith.constant 0 : index
    %65 = vector.load %arg7[%c2710, %c0_27] : memref<2752x64xbf16, #tpu.memory_space<vmem>>, vector<1x64xbf16>
    %66 = arith.extf %65 : vector<1x64xbf16> to vector<1x64xf32>
    %67 = vector.broadcast %66 : vector<1x64xf32> to vector<22x64xf32>
    %68 = arith.addf %64, %67 : vector<22x64xf32>
    %c0_28 = arith.constant 0 : index
    %c0_29 = arith.constant 0 : index
    %69 = vector.load %arg3[%c0_28, %c0_29] : memref<16x32xbf16, #tpu.memory_space<vmem>>, vector<16x32xbf16>
    %c0_30 = arith.constant 0 : index
    %c0_31 = arith.constant 0 : index
    %70 = vector.load %arg7[%c0_30, %c0_31] : memref<2752x64xbf16, #tpu.memory_space<vmem>>, vector<32x64xbf16>
    %cst_32 = arith.constant dense<0.000000e+00> : vector<16x64xf32>
    %71 = tpu.matmul %69, %70, %cst_32 {dimension_numbers = #tpu.dot_dimension_numbers<[1], [0], [0], [1], [0, 0, 1, 1], [], []>} : vector<16x32xbf16>, vector<32x64xbf16>, vector<16x64xf32> -> vector<16x64xf32>
    %c2704 = arith.constant 2704 : index
    %c0_33 = arith.constant 0 : index
    %72 = vector.load %arg7[%c2704, %c0_33] : memref<2752x64xbf16, #tpu.memory_space<vmem>>, vector<1x64xbf16>
    %73 = arith.extf %72 : vector<1x64xbf16> to vector<1x64xf32>
    %74 = vector.broadcast %73 : vector<1x64xf32> to vector<16x64xf32>
    %75 = arith.addf %71, %74 : vector<16x64xf32>
    %cst_34 = arith.constant 5.000000e-01 : f32
    %76 = vector.broadcast %cst_34 : f32 to vector<16x64xf32>
    %77 = arith.mulf %76, %75 : vector<16x64xf32>
    %cst_35 = arith.constant 4.471500e-02 : f32
    %78 = vector.broadcast %cst_35 : f32 to vector<16x64xf32>
    %79 = arith.mulf %78, %75 : vector<16x64xf32>
    %80 = arith.mulf %79, %75 : vector<16x64xf32>
    %81 = arith.mulf %80, %75 : vector<16x64xf32>
    %82 = arith.addf %75, %81 : vector<16x64xf32>
    %cst_36 = arith.constant 0.797884583 : f32
    %83 = vector.broadcast %cst_36 : f32 to vector<16x64xf32>
    %84 = arith.mulf %83, %82 : vector<16x64xf32>
    %85 = math.tanh %84 : vector<16x64xf32>
    %cst_37 = arith.constant 1.000000e+00 : f32
    %86 = vector.broadcast %cst_37 : f32 to vector<16x64xf32>
    %87 = arith.addf %86, %85 : vector<16x64xf32>
    %88 = arith.mulf %77, %87 : vector<16x64xf32>
    %89 = arith.truncf %88 : vector<16x64xf32> to vector<16x64xbf16>
    %c32 = arith.constant 32 : index
    %c0_38 = arith.constant 0 : index
    %90 = vector.load %arg7[%c32, %c0_38] : memref<2752x64xbf16, #tpu.memory_space<vmem>>, vector<64x64xbf16>
    %cst_39 = arith.constant dense<0.000000e+00> : vector<16x64xf32>
    %91 = tpu.matmul %89, %90, %cst_39 {dimension_numbers = #tpu.dot_dimension_numbers<[1], [0], [0], [1], [0, 0, 1, 1], [], []>} : vector<16x64xbf16>, vector<64x64xbf16>, vector<16x64xf32> -> vector<16x64xf32>
    %c2705 = arith.constant 2705 : index
    %c0_40 = arith.constant 0 : index
    %92 = vector.load %arg7[%c2705, %c0_40] : memref<2752x64xbf16, #tpu.memory_space<vmem>>, vector<1x64xbf16>
    %93 = arith.extf %92 : vector<1x64xbf16> to vector<1x64xf32>
    %94 = vector.broadcast %93 : vector<1x64xf32> to vector<16x64xf32>
    %95 = arith.addf %91, %94 : vector<16x64xf32>
    %c2640 = arith.constant 2640 : index
    %c0_41 = arith.constant 0 : index
    %96 = vector.load %arg7[%c2640, %c0_41] : memref<2752x64xbf16, #tpu.memory_space<vmem>>, vector<16x64xbf16>
    %97 = arith.extf %96 : vector<16x64xbf16> to vector<16x64xf32>
    %98 = arith.addf %95, %97 : vector<16x64xf32>
    %99 = arith.truncf %98 : vector<16x64xf32> to vector<16x64xbf16>
    %c0_42 = arith.constant 0 : index
    %c0_43 = arith.constant 0 : index
    %100 = vector.load %arg4[%c0_42, %c0_43] : memref<16x48xbf16, #tpu.memory_space<vmem>>, vector<16x48xbf16>
    %c96 = arith.constant 96 : index
    %c0_44 = arith.constant 0 : index
    %101 = vector.load %arg7[%c96, %c0_44] : memref<2752x64xbf16, #tpu.memory_space<vmem>>, vector<48x64xbf16>
    %cst_45 = arith.constant dense<0.000000e+00> : vector<16x64xf32>
    %102 = tpu.matmul %100, %101, %cst_45 {dimension_numbers = #tpu.dot_dimension_numbers<[1], [0], [0], [1], [0, 0, 1, 1], [], []>} : vector<16x48xbf16>, vector<48x64xbf16>, vector<16x64xf32> -> vector<16x64xf32>
    %c2706 = arith.constant 2706 : index
    %c0_46 = arith.constant 0 : index
    %103 = vector.load %arg7[%c2706, %c0_46] : memref<2752x64xbf16, #tpu.memory_space<vmem>>, vector<1x64xbf16>
    %104 = arith.extf %103 : vector<1x64xbf16> to vector<1x64xf32>
    %105 = vector.broadcast %104 : vector<1x64xf32> to vector<16x64xf32>
    %106 = arith.addf %102, %105 : vector<16x64xf32>
    %cst_47 = arith.constant 5.000000e-01 : f32
    %107 = vector.broadcast %cst_47 : f32 to vector<16x64xf32>
    %108 = arith.mulf %107, %106 : vector<16x64xf32>
    %cst_48 = arith.constant 4.471500e-02 : f32
    %109 = vector.broadcast %cst_48 : f32 to vector<16x64xf32>
    %110 = arith.mulf %109, %106 : vector<16x64xf32>
    %111 = arith.mulf %110, %106 : vector<16x64xf32>
    %112 = arith.mulf %111, %106 : vector<16x64xf32>
    %113 = arith.addf %106, %112 : vector<16x64xf32>
    %cst_49 = arith.constant 0.797884583 : f32
    %114 = vector.broadcast %cst_49 : f32 to vector<16x64xf32>
    %115 = arith.mulf %114, %113 : vector<16x64xf32>
    %116 = math.tanh %115 : vector<16x64xf32>
    %cst_50 = arith.constant 1.000000e+00 : f32
    %117 = vector.broadcast %cst_50 : f32 to vector<16x64xf32>
    %118 = arith.addf %117, %116 : vector<16x64xf32>
    %119 = arith.mulf %108, %118 : vector<16x64xf32>
    %120 = arith.truncf %119 : vector<16x64xf32> to vector<16x64xbf16>
    %c144 = arith.constant 144 : index
    %c0_51 = arith.constant 0 : index
    %121 = vector.load %arg7[%c144, %c0_51] : memref<2752x64xbf16, #tpu.memory_space<vmem>>, vector<64x64xbf16>
    %cst_52 = arith.constant dense<0.000000e+00> : vector<16x64xf32>
    %122 = tpu.matmul %120, %121, %cst_52 {dimension_numbers = #tpu.dot_dimension_numbers<[1], [0], [0], [1], [0, 0, 1, 1], [], []>} : vector<16x64xbf16>, vector<64x64xbf16>, vector<16x64xf32> -> vector<16x64xf32>
    %c2707 = arith.constant 2707 : index
    %c0_53 = arith.constant 0 : index
    %123 = vector.load %arg7[%c2707, %c0_53] : memref<2752x64xbf16, #tpu.memory_space<vmem>>, vector<1x64xbf16>
    %124 = arith.extf %123 : vector<1x64xbf16> to vector<1x64xf32>
    %125 = vector.broadcast %124 : vector<1x64xf32> to vector<16x64xf32>
    %126 = arith.addf %122, %125 : vector<16x64xf32>
    %c2656 = arith.constant 2656 : index
    %c0_54 = arith.constant 0 : index
    %127 = vector.load %arg7[%c2656, %c0_54] : memref<2752x64xbf16, #tpu.memory_space<vmem>>, vector<16x64xbf16>
    %128 = arith.extf %127 : vector<16x64xbf16> to vector<16x64xf32>
    %129 = arith.addf %126, %128 : vector<16x64xf32>
    %130 = arith.truncf %129 : vector<16x64xf32> to vector<16x64xbf16>
    %c0_55 = arith.constant 0 : index
    %c0_56 = arith.constant 0 : index
    %131 = vector.load %arg5[%c0_55, %c0_56] : memref<4x256xbf16, #tpu.memory_space<vmem>>, vector<2x256xbf16>
    %c368 = arith.constant 368 : index
    %c0_57 = arith.constant 0 : index
    %132 = vector.load %arg7[%c368, %c0_57] : memref<2752x64xbf16, #tpu.memory_space<vmem>>, vector<256x64xbf16>
    %cst_58 = arith.constant dense<0.000000e+00> : vector<2x64xf32>
    %133 = tpu.matmul %131, %132, %cst_58 {dimension_numbers = #tpu.dot_dimension_numbers<[1], [0], [0], [1], [0, 0, 1, 1], [], []>} : vector<2x256xbf16>, vector<256x64xbf16>, vector<2x64xf32> -> vector<2x64xf32>
    %c2711 = arith.constant 2711 : index
    %c0_59 = arith.constant 0 : index
    %134 = vector.load %arg7[%c2711, %c0_59] : memref<2752x64xbf16, #tpu.memory_space<vmem>>, vector<1x64xbf16>
    %135 = arith.extf %134 : vector<1x64xbf16> to vector<1x64xf32>
    %136 = vector.broadcast %135 : vector<1x64xf32> to vector<2x64xf32>
    %137 = arith.addf %133, %136 : vector<2x64xf32>
    %cst_60 = arith.constant 0.000000e+00 : f32
    %138 = vector.broadcast %cst_60 : f32 to vector<2x64xf32>
    %139 = arith.subf %138, %137 : vector<2x64xf32>
    %140 = math.exp %139 : vector<2x64xf32>
    %cst_61 = arith.constant 1.000000e+00 : f32
    %141 = vector.broadcast %cst_61 : f32 to vector<2x64xf32>
    %142 = arith.addf %141, %140 : vector<2x64xf32>
    %cst_62 = arith.constant 1.000000e+00 : f32
    %143 = vector.broadcast %cst_62 : f32 to vector<2x64xf32>
    %144 = arith.divf %143, %142 : vector<2x64xf32>
    %145 = arith.mulf %137, %144 : vector<2x64xf32>
    %146 = arith.truncf %145 : vector<2x64xf32> to vector<2x64xbf16>
    %c624 = arith.constant 624 : index
    %c0_63 = arith.constant 0 : index
    %147 = vector.load %arg7[%c624, %c0_63] : memref<2752x64xbf16, #tpu.memory_space<vmem>>, vector<64x64xbf16>
    %cst_64 = arith.constant dense<0.000000e+00> : vector<2x64xf32>
    %148 = tpu.matmul %146, %147, %cst_64 {dimension_numbers = #tpu.dot_dimension_numbers<[1], [0], [0], [1], [0, 0, 1, 1], [], []>} : vector<2x64xbf16>, vector<64x64xbf16>, vector<2x64xf32> -> vector<2x64xf32>
    %c2712 = arith.constant 2712 : index
    %c0_65 = arith.constant 0 : index
    %149 = vector.load %arg7[%c2712, %c0_65] : memref<2752x64xbf16, #tpu.memory_space<vmem>>, vector<1x64xbf16>
    %150 = arith.extf %149 : vector<1x64xbf16> to vector<1x64xf32>
    %151 = vector.broadcast %150 : vector<1x64xf32> to vector<2x64xf32>
    %152 = arith.addf %148, %151 : vector<2x64xf32>
    %c2_66 = arith.constant 2 : index
    %c0_67 = arith.constant 0 : index
    %153 = vector.load %arg5[%c2_66, %c0_67] : memref<4x256xbf16, #tpu.memory_space<vmem>>, vector<2x256xbf16>
    %c688 = arith.constant 688 : index
    %c0_68 = arith.constant 0 : index
    %154 = vector.load %arg7[%c688, %c0_68] : memref<2752x64xbf16, #tpu.memory_space<vmem>>, vector<256x64xbf16>
    %cst_69 = arith.constant dense<0.000000e+00> : vector<2x64xf32>
    %155 = tpu.matmul %153, %154, %cst_69 {dimension_numbers = #tpu.dot_dimension_numbers<[1], [0], [0], [1], [0, 0, 1, 1], [], []>} : vector<2x256xbf16>, vector<256x64xbf16>, vector<2x64xf32> -> vector<2x64xf32>
    %c2713 = arith.constant 2713 : index
    %c0_70 = arith.constant 0 : index
    %156 = vector.load %arg7[%c2713, %c0_70] : memref<2752x64xbf16, #tpu.memory_space<vmem>>, vector<1x64xbf16>
    %157 = arith.extf %156 : vector<1x64xbf16> to vector<1x64xf32>
    %158 = vector.broadcast %157 : vector<1x64xf32> to vector<2x64xf32>
    %159 = arith.addf %155, %158 : vector<2x64xf32>
    %cst_71 = arith.constant 0.000000e+00 : f32
    %160 = vector.broadcast %cst_71 : f32 to vector<2x64xf32>
    %161 = arith.subf %160, %159 : vector<2x64xf32>
    %162 = math.exp %161 : vector<2x64xf32>
    %cst_72 = arith.constant 1.000000e+00 : f32
    %163 = vector.broadcast %cst_72 : f32 to vector<2x64xf32>
    %164 = arith.addf %163, %162 : vector<2x64xf32>
    %cst_73 = arith.constant 1.000000e+00 : f32
    %165 = vector.broadcast %cst_73 : f32 to vector<2x64xf32>
    %166 = arith.divf %165, %164 : vector<2x64xf32>
    %167 = arith.mulf %159, %166 : vector<2x64xf32>
    %168 = arith.truncf %167 : vector<2x64xf32> to vector<2x64xbf16>
    %c944 = arith.constant 944 : index
    %c0_74 = arith.constant 0 : index
    %169 = vector.load %arg7[%c944, %c0_74] : memref<2752x64xbf16, #tpu.memory_space<vmem>>, vector<64x64xbf16>
    %cst_75 = arith.constant dense<0.000000e+00> : vector<2x64xf32>
    %170 = tpu.matmul %168, %169, %cst_75 {dimension_numbers = #tpu.dot_dimension_numbers<[1], [0], [0], [1], [0, 0, 1, 1], [], []>} : vector<2x64xbf16>, vector<64x64xbf16>, vector<2x64xf32> -> vector<2x64xf32>
    %c2714 = arith.constant 2714 : index
    %c0_76 = arith.constant 0 : index
    %171 = vector.load %arg7[%c2714, %c0_76] : memref<2752x64xbf16, #tpu.memory_space<vmem>>, vector<1x64xbf16>
    %172 = arith.extf %171 : vector<1x64xbf16> to vector<1x64xf32>
    %173 = vector.broadcast %172 : vector<1x64xf32> to vector<2x64xf32>
    %174 = arith.addf %170, %173 : vector<2x64xf32>
    %c2672 = arith.constant 2672 : index
    %c0_77 = arith.constant 0 : index
    %175 = vector.load %arg7[%c2672, %c0_77] : memref<2752x64xbf16, #tpu.memory_space<vmem>>, vector<22x64xbf16>
    %176 = vector.extract_strided_slice %175 {offsets = [0, 0], sizes = [22, 1], strides = [1, 1]} : vector<22x64xbf16> to vector<22x1xbf16>
    %177 = arith.extf %176 : vector<22x1xbf16> to vector<22x1xf32>
    %178 = vector.extract_strided_slice %175 {offsets = [0, 1], sizes = [22, 1], strides = [1, 1]} : vector<22x64xbf16> to vector<22x1xbf16>
    %179 = arith.extf %178 : vector<22x1xbf16> to vector<22x1xf32>
    %180 = vector.extract_strided_slice %175 {offsets = [0, 4], sizes = [22, 2], strides = [1, 1]} : vector<22x64xbf16> to vector<22x2xbf16>
    %181 = vector.extract_strided_slice %175 {offsets = [0, 6], sizes = [22, 2], strides = [1, 1]} : vector<22x64xbf16> to vector<22x2xbf16>
    %182 = arith.truncf %152 : vector<2x64xf32> to vector<2x64xbf16>
    %cst_78 = arith.constant dense<0.000000e+00> : vector<22x64xf32>
    %183 = tpu.matmul %180, %182, %cst_78 {dimension_numbers = #tpu.dot_dimension_numbers<[1], [0], [0], [1], [0, 0, 1, 1], [], []>} : vector<22x2xbf16>, vector<2x64xbf16>, vector<22x64xf32> -> vector<22x64xf32>
    %184 = arith.truncf %174 : vector<2x64xf32> to vector<2x64xbf16>
    %cst_79 = arith.constant dense<0.000000e+00> : vector<22x64xf32>
    %185 = tpu.matmul %181, %184, %cst_79 {dimension_numbers = #tpu.dot_dimension_numbers<[1], [0], [0], [1], [0, 0, 1, 1], [], []>} : vector<22x2xbf16>, vector<2x64xbf16>, vector<22x64xf32> -> vector<22x64xf32>
    %186 = arith.addf %183, %185 : vector<22x64xf32>
    %187 = vector.broadcast %177 : vector<22x1xf32> to vector<22x64xf32>
    %188 = arith.mulf %68, %187 : vector<22x64xf32>
    %189 = arith.addf %188, %186 : vector<22x64xf32>
    %c2608 = arith.constant 2608 : index
    %c0_80 = arith.constant 0 : index
    %190 = vector.load %arg7[%c2608, %c0_80] : memref<2752x64xbf16, #tpu.memory_space<vmem>>, vector<22x64xbf16>
    %191 = arith.extf %190 : vector<22x64xbf16> to vector<22x64xf32>
    %192 = arith.addf %189, %191 : vector<22x64xf32>
    %c0_81 = arith.constant 0 : index
    %c0_82 = arith.constant 0 : index
    %193 = vector.load %arg6[%c0_81, %c0_82] : memref<22x54xf32, #tpu.memory_space<vmem>>, vector<22x54xf32>
    %194 = vector.extract_strided_slice %193 {offsets = [0, 0], sizes = [22, 22], strides = [1, 1]} : vector<22x54xf32> to vector<22x22xf32>
    %195 = vector.extract_strided_slice %193 {offsets = [0, 22], sizes = [22, 16], strides = [1, 1]} : vector<22x54xf32> to vector<22x16xf32>
    %196 = vector.extract_strided_slice %193 {offsets = [0, 38], sizes = [22, 16], strides = [1, 1]} : vector<22x54xf32> to vector<22x16xf32>
    %cst_83 = arith.constant dense<0.000000e+00> : vector<22xf32>
    %197 = vector.multi_reduction <add>, %192, %cst_83 [1] : vector<22x64xf32> to vector<22xf32>
    %198 = vector.shape_cast %197 : vector<22xf32> to vector<22x1xf32>
    %cst_84 = arith.constant 6.400000e+01 : f32
    %199 = vector.broadcast %cst_84 : f32 to vector<22x1xf32>
    %200 = arith.divf %198, %199 : vector<22x1xf32>
    %201 = vector.broadcast %200 : vector<22x1xf32> to vector<22x64xf32>
    %202 = arith.subf %192, %201 : vector<22x64xf32>
    %203 = arith.mulf %202, %202 : vector<22x64xf32>
    %cst_85 = arith.constant dense<0.000000e+00> : vector<22xf32>
    %204 = vector.multi_reduction <add>, %203, %cst_85 [1] : vector<22x64xf32> to vector<22xf32>
    %205 = vector.shape_cast %204 : vector<22xf32> to vector<22x1xf32>
    %cst_86 = arith.constant 6.400000e+01 : f32
    %206 = vector.broadcast %cst_86 : f32 to vector<22x1xf32>
    %207 = arith.divf %205, %206 : vector<22x1xf32>
    %208 = vector.broadcast %200 : vector<22x1xf32> to vector<22x64xf32>
    %209 = arith.subf %192, %208 : vector<22x64xf32>
    %cst_87 = arith.constant 9.99999974E-6 : f32
    %210 = vector.broadcast %cst_87 : f32 to vector<22x1xf32>
    %211 = arith.addf %207, %210 : vector<22x1xf32>
    %212 = math.rsqrt %211 : vector<22x1xf32>
    %213 = vector.broadcast %212 : vector<22x1xf32> to vector<22x64xf32>
    %214 = arith.mulf %209, %213 : vector<22x64xf32>
    %c2715 = arith.constant 2715 : index
    %c0_88 = arith.constant 0 : index
    %215 = vector.load %arg7[%c2715, %c0_88] : memref<2752x64xbf16, #tpu.memory_space<vmem>>, vector<1x64xbf16>
    %216 = arith.extf %215 : vector<1x64xbf16> to vector<1x64xf32>
    %217 = vector.broadcast %216 : vector<1x64xf32> to vector<22x64xf32>
    %218 = arith.mulf %214, %217 : vector<22x64xf32>
    %c2716 = arith.constant 2716 : index
    %c0_89 = arith.constant 0 : index
    %219 = vector.load %arg7[%c2716, %c0_89] : memref<2752x64xbf16, #tpu.memory_space<vmem>>, vector<1x64xbf16>
    %220 = arith.extf %219 : vector<1x64xbf16> to vector<1x64xf32>
    %221 = vector.broadcast %220 : vector<1x64xf32> to vector<22x64xf32>
    %222 = arith.addf %218, %221 : vector<22x64xf32>
    %223 = arith.truncf %222 : vector<22x64xf32> to vector<22x64xbf16>
    %c1008 = arith.constant 1008 : index
    %c0_90 = arith.constant 0 : index
    %224 = vector.load %arg7[%c1008, %c0_90] : memref<2752x64xbf16, #tpu.memory_space<vmem>>, vector<64x64xbf16>
    %cst_91 = arith.constant dense<0.000000e+00> : vector<22x64xf32>
    %225 = tpu.matmul %223, %224, %cst_91 {dimension_numbers = #tpu.dot_dimension_numbers<[1], [0], [0], [1], [0, 0, 1, 1], [], []>} : vector<22x64xbf16>, vector<64x64xbf16>, vector<22x64xf32> -> vector<22x64xf32>
    %c2717 = arith.constant 2717 : index
    %c0_92 = arith.constant 0 : index
    %226 = vector.load %arg7[%c2717, %c0_92] : memref<2752x64xbf16, #tpu.memory_space<vmem>>, vector<1x64xbf16>
    %227 = arith.extf %226 : vector<1x64xbf16> to vector<1x64xf32>
    %228 = vector.broadcast %227 : vector<1x64xf32> to vector<22x64xf32>
    %229 = arith.addf %225, %228 : vector<22x64xf32>
    %cst_93 = arith.constant 2.500000e-01 : f32
    %230 = vector.broadcast %cst_93 : f32 to vector<22x64xf32>
    %231 = arith.mulf %229, %230 : vector<22x64xf32>
    %232 = arith.truncf %231 : vector<22x64xf32> to vector<22x64xbf16>
    %c1072 = arith.constant 1072 : index
    %c0_94 = arith.constant 0 : index
    %233 = vector.load %arg7[%c1072, %c0_94] : memref<2752x64xbf16, #tpu.memory_space<vmem>>, vector<64x64xbf16>
    %cst_95 = arith.constant dense<0.000000e+00> : vector<22x64xf32>
    %234 = tpu.matmul %223, %233, %cst_95 {dimension_numbers = #tpu.dot_dimension_numbers<[1], [0], [0], [1], [0, 0, 1, 1], [], []>} : vector<22x64xbf16>, vector<64x64xbf16>, vector<22x64xf32> -> vector<22x64xf32>
    %c2718 = arith.constant 2718 : index
    %c0_96 = arith.constant 0 : index
    %235 = vector.load %arg7[%c2718, %c0_96] : memref<2752x64xbf16, #tpu.memory_space<vmem>>, vector<1x64xbf16>
    %236 = arith.extf %235 : vector<1x64xbf16> to vector<1x64xf32>
    %237 = vector.broadcast %236 : vector<1x64xf32> to vector<22x64xf32>
    %238 = arith.addf %234, %237 : vector<22x64xf32>
    %239 = arith.truncf %238 : vector<22x64xf32> to vector<22x64xbf16>
    %c1136 = arith.constant 1136 : index
    %c0_97 = arith.constant 0 : index
    %240 = vector.load %arg7[%c1136, %c0_97] : memref<2752x64xbf16, #tpu.memory_space<vmem>>, vector<64x64xbf16>
    %cst_98 = arith.constant dense<0.000000e+00> : vector<22x64xf32>
    %241 = tpu.matmul %223, %240, %cst_98 {dimension_numbers = #tpu.dot_dimension_numbers<[1], [0], [0], [1], [0, 0, 1, 1], [], []>} : vector<22x64xbf16>, vector<64x64xbf16>, vector<22x64xf32> -> vector<22x64xf32>
    %c2719 = arith.constant 2719 : index
    %c0_99 = arith.constant 0 : index
    %242 = vector.load %arg7[%c2719, %c0_99] : memref<2752x64xbf16, #tpu.memory_space<vmem>>, vector<1x64xbf16>
    %243 = arith.extf %242 : vector<1x64xbf16> to vector<1x64xf32>
    %244 = vector.broadcast %243 : vector<1x64xf32> to vector<22x64xf32>
    %245 = arith.addf %241, %244 : vector<22x64xf32>
    %246 = arith.truncf %245 : vector<22x64xf32> to vector<22x64xbf16>
    %247 = vector.extract_strided_slice %232 {offsets = [0, 0], sizes = [22, 16], strides = [1, 1]} : vector<22x64xbf16> to vector<22x16xbf16>
    %248 = vector.extract_strided_slice %239 {offsets = [0, 0], sizes = [22, 16], strides = [1, 1]} : vector<22x64xbf16> to vector<22x16xbf16>
    %cst_100 = arith.constant dense<0.000000e+00> : vector<22x22xf32>
    %249 = tpu.matmul %247, %248, %cst_100 {dimension_numbers = #tpu.dot_dimension_numbers<[1], [1], [0], [0], [0, 0, 1, 0], [], []>} : vector<22x16xbf16>, vector<22x16xbf16>, vector<22x22xf32> -> vector<22x22xf32>
    %250 = vector.extract_strided_slice %232 {offsets = [0, 16], sizes = [22, 16], strides = [1, 1]} : vector<22x64xbf16> to vector<22x16xbf16>
    %251 = vector.extract_strided_slice %239 {offsets = [0, 16], sizes = [22, 16], strides = [1, 1]} : vector<22x64xbf16> to vector<22x16xbf16>
    %cst_101 = arith.constant dense<0.000000e+00> : vector<22x22xf32>
    %252 = tpu.matmul %250, %251, %cst_101 {dimension_numbers = #tpu.dot_dimension_numbers<[1], [1], [0], [0], [0, 0, 1, 0], [], []>} : vector<22x16xbf16>, vector<22x16xbf16>, vector<22x22xf32> -> vector<22x22xf32>
    %253 = vector.extract_strided_slice %232 {offsets = [0, 32], sizes = [22, 16], strides = [1, 1]} : vector<22x64xbf16> to vector<22x16xbf16>
    %254 = vector.extract_strided_slice %239 {offsets = [0, 32], sizes = [22, 16], strides = [1, 1]} : vector<22x64xbf16> to vector<22x16xbf16>
    %cst_102 = arith.constant dense<0.000000e+00> : vector<22x22xf32>
    %255 = tpu.matmul %253, %254, %cst_102 {dimension_numbers = #tpu.dot_dimension_numbers<[1], [1], [0], [0], [0, 0, 1, 0], [], []>} : vector<22x16xbf16>, vector<22x16xbf16>, vector<22x22xf32> -> vector<22x22xf32>
    %256 = vector.extract_strided_slice %232 {offsets = [0, 48], sizes = [22, 16], strides = [1, 1]} : vector<22x64xbf16> to vector<22x16xbf16>
    %257 = vector.extract_strided_slice %239 {offsets = [0, 48], sizes = [22, 16], strides = [1, 1]} : vector<22x64xbf16> to vector<22x16xbf16>
    %cst_103 = arith.constant dense<0.000000e+00> : vector<22x22xf32>
    %258 = tpu.matmul %256, %257, %cst_103 {dimension_numbers = #tpu.dot_dimension_numbers<[1], [1], [0], [0], [0, 0, 1, 0], [], []>} : vector<22x16xbf16>, vector<22x16xbf16>, vector<22x22xf32> -> vector<22x22xf32>
    %259 = vector.shape_cast %249 : vector<22x22xf32> to vector<1x22x22xf32>
    %260 = vector.shape_cast %252 : vector<22x22xf32> to vector<1x22x22xf32>
    %261 = vector.shape_cast %255 : vector<22x22xf32> to vector<1x22x22xf32>
    %262 = vector.shape_cast %258 : vector<22x22xf32> to vector<1x22x22xf32>
    %263 = tpu.concatenate %259, %260, %261, %262 in 0 : vector<1x22x22xf32>, vector<1x22x22xf32>, vector<1x22x22xf32>, vector<1x22x22xf32> -> vector<4x22x22xf32>
    %264 = vector.shape_cast %194 : vector<22x22xf32> to vector<1x22x22xf32>
    %265 = vector.broadcast %264 : vector<1x22x22xf32> to vector<4x22x22xf32>
    %266 = arith.addf %263, %265 : vector<4x22x22xf32>
    %cst_104 = arith.constant dense<0xFF800000> : vector<4x22xf32>
    %267 = vector.multi_reduction <maximumf>, %266, %cst_104 [2] : vector<4x22x22xf32> to vector<4x22xf32>
    %268 = vector.shape_cast %267 : vector<4x22xf32> to vector<4x22x1xf32>
    %269 = vector.broadcast %268 : vector<4x22x1xf32> to vector<4x22x22xf32>
    %270 = arith.subf %266, %269 : vector<4x22x22xf32>
    %271 = math.exp %270 : vector<4x22x22xf32>
    %cst_105 = arith.constant dense<0.000000e+00> : vector<4x22xf32>
    %272 = vector.multi_reduction <add>, %271, %cst_105 [2] : vector<4x22x22xf32> to vector<4x22xf32>
    %273 = vector.shape_cast %272 : vector<4x22xf32> to vector<4x22x1xf32>
    %274 = tpu.reciprocal %273 {approx = true} : vector<4x22x1xf32> -> vector<4x22x1xf32>
    %275 = vector.broadcast %274 : vector<4x22x1xf32> to vector<4x22x22xf32>
    %276 = arith.mulf %271, %275 : vector<4x22x22xf32>
    %277 = arith.truncf %276 : vector<4x22x22xf32> to vector<4x22x22xbf16>
    %278 = vector.extract_strided_slice %277 {offsets = [0, 0, 0], sizes = [1, 22, 22], strides = [1, 1, 1]} : vector<4x22x22xbf16> to vector<1x22x22xbf16>
    %279 = vector.shape_cast %278 : vector<1x22x22xbf16> to vector<22x22xbf16>
    %280 = vector.extract_strided_slice %246 {offsets = [0, 0], sizes = [22, 16], strides = [1, 1]} : vector<22x64xbf16> to vector<22x16xbf16>
    %cst_106 = arith.constant dense<0.000000e+00> : vector<22x16xf32>
    %281 = tpu.matmul %279, %280, %cst_106 {dimension_numbers = #tpu.dot_dimension_numbers<[1], [0], [0], [1], [0, 0, 1, 1], [], []>} : vector<22x22xbf16>, vector<22x16xbf16>, vector<22x16xf32> -> vector<22x16xf32>
    %282 = vector.extract_strided_slice %277 {offsets = [1, 0, 0], sizes = [1, 22, 22], strides = [1, 1, 1]} : vector<4x22x22xbf16> to vector<1x22x22xbf16>
    %283 = vector.shape_cast %282 : vector<1x22x22xbf16> to vector<22x22xbf16>
    %284 = vector.extract_strided_slice %246 {offsets = [0, 16], sizes = [22, 16], strides = [1, 1]} : vector<22x64xbf16> to vector<22x16xbf16>
    %cst_107 = arith.constant dense<0.000000e+00> : vector<22x16xf32>
    %285 = tpu.matmul %283, %284, %cst_107 {dimension_numbers = #tpu.dot_dimension_numbers<[1], [0], [0], [1], [0, 0, 1, 1], [], []>} : vector<22x22xbf16>, vector<22x16xbf16>, vector<22x16xf32> -> vector<22x16xf32>
    %286 = vector.extract_strided_slice %277 {offsets = [2, 0, 0], sizes = [1, 22, 22], strides = [1, 1, 1]} : vector<4x22x22xbf16> to vector<1x22x22xbf16>
    %287 = vector.shape_cast %286 : vector<1x22x22xbf16> to vector<22x22xbf16>
    %288 = vector.extract_strided_slice %246 {offsets = [0, 32], sizes = [22, 16], strides = [1, 1]} : vector<22x64xbf16> to vector<22x16xbf16>
    %cst_108 = arith.constant dense<0.000000e+00> : vector<22x16xf32>
    %289 = tpu.matmul %287, %288, %cst_108 {dimension_numbers = #tpu.dot_dimension_numbers<[1], [0], [0], [1], [0, 0, 1, 1], [], []>} : vector<22x22xbf16>, vector<22x16xbf16>, vector<22x16xf32> -> vector<22x16xf32>
    %290 = vector.extract_strided_slice %277 {offsets = [3, 0, 0], sizes = [1, 22, 22], strides = [1, 1, 1]} : vector<4x22x22xbf16> to vector<1x22x22xbf16>
    %291 = vector.shape_cast %290 : vector<1x22x22xbf16> to vector<22x22xbf16>
    %292 = vector.extract_strided_slice %246 {offsets = [0, 48], sizes = [22, 16], strides = [1, 1]} : vector<22x64xbf16> to vector<22x16xbf16>
    %cst_109 = arith.constant dense<0.000000e+00> : vector<22x16xf32>
    %293 = tpu.matmul %291, %292, %cst_109 {dimension_numbers = #tpu.dot_dimension_numbers<[1], [0], [0], [1], [0, 0, 1, 1], [], []>} : vector<22x22xbf16>, vector<22x16xbf16>, vector<22x16xf32> -> vector<22x16xf32>
    %294 = tpu.concatenate %281, %285, %289, %293 in 1 : vector<22x16xf32>, vector<22x16xf32>, vector<22x16xf32>, vector<22x16xf32> -> vector<22x64xf32>
    %295 = arith.truncf %294 : vector<22x64xf32> to vector<22x64xbf16>
    %c1200 = arith.constant 1200 : index
    %c0_110 = arith.constant 0 : index
    %296 = vector.load %arg7[%c1200, %c0_110] : memref<2752x64xbf16, #tpu.memory_space<vmem>>, vector<64x64xbf16>
    %cst_111 = arith.constant dense<0.000000e+00> : vector<22x64xf32>
    %297 = tpu.matmul %295, %296, %cst_111 {dimension_numbers = #tpu.dot_dimension_numbers<[1], [0], [0], [1], [0, 0, 1, 1], [], []>} : vector<22x64xbf16>, vector<64x64xbf16>, vector<22x64xf32> -> vector<22x64xf32>
    %c2720 = arith.constant 2720 : index
    %c0_112 = arith.constant 0 : index
    %298 = vector.load %arg7[%c2720, %c0_112] : memref<2752x64xbf16, #tpu.memory_space<vmem>>, vector<1x64xbf16>
    %299 = arith.extf %298 : vector<1x64xbf16> to vector<1x64xf32>
    %300 = vector.broadcast %299 : vector<1x64xf32> to vector<22x64xf32>
    %301 = arith.addf %297, %300 : vector<22x64xf32>
    %302 = arith.addf %192, %301 : vector<22x64xf32>
    %cst_113 = arith.constant dense<0.000000e+00> : vector<22xf32>
    %303 = vector.multi_reduction <add>, %302, %cst_113 [1] : vector<22x64xf32> to vector<22xf32>
    %304 = vector.shape_cast %303 : vector<22xf32> to vector<22x1xf32>
    %cst_114 = arith.constant 6.400000e+01 : f32
    %305 = vector.broadcast %cst_114 : f32 to vector<22x1xf32>
    %306 = arith.divf %304, %305 : vector<22x1xf32>
    %307 = vector.broadcast %306 : vector<22x1xf32> to vector<22x64xf32>
    %308 = arith.subf %302, %307 : vector<22x64xf32>
    %309 = arith.mulf %308, %308 : vector<22x64xf32>
    %cst_115 = arith.constant dense<0.000000e+00> : vector<22xf32>
    %310 = vector.multi_reduction <add>, %309, %cst_115 [1] : vector<22x64xf32> to vector<22xf32>
    %311 = vector.shape_cast %310 : vector<22xf32> to vector<22x1xf32>
    %cst_116 = arith.constant 6.400000e+01 : f32
    %312 = vector.broadcast %cst_116 : f32 to vector<22x1xf32>
    %313 = arith.divf %311, %312 : vector<22x1xf32>
    %314 = vector.broadcast %306 : vector<22x1xf32> to vector<22x64xf32>
    %315 = arith.subf %302, %314 : vector<22x64xf32>
    %cst_117 = arith.constant 9.99999974E-6 : f32
    %316 = vector.broadcast %cst_117 : f32 to vector<22x1xf32>
    %317 = arith.addf %313, %316 : vector<22x1xf32>
    %318 = math.rsqrt %317 : vector<22x1xf32>
    %319 = vector.broadcast %318 : vector<22x1xf32> to vector<22x64xf32>
    %320 = arith.mulf %315, %319 : vector<22x64xf32>
    %c2721 = arith.constant 2721 : index
    %c0_118 = arith.constant 0 : index
    %321 = vector.load %arg7[%c2721, %c0_118] : memref<2752x64xbf16, #tpu.memory_space<vmem>>, vector<1x64xbf16>
    %322 = arith.extf %321 : vector<1x64xbf16> to vector<1x64xf32>
    %323 = vector.broadcast %322 : vector<1x64xf32> to vector<22x64xf32>
    %324 = arith.mulf %320, %323 : vector<22x64xf32>
    %c2722 = arith.constant 2722 : index
    %c0_119 = arith.constant 0 : index
    %325 = vector.load %arg7[%c2722, %c0_119] : memref<2752x64xbf16, #tpu.memory_space<vmem>>, vector<1x64xbf16>
    %326 = arith.extf %325 : vector<1x64xbf16> to vector<1x64xf32>
    %327 = vector.broadcast %326 : vector<1x64xf32> to vector<22x64xf32>
    %328 = arith.addf %324, %327 : vector<22x64xf32>
    %329 = arith.truncf %328 : vector<22x64xf32> to vector<22x64xbf16>
    %c1264 = arith.constant 1264 : index
    %c0_120 = arith.constant 0 : index
    %330 = vector.load %arg7[%c1264, %c0_120] : memref<2752x64xbf16, #tpu.memory_space<vmem>>, vector<64x64xbf16>
    %cst_121 = arith.constant dense<0.000000e+00> : vector<22x64xf32>
    %331 = tpu.matmul %329, %330, %cst_121 {dimension_numbers = #tpu.dot_dimension_numbers<[1], [0], [0], [1], [0, 0, 1, 1], [], []>} : vector<22x64xbf16>, vector<64x64xbf16>, vector<22x64xf32> -> vector<22x64xf32>
    %c2723 = arith.constant 2723 : index
    %c0_122 = arith.constant 0 : index
    %332 = vector.load %arg7[%c2723, %c0_122] : memref<2752x64xbf16, #tpu.memory_space<vmem>>, vector<1x64xbf16>
    %333 = arith.extf %332 : vector<1x64xbf16> to vector<1x64xf32>
    %334 = vector.broadcast %333 : vector<1x64xf32> to vector<22x64xf32>
    %335 = arith.addf %331, %334 : vector<22x64xf32>
    %cst_123 = arith.constant 2.500000e-01 : f32
    %336 = vector.broadcast %cst_123 : f32 to vector<22x64xf32>
    %337 = arith.mulf %335, %336 : vector<22x64xf32>
    %338 = arith.truncf %337 : vector<22x64xf32> to vector<22x64xbf16>
    %c1328 = arith.constant 1328 : index
    %c0_124 = arith.constant 0 : index
    %339 = vector.load %arg7[%c1328, %c0_124] : memref<2752x64xbf16, #tpu.memory_space<vmem>>, vector<64x64xbf16>
    %cst_125 = arith.constant dense<0.000000e+00> : vector<16x64xf32>
    %340 = tpu.matmul %99, %339, %cst_125 {dimension_numbers = #tpu.dot_dimension_numbers<[1], [0], [0], [1], [0, 0, 1, 1], [], []>} : vector<16x64xbf16>, vector<64x64xbf16>, vector<16x64xf32> -> vector<16x64xf32>
    %c2724 = arith.constant 2724 : index
    %c0_126 = arith.constant 0 : index
    %341 = vector.load %arg7[%c2724, %c0_126] : memref<2752x64xbf16, #tpu.memory_space<vmem>>, vector<1x64xbf16>
    %342 = arith.extf %341 : vector<1x64xbf16> to vector<1x64xf32>
    %343 = vector.broadcast %342 : vector<1x64xf32> to vector<16x64xf32>
    %344 = arith.addf %340, %343 : vector<16x64xf32>
    %345 = arith.truncf %344 : vector<16x64xf32> to vector<16x64xbf16>
    %c1392 = arith.constant 1392 : index
    %c0_127 = arith.constant 0 : index
    %346 = vector.load %arg7[%c1392, %c0_127] : memref<2752x64xbf16, #tpu.memory_space<vmem>>, vector<64x64xbf16>
    %cst_128 = arith.constant dense<0.000000e+00> : vector<16x64xf32>
    %347 = tpu.matmul %99, %346, %cst_128 {dimension_numbers = #tpu.dot_dimension_numbers<[1], [0], [0], [1], [0, 0, 1, 1], [], []>} : vector<16x64xbf16>, vector<64x64xbf16>, vector<16x64xf32> -> vector<16x64xf32>
    %c2725 = arith.constant 2725 : index
    %c0_129 = arith.constant 0 : index
    %348 = vector.load %arg7[%c2725, %c0_129] : memref<2752x64xbf16, #tpu.memory_space<vmem>>, vector<1x64xbf16>
    %349 = arith.extf %348 : vector<1x64xbf16> to vector<1x64xf32>
    %350 = vector.broadcast %349 : vector<1x64xf32> to vector<16x64xf32>
    %351 = arith.addf %347, %350 : vector<16x64xf32>
    %352 = arith.truncf %351 : vector<16x64xf32> to vector<16x64xbf16>
    %353 = vector.extract_strided_slice %338 {offsets = [0, 0], sizes = [22, 16], strides = [1, 1]} : vector<22x64xbf16> to vector<22x16xbf16>
    %354 = vector.extract_strided_slice %345 {offsets = [0, 0], sizes = [16, 16], strides = [1, 1]} : vector<16x64xbf16> to vector<16x16xbf16>
    %cst_130 = arith.constant dense<0.000000e+00> : vector<22x16xf32>
    %355 = tpu.matmul %353, %354, %cst_130 {dimension_numbers = #tpu.dot_dimension_numbers<[1], [1], [0], [0], [0, 0, 1, 0], [], []>} : vector<22x16xbf16>, vector<16x16xbf16>, vector<22x16xf32> -> vector<22x16xf32>
    %356 = vector.extract_strided_slice %338 {offsets = [0, 16], sizes = [22, 16], strides = [1, 1]} : vector<22x64xbf16> to vector<22x16xbf16>
    %357 = vector.extract_strided_slice %345 {offsets = [0, 16], sizes = [16, 16], strides = [1, 1]} : vector<16x64xbf16> to vector<16x16xbf16>
    %cst_131 = arith.constant dense<0.000000e+00> : vector<22x16xf32>
    %358 = tpu.matmul %356, %357, %cst_131 {dimension_numbers = #tpu.dot_dimension_numbers<[1], [1], [0], [0], [0, 0, 1, 0], [], []>} : vector<22x16xbf16>, vector<16x16xbf16>, vector<22x16xf32> -> vector<22x16xf32>
    %359 = vector.extract_strided_slice %338 {offsets = [0, 32], sizes = [22, 16], strides = [1, 1]} : vector<22x64xbf16> to vector<22x16xbf16>
    %360 = vector.extract_strided_slice %345 {offsets = [0, 32], sizes = [16, 16], strides = [1, 1]} : vector<16x64xbf16> to vector<16x16xbf16>
    %cst_132 = arith.constant dense<0.000000e+00> : vector<22x16xf32>
    %361 = tpu.matmul %359, %360, %cst_132 {dimension_numbers = #tpu.dot_dimension_numbers<[1], [1], [0], [0], [0, 0, 1, 0], [], []>} : vector<22x16xbf16>, vector<16x16xbf16>, vector<22x16xf32> -> vector<22x16xf32>
    %362 = vector.extract_strided_slice %338 {offsets = [0, 48], sizes = [22, 16], strides = [1, 1]} : vector<22x64xbf16> to vector<22x16xbf16>
    %363 = vector.extract_strided_slice %345 {offsets = [0, 48], sizes = [16, 16], strides = [1, 1]} : vector<16x64xbf16> to vector<16x16xbf16>
    %cst_133 = arith.constant dense<0.000000e+00> : vector<22x16xf32>
    %364 = tpu.matmul %362, %363, %cst_133 {dimension_numbers = #tpu.dot_dimension_numbers<[1], [1], [0], [0], [0, 0, 1, 0], [], []>} : vector<22x16xbf16>, vector<16x16xbf16>, vector<22x16xf32> -> vector<22x16xf32>
    %365 = vector.shape_cast %355 : vector<22x16xf32> to vector<1x22x16xf32>
    %366 = vector.shape_cast %358 : vector<22x16xf32> to vector<1x22x16xf32>
    %367 = vector.shape_cast %361 : vector<22x16xf32> to vector<1x22x16xf32>
    %368 = vector.shape_cast %364 : vector<22x16xf32> to vector<1x22x16xf32>
    %369 = tpu.concatenate %365, %366, %367, %368 in 0 : vector<1x22x16xf32>, vector<1x22x16xf32>, vector<1x22x16xf32>, vector<1x22x16xf32> -> vector<4x22x16xf32>
    %370 = vector.shape_cast %195 : vector<22x16xf32> to vector<1x22x16xf32>
    %371 = vector.broadcast %370 : vector<1x22x16xf32> to vector<4x22x16xf32>
    %372 = arith.addf %369, %371 : vector<4x22x16xf32>
    %cst_134 = arith.constant dense<0xFF800000> : vector<4x22xf32>
    %373 = vector.multi_reduction <maximumf>, %372, %cst_134 [2] : vector<4x22x16xf32> to vector<4x22xf32>
    %374 = vector.shape_cast %373 : vector<4x22xf32> to vector<4x22x1xf32>
    %375 = vector.broadcast %374 : vector<4x22x1xf32> to vector<4x22x16xf32>
    %376 = arith.subf %372, %375 : vector<4x22x16xf32>
    %377 = math.exp %376 : vector<4x22x16xf32>
    %cst_135 = arith.constant dense<0.000000e+00> : vector<4x22xf32>
    %378 = vector.multi_reduction <add>, %377, %cst_135 [2] : vector<4x22x16xf32> to vector<4x22xf32>
    %379 = vector.shape_cast %378 : vector<4x22xf32> to vector<4x22x1xf32>
    %380 = tpu.reciprocal %379 {approx = true} : vector<4x22x1xf32> -> vector<4x22x1xf32>
    %381 = vector.broadcast %380 : vector<4x22x1xf32> to vector<4x22x16xf32>
    %382 = arith.mulf %377, %381 : vector<4x22x16xf32>
    %383 = arith.truncf %382 : vector<4x22x16xf32> to vector<4x22x16xbf16>
    %384 = vector.extract_strided_slice %383 {offsets = [0, 0, 0], sizes = [1, 22, 16], strides = [1, 1, 1]} : vector<4x22x16xbf16> to vector<1x22x16xbf16>
    %385 = vector.shape_cast %384 : vector<1x22x16xbf16> to vector<22x16xbf16>
    %386 = vector.extract_strided_slice %352 {offsets = [0, 0], sizes = [16, 16], strides = [1, 1]} : vector<16x64xbf16> to vector<16x16xbf16>
    %cst_136 = arith.constant dense<0.000000e+00> : vector<22x16xf32>
    %387 = tpu.matmul %385, %386, %cst_136 {dimension_numbers = #tpu.dot_dimension_numbers<[1], [0], [0], [1], [0, 0, 1, 1], [], []>} : vector<22x16xbf16>, vector<16x16xbf16>, vector<22x16xf32> -> vector<22x16xf32>
    %388 = vector.extract_strided_slice %383 {offsets = [1, 0, 0], sizes = [1, 22, 16], strides = [1, 1, 1]} : vector<4x22x16xbf16> to vector<1x22x16xbf16>
    %389 = vector.shape_cast %388 : vector<1x22x16xbf16> to vector<22x16xbf16>
    %390 = vector.extract_strided_slice %352 {offsets = [0, 16], sizes = [16, 16], strides = [1, 1]} : vector<16x64xbf16> to vector<16x16xbf16>
    %cst_137 = arith.constant dense<0.000000e+00> : vector<22x16xf32>
    %391 = tpu.matmul %389, %390, %cst_137 {dimension_numbers = #tpu.dot_dimension_numbers<[1], [0], [0], [1], [0, 0, 1, 1], [], []>} : vector<22x16xbf16>, vector<16x16xbf16>, vector<22x16xf32> -> vector<22x16xf32>
    %392 = vector.extract_strided_slice %383 {offsets = [2, 0, 0], sizes = [1, 22, 16], strides = [1, 1, 1]} : vector<4x22x16xbf16> to vector<1x22x16xbf16>
    %393 = vector.shape_cast %392 : vector<1x22x16xbf16> to vector<22x16xbf16>
    %394 = vector.extract_strided_slice %352 {offsets = [0, 32], sizes = [16, 16], strides = [1, 1]} : vector<16x64xbf16> to vector<16x16xbf16>
    %cst_138 = arith.constant dense<0.000000e+00> : vector<22x16xf32>
    %395 = tpu.matmul %393, %394, %cst_138 {dimension_numbers = #tpu.dot_dimension_numbers<[1], [0], [0], [1], [0, 0, 1, 1], [], []>} : vector<22x16xbf16>, vector<16x16xbf16>, vector<22x16xf32> -> vector<22x16xf32>
    %396 = vector.extract_strided_slice %383 {offsets = [3, 0, 0], sizes = [1, 22, 16], strides = [1, 1, 1]} : vector<4x22x16xbf16> to vector<1x22x16xbf16>
    %397 = vector.shape_cast %396 : vector<1x22x16xbf16> to vector<22x16xbf16>
    %398 = vector.extract_strided_slice %352 {offsets = [0, 48], sizes = [16, 16], strides = [1, 1]} : vector<16x64xbf16> to vector<16x16xbf16>
    %cst_139 = arith.constant dense<0.000000e+00> : vector<22x16xf32>
    %399 = tpu.matmul %397, %398, %cst_139 {dimension_numbers = #tpu.dot_dimension_numbers<[1], [0], [0], [1], [0, 0, 1, 1], [], []>} : vector<22x16xbf16>, vector<16x16xbf16>, vector<22x16xf32> -> vector<22x16xf32>
    %400 = tpu.concatenate %387, %391, %395, %399 in 1 : vector<22x16xf32>, vector<22x16xf32>, vector<22x16xf32>, vector<22x16xf32> -> vector<22x64xf32>
    %401 = arith.truncf %400 : vector<22x64xf32> to vector<22x64xbf16>
    %c1456 = arith.constant 1456 : index
    %c0_140 = arith.constant 0 : index
    %402 = vector.load %arg7[%c1456, %c0_140] : memref<2752x64xbf16, #tpu.memory_space<vmem>>, vector<64x64xbf16>
    %cst_141 = arith.constant dense<0.000000e+00> : vector<22x64xf32>
    %403 = tpu.matmul %401, %402, %cst_141 {dimension_numbers = #tpu.dot_dimension_numbers<[1], [0], [0], [1], [0, 0, 1, 1], [], []>} : vector<22x64xbf16>, vector<64x64xbf16>, vector<22x64xf32> -> vector<22x64xf32>
    %c2726 = arith.constant 2726 : index
    %c0_142 = arith.constant 0 : index
    %404 = vector.load %arg7[%c2726, %c0_142] : memref<2752x64xbf16, #tpu.memory_space<vmem>>, vector<1x64xbf16>
    %405 = arith.extf %404 : vector<1x64xbf16> to vector<1x64xf32>
    %406 = vector.broadcast %405 : vector<1x64xf32> to vector<22x64xf32>
    %407 = arith.addf %403, %406 : vector<22x64xf32>
    %408 = arith.addf %302, %407 : vector<22x64xf32>
    %cst_143 = arith.constant dense<0.000000e+00> : vector<22xf32>
    %409 = vector.multi_reduction <add>, %408, %cst_143 [1] : vector<22x64xf32> to vector<22xf32>
    %410 = vector.shape_cast %409 : vector<22xf32> to vector<22x1xf32>
    %cst_144 = arith.constant 6.400000e+01 : f32
    %411 = vector.broadcast %cst_144 : f32 to vector<22x1xf32>
    %412 = arith.divf %410, %411 : vector<22x1xf32>
    %413 = vector.broadcast %412 : vector<22x1xf32> to vector<22x64xf32>
    %414 = arith.subf %408, %413 : vector<22x64xf32>
    %415 = arith.mulf %414, %414 : vector<22x64xf32>
    %cst_145 = arith.constant dense<0.000000e+00> : vector<22xf32>
    %416 = vector.multi_reduction <add>, %415, %cst_145 [1] : vector<22x64xf32> to vector<22xf32>
    %417 = vector.shape_cast %416 : vector<22xf32> to vector<22x1xf32>
    %cst_146 = arith.constant 6.400000e+01 : f32
    %418 = vector.broadcast %cst_146 : f32 to vector<22x1xf32>
    %419 = arith.divf %417, %418 : vector<22x1xf32>
    %420 = vector.broadcast %412 : vector<22x1xf32> to vector<22x64xf32>
    %421 = arith.subf %408, %420 : vector<22x64xf32>
    %cst_147 = arith.constant 9.99999974E-6 : f32
    %422 = vector.broadcast %cst_147 : f32 to vector<22x1xf32>
    %423 = arith.addf %419, %422 : vector<22x1xf32>
    %424 = math.rsqrt %423 : vector<22x1xf32>
    %425 = vector.broadcast %424 : vector<22x1xf32> to vector<22x64xf32>
    %426 = arith.mulf %421, %425 : vector<22x64xf32>
    %c2727 = arith.constant 2727 : index
    %c0_148 = arith.constant 0 : index
    %427 = vector.load %arg7[%c2727, %c0_148] : memref<2752x64xbf16, #tpu.memory_space<vmem>>, vector<1x64xbf16>
    %428 = arith.extf %427 : vector<1x64xbf16> to vector<1x64xf32>
    %429 = vector.broadcast %428 : vector<1x64xf32> to vector<22x64xf32>
    %430 = arith.mulf %426, %429 : vector<22x64xf32>
    %c2728 = arith.constant 2728 : index
    %c0_149 = arith.constant 0 : index
    %431 = vector.load %arg7[%c2728, %c0_149] : memref<2752x64xbf16, #tpu.memory_space<vmem>>, vector<1x64xbf16>
    %432 = arith.extf %431 : vector<1x64xbf16> to vector<1x64xf32>
    %433 = vector.broadcast %432 : vector<1x64xf32> to vector<22x64xf32>
    %434 = arith.addf %430, %433 : vector<22x64xf32>
    %435 = arith.truncf %434 : vector<22x64xf32> to vector<22x64xbf16>
    %c0_150 = arith.constant 0 : index
    %c0_151 = arith.constant 0 : index
    %c0_152 = arith.constant 0 : index
    %436 = vector.load %arg8[%c0_150, %c0_151, %c0_152] : memref<2x65x256xbf16, #tpu.memory_space<vmem>>, vector<1x64x256xbf16>
    %437 = vector.shape_cast %436 : vector<1x64x256xbf16> to vector<64x256xbf16>
    %cst_153 = arith.constant dense<0.000000e+00> : vector<22x256xf32>
    %438 = tpu.matmul %435, %437, %cst_153 {dimension_numbers = #tpu.dot_dimension_numbers<[1], [0], [0], [1], [0, 0, 1, 1], [], []>} : vector<22x64xbf16>, vector<64x256xbf16>, vector<22x256xf32> -> vector<22x256xf32>
    %c0_154 = arith.constant 0 : index
    %c64 = arith.constant 64 : index
    %c0_155 = arith.constant 0 : index
    %439 = vector.load %arg8[%c0_154, %c64, %c0_155] : memref<2x65x256xbf16, #tpu.memory_space<vmem>>, vector<1x1x256xbf16>
    %440 = vector.shape_cast %439 : vector<1x1x256xbf16> to vector<1x256xbf16>
    %441 = arith.extf %440 : vector<1x256xbf16> to vector<1x256xf32>
    %442 = vector.broadcast %441 : vector<1x256xf32> to vector<22x256xf32>
    %443 = arith.addf %438, %442 : vector<22x256xf32>
    %cst_156 = arith.constant 5.000000e-01 : f32
    %444 = vector.broadcast %cst_156 : f32 to vector<22x256xf32>
    %445 = arith.mulf %444, %443 : vector<22x256xf32>
    %cst_157 = arith.constant 4.471500e-02 : f32
    %446 = vector.broadcast %cst_157 : f32 to vector<22x256xf32>
    %447 = arith.mulf %446, %443 : vector<22x256xf32>
    %448 = arith.mulf %447, %443 : vector<22x256xf32>
    %449 = arith.mulf %448, %443 : vector<22x256xf32>
    %450 = arith.addf %443, %449 : vector<22x256xf32>
    %cst_158 = arith.constant 0.797884583 : f32
    %451 = vector.broadcast %cst_158 : f32 to vector<22x256xf32>
    %452 = arith.mulf %451, %450 : vector<22x256xf32>
    %453 = math.tanh %452 : vector<22x256xf32>
    %cst_159 = arith.constant 1.000000e+00 : f32
    %454 = vector.broadcast %cst_159 : f32 to vector<22x256xf32>
    %455 = arith.addf %454, %453 : vector<22x256xf32>
    %456 = arith.mulf %445, %455 : vector<22x256xf32>
    %457 = arith.truncf %456 : vector<22x256xf32> to vector<22x256xbf16>
    %c1520 = arith.constant 1520 : index
    %c0_160 = arith.constant 0 : index
    %458 = vector.load %arg7[%c1520, %c0_160] : memref<2752x64xbf16, #tpu.memory_space<vmem>>, vector<256x64xbf16>
    %cst_161 = arith.constant dense<0.000000e+00> : vector<22x64xf32>
    %459 = tpu.matmul %457, %458, %cst_161 {dimension_numbers = #tpu.dot_dimension_numbers<[1], [0], [0], [1], [0, 0, 1, 1], [], []>} : vector<22x256xbf16>, vector<256x64xbf16>, vector<22x64xf32> -> vector<22x64xf32>
    %c2729 = arith.constant 2729 : index
    %c0_162 = arith.constant 0 : index
    %460 = vector.load %arg7[%c2729, %c0_162] : memref<2752x64xbf16, #tpu.memory_space<vmem>>, vector<1x64xbf16>
    %461 = arith.extf %460 : vector<1x64xbf16> to vector<1x64xf32>
    %462 = vector.broadcast %461 : vector<1x64xf32> to vector<22x64xf32>
    %463 = arith.addf %459, %462 : vector<22x64xf32>
    %464 = arith.addf %408, %463 : vector<22x64xf32>
    %cst_163 = arith.constant dense<0.000000e+00> : vector<22xf32>
    %465 = vector.multi_reduction <add>, %464, %cst_163 [1] : vector<22x64xf32> to vector<22xf32>
    %466 = vector.shape_cast %465 : vector<22xf32> to vector<22x1xf32>
    %cst_164 = arith.constant 6.400000e+01 : f32
    %467 = vector.broadcast %cst_164 : f32 to vector<22x1xf32>
    %468 = arith.divf %466, %467 : vector<22x1xf32>
    %469 = vector.broadcast %468 : vector<22x1xf32> to vector<22x64xf32>
    %470 = arith.subf %464, %469 : vector<22x64xf32>
    %471 = arith.mulf %470, %470 : vector<22x64xf32>
    %cst_165 = arith.constant dense<0.000000e+00> : vector<22xf32>
    %472 = vector.multi_reduction <add>, %471, %cst_165 [1] : vector<22x64xf32> to vector<22xf32>
    %473 = vector.shape_cast %472 : vector<22xf32> to vector<22x1xf32>
    %cst_166 = arith.constant 6.400000e+01 : f32
    %474 = vector.broadcast %cst_166 : f32 to vector<22x1xf32>
    %475 = arith.divf %473, %474 : vector<22x1xf32>
    %476 = vector.broadcast %468 : vector<22x1xf32> to vector<22x64xf32>
    %477 = arith.subf %464, %476 : vector<22x64xf32>
    %cst_167 = arith.constant 9.99999974E-6 : f32
    %478 = vector.broadcast %cst_167 : f32 to vector<22x1xf32>
    %479 = arith.addf %475, %478 : vector<22x1xf32>
    %480 = math.rsqrt %479 : vector<22x1xf32>
    %481 = vector.broadcast %480 : vector<22x1xf32> to vector<22x64xf32>
    %482 = arith.mulf %477, %481 : vector<22x64xf32>
    %c2730 = arith.constant 2730 : index
    %c0_168 = arith.constant 0 : index
    %483 = vector.load %arg7[%c2730, %c0_168] : memref<2752x64xbf16, #tpu.memory_space<vmem>>, vector<1x64xbf16>
    %484 = arith.extf %483 : vector<1x64xbf16> to vector<1x64xf32>
    %485 = vector.broadcast %484 : vector<1x64xf32> to vector<22x64xf32>
    %486 = arith.mulf %482, %485 : vector<22x64xf32>
    %c2731 = arith.constant 2731 : index
    %c0_169 = arith.constant 0 : index
    %487 = vector.load %arg7[%c2731, %c0_169] : memref<2752x64xbf16, #tpu.memory_space<vmem>>, vector<1x64xbf16>
    %488 = arith.extf %487 : vector<1x64xbf16> to vector<1x64xf32>
    %489 = vector.broadcast %488 : vector<1x64xf32> to vector<22x64xf32>
    %490 = arith.addf %486, %489 : vector<22x64xf32>
    %491 = arith.truncf %490 : vector<22x64xf32> to vector<22x64xbf16>
    %c1776 = arith.constant 1776 : index
    %c0_170 = arith.constant 0 : index
    %492 = vector.load %arg7[%c1776, %c0_170] : memref<2752x64xbf16, #tpu.memory_space<vmem>>, vector<64x64xbf16>
    %cst_171 = arith.constant dense<0.000000e+00> : vector<22x64xf32>
    %493 = tpu.matmul %491, %492, %cst_171 {dimension_numbers = #tpu.dot_dimension_numbers<[1], [0], [0], [1], [0, 0, 1, 1], [], []>} : vector<22x64xbf16>, vector<64x64xbf16>, vector<22x64xf32> -> vector<22x64xf32>
    %c2732 = arith.constant 2732 : index
    %c0_172 = arith.constant 0 : index
    %494 = vector.load %arg7[%c2732, %c0_172] : memref<2752x64xbf16, #tpu.memory_space<vmem>>, vector<1x64xbf16>
    %495 = arith.extf %494 : vector<1x64xbf16> to vector<1x64xf32>
    %496 = vector.broadcast %495 : vector<1x64xf32> to vector<22x64xf32>
    %497 = arith.addf %493, %496 : vector<22x64xf32>
    %cst_173 = arith.constant 2.500000e-01 : f32
    %498 = vector.broadcast %cst_173 : f32 to vector<22x64xf32>
    %499 = arith.mulf %497, %498 : vector<22x64xf32>
    %500 = arith.truncf %499 : vector<22x64xf32> to vector<22x64xbf16>
    %c1840 = arith.constant 1840 : index
    %c0_174 = arith.constant 0 : index
    %501 = vector.load %arg7[%c1840, %c0_174] : memref<2752x64xbf16, #tpu.memory_space<vmem>>, vector<64x64xbf16>
    %cst_175 = arith.constant dense<0.000000e+00> : vector<22x64xf32>
    %502 = tpu.matmul %491, %501, %cst_175 {dimension_numbers = #tpu.dot_dimension_numbers<[1], [0], [0], [1], [0, 0, 1, 1], [], []>} : vector<22x64xbf16>, vector<64x64xbf16>, vector<22x64xf32> -> vector<22x64xf32>
    %c2733 = arith.constant 2733 : index
    %c0_176 = arith.constant 0 : index
    %503 = vector.load %arg7[%c2733, %c0_176] : memref<2752x64xbf16, #tpu.memory_space<vmem>>, vector<1x64xbf16>
    %504 = arith.extf %503 : vector<1x64xbf16> to vector<1x64xf32>
    %505 = vector.broadcast %504 : vector<1x64xf32> to vector<22x64xf32>
    %506 = arith.addf %502, %505 : vector<22x64xf32>
    %507 = arith.truncf %506 : vector<22x64xf32> to vector<22x64xbf16>
    %c1904 = arith.constant 1904 : index
    %c0_177 = arith.constant 0 : index
    %508 = vector.load %arg7[%c1904, %c0_177] : memref<2752x64xbf16, #tpu.memory_space<vmem>>, vector<64x64xbf16>
    %cst_178 = arith.constant dense<0.000000e+00> : vector<22x64xf32>
    %509 = tpu.matmul %491, %508, %cst_178 {dimension_numbers = #tpu.dot_dimension_numbers<[1], [0], [0], [1], [0, 0, 1, 1], [], []>} : vector<22x64xbf16>, vector<64x64xbf16>, vector<22x64xf32> -> vector<22x64xf32>
    %c2734 = arith.constant 2734 : index
    %c0_179 = arith.constant 0 : index
    %510 = vector.load %arg7[%c2734, %c0_179] : memref<2752x64xbf16, #tpu.memory_space<vmem>>, vector<1x64xbf16>
    %511 = arith.extf %510 : vector<1x64xbf16> to vector<1x64xf32>
    %512 = vector.broadcast %511 : vector<1x64xf32> to vector<22x64xf32>
    %513 = arith.addf %509, %512 : vector<22x64xf32>
    %514 = arith.truncf %513 : vector<22x64xf32> to vector<22x64xbf16>
    %515 = vector.extract_strided_slice %500 {offsets = [0, 0], sizes = [22, 16], strides = [1, 1]} : vector<22x64xbf16> to vector<22x16xbf16>
    %516 = vector.extract_strided_slice %507 {offsets = [0, 0], sizes = [22, 16], strides = [1, 1]} : vector<22x64xbf16> to vector<22x16xbf16>
    %cst_180 = arith.constant dense<0.000000e+00> : vector<22x22xf32>
    %517 = tpu.matmul %515, %516, %cst_180 {dimension_numbers = #tpu.dot_dimension_numbers<[1], [1], [0], [0], [0, 0, 1, 0], [], []>} : vector<22x16xbf16>, vector<22x16xbf16>, vector<22x22xf32> -> vector<22x22xf32>
    %518 = vector.extract_strided_slice %500 {offsets = [0, 16], sizes = [22, 16], strides = [1, 1]} : vector<22x64xbf16> to vector<22x16xbf16>
    %519 = vector.extract_strided_slice %507 {offsets = [0, 16], sizes = [22, 16], strides = [1, 1]} : vector<22x64xbf16> to vector<22x16xbf16>
    %cst_181 = arith.constant dense<0.000000e+00> : vector<22x22xf32>
    %520 = tpu.matmul %518, %519, %cst_181 {dimension_numbers = #tpu.dot_dimension_numbers<[1], [1], [0], [0], [0, 0, 1, 0], [], []>} : vector<22x16xbf16>, vector<22x16xbf16>, vector<22x22xf32> -> vector<22x22xf32>
    %521 = vector.extract_strided_slice %500 {offsets = [0, 32], sizes = [22, 16], strides = [1, 1]} : vector<22x64xbf16> to vector<22x16xbf16>
    %522 = vector.extract_strided_slice %507 {offsets = [0, 32], sizes = [22, 16], strides = [1, 1]} : vector<22x64xbf16> to vector<22x16xbf16>
    %cst_182 = arith.constant dense<0.000000e+00> : vector<22x22xf32>
    %523 = tpu.matmul %521, %522, %cst_182 {dimension_numbers = #tpu.dot_dimension_numbers<[1], [1], [0], [0], [0, 0, 1, 0], [], []>} : vector<22x16xbf16>, vector<22x16xbf16>, vector<22x22xf32> -> vector<22x22xf32>
    %524 = vector.extract_strided_slice %500 {offsets = [0, 48], sizes = [22, 16], strides = [1, 1]} : vector<22x64xbf16> to vector<22x16xbf16>
    %525 = vector.extract_strided_slice %507 {offsets = [0, 48], sizes = [22, 16], strides = [1, 1]} : vector<22x64xbf16> to vector<22x16xbf16>
    %cst_183 = arith.constant dense<0.000000e+00> : vector<22x22xf32>
    %526 = tpu.matmul %524, %525, %cst_183 {dimension_numbers = #tpu.dot_dimension_numbers<[1], [1], [0], [0], [0, 0, 1, 0], [], []>} : vector<22x16xbf16>, vector<22x16xbf16>, vector<22x22xf32> -> vector<22x22xf32>
    %527 = vector.shape_cast %517 : vector<22x22xf32> to vector<1x22x22xf32>
    %528 = vector.shape_cast %520 : vector<22x22xf32> to vector<1x22x22xf32>
    %529 = vector.shape_cast %523 : vector<22x22xf32> to vector<1x22x22xf32>
    %530 = vector.shape_cast %526 : vector<22x22xf32> to vector<1x22x22xf32>
    %531 = tpu.concatenate %527, %528, %529, %530 in 0 : vector<1x22x22xf32>, vector<1x22x22xf32>, vector<1x22x22xf32>, vector<1x22x22xf32> -> vector<4x22x22xf32>
    %532 = vector.shape_cast %194 : vector<22x22xf32> to vector<1x22x22xf32>
    %533 = vector.broadcast %532 : vector<1x22x22xf32> to vector<4x22x22xf32>
    %534 = arith.addf %531, %533 : vector<4x22x22xf32>
    %cst_184 = arith.constant dense<0xFF800000> : vector<4x22xf32>
    %535 = vector.multi_reduction <maximumf>, %534, %cst_184 [2] : vector<4x22x22xf32> to vector<4x22xf32>
    %536 = vector.shape_cast %535 : vector<4x22xf32> to vector<4x22x1xf32>
    %537 = vector.broadcast %536 : vector<4x22x1xf32> to vector<4x22x22xf32>
    %538 = arith.subf %534, %537 : vector<4x22x22xf32>
    %539 = math.exp %538 : vector<4x22x22xf32>
    %cst_185 = arith.constant dense<0.000000e+00> : vector<4x22xf32>
    %540 = vector.multi_reduction <add>, %539, %cst_185 [2] : vector<4x22x22xf32> to vector<4x22xf32>
    %541 = vector.shape_cast %540 : vector<4x22xf32> to vector<4x22x1xf32>
    %542 = tpu.reciprocal %541 {approx = true} : vector<4x22x1xf32> -> vector<4x22x1xf32>
    %543 = vector.broadcast %542 : vector<4x22x1xf32> to vector<4x22x22xf32>
    %544 = arith.mulf %539, %543 : vector<4x22x22xf32>
    %545 = arith.truncf %544 : vector<4x22x22xf32> to vector<4x22x22xbf16>
    %546 = vector.extract_strided_slice %545 {offsets = [0, 0, 0], sizes = [1, 22, 22], strides = [1, 1, 1]} : vector<4x22x22xbf16> to vector<1x22x22xbf16>
    %547 = vector.shape_cast %546 : vector<1x22x22xbf16> to vector<22x22xbf16>
    %548 = vector.extract_strided_slice %514 {offsets = [0, 0], sizes = [22, 16], strides = [1, 1]} : vector<22x64xbf16> to vector<22x16xbf16>
    %cst_186 = arith.constant dense<0.000000e+00> : vector<22x16xf32>
    %549 = tpu.matmul %547, %548, %cst_186 {dimension_numbers = #tpu.dot_dimension_numbers<[1], [0], [0], [1], [0, 0, 1, 1], [], []>} : vector<22x22xbf16>, vector<22x16xbf16>, vector<22x16xf32> -> vector<22x16xf32>
    %550 = vector.extract_strided_slice %545 {offsets = [1, 0, 0], sizes = [1, 22, 22], strides = [1, 1, 1]} : vector<4x22x22xbf16> to vector<1x22x22xbf16>
    %551 = vector.shape_cast %550 : vector<1x22x22xbf16> to vector<22x22xbf16>
    %552 = vector.extract_strided_slice %514 {offsets = [0, 16], sizes = [22, 16], strides = [1, 1]} : vector<22x64xbf16> to vector<22x16xbf16>
    %cst_187 = arith.constant dense<0.000000e+00> : vector<22x16xf32>
    %553 = tpu.matmul %551, %552, %cst_187 {dimension_numbers = #tpu.dot_dimension_numbers<[1], [0], [0], [1], [0, 0, 1, 1], [], []>} : vector<22x22xbf16>, vector<22x16xbf16>, vector<22x16xf32> -> vector<22x16xf32>
    %554 = vector.extract_strided_slice %545 {offsets = [2, 0, 0], sizes = [1, 22, 22], strides = [1, 1, 1]} : vector<4x22x22xbf16> to vector<1x22x22xbf16>
    %555 = vector.shape_cast %554 : vector<1x22x22xbf16> to vector<22x22xbf16>
    %556 = vector.extract_strided_slice %514 {offsets = [0, 32], sizes = [22, 16], strides = [1, 1]} : vector<22x64xbf16> to vector<22x16xbf16>
    %cst_188 = arith.constant dense<0.000000e+00> : vector<22x16xf32>
    %557 = tpu.matmul %555, %556, %cst_188 {dimension_numbers = #tpu.dot_dimension_numbers<[1], [0], [0], [1], [0, 0, 1, 1], [], []>} : vector<22x22xbf16>, vector<22x16xbf16>, vector<22x16xf32> -> vector<22x16xf32>
    %558 = vector.extract_strided_slice %545 {offsets = [3, 0, 0], sizes = [1, 22, 22], strides = [1, 1, 1]} : vector<4x22x22xbf16> to vector<1x22x22xbf16>
    %559 = vector.shape_cast %558 : vector<1x22x22xbf16> to vector<22x22xbf16>
    %560 = vector.extract_strided_slice %514 {offsets = [0, 48], sizes = [22, 16], strides = [1, 1]} : vector<22x64xbf16> to vector<22x16xbf16>
    %cst_189 = arith.constant dense<0.000000e+00> : vector<22x16xf32>
    %561 = tpu.matmul %559, %560, %cst_189 {dimension_numbers = #tpu.dot_dimension_numbers<[1], [0], [0], [1], [0, 0, 1, 1], [], []>} : vector<22x22xbf16>, vector<22x16xbf16>, vector<22x16xf32> -> vector<22x16xf32>
    %562 = tpu.concatenate %549, %553, %557, %561 in 1 : vector<22x16xf32>, vector<22x16xf32>, vector<22x16xf32>, vector<22x16xf32> -> vector<22x64xf32>
    %563 = arith.truncf %562 : vector<22x64xf32> to vector<22x64xbf16>
    %c1968 = arith.constant 1968 : index
    %c0_190 = arith.constant 0 : index
    %564 = vector.load %arg7[%c1968, %c0_190] : memref<2752x64xbf16, #tpu.memory_space<vmem>>, vector<64x64xbf16>
    %cst_191 = arith.constant dense<0.000000e+00> : vector<22x64xf32>
    %565 = tpu.matmul %563, %564, %cst_191 {dimension_numbers = #tpu.dot_dimension_numbers<[1], [0], [0], [1], [0, 0, 1, 1], [], []>} : vector<22x64xbf16>, vector<64x64xbf16>, vector<22x64xf32> -> vector<22x64xf32>
    %c2735 = arith.constant 2735 : index
    %c0_192 = arith.constant 0 : index
    %566 = vector.load %arg7[%c2735, %c0_192] : memref<2752x64xbf16, #tpu.memory_space<vmem>>, vector<1x64xbf16>
    %567 = arith.extf %566 : vector<1x64xbf16> to vector<1x64xf32>
    %568 = vector.broadcast %567 : vector<1x64xf32> to vector<22x64xf32>
    %569 = arith.addf %565, %568 : vector<22x64xf32>
    %570 = arith.addf %464, %569 : vector<22x64xf32>
    %cst_193 = arith.constant dense<0.000000e+00> : vector<22xf32>
    %571 = vector.multi_reduction <add>, %570, %cst_193 [1] : vector<22x64xf32> to vector<22xf32>
    %572 = vector.shape_cast %571 : vector<22xf32> to vector<22x1xf32>
    %cst_194 = arith.constant 6.400000e+01 : f32
    %573 = vector.broadcast %cst_194 : f32 to vector<22x1xf32>
    %574 = arith.divf %572, %573 : vector<22x1xf32>
    %575 = vector.broadcast %574 : vector<22x1xf32> to vector<22x64xf32>
    %576 = arith.subf %570, %575 : vector<22x64xf32>
    %577 = arith.mulf %576, %576 : vector<22x64xf32>
    %cst_195 = arith.constant dense<0.000000e+00> : vector<22xf32>
    %578 = vector.multi_reduction <add>, %577, %cst_195 [1] : vector<22x64xf32> to vector<22xf32>
    %579 = vector.shape_cast %578 : vector<22xf32> to vector<22x1xf32>
    %cst_196 = arith.constant 6.400000e+01 : f32
    %580 = vector.broadcast %cst_196 : f32 to vector<22x1xf32>
    %581 = arith.divf %579, %580 : vector<22x1xf32>
    %582 = vector.broadcast %574 : vector<22x1xf32> to vector<22x64xf32>
    %583 = arith.subf %570, %582 : vector<22x64xf32>
    %cst_197 = arith.constant 9.99999974E-6 : f32
    %584 = vector.broadcast %cst_197 : f32 to vector<22x1xf32>
    %585 = arith.addf %581, %584 : vector<22x1xf32>
    %586 = math.rsqrt %585 : vector<22x1xf32>
    %587 = vector.broadcast %586 : vector<22x1xf32> to vector<22x64xf32>
    %588 = arith.mulf %583, %587 : vector<22x64xf32>
    %c2736 = arith.constant 2736 : index
    %c0_198 = arith.constant 0 : index
    %589 = vector.load %arg7[%c2736, %c0_198] : memref<2752x64xbf16, #tpu.memory_space<vmem>>, vector<1x64xbf16>
    %590 = arith.extf %589 : vector<1x64xbf16> to vector<1x64xf32>
    %591 = vector.broadcast %590 : vector<1x64xf32> to vector<22x64xf32>
    %592 = arith.mulf %588, %591 : vector<22x64xf32>
    %c2737 = arith.constant 2737 : index
    %c0_199 = arith.constant 0 : index
    %593 = vector.load %arg7[%c2737, %c0_199] : memref<2752x64xbf16, #tpu.memory_space<vmem>>, vector<1x64xbf16>
    %594 = arith.extf %593 : vector<1x64xbf16> to vector<1x64xf32>
    %595 = vector.broadcast %594 : vector<1x64xf32> to vector<22x64xf32>
    %596 = arith.addf %592, %595 : vector<22x64xf32>
    %597 = arith.truncf %596 : vector<22x64xf32> to vector<22x64xbf16>
    %c2032 = arith.constant 2032 : index
    %c0_200 = arith.constant 0 : index
    %598 = vector.load %arg7[%c2032, %c0_200] : memref<2752x64xbf16, #tpu.memory_space<vmem>>, vector<64x64xbf16>
    %cst_201 = arith.constant dense<0.000000e+00> : vector<22x64xf32>
    %599 = tpu.matmul %597, %598, %cst_201 {dimension_numbers = #tpu.dot_dimension_numbers<[1], [0], [0], [1], [0, 0, 1, 1], [], []>} : vector<22x64xbf16>, vector<64x64xbf16>, vector<22x64xf32> -> vector<22x64xf32>
    %c2738 = arith.constant 2738 : index
    %c0_202 = arith.constant 0 : index
    %600 = vector.load %arg7[%c2738, %c0_202] : memref<2752x64xbf16, #tpu.memory_space<vmem>>, vector<1x64xbf16>
    %601 = arith.extf %600 : vector<1x64xbf16> to vector<1x64xf32>
    %602 = vector.broadcast %601 : vector<1x64xf32> to vector<22x64xf32>
    %603 = arith.addf %599, %602 : vector<22x64xf32>
    %cst_203 = arith.constant 2.500000e-01 : f32
    %604 = vector.broadcast %cst_203 : f32 to vector<22x64xf32>
    %605 = arith.mulf %603, %604 : vector<22x64xf32>
    %606 = arith.truncf %605 : vector<22x64xf32> to vector<22x64xbf16>
    %c2096 = arith.constant 2096 : index
    %c0_204 = arith.constant 0 : index
    %607 = vector.load %arg7[%c2096, %c0_204] : memref<2752x64xbf16, #tpu.memory_space<vmem>>, vector<64x64xbf16>
    %cst_205 = arith.constant dense<0.000000e+00> : vector<16x64xf32>
    %608 = tpu.matmul %130, %607, %cst_205 {dimension_numbers = #tpu.dot_dimension_numbers<[1], [0], [0], [1], [0, 0, 1, 1], [], []>} : vector<16x64xbf16>, vector<64x64xbf16>, vector<16x64xf32> -> vector<16x64xf32>
    %c2739 = arith.constant 2739 : index
    %c0_206 = arith.constant 0 : index
    %609 = vector.load %arg7[%c2739, %c0_206] : memref<2752x64xbf16, #tpu.memory_space<vmem>>, vector<1x64xbf16>
    %610 = arith.extf %609 : vector<1x64xbf16> to vector<1x64xf32>
    %611 = vector.broadcast %610 : vector<1x64xf32> to vector<16x64xf32>
    %612 = arith.addf %608, %611 : vector<16x64xf32>
    %613 = arith.truncf %612 : vector<16x64xf32> to vector<16x64xbf16>
    %c2160 = arith.constant 2160 : index
    %c0_207 = arith.constant 0 : index
    %614 = vector.load %arg7[%c2160, %c0_207] : memref<2752x64xbf16, #tpu.memory_space<vmem>>, vector<64x64xbf16>
    %cst_208 = arith.constant dense<0.000000e+00> : vector<16x64xf32>
    %615 = tpu.matmul %130, %614, %cst_208 {dimension_numbers = #tpu.dot_dimension_numbers<[1], [0], [0], [1], [0, 0, 1, 1], [], []>} : vector<16x64xbf16>, vector<64x64xbf16>, vector<16x64xf32> -> vector<16x64xf32>
    %c2740 = arith.constant 2740 : index
    %c0_209 = arith.constant 0 : index
    %616 = vector.load %arg7[%c2740, %c0_209] : memref<2752x64xbf16, #tpu.memory_space<vmem>>, vector<1x64xbf16>
    %617 = arith.extf %616 : vector<1x64xbf16> to vector<1x64xf32>
    %618 = vector.broadcast %617 : vector<1x64xf32> to vector<16x64xf32>
    %619 = arith.addf %615, %618 : vector<16x64xf32>
    %620 = arith.truncf %619 : vector<16x64xf32> to vector<16x64xbf16>
    %621 = vector.extract_strided_slice %606 {offsets = [0, 0], sizes = [22, 16], strides = [1, 1]} : vector<22x64xbf16> to vector<22x16xbf16>
    %622 = vector.extract_strided_slice %613 {offsets = [0, 0], sizes = [16, 16], strides = [1, 1]} : vector<16x64xbf16> to vector<16x16xbf16>
    %cst_210 = arith.constant dense<0.000000e+00> : vector<22x16xf32>
    %623 = tpu.matmul %621, %622, %cst_210 {dimension_numbers = #tpu.dot_dimension_numbers<[1], [1], [0], [0], [0, 0, 1, 0], [], []>} : vector<22x16xbf16>, vector<16x16xbf16>, vector<22x16xf32> -> vector<22x16xf32>
    %624 = vector.extract_strided_slice %606 {offsets = [0, 16], sizes = [22, 16], strides = [1, 1]} : vector<22x64xbf16> to vector<22x16xbf16>
    %625 = vector.extract_strided_slice %613 {offsets = [0, 16], sizes = [16, 16], strides = [1, 1]} : vector<16x64xbf16> to vector<16x16xbf16>
    %cst_211 = arith.constant dense<0.000000e+00> : vector<22x16xf32>
    %626 = tpu.matmul %624, %625, %cst_211 {dimension_numbers = #tpu.dot_dimension_numbers<[1], [1], [0], [0], [0, 0, 1, 0], [], []>} : vector<22x16xbf16>, vector<16x16xbf16>, vector<22x16xf32> -> vector<22x16xf32>
    %627 = vector.extract_strided_slice %606 {offsets = [0, 32], sizes = [22, 16], strides = [1, 1]} : vector<22x64xbf16> to vector<22x16xbf16>
    %628 = vector.extract_strided_slice %613 {offsets = [0, 32], sizes = [16, 16], strides = [1, 1]} : vector<16x64xbf16> to vector<16x16xbf16>
    %cst_212 = arith.constant dense<0.000000e+00> : vector<22x16xf32>
    %629 = tpu.matmul %627, %628, %cst_212 {dimension_numbers = #tpu.dot_dimension_numbers<[1], [1], [0], [0], [0, 0, 1, 0], [], []>} : vector<22x16xbf16>, vector<16x16xbf16>, vector<22x16xf32> -> vector<22x16xf32>
    %630 = vector.extract_strided_slice %606 {offsets = [0, 48], sizes = [22, 16], strides = [1, 1]} : vector<22x64xbf16> to vector<22x16xbf16>
    %631 = vector.extract_strided_slice %613 {offsets = [0, 48], sizes = [16, 16], strides = [1, 1]} : vector<16x64xbf16> to vector<16x16xbf16>
    %cst_213 = arith.constant dense<0.000000e+00> : vector<22x16xf32>
    %632 = tpu.matmul %630, %631, %cst_213 {dimension_numbers = #tpu.dot_dimension_numbers<[1], [1], [0], [0], [0, 0, 1, 0], [], []>} : vector<22x16xbf16>, vector<16x16xbf16>, vector<22x16xf32> -> vector<22x16xf32>
    %633 = vector.shape_cast %623 : vector<22x16xf32> to vector<1x22x16xf32>
    %634 = vector.shape_cast %626 : vector<22x16xf32> to vector<1x22x16xf32>
    %635 = vector.shape_cast %629 : vector<22x16xf32> to vector<1x22x16xf32>
    %636 = vector.shape_cast %632 : vector<22x16xf32> to vector<1x22x16xf32>
    %637 = tpu.concatenate %633, %634, %635, %636 in 0 : vector<1x22x16xf32>, vector<1x22x16xf32>, vector<1x22x16xf32>, vector<1x22x16xf32> -> vector<4x22x16xf32>
    %638 = vector.shape_cast %196 : vector<22x16xf32> to vector<1x22x16xf32>
    %639 = vector.broadcast %638 : vector<1x22x16xf32> to vector<4x22x16xf32>
    %640 = arith.addf %637, %639 : vector<4x22x16xf32>
    %cst_214 = arith.constant dense<0xFF800000> : vector<4x22xf32>
    %641 = vector.multi_reduction <maximumf>, %640, %cst_214 [2] : vector<4x22x16xf32> to vector<4x22xf32>
    %642 = vector.shape_cast %641 : vector<4x22xf32> to vector<4x22x1xf32>
    %643 = vector.broadcast %642 : vector<4x22x1xf32> to vector<4x22x16xf32>
    %644 = arith.subf %640, %643 : vector<4x22x16xf32>
    %645 = math.exp %644 : vector<4x22x16xf32>
    %cst_215 = arith.constant dense<0.000000e+00> : vector<4x22xf32>
    %646 = vector.multi_reduction <add>, %645, %cst_215 [2] : vector<4x22x16xf32> to vector<4x22xf32>
    %647 = vector.shape_cast %646 : vector<4x22xf32> to vector<4x22x1xf32>
    %648 = tpu.reciprocal %647 {approx = true} : vector<4x22x1xf32> -> vector<4x22x1xf32>
    %649 = vector.broadcast %648 : vector<4x22x1xf32> to vector<4x22x16xf32>
    %650 = arith.mulf %645, %649 : vector<4x22x16xf32>
    %651 = arith.truncf %650 : vector<4x22x16xf32> to vector<4x22x16xbf16>
    %652 = vector.extract_strided_slice %651 {offsets = [0, 0, 0], sizes = [1, 22, 16], strides = [1, 1, 1]} : vector<4x22x16xbf16> to vector<1x22x16xbf16>
    %653 = vector.shape_cast %652 : vector<1x22x16xbf16> to vector<22x16xbf16>
    %654 = vector.extract_strided_slice %620 {offsets = [0, 0], sizes = [16, 16], strides = [1, 1]} : vector<16x64xbf16> to vector<16x16xbf16>
    %cst_216 = arith.constant dense<0.000000e+00> : vector<22x16xf32>
    %655 = tpu.matmul %653, %654, %cst_216 {dimension_numbers = #tpu.dot_dimension_numbers<[1], [0], [0], [1], [0, 0, 1, 1], [], []>} : vector<22x16xbf16>, vector<16x16xbf16>, vector<22x16xf32> -> vector<22x16xf32>
    %656 = vector.extract_strided_slice %651 {offsets = [1, 0, 0], sizes = [1, 22, 16], strides = [1, 1, 1]} : vector<4x22x16xbf16> to vector<1x22x16xbf16>
    %657 = vector.shape_cast %656 : vector<1x22x16xbf16> to vector<22x16xbf16>
    %658 = vector.extract_strided_slice %620 {offsets = [0, 16], sizes = [16, 16], strides = [1, 1]} : vector<16x64xbf16> to vector<16x16xbf16>
    %cst_217 = arith.constant dense<0.000000e+00> : vector<22x16xf32>
    %659 = tpu.matmul %657, %658, %cst_217 {dimension_numbers = #tpu.dot_dimension_numbers<[1], [0], [0], [1], [0, 0, 1, 1], [], []>} : vector<22x16xbf16>, vector<16x16xbf16>, vector<22x16xf32> -> vector<22x16xf32>
    %660 = vector.extract_strided_slice %651 {offsets = [2, 0, 0], sizes = [1, 22, 16], strides = [1, 1, 1]} : vector<4x22x16xbf16> to vector<1x22x16xbf16>
    %661 = vector.shape_cast %660 : vector<1x22x16xbf16> to vector<22x16xbf16>
    %662 = vector.extract_strided_slice %620 {offsets = [0, 32], sizes = [16, 16], strides = [1, 1]} : vector<16x64xbf16> to vector<16x16xbf16>
    %cst_218 = arith.constant dense<0.000000e+00> : vector<22x16xf32>
    %663 = tpu.matmul %661, %662, %cst_218 {dimension_numbers = #tpu.dot_dimension_numbers<[1], [0], [0], [1], [0, 0, 1, 1], [], []>} : vector<22x16xbf16>, vector<16x16xbf16>, vector<22x16xf32> -> vector<22x16xf32>
    %664 = vector.extract_strided_slice %651 {offsets = [3, 0, 0], sizes = [1, 22, 16], strides = [1, 1, 1]} : vector<4x22x16xbf16> to vector<1x22x16xbf16>
    %665 = vector.shape_cast %664 : vector<1x22x16xbf16> to vector<22x16xbf16>
    %666 = vector.extract_strided_slice %620 {offsets = [0, 48], sizes = [16, 16], strides = [1, 1]} : vector<16x64xbf16> to vector<16x16xbf16>
    %cst_219 = arith.constant dense<0.000000e+00> : vector<22x16xf32>
    %667 = tpu.matmul %665, %666, %cst_219 {dimension_numbers = #tpu.dot_dimension_numbers<[1], [0], [0], [1], [0, 0, 1, 1], [], []>} : vector<22x16xbf16>, vector<16x16xbf16>, vector<22x16xf32> -> vector<22x16xf32>
    %668 = tpu.concatenate %655, %659, %663, %667 in 1 : vector<22x16xf32>, vector<22x16xf32>, vector<22x16xf32>, vector<22x16xf32> -> vector<22x64xf32>
    %669 = arith.truncf %668 : vector<22x64xf32> to vector<22x64xbf16>
    %c2224 = arith.constant 2224 : index
    %c0_220 = arith.constant 0 : index
    %670 = vector.load %arg7[%c2224, %c0_220] : memref<2752x64xbf16, #tpu.memory_space<vmem>>, vector<64x64xbf16>
    %cst_221 = arith.constant dense<0.000000e+00> : vector<22x64xf32>
    %671 = tpu.matmul %669, %670, %cst_221 {dimension_numbers = #tpu.dot_dimension_numbers<[1], [0], [0], [1], [0, 0, 1, 1], [], []>} : vector<22x64xbf16>, vector<64x64xbf16>, vector<22x64xf32> -> vector<22x64xf32>
    %c2741 = arith.constant 2741 : index
    %c0_222 = arith.constant 0 : index
    %672 = vector.load %arg7[%c2741, %c0_222] : memref<2752x64xbf16, #tpu.memory_space<vmem>>, vector<1x64xbf16>
    %673 = arith.extf %672 : vector<1x64xbf16> to vector<1x64xf32>
    %674 = vector.broadcast %673 : vector<1x64xf32> to vector<22x64xf32>
    %675 = arith.addf %671, %674 : vector<22x64xf32>
    %676 = arith.addf %570, %675 : vector<22x64xf32>
    %cst_223 = arith.constant dense<0.000000e+00> : vector<22xf32>
    %677 = vector.multi_reduction <add>, %676, %cst_223 [1] : vector<22x64xf32> to vector<22xf32>
    %678 = vector.shape_cast %677 : vector<22xf32> to vector<22x1xf32>
    %cst_224 = arith.constant 6.400000e+01 : f32
    %679 = vector.broadcast %cst_224 : f32 to vector<22x1xf32>
    %680 = arith.divf %678, %679 : vector<22x1xf32>
    %681 = vector.broadcast %680 : vector<22x1xf32> to vector<22x64xf32>
    %682 = arith.subf %676, %681 : vector<22x64xf32>
    %683 = arith.mulf %682, %682 : vector<22x64xf32>
    %cst_225 = arith.constant dense<0.000000e+00> : vector<22xf32>
    %684 = vector.multi_reduction <add>, %683, %cst_225 [1] : vector<22x64xf32> to vector<22xf32>
    %685 = vector.shape_cast %684 : vector<22xf32> to vector<22x1xf32>
    %cst_226 = arith.constant 6.400000e+01 : f32
    %686 = vector.broadcast %cst_226 : f32 to vector<22x1xf32>
    %687 = arith.divf %685, %686 : vector<22x1xf32>
    %688 = vector.broadcast %680 : vector<22x1xf32> to vector<22x64xf32>
    %689 = arith.subf %676, %688 : vector<22x64xf32>
    %cst_227 = arith.constant 9.99999974E-6 : f32
    %690 = vector.broadcast %cst_227 : f32 to vector<22x1xf32>
    %691 = arith.addf %687, %690 : vector<22x1xf32>
    %692 = math.rsqrt %691 : vector<22x1xf32>
    %693 = vector.broadcast %692 : vector<22x1xf32> to vector<22x64xf32>
    %694 = arith.mulf %689, %693 : vector<22x64xf32>
    %c2742 = arith.constant 2742 : index
    %c0_228 = arith.constant 0 : index
    %695 = vector.load %arg7[%c2742, %c0_228] : memref<2752x64xbf16, #tpu.memory_space<vmem>>, vector<1x64xbf16>
    %696 = arith.extf %695 : vector<1x64xbf16> to vector<1x64xf32>
    %697 = vector.broadcast %696 : vector<1x64xf32> to vector<22x64xf32>
    %698 = arith.mulf %694, %697 : vector<22x64xf32>
    %c2743 = arith.constant 2743 : index
    %c0_229 = arith.constant 0 : index
    %699 = vector.load %arg7[%c2743, %c0_229] : memref<2752x64xbf16, #tpu.memory_space<vmem>>, vector<1x64xbf16>
    %700 = arith.extf %699 : vector<1x64xbf16> to vector<1x64xf32>
    %701 = vector.broadcast %700 : vector<1x64xf32> to vector<22x64xf32>
    %702 = arith.addf %698, %701 : vector<22x64xf32>
    %703 = arith.truncf %702 : vector<22x64xf32> to vector<22x64xbf16>
    %c1_230 = arith.constant 1 : index
    %c0_231 = arith.constant 0 : index
    %c0_232 = arith.constant 0 : index
    %704 = vector.load %arg8[%c1_230, %c0_231, %c0_232] : memref<2x65x256xbf16, #tpu.memory_space<vmem>>, vector<1x64x256xbf16>
    %705 = vector.shape_cast %704 : vector<1x64x256xbf16> to vector<64x256xbf16>
    %cst_233 = arith.constant dense<0.000000e+00> : vector<22x256xf32>
    %706 = tpu.matmul %703, %705, %cst_233 {dimension_numbers = #tpu.dot_dimension_numbers<[1], [0], [0], [1], [0, 0, 1, 1], [], []>} : vector<22x64xbf16>, vector<64x256xbf16>, vector<22x256xf32> -> vector<22x256xf32>
    %c1_234 = arith.constant 1 : index
    %c64_235 = arith.constant 64 : index
    %c0_236 = arith.constant 0 : index
    %707 = vector.load %arg8[%c1_234, %c64_235, %c0_236] : memref<2x65x256xbf16, #tpu.memory_space<vmem>>, vector<1x1x256xbf16>
    %708 = vector.shape_cast %707 : vector<1x1x256xbf16> to vector<1x256xbf16>
    %709 = arith.extf %708 : vector<1x256xbf16> to vector<1x256xf32>
    %710 = vector.broadcast %709 : vector<1x256xf32> to vector<22x256xf32>
    %711 = arith.addf %706, %710 : vector<22x256xf32>
    %cst_237 = arith.constant 5.000000e-01 : f32
    %712 = vector.broadcast %cst_237 : f32 to vector<22x256xf32>
    %713 = arith.mulf %712, %711 : vector<22x256xf32>
    %cst_238 = arith.constant 4.471500e-02 : f32
    %714 = vector.broadcast %cst_238 : f32 to vector<22x256xf32>
    %715 = arith.mulf %714, %711 : vector<22x256xf32>
    %716 = arith.mulf %715, %711 : vector<22x256xf32>
    %717 = arith.mulf %716, %711 : vector<22x256xf32>
    %718 = arith.addf %711, %717 : vector<22x256xf32>
    %cst_239 = arith.constant 0.797884583 : f32
    %719 = vector.broadcast %cst_239 : f32 to vector<22x256xf32>
    %720 = arith.mulf %719, %718 : vector<22x256xf32>
    %721 = math.tanh %720 : vector<22x256xf32>
    %cst_240 = arith.constant 1.000000e+00 : f32
    %722 = vector.broadcast %cst_240 : f32 to vector<22x256xf32>
    %723 = arith.addf %722, %721 : vector<22x256xf32>
    %724 = arith.mulf %713, %723 : vector<22x256xf32>
    %725 = arith.truncf %724 : vector<22x256xf32> to vector<22x256xbf16>
    %c2288 = arith.constant 2288 : index
    %c0_241 = arith.constant 0 : index
    %726 = vector.load %arg7[%c2288, %c0_241] : memref<2752x64xbf16, #tpu.memory_space<vmem>>, vector<256x64xbf16>
    %cst_242 = arith.constant dense<0.000000e+00> : vector<22x64xf32>
    %727 = tpu.matmul %725, %726, %cst_242 {dimension_numbers = #tpu.dot_dimension_numbers<[1], [0], [0], [1], [0, 0, 1, 1], [], []>} : vector<22x256xbf16>, vector<256x64xbf16>, vector<22x64xf32> -> vector<22x64xf32>
    %c2744 = arith.constant 2744 : index
    %c0_243 = arith.constant 0 : index
    %728 = vector.load %arg7[%c2744, %c0_243] : memref<2752x64xbf16, #tpu.memory_space<vmem>>, vector<1x64xbf16>
    %729 = arith.extf %728 : vector<1x64xbf16> to vector<1x64xf32>
    %730 = vector.broadcast %729 : vector<1x64xf32> to vector<22x64xf32>
    %731 = arith.addf %727, %730 : vector<22x64xf32>
    %732 = arith.addf %676, %731 : vector<22x64xf32>
    %cst_244 = arith.constant dense<0.000000e+00> : vector<22xf32>
    %733 = vector.multi_reduction <add>, %732, %cst_244 [1] : vector<22x64xf32> to vector<22xf32>
    %734 = vector.shape_cast %733 : vector<22xf32> to vector<22x1xf32>
    %cst_245 = arith.constant 6.400000e+01 : f32
    %735 = vector.broadcast %cst_245 : f32 to vector<22x1xf32>
    %736 = arith.divf %734, %735 : vector<22x1xf32>
    %737 = vector.broadcast %736 : vector<22x1xf32> to vector<22x64xf32>
    %738 = arith.subf %732, %737 : vector<22x64xf32>
    %739 = arith.mulf %738, %738 : vector<22x64xf32>
    %cst_246 = arith.constant dense<0.000000e+00> : vector<22xf32>
    %740 = vector.multi_reduction <add>, %739, %cst_246 [1] : vector<22x64xf32> to vector<22xf32>
    %741 = vector.shape_cast %740 : vector<22xf32> to vector<22x1xf32>
    %cst_247 = arith.constant 6.400000e+01 : f32
    %742 = vector.broadcast %cst_247 : f32 to vector<22x1xf32>
    %743 = arith.divf %741, %742 : vector<22x1xf32>
    %744 = vector.broadcast %736 : vector<22x1xf32> to vector<22x64xf32>
    %745 = arith.subf %732, %744 : vector<22x64xf32>
    %cst_248 = arith.constant 9.99999974E-6 : f32
    %746 = vector.broadcast %cst_248 : f32 to vector<22x1xf32>
    %747 = arith.addf %743, %746 : vector<22x1xf32>
    %748 = math.rsqrt %747 : vector<22x1xf32>
    %749 = vector.broadcast %748 : vector<22x1xf32> to vector<22x64xf32>
    %750 = arith.mulf %745, %749 : vector<22x64xf32>
    %c2745 = arith.constant 2745 : index
    %c0_249 = arith.constant 0 : index
    %751 = vector.load %arg7[%c2745, %c0_249] : memref<2752x64xbf16, #tpu.memory_space<vmem>>, vector<1x64xbf16>
    %752 = arith.extf %751 : vector<1x64xbf16> to vector<1x64xf32>
    %753 = vector.broadcast %752 : vector<1x64xf32> to vector<22x64xf32>
    %754 = arith.mulf %750, %753 : vector<22x64xf32>
    %c2746 = arith.constant 2746 : index
    %c0_250 = arith.constant 0 : index
    %755 = vector.load %arg7[%c2746, %c0_250] : memref<2752x64xbf16, #tpu.memory_space<vmem>>, vector<1x64xbf16>
    %756 = arith.extf %755 : vector<1x64xbf16> to vector<1x64xf32>
    %757 = vector.broadcast %756 : vector<1x64xf32> to vector<22x64xf32>
    %758 = arith.addf %754, %757 : vector<22x64xf32>
    %759 = arith.truncf %758 : vector<22x64xf32> to vector<22x64xbf16>
    %c2544 = arith.constant 2544 : index
    %c0_251 = arith.constant 0 : index
    %760 = vector.load %arg7[%c2544, %c0_251] : memref<2752x64xbf16, #tpu.memory_space<vmem>>, vector<64x64xbf16>
    %cst_252 = arith.constant dense<0.000000e+00> : vector<22x64xf32>
    %761 = tpu.matmul %759, %760, %cst_252 {dimension_numbers = #tpu.dot_dimension_numbers<[1], [0], [0], [1], [0, 0, 1, 1], [], []>} : vector<22x64xbf16>, vector<64x64xbf16>, vector<22x64xf32> -> vector<22x64xf32>
    %c2747 = arith.constant 2747 : index
    %c0_253 = arith.constant 0 : index
    %762 = vector.load %arg7[%c2747, %c0_253] : memref<2752x64xbf16, #tpu.memory_space<vmem>>, vector<1x64xbf16>
    %763 = arith.extf %762 : vector<1x64xbf16> to vector<1x64xf32>
    %764 = vector.broadcast %763 : vector<1x64xf32> to vector<22x64xf32>
    %765 = arith.addf %761, %764 : vector<22x64xf32>
    %766 = arith.truncf %765 : vector<22x64xf32> to vector<22x64xbf16>
    %767 = arith.extf %766 : vector<22x64xbf16> to vector<22x64xf32>
    %768 = vector.extract_strided_slice %767 {offsets = [0, 0], sizes = [22, 16], strides = [1, 1]} : vector<22x64xf32> to vector<22x16xf32>
    %769 = arith.subf %768, %10 : vector<22x16xf32>
    %770 = vector.broadcast %179 : vector<22x1xf32> to vector<22x16xf32>
    %771 = arith.mulf %769, %770 : vector<22x16xf32>
    %772 = arith.mulf %771, %771 : vector<22x16xf32>
    %773 = vector.shape_cast %772 : vector<22x16xf32> to vector<1x22x16xf32>
    %cst_254 = arith.constant dense<0.000000e+00> : vector<1xf32>
    %774 = vector.multi_reduction <add>, %773, %cst_254 [1, 2] : vector<1x22x16xf32> to vector<1xf32>
    %775 = vector.shape_cast %774 : vector<1xf32> to vector<1x1x1xf32>
    %776 = vector.extract %775[0, 0, 0] : f32 from vector<1x1x1xf32>
    %777 = vector.broadcast %776 : f32 to vector<1x1xf32>
    %c0_255 = arith.constant 0 : index
    %c0_256 = arith.constant 0 : index
    %778 = vector.load %arg9[%c0_255, %c0_256] : memref<1x1xf32, #tpu.memory_space<vmem>>, vector<1x1xf32>
    tpu.vector_store %arg9[%c0_255, %c0_256], %777 {strides = array<i32>} : memref<1x1xf32, #tpu.memory_space<vmem>>, vector<1x1xf32>,
    return
  }
  func.func @transform_0(%arg0: i32) -> (i32, i32, i32) {
    %c0_i32 = arith.constant 0 : i32
    %c0_i32_0 = arith.constant 0 : i32
    %c0_i32_1 = arith.constant 0 : i32
    %c0_i32_2 = arith.constant 0 : i32
    return %c0_i32, %c0_i32_0, %c0_i32_1 : i32, i32, i32
  }
  func.func @transform_1(%arg0: i32) -> (i32, i32) {
    %c0_i32 = arith.constant 0 : i32
    %c0_i32_0 = arith.constant 0 : i32
    %c0_i32_1 = arith.constant 0 : i32
    return %c0_i32, %c0_i32_0 : i32, i32
  }
  func.func @transform_2(%arg0: i32) -> (i32, i32) {
    %c0_i32 = arith.constant 0 : i32
    %c0_i32_0 = arith.constant 0 : i32
    %c0_i32_1 = arith.constant 0 : i32
    return %c0_i32, %c0_i32_0 : i32, i32
  }
  func.func @transform_3(%arg0: i32) -> (i32, i32) {
    %c0_i32 = arith.constant 0 : i32
    %c0_i32_0 = arith.constant 0 : i32
    %c0_i32_1 = arith.constant 0 : i32
    return %c0_i32, %c0_i32_0 : i32, i32
  }
  func.func @transform_4(%arg0: i32) -> (i32, i32) {
    %c0_i32 = arith.constant 0 : i32
    %c0_i32_0 = arith.constant 0 : i32
    %c0_i32_1 = arith.constant 0 : i32
    return %c0_i32, %c0_i32_0 : i32, i32
  }
  func.func @transform_5(%arg0: i32) -> (i32, i32) {
    %c0_i32 = arith.constant 0 : i32
    %c0_i32_0 = arith.constant 0 : i32
    %c0_i32_1 = arith.constant 0 : i32
    return %c0_i32, %c0_i32_0 : i32, i32
  }
  func.func @transform_6(%arg0: i32) -> (i32, i32) {
    %c0_i32 = arith.constant 0 : i32
    %c0_i32_0 = arith.constant 0 : i32
    %c0_i32_1 = arith.constant 0 : i32
    return %c0_i32, %c0_i32_0 : i32, i32
  }
  func.func @transform_7(%arg0: i32) -> (i32, i32, i32) {
    %c0_i32 = arith.constant 0 : i32
    %c0_i32_0 = arith.constant 0 : i32
    %c0_i32_1 = arith.constant 0 : i32
    %c0_i32_2 = arith.constant 0 : i32
    return %c0_i32, %c0_i32_0, %c0_i32_1 : i32, i32, i32
  }
  func.func @transform_8(%arg0: i32) -> (i32, i32) {
    %c0_i32 = arith.constant 0 : i32
    %c0_i32_0 = arith.constant 0 : i32
    %c0_i32_1 = arith.constant 0 : i32
    return %c0_i32, %c0_i32_0 : i32, i32
  }
}

</mosaic_0001>

<llo_original>
// kernel: compute_loss.21
$region0: #{compute_loss.21}
  #allocation0 [shape = 'u32[]', space=smem, size = 0x4, offset = 0x4, fixed_abs, tag = 'smem constant byte address 0x4 - core index']
  #allocation1 [shape = 'u32[144,128]{1,0:T(1,128)}', space=vmem, size = 0x12000, scoped, tag = 'internal scratch']
  %s0 = inlined_call_operand.vmem [shape: bf16[4,22,16], index: 0, kind: input, shape index: {}]
  %s1 = inlined_call_operand.vmem [shape: f32[22,2], index: 1, kind: input, shape index: {}]
  %s2 = inlined_call_operand.vmem [shape: bf16[16,32], index: 2, kind: input, shape index: {}]
  %s3 = inlined_call_operand.vmem [shape: bf16[16,48], index: 3, kind: input, shape index: {}]
  %s4 = inlined_call_operand.vmem [shape: bf16[4,256], index: 4, kind: input, shape index: {}]
  %s5 = inlined_call_operand.vmem [shape: f32[22,54], index: 5, kind: input, shape index: {}]
  %s6 = inlined_call_operand.vmem [shape: bf16[2752,64], index: 6, kind: input, shape index: {}]
  %s7 = inlined_call_operand.vmem [shape: bf16[2,65,256], index: 7, kind: input, shape index: {}]
  %s8 = inlined_call_operand.hbm [shape: f32[1,1], index: 8, kind: output, shape index: {}]
  %s9 = sld [smem:[#allocation0]]
  $region42: #{compute_loss.21} parent=0
    _
  %s11 = ssub.s32 1, %s9
  %s12 = scalar_select 0, %s11, %s9
  $region1: #{compute_loss.21} parent=0
    #allocation2 [shape = 'u8[512]{0}', space=vmem, size = 0x400, scoped, tag = 'output window, operand 0, single buffered']
    #allocation3 [shape = 's32[1]{0}', space=sflag, size = 0x4, scoped, tag = 'scoped memory for compute_loss.21']
    %13 = vsyncpa [#allocation3], 0
    // Predicated region
    $region2: #{compute_loss.21} parent=1 // pred_check
      _
    $region3: #{compute_loss.21} parent=1 // pred_check_branch
      %15 = sbr.rel (0) target = $region5
    $region4: #{compute_loss.21} parent=1 // pred_region
      _
    $region5: #{compute_loss.21} parent=1 // pred_fallthru
      _
    // Predicated region
    $region6: #{compute_loss.21} parent=1 // pred_check
      _
    $region7: #{compute_loss.21} parent=1 // pred_check_branch
      %17 = sbr.rel (0) target = $region9
    $region8: #{compute_loss.21} parent=1 // pred_region
      _
    $region9: #{compute_loss.21} parent=1 // pred_fallthru
      _
    // Predicated region
    $region10: #{compute_loss.21} parent=1 // pred_check
      _
    $region11: #{compute_loss.21} parent=1 // pred_check_branch
      %19 = sbr.rel (0) target = $region13
    $region12: #{compute_loss.21} parent=1 // pred_region
      _
    $region13: #{compute_loss.21} parent=1 // pred_fallthru
      _
    // Predicated region
    $region14: #{compute_loss.21} parent=1 // pred_check
      _
    $region15: #{compute_loss.21} parent=1 // pred_check_branch
      %21 = sbr.rel (0) target = $region17
    $region16: #{compute_loss.21} parent=1 // pred_region
      _
    $region17: #{compute_loss.21} parent=1 // pred_fallthru
      _
    // Predicated region
    $region18: #{compute_loss.21} parent=1 // pred_check
      _
    $region19: #{compute_loss.21} parent=1 // pred_check_branch
      %23 = sbr.rel (0) target = $region21
    $region20: #{compute_loss.21} parent=1 // pred_region
      _
    $region21: #{compute_loss.21} parent=1 // pred_fallthru
      _
    // Predicated region
    $region22: #{compute_loss.21} parent=1 // pred_check
      _
    $region23: #{compute_loss.21} parent=1 // pred_check_branch
      %25 = sbr.rel (0) target = $region25
    $region24: #{compute_loss.21} parent=1 // pred_region
      _
    $region25: #{compute_loss.21} parent=1 // pred_fallthru
      _
    // Predicated region
    $region26: #{compute_loss.21} parent=1 // pred_check
      _
    $region27: #{compute_loss.21} parent=1 // pred_check_branch
      %27 = sbr.rel (0) target = $region29
    $region28: #{compute_loss.21} parent=1 // pred_region
      _
    $region29: #{compute_loss.21} parent=1 // pred_fallthru
      _
    // Predicated region
    $region30: #{compute_loss.21} parent=1 // pred_check
      _
    $region31: #{compute_loss.21} parent=1 // pred_check_branch
      %29 = sbr.rel (0) target = $region33
    $region32: #{compute_loss.21} parent=1 // pred_region
      _
    $region33: #{compute_loss.21} parent=1 // pred_fallthru
      _
    %v31 = vld [vmem:[%s0] sm:$0xf]
    %v32 = vld [vmem:[%s0 + $0x4] sm:$0xf]
    %v33 = vld [vmem:[%s0 + $0x8] sm:$0x7]
    %v34 = vunpack.c.l.bf16 %v31
    %v35 = vunpack.c.l.bf16 %v32
    %v36 = vunpack.c.l.bf16 %v33
    %s37 = scalar_lea.vmem %s0, 12
    %v38 = vld [vmem:[%s37] sm:$0xf]
    %v39 = vld [vmem:[%s37 + $0x4] sm:$0xf]
    %v40 = vld [vmem:[%s37 + $0x8] sm:$0x7]
    %v41 = vunpack.c.l.bf16 %v38
    %v42 = vunpack.c.l.bf16 %v39
    %v43 = vunpack.c.l.bf16 %v40
    %s44 = scalar_lea.vmem %s0, 24
    %v45 = vld [vmem:[%s44] sm:$0xf]
    %v46 = vld [vmem:[%s44 + $0x4] sm:$0xf]
    %v47 = vld [vmem:[%s44 + $0x8] sm:$0x7]
    %s48 = scalar_lea.vmem %s0, 36
    %v49 = vld [vmem:[%s48] sm:$0xf]
    %v50 = vld [vmem:[%s48 + $0x4] sm:$0xf]
    %v51 = vld [vmem:[%s48 + $0x8] sm:$0x7]
    %v52 = vunpack.c.l.bf16 %v49
    %v53 = vunpack.c.l.bf16 %v50
    %v54 = vunpack.c.l.bf16 %v51
    %v55 = vld [vmem:[%s1] sm:$0xff]
    %v56 = vld [vmem:[%s1 + $0x8] sm:$0xff]
    %v57 = vld [vmem:[%s1 + $0x10] sm:$0x3f]
    %59 = vset.pattern.permute.xlu0 0
    %60 = vperm.xlu0 %59, %v55
    %v61 = vpop.permute.xlu0 %60
    %64 = vset.pattern.permute.xlu0 0
    %65 = vperm.xlu0 %64, %v56
    %v66 = vpop.permute.xlu0 %65
    %69 = vset.pattern.permute.xlu0 0
    %70 = vperm.xlu0 %69, %v57
    %v71 = vpop.permute.xlu0 %70
    %v73 = vmul.f32 %v61, %v34
    %v74 = vmul.f32 %v66, %v35
    %v75 = vmul.f32 %v71, %v36
    %76 = vset.pattern.permute.xlu0 1
    %77 = vperm.xlu0 %76, %v55
    %v78 = vpop.permute.xlu0 %77
    %80 = vset.pattern.permute.xlu0 1
    %81 = vperm.xlu0 %80, %v56
    %v82 = vpop.permute.xlu0 %81
    %84 = vset.pattern.permute.xlu0 1
    %85 = vperm.xlu0 %84, %v57
    %v86 = vpop.permute.xlu0 %85
    %v88 = vmul.f32 %v78, %v41
    %v89 = vmul.f32 %v82, %v42
    %v90 = vmul.f32 %v86, %v43
    %v91 = vadd.f32 %v73, %v88
    %v92 = vadd.f32 %v74, %v89
    %v93 = vadd.f32 %v75, %v90
    %v94 = vpack.c.bf16 %v92, %v91
    %v95 = vpack.c.bf16 %v93, %v93
    %v96 = vld [vmem:[%s6 + $0x68] sm:$0xf]
    %v97 = vld [vmem:[%s6 + $0x6c] sm:$0xf]
    %v98 = vld [vmem:[%s6 + $0x70] sm:$0xf]
    %v99 = vld [vmem:[%s6 + $0x74] sm:$0xf]
    %v103 = vunpack.c.l.b16 %v45
    %v104 = vunpack.c.l.b16 %v46
    %v105 = vunpack.c.l.b16 %v47
    %v106 = vpack.c.b16 %v104, %v103
    %v107 = vpack.c.b16 %v105, %v105
    %v110 = vunpack.c.l.b16 %v98
    %v111 = vunpack.c.l.b16 %v99
    %v112 = vpack.c.b16 %v111, %v110
    %vm114 = vcmask 130048
    %v116 = vsel %vm114, %v106, 0
    %v119 = vsel %vm114, %v107, 0
    %121 = vmatprep.subr.bf16.mxu0 0
    %122 = vmatpush1.bf16.msra.mxu0 0
    %123 = vmatprep.subr.bf16.mxu0 0
    %124 = vmatpush1.bf16.msra.mxu0 0
    %125 = vmatprep.subr.bf16.mxu0 0
    %126 = vmatpush1.bf16.msra.mxu0 0
    %127 = vmatprep.subr.bf16.mxu0 0
    %128 = vmatpush1.bf16.msra.mxu0 0
    %129 = vmatprep.subr.bf16.mxu0 0
    %130 = vmatpush1.bf16.msra.mxu0 0
    %131 = vmatprep.subr.bf16.mxu0 0
    %132 = vmatpush1.bf16.msra.mxu0 0
    %133 = vmatprep.subr.bf16.mxu0 0
    %134 = vmatpush1.bf16.msra.mxu0 0
    %135 = vmatprep.subr.bf16.mxu0 0
    %136 = vmatpush1.bf16.msra.mxu0 %v112
    %137 = vmatprep.subr.bf16.mxu0 0
    %138 = vmatpush2.bf16.msra.mxu0 0
    %139 = vmatprep.subr.bf16.mxu0 0
    %140 = vmatpush2.bf16.msra.mxu0 0
    %141 = vmatprep.subr.bf16.mxu0 0
    %142 = vmatpush2.bf16.msra.mxu0 0
    %143 = vmatprep.subr.bf16.mxu0 0
    %144 = vmatpush2.bf16.msra.mxu0 0
    %145 = vmatprep.subr.bf16.mxu0 0
    %146 = vmatpush2.bf16.msra.mxu0 0
    %147 = vmatprep.subr.bf16.mxu0 0
    %148 = vmatpush2.bf16.msra.mxu0 0
    %149 = vmatprep.subr.bf16.mxu0 0
    %150 = vmatpush2.bf16.msra.mxu0 0
    %151 = vmatprep.subr.bf16.mxu0 0
    %152 = vmatpush2.bf16.msra.mxu0 0
    %153 = vmatprep.mubr.bf16.mxu0 0
    %154 = vmatmul.mubr.bf16.gmra.mxu0 %v116
    %v155 = vpop.f32.mrf.mxu0
    %v156 = vadd.f32 0.0, %v155
    %v157 = vpop.f32.mrf.mxu0
    %v158 = vpop.f32.mrf.mxu0
    %v159 = vadd.f32 0.0, %v158
    %v160 = vpop.f32.mrf.mxu0
    %161 = vmatprep.mubr.bf16.mxu0 0
    %162 = vmatmul.mubr.bf16.gmra.mxu0 %v119
    %v163 = vpop.f32.mrf.mxu0
    %v164 = vadd.f32 0.0, %v163
    %v165 = vpop.f32.mrf.mxu0
    %v166 = vpop.f32.mrf.mxu0
    %v167 = vpop.f32.mrf.mxu0
    %168 = vdwg.mxu0
    %v171 = vunpack.c.l.b16 %v96
    %v172 = vunpack.c.l.b16 %v97
    %v173 = vpack.c.b16 %v172, %v171
    %v176 = vsel %vm114, %v94, 0
    %v179 = vsel %vm114, %v95, 0
    %181 = vmatprep.subr.bf16.mxu0 0
    %182 = vmatpush1.bf16.msra.mxu0 0
    %183 = vmatprep.subr.bf16.mxu0 0
    %184 = vmatpush1.bf16.msra.mxu0 0
    %185 = vmatprep.subr.bf16.mxu0 0
    %186 = vmatpush1.bf16.msra.mxu0 0
    %187 = vmatprep.subr.bf16.mxu0 0
    %188 = vmatpush1.bf16.msra.mxu0 0
    %189 = vmatprep.subr.bf16.mxu0 0
    %190 = vmatpush1.bf16.msra.mxu0 0
    %191 = vmatprep.subr.bf16.mxu0 0
    %192 = vmatpush1.bf16.msra.mxu0 0
    %193 = vmatprep.subr.bf16.mxu0 0
    %194 = vmatpush1.bf16.msra.mxu0 0
    %195 = vmatprep.subr.bf16.mxu0 0
    %196 = vmatpush1.bf16.msra.mxu0 %v173
    %197 = vmatprep.subr.bf16.mxu0 0
    %198 = vmatpush2.bf16.msra.mxu0 0
    %199 = vmatprep.subr.bf16.mxu0 0
    %200 = vmatpush2.bf16.msra.mxu0 0
    %201 = vmatprep.subr.bf16.mxu0 0
    %202 = vmatpush2.bf16.msra.mxu0 0
    %203 = vmatprep.subr.bf16.mxu0 0
    %204 = vmatpush2.bf16.msra.mxu0 0
    %205 = vmatprep.subr.bf16.mxu0 0
    %206 = vmatpush2.bf16.msra.mxu0 0
    %207 = vmatprep.subr.bf16.mxu0 0
    %208 = vmatpush2.bf16.msra.mxu0 0
    %209 = vmatprep.subr.bf16.mxu0 0
    %210 = vmatpush2.bf16.msra.mxu0 0
    %211 = vmatprep.subr.bf16.mxu0 0
    %212 = vmatpush2.bf16.msra.mxu0 0
    %213 = vmatprep.mubr.bf16.mxu0 0
    %214 = vmatmul.mubr.bf16.gmra.mxu0 %v176
    %v215 = vpop.f32.mrf.mxu0
    %v216 = vadd.f32 %v156, %v215
    %v217 = vpop.f32.mrf.mxu0
    %v218 = vpop.f32.mrf.mxu0
    %v219 = vadd.f32 %v159, %v218
    %v220 = vpop.f32.mrf.mxu0
    %221 = vmatprep.mubr.bf16.mxu0 0
    %222 = vmatmul.mubr.bf16.gmra.mxu0 %v179
    %v223 = vpop.f32.mrf.mxu0
    %v224 = vadd.f32 %v164, %v223
    %v225 = vpop.f32.mrf.mxu0
    %v226 = vpop.f32.mrf.mxu0
    %v227 = vpop.f32.mrf.mxu0
    %228 = vdwg.mxu0
    %v229 = vld [vmem:[%s6 + $0x548] sm:$0x4]
    %v230 = vunpack.c.l.bf16 %v229
    %v231 = vlaneseq
    %v232 = vshrl.u32 %v231, 7
    %v233 = vsub.s32 4, %v232
    %v234 = vrot.slane %v230, %v233
    %v235 = vadd.f32 %v216, %v234
    %v236 = vadd.f32 %v219, %v234
    %v237 = vadd.f32 %v224, %v234
    %v238 = vmul.f32 %v235, 0.5
    %v239 = vmul.f32 %v236, 0.5
    %v240 = vmul.f32 %v237, 0.5
    %v241 = vmul.f32 %v235, 0.044715
    %v242 = vmul.f32 %v236, 0.044715
    %v243 = vmul.f32 %v237, 0.044715
    %v244 = vmul.f32 %v241, %v235
    %v245 = vmul.f32 %v242, %v236
    %v246 = vmul.f32 %v243, %v237
    %v247 = vmul.f32 %v244, %v235
    %v248 = vmul.f32 %v245, %v236
    %v249 = vmul.f32 %v246, %v237
    %v250 = vadd.f32 %v235, %v247
    %v251 = vadd.f32 %v236, %v248
    %v252 = vadd.f32 %v237, %v249
    %v253 = vmul.f32 %v250, 0.7978846
    %v254 = vmul.f32 %v251, 0.7978846
    %v255 = vmul.f32 %v252, 0.7978846
    %v256 = vtanh.pop %v253
    %v257 = vtanh.pop %v254
    %v258 = vtanh.pop %v255
    %v259 = vadd.f32 %v256, 1.0
    %v260 = vadd.f32 %v257, 1.0
    %v261 = vadd.f32 %v258, 1.0
    %v262 = vmul.f32 %v238, %v259
    %v263 = vmul.f32 %v239, %v260
    %v264 = vmul.f32 %v240, %v261
    %v265 = vpack.c.bf16 %v263, %v262
    %v266 = vpack.c.bf16 %v264, %v264
    %v267 = vld [vmem:[%s6 + $0x78] sm:$0xf]
    %v268 = vld [vmem:[%s6 + $0x7c] sm:$0xf]
    %v269 = vld [vmem:[%s6 + $0x80] sm:$0xf]
    %v270 = vld [vmem:[%s6 + $0x84] sm:$0xf]
    %v271 = vld [vmem:[%s6 + $0x88] sm:$0xf]
    %v272 = vld [vmem:[%s6 + $0x8c] sm:$0xf]
    %v273 = vld [vmem:[%s6 + $0x90] sm:$0xf]
    %v274 = vld [vmem:[%s6 + $0x94] sm:$0xf]
    %v275 = vlaneseq
    %v276 = vshrl.u32 %v275, 7
    %v277 = vsub.s32 5, %v276
    %v278 = vrot.slane %v230, %v277
    %v287 = vunpack.c.l.b16 %v267
    %v288 = vunpack.c.l.b16 %v268
    %v289 = vunpack.c.l.b16 %v269
    %v290 = vunpack.c.l.b16 %v270
    %v291 = vunpack.c.l.b16 %v271
    %v292 = vunpack.c.l.b16 %v272
    %v293 = vunpack.c.l.b16 %v273
    %v294 = vunpack.c.l.b16 %v274
    %v295 = vpack.c.b16 %v288, %v287
    %v296 = vpack.c.b16 %v290, %v289
    %v297 = vpack.c.b16 %v292, %v291
    %v298 = vpack.c.b16 %v294, %v293
    %vm303 = vcmask 523264
    %v305 = vsel %vm303, %v265, 0
    %v308 = vsel %vm303, %v266, 0
    %310 = vmatprep.subr.bf16.mxu0 0
    %311 = vmatpush1.bf16.msra.mxu0 0
    %312 = vmatprep.subr.bf16.mxu0 0
    %313 = vmatpush1.bf16.msra.mxu0 0
    %314 = vmatprep.subr.bf16.mxu0 0
    %315 = vmatpush1.bf16.msra.mxu0 0
    %316 = vmatprep.subr.bf16.mxu0 0
    %317 = vmatpush1.bf16.msra.mxu0 0
    %318 = vmatprep.subr.bf16.mxu0 0
    %319 = vmatpush1.bf16.msra.mxu0 %v298
    %320 = vmatprep.subr.bf16.mxu0 0
    %321 = vmatpush1.bf16.msra.mxu0 %v297
    %322 = vmatprep.subr.bf16.mxu0 0
    %323 = vmatpush1.bf16.msra.mxu0 %v296
    %324 = vmatprep.subr.bf16.mxu0 0
    %325 = vmatpush1.bf16.msra.mxu0 %v295
    %326 = vmatprep.subr.bf16.mxu0 0
    %327 = vmatpush2.bf16.msra.mxu0 0
    %328 = vmatprep.subr.bf16.mxu0 0
    %329 = vmatpush2.bf16.msra.mxu0 0
    %330 = vmatprep.subr.bf16.mxu0 0
    %331 = vmatpush2.bf16.msra.mxu0 0
    %332 = vmatprep.subr.bf16.mxu0 0
    %333 = vmatpush2.bf16.msra.mxu0 0
    %334 = vmatprep.subr.bf16.mxu0 0
    %335 = vmatpush2.bf16.msra.mxu0 0
    %336 = vmatprep.subr.bf16.mxu0 0
    %337 = vmatpush2.bf16.msra.mxu0 0
    %338 = vmatprep.subr.bf16.mxu0 0
    %339 = vmatpush2.bf16.msra.mxu0 0
    %340 = vmatprep.subr.bf16.mxu0 0
    %341 = vmatpush2.bf16.msra.mxu0 0
    %342 = vmatprep.mubr.bf16.mxu0 0
    %343 = vmatmul.mubr.bf16.gmra.mxu0 %v305
    %v344 = vpop.f32.mrf.mxu0
    %v345 = vadd.f32 %v278, %v344
    %v346 = vpop.f32.mrf.mxu0
    %v347 = vpop.f32.mrf.mxu0
    %v348 = vadd.f32 %v278, %v347
    %v349 = vpop.f32.mrf.mxu0
    %350 = vmatprep.mubr.bf16.mxu0 0
    %351 = vmatmul.mubr.bf16.gmra.mxu0 %v308
    %v352 = vpop.f32.mrf.mxu0
    %v353 = vadd.f32 %v278, %v352
    %v354 = vpop.f32.mrf.mxu0
    %v355 = vpop.f32.mrf.mxu0
    %v356 = vpop.f32.mrf.mxu0
    %357 = vdwg.mxu0
    %v358 = vmul.f32 %v345, 0.5
    %v359 = vmul.f32 %v348, 0.5
    %v360 = vmul.f32 %v353, 0.5
    %v361 = vmul.f32 %v345, 0.044715
    %v362 = vmul.f32 %v348, 0.044715
    %v363 = vmul.f32 %v353, 0.044715
    %v364 = vmul.f32 %v361, %v345
    %v365 = vmul.f32 %v362, %v348
    %v366 = vmul.f32 %v363, %v353
    %v367 = vmul.f32 %v364, %v345
    %v368 = vmul.f32 %v365, %v348
    %v369 = vmul.f32 %v366, %v353
    %v370 = vadd.f32 %v345, %v367
    %v371 = vadd.f32 %v348, %v368
    %v372 = vadd.f32 %v353, %v369
    %v373 = vmul.f32 %v370, 0.7978846
    %v374 = vmul.f32 %v371, 0.7978846
    %v375 = vmul.f32 %v372, 0.7978846
    %v376 = vtanh.pop %v373
    %v377 = vtanh.pop %v374
    %v378 = vtanh.pop %v375
    %v379 = vadd.f32 %v376, 1.0
    %v380 = vadd.f32 %v377, 1.0
    %v381 = vadd.f32 %v378, 1.0
    %v382 = vmul.f32 %v358, %v379
    %v383 = vmul.f32 %v359, %v380
    %v384 = vmul.f32 %v360, %v381
    %v385 = vpack.c.bf16 %v383, %v382
    %v386 = vpack.c.bf16 %v384, %v384
    %v387 = vld [vmem:[%s6 + $0x98] sm:$0xf]
    %v388 = vld [vmem:[%s6 + $0x9c] sm:$0xf]
    %v389 = vld [vmem:[%s6 + $0xa0] sm:$0xf]
    %v390 = vld [vmem:[%s6 + $0xa4] sm:$0xf]
    %v391 = vld [vmem:[%s6 + $0xa8] sm:$0xf]
    %v392 = vld [vmem:[%s6 + $0xac] sm:$0xf]
    %v393 = vld [vmem:[%s6 + $0xb0] sm:$0xf]
    %v394 = vld [vmem:[%s6 + $0xb4] sm:$0xf]
    %v395 = vld [vmem:[%s6 + $0x548] sm:$0x8]
    %v396 = vunpack.c.l.bf16 %v395
    %v397 = vlaneseq
    %v398 = vshrl.u32 %v397, 7
    %v399 = vsub.s32 6, %v398
    %v400 = vrot.slane %v396, %v399
    %v409 = vunpack.c.l.b16 %v387
    %v410 = vunpack.c.l.b16 %v388
    %v411 = vunpack.c.l.b16 %v389
    %v412 = vunpack.c.l.b16 %v390
    %v413 = vunpack.c.l.b16 %v391
    %v414 = vunpack.c.l.b16 %v392
    %v415 = vunpack.c.l.b16 %v393
    %v416 = vunpack.c.l.b16 %v394
    %v417 = vpack.c.b16 %v410, %v409
    %v418 = vpack.c.b16 %v412, %v411
    %v419 = vpack.c.b16 %v414, %v413
    %v420 = vpack.c.b16 %v416, %v415
    %v426 = vsel %vm303, %v385, 0
    %v429 = vsel %vm303, %v386, 0
    %431 = vmatprep.subr.bf16.mxu0 0
    %432 = vmatpush1.bf16.msra.mxu0 0
    %433 = vmatprep.subr.bf16.mxu0 0
    %434 = vmatpush1.bf16.msra.mxu0 0
    %435 = vmatprep.subr.bf16.mxu0 0
    %436 = vmatpush1.bf16.msra.mxu0 0
    %437 = vmatprep.subr.bf16.mxu0 0
    %438 = vmatpush1.bf16.msra.mxu0 0
    %439 = vmatprep.subr.bf16.mxu0 0
    %440 = vmatpush1.bf16.msra.mxu0 %v420
    %441 = vmatprep.subr.bf16.mxu0 0
    %442 = vmatpush1.bf16.msra.mxu0 %v419
    %443 = vmatprep.subr.bf16.mxu0 0
    %444 = vmatpush1.bf16.msra.mxu0 %v418
    %445 = vmatprep.subr.bf16.mxu0 0
    %446 = vmatpush1.bf16.msra.mxu0 %v417
    %447 = vmatprep.subr.bf16.mxu0 0
    %448 = vmatpush2.bf16.msra.mxu0 0
    %449 = vmatprep.subr.bf16.mxu0 0
    %450 = vmatpush2.bf16.msra.mxu0 0
    %451 = vmatprep.subr.bf16.mxu0 0
    %452 = vmatpush2.bf16.msra.mxu0 0
    %453 = vmatprep.subr.bf16.mxu0 0
    %454 = vmatpush2.bf16.msra.mxu0 0
    %455 = vmatprep.subr.bf16.mxu0 0
    %456 = vmatpush2.bf16.msra.mxu0 0
    %457 = vmatprep.subr.bf16.mxu0 0
    %458 = vmatpush2.bf16.msra.mxu0 0
    %459 = vmatprep.subr.bf16.mxu0 0
    %460 = vmatpush2.bf16.msra.mxu0 0
    %461 = vmatprep.subr.bf16.mxu0 0
    %462 = vmatpush2.bf16.msra.mxu0 0
    %463 = vmatprep.mubr.bf16.mxu0 0
    %464 = vmatmul.mubr.bf16.gmra.mxu0 %v426
    %v465 = vpop.f32.mrf.mxu0
    %v466 = vadd.f32 %v400, %v465
    %v467 = vpop.f32.mrf.mxu0
    %v468 = vpop.f32.mrf.mxu0
    %v469 = vadd.f32 %v400, %v468
    %v470 = vpop.f32.mrf.mxu0
    %471 = vmatprep.mubr.bf16.mxu0 0
    %472 = vmatmul.mubr.bf16.gmra.mxu0 %v429
    %v473 = vpop.f32.mrf.mxu0
    %v474 = vadd.f32 %v400, %v473
    %v475 = vpop.f32.mrf.mxu0
    %v476 = vpop.f32.mrf.mxu0
    %v477 = vpop.f32.mrf.mxu0
    %478 = vdwg.mxu0
    %v479 = vld [vmem:[%s2] sm:$0xf]
    %v480 = vld [vmem:[%s2 + $0x4] sm:$0xf]
    %v481 = vld [vmem:[%s6] sm:$0xf]
    %v482 = vld [vmem:[%s6 + $0x4] sm:$0xf]
    %v483 = vld [vmem:[%s6 + $0x8] sm:$0xf]
    %v484 = vld [vmem:[%s6 + $0xc] sm:$0xf]
    %v485 = vld [vmem:[%s6 + $0x548] sm:$0x1]
    %v486 = vunpack.c.l.bf16 %v485
    %v487 = vlaneseq
    %v488 = vshrl.u32 %v487, 7
    %v489 = vsub.s32 0, %v488
    %v490 = vrot.slane %v486, %v489
    %v493 = vunpack.c.l.b16 %v479
    %v494 = vunpack.c.l.b16 %v480
    %v495 = vpack.c.b16 %v494, %v493
    %v500 = vunpack.c.l.b16 %v481
    %v501 = vunpack.c.l.b16 %v482
    %v502 = vunpack.c.l.b16 %v483
    %v503 = vunpack.c.l.b16 %v484
    %v504 = vpack.c.b16 %v501, %v500
    %v505 = vpack.c.b16 %v503, %v502
    %vm508 = vcmask 261120
    %v510 = vsel %vm508, %v495, 0
    %512 = vmatprep.subr.bf16.mxu0 0
    %513 = vmatpush1.bf16.msra.mxu0 0
    %514 = vmatprep.subr.bf16.mxu0 0
    %515 = vmatpush1.bf16.msra.mxu0 0
    %516 = vmatprep.subr.bf16.mxu0 0
    %517 = vmatpush1.bf16.msra.mxu0 0
    %518 = vmatprep.subr.bf16.mxu0 0
    %519 = vmatpush1.bf16.msra.mxu0 0
    %520 = vmatprep.subr.bf16.mxu0 0
    %521 = vmatpush1.bf16.msra.mxu0 0
    %522 = vmatprep.subr.bf16.mxu0 0
    %523 = vmatpush1.bf16.msra.mxu0 0
    %524 = vmatprep.subr.bf16.mxu0 0
    %525 = vmatpush1.bf16.msra.mxu0 %v505
    %526 = vmatprep.subr.bf16.mxu0 0
    %527 = vmatpush1.bf16.msra.mxu0 %v504
    %528 = vmatprep.subr.bf16.mxu0 0
    %529 = vmatpush2.bf16.msra.mxu0 0
    %530 = vmatprep.subr.bf16.mxu0 0
    %531 = vmatpush2.bf16.msra.mxu0 0
    %532 = vmatprep.subr.bf16.mxu0 0
    %533 = vmatpush2.bf16.msra.mxu0 0
    %534 = vmatprep.subr.bf16.mxu0 0
    %535 = vmatpush2.bf16.msra.mxu0 0
    %536 = vmatprep.subr.bf16.mxu0 0
    %537 = vmatpush2.bf16.msra.mxu0 0
    %538 = vmatprep.subr.bf16.mxu0 0
    %539 = vmatpush2.bf16.msra.mxu0 0
    %540 = vmatprep.subr.bf16.mxu0 0
    %541 = vmatpush2.bf16.msra.mxu0 0
    %542 = vmatprep.subr.bf16.mxu0 0
    %543 = vmatpush2.bf16.msra.mxu0 0
    %544 = vmatprep.mubr.bf16.mxu0 0
    %545 = vmatmul.mubr.bf16.gmra.mxu0 %v510
    %v546 = vpop.f32.mrf.mxu0
    %v547 = vadd.f32 %v490, %v546
    %v548 = vpop.f32.mrf.mxu0
    %v549 = vpop.f32.mrf.mxu0
    %v550 = vadd.f32 %v490, %v549
    %v551 = vpop.f32.mrf.mxu0
    %552 = vdwg.mxu0
    %v553 = vmul.f32 %v547, 0.5
    %v554 = vmul.f32 %v550, 0.5
    %v555 = vmul.f32 %v547, 0.044715
    %v556 = vmul.f32 %v550, 0.044715
    %v557 = vmul.f32 %v555, %v547
    %v558 = vmul.f32 %v556, %v550
    %v559 = vmul.f32 %v557, %v547
    %v560 = vmul.f32 %v558, %v550
    %v561 = vadd.f32 %v547, %v559
    %v562 = vadd.f32 %v550, %v560
    %v563 = vmul.f32 %v561, 0.7978846
    %v564 = vmul.f32 %v562, 0.7978846
    %v565 = vtanh.pop %v563
    %v566 = vtanh.pop %v564
    %v567 = vadd.f32 %v565, 1.0
    %v568 = vadd.f32 %v566, 1.0
    %v569 = vmul.f32 %v553, %v567
    %v570 = vmul.f32 %v554, %v568
    %v571 = vpack.c.bf16 %v570, %v569
    %v572 = vld [vmem:[%s6 + $0x10] sm:$0xf]
    %v573 = vld [vmem:[%s6 + $0x14] sm:$0xf]
    %v574 = vld [vmem:[%s6 + $0x18] sm:$0xf]
    %v575 = vld [vmem:[%s6 + $0x1c] sm:$0xf]
    %v576 = vld [vmem:[%s6 + $0x20] sm:$0xf]
    %v577 = vld [vmem:[%s6 + $0x24] sm:$0xf]
    %v578 = vld [vmem:[%s6 + $0x28] sm:$0xf]
    %v579 = vld [vmem:[%s6 + $0x2c] sm:$0xf]
    %v580 = vlaneseq
    %v581 = vshrl.u32 %v580, 7
    %v582 = vsub.s32 1, %v581
    %v583 = vrot.slane %v486, %v582
    %v592 = vunpack.c.l.b16 %v572
    %v593 = vunpack.c.l.b16 %v573
    %v594 = vunpack.c.l.b16 %v574
    %v595 = vunpack.c.l.b16 %v575
    %v596 = vunpack.c.l.b16 %v576
    %v597 = vunpack.c.l.b16 %v577
    %v598 = vunpack.c.l.b16 %v578
    %v599 = vunpack.c.l.b16 %v579
    %v600 = vpack.c.b16 %v593, %v592
    %v601 = vpack.c.b16 %v595, %v594
    %v602 = vpack.c.b16 %v597, %v596
    %v603 = vpack.c.b16 %v599, %v598
    %v609 = vsel %vm303, %v571, 0
    %611 = vmatprep.subr.bf16.mxu0 0
    %612 = vmatpush1.bf16.msra.mxu0 0
    %613 = vmatprep.subr.bf16.mxu0 0
    %614 = vmatpush1.bf16.msra.mxu0 0
    %615 = vmatprep.subr.bf16.mxu0 0
    %616 = vmatpush1.bf16.msra.mxu0 0
    %617 = vmatprep.subr.bf16.mxu0 0
    %618 = vmatpush1.bf16.msra.mxu0 0
    %619 = vmatprep.subr.bf16.mxu0 0
    %620 = vmatpush1.bf16.msra.mxu0 %v603
    %621 = vmatprep.subr.bf16.mxu0 0
    %622 = vmatpush1.bf16.msra.mxu0 %v602
    %623 = vmatprep.subr.bf16.mxu0 0
    %624 = vmatpush1.bf16.msra.mxu0 %v601
    %625 = vmatprep.subr.bf16.mxu0 0
    %626 = vmatpush1.bf16.msra.mxu0 %v600
    %627 = vmatprep.subr.bf16.mxu0 0
    %628 = vmatpush2.bf16.msra.mxu0 0
    %629 = vmatprep.subr.bf16.mxu0 0
    %630 = vmatpush2.bf16.msra.mxu0 0
    %631 = vmatprep.subr.bf16.mxu0 0
    %632 = vmatpush2.bf16.msra.mxu0 0
    %633 = vmatprep.subr.bf16.mxu0 0
    %634 = vmatpush2.bf16.msra.mxu0 0
    %635 = vmatprep.subr.bf16.mxu0 0
    %636 = vmatpush2.bf16.msra.mxu0 0
    %637 = vmatprep.subr.bf16.mxu0 0
    %638 = vmatpush2.bf16.msra.mxu0 0
    %639 = vmatprep.subr.bf16.mxu0 0
    %640 = vmatpush2.bf16.msra.mxu0 0
    %641 = vmatprep.subr.bf16.mxu0 0
    %642 = vmatpush2.bf16.msra.mxu0 0
    %643 = vmatprep.mubr.bf16.mxu0 0
    %644 = vmatmul.mubr.bf16.gmra.mxu0 %v609
    %v645 = vpop.f32.mrf.mxu0
    %v646 = vadd.f32 %v583, %v645
    %v647 = vpop.f32.mrf.mxu0
    %v648 = vpop.f32.mrf.mxu0
    %v649 = vadd.f32 %v583, %v648
    %v650 = vpop.f32.mrf.mxu0
    %651 = vdwg.mxu0
    %v652 = vld [vmem:[%s6 + $0x528] sm:$0xf]
    %v653 = vld [vmem:[%s6 + $0x52c] sm:$0xf]
    %v654 = vunpack.c.l.bf16 %v652
    %v655 = vunpack.c.l.bf16 %v653
    %v656 = vadd.f32 %v646, %v654
    %v657 = vadd.f32 %v649, %v655
    %v658 = vpack.c.bf16 %v657, %v656
    %v659 = vld [vmem:[%s3] sm:$0xf]
    %v660 = vld [vmem:[%s3 + $0x4] sm:$0xf]
    %v661 = vld [vmem:[%s6 + $0x30] sm:$0xf]
    %v662 = vld [vmem:[%s6 + $0x34] sm:$0xf]
    %v663 = vld [vmem:[%s6 + $0x38] sm:$0xf]
    %v664 = vld [vmem:[%s6 + $0x3c] sm:$0xf]
    %v665 = vld [vmem:[%s6 + $0x40] sm:$0xf]
    %v666 = vld [vmem:[%s6 + $0x44] sm:$0xf]
    %v667 = vld [vmem:[%s6 + $0x548] sm:$0x2]
    %v668 = vunpack.c.l.bf16 %v667
    %v669 = vlaneseq
    %v670 = vshrl.u32 %v669, 7
    %v671 = vsub.s32 2, %v670
    %v672 = vrot.slane %v668, %v671
    %v675 = vunpack.c.l.b16 %v659
    %v676 = vunpack.c.l.b16 %v660
    %v677 = vpack.c.b16 %v676, %v675
    %v684 = vunpack.c.l.b16 %v661
    %v685 = vunpack.c.l.b16 %v662
    %v686 = vunpack.c.l.b16 %v663
    %v687 = vunpack.c.l.b16 %v664
    %v688 = vunpack.c.l.b16 %v665
    %v689 = vunpack.c.l.b16 %v666
    %v690 = vpack.c.b16 %v685, %v684
    %v691 = vpack.c.b16 %v687, %v686
    %v692 = vpack.c.b16 %v689, %v688
    %vm696 = vcmask 392192
    %v698 = vsel %vm696, %v677, 0
    %700 = vmatprep.subr.bf16.mxu0 0
    %701 = vmatpush1.bf16.msra.mxu0 0
    %702 = vmatprep.subr.bf16.mxu0 0
    %703 = vmatpush1.bf16.msra.mxu0 0
    %704 = vmatprep.subr.bf16.mxu0 0
    %705 = vmatpush1.bf16.msra.mxu0 0
    %706 = vmatprep.subr.bf16.mxu0 0
    %707 = vmatpush1.bf16.msra.mxu0 0
    %708 = vmatprep.subr.bf16.mxu0 0
    %709 = vmatpush1.bf16.msra.mxu0 0
    %710 = vmatprep.subr.bf16.mxu0 0
    %711 = vmatpush1.bf16.msra.mxu0 %v692
    %712 = vmatprep.subr.bf16.mxu0 0
    %713 = vmatpush1.bf16.msra.mxu0 %v691
    %714 = vmatprep.subr.bf16.mxu0 0
    %715 = vmatpush1.bf16.msra.mxu0 %v690
    %716 = vmatprep.subr.bf16.mxu0 0
    %717 = vmatpush2.bf16.msra.mxu0 0
    %718 = vmatprep.subr.bf16.mxu0 0
    %719 = vmatpush2.bf16.msra.mxu0 0
    %720 = vmatprep.subr.bf16.mxu0 0
    %721 = vmatpush2.bf16.msra.mxu0 0
    %722 = vmatprep.subr.bf16.mxu0 0
    %723 = vmatpush2.bf16.msra.mxu0 0
    %724 = vmatprep.subr.bf16.mxu0 0
    %725 = vmatpush2.bf16.msra.mxu0 0
    %726 = vmatprep.subr.bf16.mxu0 0
    %727 = vmatpush2.bf16.msra.mxu0 0
    %728 = vmatprep.subr.bf16.mxu0 0
    %729 = vmatpush2.bf16.msra.mxu0 0
    %730 = vmatprep.subr.bf16.mxu0 0
    %731 = vmatpush2.bf16.msra.mxu0 0
    %732 = vmatprep.mubr.bf16.mxu0 0
    %733 = vmatmul.mubr.bf16.gmra.mxu0 %v698
    %v734 = vpop.f32.mrf.mxu0
    %v735 = vadd.f32 %v672, %v734
    %v736 = vpop.f32.mrf.mxu0
    %v737 = vpop.f32.mrf.mxu0
    %v738 = vadd.f32 %v672, %v737
    %v739 = vpop.f32.mrf.mxu0
    %740 = vdwg.mxu0
    %v741 = vmul.f32 %v735, 0.5
    %v742 = vmul.f32 %v738, 0.5
    %v743 = vmul.f32 %v735, 0.044715
    %v744 = vmul.f32 %v738, 0.044715
    %v745 = vmul.f32 %v743, %v735
    %v746 = vmul.f32 %v744, %v738
    %v747 = vmul.f32 %v745, %v735
    %v748 = vmul.f32 %v746, %v738
    %v749 = vadd.f32 %v735, %v747
    %v750 = vadd.f32 %v738, %v748
    %v751 = vmul.f32 %v749, 0.7978846
    %v752 = vmul.f32 %v750, 0.7978846
    %v753 = vtanh.pop %v751
    %v754 = vtanh.pop %v752
    %v755 = vadd.f32 %v753, 1.0
    %v756 = vadd.f32 %v754, 1.0
    %v757 = vmul.f32 %v741, %v755
    %v758 = vmul.f32 %v742, %v756
    %v759 = vpack.c.bf16 %v758, %v757
    %v760 = vld [vmem:[%s6 + $0x48] sm:$0xf]
    %v761 = vld [vmem:[%s6 + $0x4c] sm:$0xf]
    %v762 = vld [vmem:[%s6 + $0x50] sm:$0xf]
    %v763 = vld [vmem:[%s6 + $0x54] sm:$0xf]
    %v764 = vld [vmem:[%s6 + $0x58] sm:$0xf]
    %v765 = vld [vmem:[%s6 + $0x5c] sm:$0xf]
    %v766 = vld [vmem:[%s6 + $0x60] sm:$0xf]
    %v767 = vld [vmem:[%s6 + $0x64] sm:$0xf]
    %v768 = vlaneseq
    %v769 = vshrl.u32 %v768, 7
    %v770 = vsub.s32 3, %v769
    %v771 = vrot.slane %v668, %v770
    %v780 = vunpack.c.l.b16 %v760
    %v781 = vunpack.c.l.b16 %v761
    %v782 = vunpack.c.l.b16 %v762
    %v783 = vunpack.c.l.b16 %v763
    %v784 = vunpack.c.l.b16 %v764
    %v785 = vunpack.c.l.b16 %v765
    %v786 = vunpack.c.l.b16 %v766
    %v787 = vunpack.c.l.b16 %v767
    %v788 = vpack.c.b16 %v781, %v780
    %v789 = vpack.c.b16 %v783, %v782
    %v790 = vpack.c.b16 %v785, %v784
    %v791 = vpack.c.b16 %v787, %v786
    %v797 = vsel %vm303, %v759, 0
    %799 = vmatprep.subr.bf16.mxu0 0
    %800 = vmatpush1.bf16.msra.mxu0 0
    %801 = vmatprep.subr.bf16.mxu0 0
    %802 = vmatpush1.bf16.msra.mxu0 0
    %803 = vmatprep.subr.bf16.mxu0 0
    %804 = vmatpush1.bf16.msra.mxu0 0
    %805 = vmatprep.subr.bf16.mxu0 0
    %806 = vmatpush1.bf16.msra.mxu0 0
    %807 = vmatprep.subr.bf16.mxu0 0
    %808 = vmatpush1.bf16.msra.mxu0 %v791
    %809 = vmatprep.subr.bf16.mxu0 0
    %810 = vmatpush1.bf16.msra.mxu0 %v790
    %811 = vmatprep.subr.bf16.mxu0 0
    %812 = vmatpush1.bf16.msra.mxu0 %v789
    %813 = vmatprep.subr.bf16.mxu0 0
    %814 = vmatpush1.bf16.msra.mxu0 %v788
    %815 = vmatprep.subr.bf16.mxu0 0
    %816 = vmatpush2.bf16.msra.mxu0 0
    %817 = vmatprep.subr.bf16.mxu0 0
    %818 = vmatpush2.bf16.msra.mxu0 0
    %819 = vmatprep.subr.bf16.mxu0 0
    %820 = vmatpush2.bf16.msra.mxu0 0
    %821 = vmatprep.subr.bf16.mxu0 0
    %822 = vmatpush2.bf16.msra.mxu0 0
    %823 = vmatprep.subr.bf16.mxu0 0
    %824 = vmatpush2.bf16.msra.mxu0 0
    %825 = vmatprep.subr.bf16.mxu0 0
    %826 = vmatpush2.bf16.msra.mxu0 0
    %827 = vmatprep.subr.bf16.mxu0 0
    %828 = vmatpush2.bf16.msra.mxu0 0
    %829 = vmatprep.subr.bf16.mxu0 0
    %830 = vmatpush2.bf16.msra.mxu0 0
    %831 = vmatprep.mubr.bf16.mxu0 0
    %832 = vmatmul.mubr.bf16.gmra.mxu0 %v797
    %v833 = vpop.f32.mrf.mxu0
    %v834 = vadd.f32 %v771, %v833
    %v835 = vpop.f32.mrf.mxu0
    %v836 = vpop.f32.mrf.mxu0
    %v837 = vadd.f32 %v771, %v836
    %v838 = vpop.f32.mrf.mxu0
    %839 = vdwg.mxu0
    %v840 = vld [vmem:[%s6 + $0x530] sm:$0xf]
    %v841 = vld [vmem:[%s6 + $0x534] sm:$0xf]
    %v842 = vunpack.c.l.bf16 %v840
    %v843 = vunpack.c.l.bf16 %v841
    %v844 = vadd.f32 %v834, %v842
    %v845 = vadd.f32 %v837, %v843
    %v846 = vpack.c.bf16 %v845, %v844
    %v847 = vld [vmem:[%s4] sm:$0x5]
    %v848 = vld [vmem:[%s6 + $0xb8] sm:$0xf]
    %v849 = vld [vmem:[%s6 + $0xbc] sm:$0xf]
    %v850 = vld [vmem:[%s6 + $0xc0] sm:$0xf]
    %v851 = vld [vmem:[%s6 + $0xc4] sm:$0xf]
    %v852 = vld [vmem:[%s6 + $0xc8] sm:$0xf]
    %v853 = vld [vmem:[%s6 + $0xcc] sm:$0xf]
    %v854 = vld [vmem:[%s6 + $0xd0] sm:$0xf]
    %v855 = vld [vmem:[%s6 + $0xd4] sm:$0xf]
    %v856 = vld [vmem:[%s6 + $0xd8] sm:$0xf]
    %v857 = vld [vmem:[%s6 + $0xdc] sm:$0xf]
    %v858 = vld [vmem:[%s6 + $0xe0] sm:$0xf]
    %v859 = vld [vmem:[%s6 + $0xe4] sm:$0xf]
    %v860 = vld [vmem:[%s6 + $0xe8] sm:$0xf]
    %v861 = vld [vmem:[%s6 + $0xec] sm:$0xf]
    %v862 = vld [vmem:[%s6 + $0xf0] sm:$0xf]
    %v863 = vld [vmem:[%s6 + $0xf4] sm:$0xf]
    %v864 = vld [vmem:[%s6 + $0xf8] sm:$0xf]
    %v865 = vld [vmem:[%s6 + $0xfc] sm:$0xf]
    %v866 = vld [vmem:[%s6 + $0x100] sm:$0xf]
    %v867 = vld [vmem:[%s6 + $0x104] sm:$0xf]
    %v868 = vld [vmem:[%s6 + $0x108] sm:$0xf]
    %v869 = vld [vmem:[%s6 + $0x10c] sm:$0xf]
    %v870 = vld [vmem:[%s6 + $0x110] sm:$0xf]
    %v871 = vld [vmem:[%s6 + $0x114] sm:$0xf]
    %v872 = vld [vmem:[%s6 + $0x118] sm:$0xf]
    %v873 = vld [vmem:[%s6 + $0x11c] sm:$0xf]
    %v874 = vld [vmem:[%s6 + $0x120] sm:$0xf]
    %v875 = vld [vmem:[%s6 + $0x124] sm:$0xf]
    %v876 = vld [vmem:[%s6 + $0x128] sm:$0xf]
    %v877 = vld [vmem:[%s6 + $0x12c] sm:$0xf]
    %v878 = vld [vmem:[%s6 + $0x130] sm:$0xf]
    %v879 = vld [vmem:[%s6 + $0x134] sm:$0xf]
    %v880 = vlaneseq
    %v881 = vshrl.u32 %v880, 7
    %v882 = vsub.s32 7, %v881
    %v883 = vrot.slane %v396, %v882
    %v886 = vunpack.c.l.s4 1983009808
    %v887 = vunpack.c.0.s8 %v886
    %v888 = vlaneseq
    %v889 = vshrl.u32 %v888, 7
    %v890 = vsub.s32 %v887, %v889
    %v891 = vrot.slane %v847, %v890
    %v892 = vcombine.high %v891, %v891
    %v927 = vunpack.c.l.b16 %v848
    %v928 = vunpack.c.l.b16 %v849
    %v929 = vunpack.c.l.b16 %v850
    %v930 = vunpack.c.l.b16 %v851
    %v931 = vunpack.c.l.b16 %v852
    %v932 = vunpack.c.l.b16 %v853
    %v933 = vunpack.c.l.b16 %v854
    %v934 = vunpack.c.l.b16 %v855
    %v935 = vunpack.c.l.b16 %v856
    %v936 = vunpack.c.l.b16 %v857
    %v937 = vunpack.c.l.b16 %v858
    %v938 = vunpack.c.l.b16 %v859
    %v939 = vunpack.c.l.b16 %v860
    %v940 = vunpack.c.l.b16 %v861
    %v941 = vunpack.c.l.b16 %v862
    %v942 = vunpack.c.l.b16 %v863
    %v943 = vunpack.c.l.b16 %v864
    %v944 = vunpack.c.l.b16 %v865
    %v945 = vunpack.c.l.b16 %v866
    %v946 = vunpack.c.l.b16 %v867
    %v947 = vunpack.c.l.b16 %v868
    %v948 = vunpack.c.l.b16 %v869
    %v949 = vunpack.c.l.b16 %v870
    %v950 = vunpack.c.l.b16 %v871
    %v951 = vunpack.c.l.b16 %v872
    %v952 = vunpack.c.l.b16 %v873
    %v953 = vunpack.c.l.b16 %v874
    %v954 = vunpack.c.l.b16 %v875
    %v955 = vunpack.c.l.b16 %v876
    %v956 = vunpack.c.l.b16 %v877
    %v957 = vunpack.c.l.b16 %v878
    %v958 = vunpack.c.l.b16 %v879
    %v959 = vpack.c.b16 %v928, %v927
    %v960 = vpack.c.b16 %v930, %v929
    %v961 = vpack.c.b16 %v932, %v931
    %v962 = vpack.c.b16 %v934, %v933
    %v963 = vpack.c.b16 %v936, %v935
    %v964 = vpack.c.b16 %v938, %v937
    %v965 = vpack.c.b16 %v940, %v939
    %v966 = vpack.c.b16 %v942, %v941
    %v967 = vpack.c.b16 %v944, %v943
    %v968 = vpack.c.b16 %v946, %v945
    %v969 = vpack.c.b16 %v948, %v947
    %v970 = vpack.c.b16 %v950, %v949
    %v971 = vpack.c.b16 %v952, %v951
    %v972 = vpack.c.b16 %v954, %v953
    %v973 = vpack.c.b16 %v956, %v955
    %v974 = vpack.c.b16 %v958, %v957
    %991 = vmatprep.subr.bf16.mxu0 0
    %992 = vmatpush1.bf16.msra.mxu0 %v966
    %993 = vmatprep.subr.bf16.mxu0 0
    %994 = vmatpush1.bf16.msra.mxu0 %v965
    %995 = vmatprep.subr.bf16.mxu0 0
    %996 = vmatpush1.bf16.msra.mxu0 %v964
    %997 = vmatprep.subr.bf16.mxu0 0
    %998 = vmatpush1.bf16.msra.mxu0 %v963
    %999 = vmatprep.subr.bf16.mxu0 0
    %1000 = vmatpush1.bf16.msra.mxu0 %v962
    %1001 = vmatprep.subr.bf16.mxu0 0
    %1002 = vmatpush1.bf16.msra.mxu0 %v961
    %1003 = vmatprep.subr.bf16.mxu0 0
    %1004 = vmatpush1.bf16.msra.mxu0 %v960
    %1005 = vmatprep.subr.bf16.mxu0 0
    %1006 = vmatpush1.bf16.msra.mxu0 %v959
    %1007 = vmatprep.subr.bf16.mxu0 0
    %1008 = vmatpush2.bf16.msra.mxu0 %v974
    %1009 = vmatprep.subr.bf16.mxu0 0
    %1010 = vmatpush2.bf16.msra.mxu0 %v973
    %1011 = vmatprep.subr.bf16.mxu0 0
    %1012 = vmatpush2.bf16.msra.mxu0 %v972
    %1013 = vmatprep.subr.bf16.mxu0 0
    %1014 = vmatpush2.bf16.msra.mxu0 %v971
    %1015 = vmatprep.subr.bf16.mxu0 0
    %1016 = vmatpush2.bf16.msra.mxu0 %v970
    %1017 = vmatprep.subr.bf16.mxu0 0
    %1018 = vmatpush2.bf16.msra.mxu0 %v969
    %1019 = vmatprep.subr.bf16.mxu0 0
    %1020 = vmatpush2.bf16.msra.mxu0 %v968
    %1021 = vmatprep.subr.bf16.mxu0 0
    %1022 = vmatpush2.bf16.msra.mxu0 %v967
    %1023 = vmatprep.mubr.bf16.mxu0 %v892
    %1024 = vmatmul.mubr.bf16.gmra.mxu0 %v891
    %v1025 = vpop.f32.mrf.mxu0
    %v1026 = vadd.f32 %v883, %v1025
    %v1027 = vpop.f32.mrf.mxu0
    %v1028 = vpop.f32.mrf.mxu0
    %v1029 = vpop.f32.mrf.mxu0
    %1030 = vdwg.mxu0
    %v1031 = vsub.f32 0.0, %v1026
    %v1032 = vmul.f32 %v1031, 1.442695
    %v1033 = vpow.pop %v1032
    %v1034 = vadd.f32 %v1033, 1.0
    %v1035 = vrcp.pop %v1034
    %v1036 = vmul.f32 1.0, %v1035
    %v1037 = vmul.f32 %v1026, %v1036
    %v1038 = vpack.c.bf16 %v1037, %v1037
    %v1039 = vld [vmem:[%s6 + $0x138] sm:$0xf]
    %v1040 = vld [vmem:[%s6 + $0x13c] sm:$0xf]
    %v1041 = vld [vmem:[%s6 + $0x140] sm:$0xf]
    %v1042 = vld [vmem:[%s6 + $0x144] sm:$0xf]
    %v1043 = vld [vmem:[%s6 + $0x148] sm:$0xf]
    %v1044 = vld [vmem:[%s6 + $0x14c] sm:$0xf]
    %v1045 = vld [vmem:[%s6 + $0x150] sm:$0xf]
    %v1046 = vld [vmem:[%s6 + $0x154] sm:$0xf]
    %v1047 = vld [vmem:[%s6 + $0x54c] sm:$0x1]
    %v1048 = vunpack.c.l.bf16 %v1047
    %v1049 = vlaneseq
    %v1050 = vshrl.u32 %v1049, 7
    %v1051 = vsub.s32 0, %v1050
    %v1052 = vrot.slane %v1048, %v1051
    %v1061 = vunpack.c.l.b16 %v1039
    %v1062 = vunpack.c.l.b16 %v1040
    %v1063 = vunpack.c.l.b16 %v1041
    %v1064 = vunpack.c.l.b16 %v1042
    %v1065 = vunpack.c.l.b16 %v1043
    %v1066 = vunpack.c.l.b16 %v1044
    %v1067 = vunpack.c.l.b16 %v1045
    %v1068 = vunpack.c.l.b16 %v1046
    %v1069 = vpack.c.b16 %v1062, %v1061
    %v1070 = vpack.c.b16 %v1064, %v1063
    %v1071 = vpack.c.b16 %v1066, %v1065
    %v1072 = vpack.c.b16 %v1068, %v1067
    %v1078 = vsel %vm303, %v1038, 0
    %1080 = vmatprep.subr.bf16.mxu0 0
    %1081 = vmatpush1.bf16.msra.mxu0 0
    %1082 = vmatprep.subr.bf16.mxu0 0
    %1083 = vmatpush1.bf16.msra.mxu0 0
    %1084 = vmatprep.subr.bf16.mxu0 0
    %1085 = vmatpush1.bf16.msra.mxu0 0
    %1086 = vmatprep.subr.bf16.mxu0 0
    %1087 = vmatpush1.bf16.msra.mxu0 0
    %1088 = vmatprep.subr.bf16.mxu0 0
    %1089 = vmatpush1.bf16.msra.mxu0 %v1072
    %1090 = vmatprep.subr.bf16.mxu0 0
    %1091 = vmatpush1.bf16.msra.mxu0 %v1071
    %1092 = vmatprep.subr.bf16.mxu0 0
    %1093 = vmatpush1.bf16.msra.mxu0 %v1070
    %1094 = vmatprep.subr.bf16.mxu0 0
    %1095 = vmatpush1.bf16.msra.mxu0 %v1069
    %1096 = vmatprep.subr.bf16.mxu0 0
    %1097 = vmatpush2.bf16.msra.mxu0 0
    %1098 = vmatprep.subr.bf16.mxu0 0
    %1099 = vmatpush2.bf16.msra.mxu0 0
    %1100 = vmatprep.subr.bf16.mxu0 0
    %1101 = vmatpush2.bf16.msra.mxu0 0
    %1102 = vmatprep.subr.bf16.mxu0 0
    %1103 = vmatpush2.bf16.msra.mxu0 0
    %1104 = vmatprep.subr.bf16.mxu0 0
    %1105 = vmatpush2.bf16.msra.mxu0 0
    %1106 = vmatprep.subr.bf16.mxu0 0
    %1107 = vmatpush2.bf16.msra.mxu0 0
    %1108 = vmatprep.subr.bf16.mxu0 0
    %1109 = vmatpush2.bf16.msra.mxu0 0
    %1110 = vmatprep.subr.bf16.mxu0 0
    %1111 = vmatpush2.bf16.msra.mxu0 0
    %1112 = vmatprep.mubr.bf16.mxu0 0
    %1113 = vmatmul.mubr.bf16.gmra.mxu0 %v1078
    %v1114 = vpop.f32.mrf.mxu0
    %v1115 = vadd.f32 %v1052, %v1114
    %v1116 = vpop.f32.mrf.mxu0
    %v1117 = vpop.f32.mrf.mxu0
    %v1118 = vpop.f32.mrf.mxu0
    %1119 = vdwg.mxu0
    %v1120 = vld [vmem:[%s4] sm:$0xa]
    %v1121 = vld [vmem:[%s6 + $0x158] sm:$0xf]
    %v1122 = vld [vmem:[%s6 + $0x15c] sm:$0xf]
    %v1123 = vld [vmem:[%s6 + $0x160] sm:$0xf]
    %v1124 = vld [vmem:[%s6 + $0x164] sm:$0xf]
    %v1125 = vld [vmem:[%s6 + $0x168] sm:$0xf]
    %v1126 = vld [vmem:[%s6 + $0x16c] sm:$0xf]
    %v1127 = vld [vmem:[%s6 + $0x170] sm:$0xf]
    %v1128 = vld [vmem:[%s6 + $0x174] sm:$0xf]
    %v1129 = vld [vmem:[%s6 + $0x178] sm:$0xf]
    %v1130 = vld [vmem:[%s6 + $0x17c] sm:$0xf]
    %v1131 = vld [vmem:[%s6 + $0x180] sm:$0xf]
    %v1132 = vld [vmem:[%s6 + $0x184] sm:$0xf]
    %v1133 = vld [vmem:[%s6 + $0x188] sm:$0xf]
    %v1134 = vld [vmem:[%s6 + $0x18c] sm:$0xf]
    %v1135 = vld [vmem:[%s6 + $0x190] sm:$0xf]
    %v1136 = vld [vmem:[%s6 + $0x194] sm:$0xf]
    %v1137 = vld [vmem:[%s6 + $0x198] sm:$0xf]
    %v1138 = vld [vmem:[%s6 + $0x19c] sm:$0xf]
    %v1139 = vld [vmem:[%s6 + $0x1a0] sm:$0xf]
    %v1140 = vld [vmem:[%s6 + $0x1a4] sm:$0xf]
    %v1141 = vld [vmem:[%s6 + $0x1a8] sm:$0xf]
    %v1142 = vld [vmem:[%s6 + $0x1ac] sm:$0xf]
    %v1143 = vld [vmem:[%s6 + $0x1b0] sm:$0xf]
    %v1144 = vld [vmem:[%s6 + $0x1b4] sm:$0xf]
    %v1145 = vld [vmem:[%s6 + $0x1b8] sm:$0xf]
    %v1146 = vld [vmem:[%s6 + $0x1bc] sm:$0xf]
    %v1147 = vld [vmem:[%s6 + $0x1c0] sm:$0xf]
    %v1148 = vld [vmem:[%s6 + $0x1c4] sm:$0xf]
    %v1149 = vld [vmem:[%s6 + $0x1c8] sm:$0xf]
    %v1150 = vld [vmem:[%s6 + $0x1cc] sm:$0xf]
    %v1151 = vld [vmem:[%s6 + $0x1d0] sm:$0xf]
    %v1152 = vld [vmem:[%s6 + $0x1d4] sm:$0xf]
    %v1153 = vlaneseq
    %v1154 = vshrl.u32 %v1153, 7
    %v1155 = vsub.s32 1, %v1154
    %v1156 = vrot.slane %v1048, %v1155
    %v1159 = vunpack.c.l.s4 1983009808
    %v1160 = vunpack.c.0.s8 %v1159
    %v1161 = vlaneseq
    %v1162 = vshrl.u32 %v1161, 7
    %v1163 = vsub.s32 %v1160, %v1162
    %v1164 = vrot.slane %v1120, %v1163
    %v1165 = vcombine.high %v1164, %v1164
    %v1166 = vrot.slane %v1164, 1
    %v1167 = vrot.slane %v1165, 1
    %v1202 = vunpack.c.l.b16 %v1121
    %v1203 = vunpack.c.l.b16 %v1122
    %v1204 = vunpack.c.l.b16 %v1123
    %v1205 = vunpack.c.l.b16 %v1124
    %v1206 = vunpack.c.l.b16 %v1125
    %v1207 = vunpack.c.l.b16 %v1126
    %v1208 = vunpack.c.l.b16 %v1127
    %v1209 = vunpack.c.l.b16 %v1128
    %v1210 = vunpack.c.l.b16 %v1129
    %v1211 = vunpack.c.l.b16 %v1130
    %v1212 = vunpack.c.l.b16 %v1131
    %v1213 = vunpack.c.l.b16 %v1132
    %v1214 = vunpack.c.l.b16 %v1133
    %v1215 = vunpack.c.l.b16 %v1134
    %v1216 = vunpack.c.l.b16 %v1135
    %v1217 = vunpack.c.l.b16 %v1136
    %v1218 = vunpack.c.l.b16 %v1137
    %v1219 = vunpack.c.l.b16 %v1138
    %v1220 = vunpack.c.l.b16 %v1139
    %v1221 = vunpack.c.l.b16 %v1140
    %v1222 = vunpack.c.l.b16 %v1141
    %v1223 = vunpack.c.l.b16 %v1142
    %v1224 = vunpack.c.l.b16 %v1143
    %v1225 = vunpack.c.l.b16 %v1144
    %v1226 = vunpack.c.l.b16 %v1145
    %v1227 = vunpack.c.l.b16 %v1146
    %v1228 = vunpack.c.l.b16 %v1147
    %v1229 = vunpack.c.l.b16 %v1148
    %v1230 = vunpack.c.l.b16 %v1149
    %v1231 = vunpack.c.l.b16 %v1150
    %v1232 = vunpack.c.l.b16 %v1151
    %v1233 = vunpack.c.l.b16 %v1152
    %v1234 = vpack.c.b16 %v1203, %v1202
    %v1235 = vpack.c.b16 %v1205, %v1204
    %v1236 = vpack.c.b16 %v1207, %v1206
    %v1237 = vpack.c.b16 %v1209, %v1208
    %v1238 = vpack.c.b16 %v1211, %v1210
    %v1239 = vpack.c.b16 %v1213, %v1212
    %v1240 = vpack.c.b16 %v1215, %v1214
    %v1241 = vpack.c.b16 %v1217, %v1216
    %v1242 = vpack.c.b16 %v1219, %v1218
    %v1243 = vpack.c.b16 %v1221, %v1220
    %v1244 = vpack.c.b16 %v1223, %v1222
    %v1245 = vpack.c.b16 %v1225, %v1224
    %v1246 = vpack.c.b16 %v1227, %v1226
    %v1247 = vpack.c.b16 %v1229, %v1228
    %v1248 = vpack.c.b16 %v1231, %v1230
    %v1249 = vpack.c.b16 %v1233, %v1232
    %1266 = vmatprep.subr.bf16.mxu0 0
    %1267 = vmatpush1.bf16.msra.mxu0 %v1241
    %1268 = vmatprep.subr.bf16.mxu0 0
    %1269 = vmatpush1.bf16.msra.mxu0 %v1240
    %1270 = vmatprep.subr.bf16.mxu0 0
    %1271 = vmatpush1.bf16.msra.mxu0 %v1239
    %1272 = vmatprep.subr.bf16.mxu0 0
    %1273 = vmatpush1.bf16.msra.mxu0 %v1238
    %1274 = vmatprep.subr.bf16.mxu0 0
    %1275 = vmatpush1.bf16.msra.mxu0 %v1237
    %1276 = vmatprep.subr.bf16.mxu0 0
    %1277 = vmatpush1.bf16.msra.mxu0 %v1236
    %1278 = vmatprep.subr.bf16.mxu0 0
    %1279 = vmatpush1.bf16.msra.mxu0 %v1235
    %1280 = vmatprep.subr.bf16.mxu0 0
    %1281 = vmatpush1.bf16.msra.mxu0 %v1234
    %1282 = vmatprep.subr.bf16.mxu0 0
    %1283 = vmatpush2.bf16.msra.mxu0 %v1249
    %1284 = vmatprep.subr.bf16.mxu0 0
    %1285 = vmatpush2.bf16.msra.mxu0 %v1248
    %1286 = vmatprep.subr.bf16.mxu0 0
    %1287 = vmatpush2.bf16.msra.mxu0 %v1247
    %1288 = vmatprep.subr.bf16.mxu0 0
    %1289 = vmatpush2.bf16.msra.mxu0 %v1246
    %1290 = vmatprep.subr.bf16.mxu0 0
    %1291 = vmatpush2.bf16.msra.mxu0 %v1245
    %1292 = vmatprep.subr.bf16.mxu0 0
    %1293 = vmatpush2.bf16.msra.mxu0 %v1244
    %1294 = vmatprep.subr.bf16.mxu0 0
    %1295 = vmatpush2.bf16.msra.mxu0 %v1243
    %1296 = vmatprep.subr.bf16.mxu0 0
    %1297 = vmatpush2.bf16.msra.mxu0 %v1242
    %1298 = vmatprep.mubr.bf16.mxu0 %v1167
    %1299 = vmatmul.mubr.bf16.gmra.mxu0 %v1166
    %v1300 = vpop.f32.mrf.mxu0
    %v1301 = vadd.f32 %v1156, %v1300
    %v1302 = vpop.f32.mrf.mxu0
    %v1303 = vpop.f32.mrf.mxu0
    %v1304 = vpop.f32.mrf.mxu0
    %1305 = vdwg.mxu0
    %v1306 = vsub.f32 0.0, %v1301
    %v1307 = vmul.f32 %v1306, 1.442695
    %v1308 = vpow.pop %v1307
    %v1309 = vadd.f32 %v1308, 1.0
    %v1310 = vrcp.pop %v1309
    %v1311 = vmul.f32 1.0, %v1310
    %v1312 = vmul.f32 %v1301, %v1311
    %v1313 = vpack.c.bf16 %v1312, %v1312
    %v1314 = vld [vmem:[%s6 + $0x1d8] sm:$0xf]
    %v1315 = vld [vmem:[%s6 + $0x1dc] sm:$0xf]
    %v1316 = vld [vmem:[%s6 + $0x1e0] sm:$0xf]
    %v1317 = vld [vmem:[%s6 + $0x1e4] sm:$0xf]
    %v1318 = vld [vmem:[%s6 + $0x1e8] sm:$0xf]
    %v1319 = vld [vmem:[%s6 + $0x1ec] sm:$0xf]
    %v1320 = vld [vmem:[%s6 + $0x1f0] sm:$0xf]
    %v1321 = vld [vmem:[%s6 + $0x1f4] sm:$0xf]
    %v1322 = vld [vmem:[%s6 + $0x54c] sm:$0x2]
    %v1323 = vunpack.c.l.bf16 %v1322
    %v1324 = vlaneseq
    %v1325 = vshrl.u32 %v1324, 7
    %v1326 = vsub.s32 2, %v1325
    %v1327 = vrot.slane %v1323, %v1326
    %v1336 = vunpack.c.l.b16 %v1314
    %v1337 = vunpack.c.l.b16 %v1315
    %v1338 = vunpack.c.l.b16 %v1316
    %v1339 = vunpack.c.l.b16 %v1317
    %v1340 = vunpack.c.l.b16 %v1318
    %v1341 = vunpack.c.l.b16 %v1319
    %v1342 = vunpack.c.l.b16 %v1320
    %v1343 = vunpack.c.l.b16 %v1321
    %v1344 = vpack.c.b16 %v1337, %v1336
    %v1345 = vpack.c.b16 %v1339, %v1338
    %v1346 = vpack.c.b16 %v1341, %v1340
    %v1347 = vpack.c.b16 %v1343, %v1342
    %v1353 = vsel %vm303, %v1313, 0
    %1355 = vmatprep.subr.bf16.mxu0 0
    %1356 = vmatpush1.bf16.msra.mxu0 0
    %1357 = vmatprep.subr.bf16.mxu0 0
    %1358 = vmatpush1.bf16.msra.mxu0 0
    %1359 = vmatprep.subr.bf16.mxu0 0
    %1360 = vmatpush1.bf16.msra.mxu0 0
    %1361 = vmatprep.subr.bf16.mxu0 0
    %1362 = vmatpush1.bf16.msra.mxu0 0
    %1363 = vmatprep.subr.bf16.mxu0 0
    %1364 = vmatpush1.bf16.msra.mxu0 %v1347
    %1365 = vmatprep.subr.bf16.mxu0 0
    %1366 = vmatpush1.bf16.msra.mxu0 %v1346
    %1367 = vmatprep.subr.bf16.mxu0 0
    %1368 = vmatpush1.bf16.msra.mxu0 %v1345
    %1369 = vmatprep.subr.bf16.mxu0 0
    %1370 = vmatpush1.bf16.msra.mxu0 %v1344
    %1371 = vmatprep.subr.bf16.mxu0 0
    %1372 = vmatpush2.bf16.msra.mxu0 0
    %1373 = vmatprep.subr.bf16.mxu0 0
    %1374 = vmatpush2.bf16.msra.mxu0 0
    %1375 = vmatprep.subr.bf16.mxu0 0
    %1376 = vmatpush2.bf16.msra.mxu0 0
    %1377 = vmatprep.subr.bf16.mxu0 0
    %1378 = vmatpush2.bf16.msra.mxu0 0
    %1379 = vmatprep.subr.bf16.mxu0 0
    %1380 = vmatpush2.bf16.msra.mxu0 0
    %1381 = vmatprep.subr.bf16.mxu0 0
    %1382 = vmatpush2.bf16.msra.mxu0 0
    %1383 = vmatprep.subr.bf16.mxu0 0
    %1384 = vmatpush2.bf16.msra.mxu0 0
    %1385 = vmatprep.subr.bf16.mxu0 0
    %1386 = vmatpush2.bf16.msra.mxu0 0
    %1387 = vmatprep.mubr.bf16.mxu0 0
    %1388 = vmatmul.mubr.bf16.gmra.mxu0 %v1353
    %v1389 = vpop.f32.mrf.mxu0
    %v1390 = vadd.f32 %v1327, %v1389
    %v1391 = vpop.f32.mrf.mxu0
    %v1392 = vpop.f32.mrf.mxu0
    %v1393 = vpop.f32.mrf.mxu0
    %1394 = vdwg.mxu0
    %v1395 = vld [vmem:[%s6 + $0x538] sm:$0xf]
    %v1396 = vld [vmem:[%s6 + $0x53c] sm:$0xf]
    %v1397 = vld [vmem:[%s6 + $0x540] sm:$0x7]
    %v1398 = vunpack.c.l.bf16 %v1395
    %v1399 = vunpack.c.l.bf16 %v1396
    %v1400 = vunpack.c.l.bf16 %v1397
    %v1401 = vpack.c.bf16 %v1115, %v1115
    %v1402 = vpack.c.bf16 %v1390, %v1390
    %v1406 = vunpack.c.l.b16 %v1395
    %v1407 = vunpack.c.l.b16 %v1396
    %v1408 = vunpack.c.l.b16 %v1397
    %v1409 = vpack.c.b16 %v1407, %v1406
    %v1410 = vpack.c.b16 %v1408, %v1408
    %1411 = vrot.lane.b32.xlu0 %v1409, 122
    %v1412 = vpop.permute.xlu0 %1411
    %1413 = vrot.lane.b32.xlu0 %v1410, 122
    %v1414 = vpop.permute.xlu0 %1413
    %vm1415 = vcmask 15360
    %v1417 = vsel %vm1415, %v1412, 0
    %v1420 = vsel %vm1415, %v1414, 0
    %vm1422 = vcmask 1040384
    %v1424 = vsel %vm1422, %v1402, 0
    %1426 = vmatprep.subr.bf16.mxu0 0
    %1427 = vmatpush1.bf16.msra.mxu0 0
    %1428 = vmatprep.subr.bf16.mxu0 0
    %1429 = vmatpush1.bf16.msra.mxu0 0
    %1430 = vmatprep.subr.bf16.mxu0 0
    %1431 = vmatpush1.bf16.msra.mxu0 0
    %1432 = vmatprep.subr.bf16.mxu0 0
    %1433 = vmatpush1.bf16.msra.mxu0 0
    %1434 = vmatprep.subr.bf16.mxu0 0
    %1435 = vmatpush1.bf16.msra.mxu0 0
    %1436 = vmatprep.subr.bf16.mxu0 0
    %1437 = vmatpush1.bf16.msra.mxu0 0
    %1438 = vmatprep.subr.bf16.mxu0 0
    %1439 = vmatpush1.bf16.msra.mxu0 0
    %1440 = vmatprep.subr.bf16.mxu0 0
    %1441 = vmatpush1.bf16.msra.mxu0 %v1424
    %1442 = vmatprep.subr.bf16.mxu0 0
    %1443 = vmatpush2.bf16.msra.mxu0 0
    %1444 = vmatprep.subr.bf16.mxu0 0
    %1445 = vmatpush2.bf16.msra.mxu0 0
    %1446 = vmatprep.subr.bf16.mxu0 0
    %1447 = vmatpush2.bf16.msra.mxu0 0
    %1448 = vmatprep.subr.bf16.mxu0 0
    %1449 = vmatpush2.bf16.msra.mxu0 0
    %1450 = vmatprep.subr.bf16.mxu0 0
    %1451 = vmatpush2.bf16.msra.mxu0 0
    %1452 = vmatprep.subr.bf16.mxu0 0
    %1453 = vmatpush2.bf16.msra.mxu0 0
    %1454 = vmatprep.subr.bf16.mxu0 0
    %1455 = vmatpush2.bf16.msra.mxu0 0
    %1456 = vmatprep.subr.bf16.mxu0 0
    %1457 = vmatpush2.bf16.msra.mxu0 0
    %1458 = vmatprep.mubr.bf16.mxu0 0
    %1459 = vmatmul.mubr.bf16.gmra.mxu0 %v1417
    %v1460 = vpop.f32.mrf.mxu0
    %v1461 = vadd.f32 0.0, %v1460
    %v1462 = vpop.f32.mrf.mxu0
    %v1463 = vpop.f32.mrf.mxu0
    %v1464 = vadd.f32 0.0, %v1463
    %v1465 = vpop.f32.mrf.mxu0
    %1466 = vmatprep.mubr.bf16.mxu0 0
    %1467 = vmatmul.mubr.bf16.gmra.mxu0 %v1420
    %v1468 = vpop.f32.mrf.mxu0
    %v1469 = vadd.f32 0.0, %v1468
    %v1470 = vpop.f32.mrf.mxu0
    %v1471 = vpop.f32.mrf.mxu0
    %v1472 = vpop.f32.mrf.mxu0
    %1473 = vdwg.mxu0
    %1474 = vrot.lane.b32.xlu0 %v1409, 124
    %v1475 = vpop.permute.xlu0 %1474
    %1476 = vrot.lane.b32.xlu0 %v1410, 124
    %v1477 = vpop.permute.xlu0 %1476
    %v1479 = vsel %vm1415, %v1475, 0
    %v1482 = vsel %vm1415, %v1477, 0
    %v1485 = vsel %vm1422, %v1401, 0
    %1487 = vmatprep.subr.bf16.mxu0 0
    %1488 = vmatpush1.bf16.msra.mxu0 0
    %1489 = vmatprep.subr.bf16.mxu0 0
    %1490 = vmatpush1.bf16.msra.mxu0 0
    %1491 = vmatprep.subr.bf16.mxu0 0
    %1492 = vmatpush1.bf16.msra.mxu0 0
    %1493 = vmatprep.subr.bf16.mxu0 0
    %1494 = vmatpush1.bf16.msra.mxu0 0
    %1495 = vmatprep.subr.bf16.mxu0 0
    %1496 = vmatpush1.bf16.msra.mxu0 0
    %1497 = vmatprep.subr.bf16.mxu0 0
    %1498 = vmatpush1.bf16.msra.mxu0 0
    %1499 = vmatprep.subr.bf16.mxu0 0
    %1500 = vmatpush1.bf16.msra.mxu0 0
    %1501 = vmatprep.subr.bf16.mxu0 0
    %1502 = vmatpush1.bf16.msra.mxu0 %v1485
    %1503 = vmatprep.subr.bf16.mxu0 0
    %1504 = vmatpush2.bf16.msra.mxu0 0
    %1505 = vmatprep.subr.bf16.mxu0 0
    %1506 = vmatpush2.bf16.msra.mxu0 0
    %1507 = vmatprep.subr.bf16.mxu0 0
    %1508 = vmatpush2.bf16.msra.mxu0 0
    %1509 = vmatprep.subr.bf16.mxu0 0
    %1510 = vmatpush2.bf16.msra.mxu0 0
    %1511 = vmatprep.subr.bf16.mxu0 0
    %1512 = vmatpush2.bf16.msra.mxu0 0
    %1513 = vmatprep.subr.bf16.mxu0 0
    %1514 = vmatpush2.bf16.msra.mxu0 0
    %1515 = vmatprep.subr.bf16.mxu0 0
    %1516 = vmatpush2.bf16.msra.mxu0 0
    %1517 = vmatprep.subr.bf16.mxu0 0
    %1518 = vmatpush2.bf16.msra.mxu0 0
    %1519 = vmatprep.mubr.bf16.mxu0 0
    %1520 = vmatmul.mubr.bf16.gmra.mxu0 %v1479
    %v1521 = vpop.f32.mrf.mxu0
    %v1522 = vadd.f32 %v1461, %v1521
    %v1523 = vpop.f32.mrf.mxu0
    %v1524 = vpop.f32.mrf.mxu0
    %v1525 = vadd.f32 %v1464, %v1524
    %v1526 = vpop.f32.mrf.mxu0
    %1527 = vmatprep.mubr.bf16.mxu0 0
    %1528 = vmatmul.mubr.bf16.gmra.mxu0 %v1482
    %v1529 = vpop.f32.mrf.mxu0
    %v1530 = vadd.f32 %v1469, %v1529
    %v1531 = vpop.f32.mrf.mxu0
    %v1532 = vpop.f32.mrf.mxu0
    %v1533 = vpop.f32.mrf.mxu0
    %1534 = vdwg.mxu0
    %1536 = vset.pattern.permute.xlu0 0
    %1537 = vperm.xlu0 %1536, %v1398
    %v1538 = vpop.permute.xlu0 %1537
    %1541 = vset.pattern.permute.xlu0 0
    %1542 = vperm.xlu0 %1541, %v1399
    %v1543 = vpop.permute.xlu0 %1542
    %1546 = vset.pattern.permute.xlu0 0
    %1547 = vperm.xlu0 %1546, %v1400
    %v1548 = vpop.permute.xlu0 %1547
    %v1550 = vmul.f32 %v466, %v1538
    %v1551 = vmul.f32 %v469, %v1543
    %v1552 = vmul.f32 %v474, %v1548
    %v1553 = vadd.f32 %v1550, %v1522
    %v1554 = vadd.f32 %v1551, %v1525
    %v1555 = vadd.f32 %v1552, %v1530
    %v1556 = vld [vmem:[%s6 + $0x518] sm:$0xf]
    %v1557 = vld [vmem:[%s6 + $0x51c] sm:$0xf]
    %v1558 = vld [vmem:[%s6 + $0x520] sm:$0x7]
    %v1559 = vunpack.c.l.bf16 %v1556
    %v1560 = vunpack.c.l.bf16 %v1557
    %v1561 = vunpack.c.l.bf16 %v1558
    %v1562 = vadd.f32 %v1553, %v1559
    %v1563 = vadd.f32 %v1554, %v1560
    %v1564 = vadd.f32 %v1555, %v1561
    %v1565 = vld [vmem:[%s5] sm:$0xff]
    %v1566 = vld [vmem:[%s5 + $0x8] sm:$0xff]
    %v1567 = vld [vmem:[%s5 + $0x10] sm:$0x3f]
    %v1568 = vsel %vm303, %v1562, 0.0
    %1569 = vadd.xlane.f32.xlu0 %v1568
    %v1570 = vpop.xlane.xlu0 %1569
    %v1571 = vsel %vm303, %v1563, 0.0
    %1572 = vadd.xlane.f32.xlu0 %v1571
    %v1573 = vpop.xlane.xlu0 %1572
    %vm1574 = vcmask 521216
    %v1575 = vsel %vm1574, %v1564, 0.0
    %1576 = vadd.xlane.f32.xlu0 %v1575
    %v1577 = vpop.xlane.xlu0 %1576
    %v1578 = vrcp.pop 64.0
    %v1579 = vmul.f32 %v1570, %v1578
    %v1580 = vmul.f32 %v1573, %v1578
    %v1581 = vmul.f32 %v1577, %v1578
    %v1582 = vsub.f32 %v1562, %v1579
    %v1583 = vsub.f32 %v1563, %v1580
    %v1584 = vsub.f32 %v1564, %v1581
    %v1585 = vmul.f32 %v1582, %v1582
    %v1586 = vmul.f32 %v1583, %v1583
    %v1587 = vmul.f32 %v1584, %v1584
    %v1588 = vsel %vm303, %v1585, 0.0
    %1589 = vadd.xlane.f32.xlu0 %v1588
    %v1590 = vpop.xlane.xlu0 %1589
    %v1591 = vsel %vm303, %v1586, 0.0
    %1592 = vadd.xlane.f32.xlu0 %v1591
    %v1593 = vpop.xlane.xlu0 %1592
    %v1594 = vsel %vm1574, %v1587, 0.0
    %1595 = vadd.xlane.f32.xlu0 %v1594
    %v1596 = vpop.xlane.xlu0 %1595
    %v1597 = vmul.f32 %v1590, %v1578
    %v1598 = vmul.f32 %v1593, %v1578
    %v1599 = vmul.f32 %v1596, %v1578
    %v1600 = vadd.f32 %v1597, 1e-05
    %v1601 = vadd.f32 %v1598, 1e-05
    %v1602 = vadd.f32 %v1599, 1e-05
    %v1603 = vrsqrt.pop %v1600
    %v1604 = vrsqrt.pop %v1601
    %v1605 = vrsqrt.pop %v1602
    %v1606 = vmul.f32 %v1582, %v1603
    %v1607 = vmul.f32 %v1583, %v1604
    %v1608 = vmul.f32 %v1584, %v1605
    %v1609 = vlaneseq
    %v1610 = vshrl.u32 %v1609, 7
    %v1611 = vsub.s32 3, %v1610
    %v1612 = vrot.slane %v1323, %v1611
    %v1613 = vmul.f32 %v1606, %v1612
    %v1614 = vmul.f32 %v1607, %v1612
    %v1615 = vmul.f32 %v1608, %v1612
    %v1616 = vld [vmem:[%s6 + $0x54c] sm:$0x4]
    %v1617 = vunpack.c.l.bf16 %v1616
    %v1618 = vlaneseq
    %v1619 = vshrl.u32 %v1618, 7
    %v1620 = vsub.s32 4, %v1619
    %v1621 = vrot.slane %v1617, %v1620
    %v1622 = vadd.f32 %v1613, %v1621
    %v1623 = vadd.f32 %v1614, %v1621
    %v1624 = vadd.f32 %v1615, %v1621
    %v1625 = vpack.c.bf16 %v1623, %v1622
    %v1626 = vpack.c.bf16 %v1624, %v1624
    %v1627 = vld [vmem:[%s6 + $0x1f8] sm:$0xf]
    %v1628 = vld [vmem:[%s6 + $0x1fc] sm:$0xf]
    %v1629 = vld [vmem:[%s6 + $0x200] sm:$0xf]
    %v1630 = vld [vmem:[%s6 + $0x204] sm:$0xf]
    %v1631 = vld [vmem:[%s6 + $0x208] sm:$0xf]
    %v1632 = vld [vmem:[%s6 + $0x20c] sm:$0xf]
    %v1633 = vld [vmem:[%s6 + $0x210] sm:$0xf]
    %v1634 = vld [vmem:[%s6 + $0x214] sm:$0xf]
    %v1635 = vlaneseq
    %v1636 = vshrl.u32 %v1635, 7
    %v1637 = vsub.s32 5, %v1636
    %v1638 = vrot.slane %v1617, %v1637
    %v1647 = vunpack.c.l.b16 %v1627
    %v1648 = vunpack.c.l.b16 %v1628
    %v1649 = vunpack.c.l.b16 %v1629
    %v1650 = vunpack.c.l.b16 %v1630
    %v1651 = vunpack.c.l.b16 %v1631
    %v1652 = vunpack.c.l.b16 %v1632
    %v1653 = vunpack.c.l.b16 %v1633
    %v1654 = vunpack.c.l.b16 %v1634
    %v1655 = vpack.c.b16 %v1648, %v1647
    %v1656 = vpack.c.b16 %v1650, %v1649
    %v1657 = vpack.c.b16 %v1652, %v1651
    %v1658 = vpack.c.b16 %v1654, %v1653
    %v1664 = vsel %vm303, %v1625, 0
    %v1667 = vsel %vm303, %v1626, 0
    %1669 = vmatprep.subr.bf16.mxu0 0
    %1670 = vmatpush1.bf16.msra.mxu0 0
    %1671 = vmatprep.subr.bf16.mxu0 0
    %1672 = vmatpush1.bf16.msra.mxu0 0
    %1673 = vmatprep.subr.bf16.mxu0 0
    %1674 = vmatpush1.bf16.msra.mxu0 0
    %1675 = vmatprep.subr.bf16.mxu0 0
    %1676 = vmatpush1.bf16.msra.mxu0 0
    %1677 = vmatprep.subr.bf16.mxu0 0
    %1678 = vmatpush1.bf16.msra.mxu0 %v1658
    %1679 = vmatprep.subr.bf16.mxu0 0
    %1680 = vmatpush1.bf16.msra.mxu0 %v1657
    %1681 = vmatprep.subr.bf16.mxu0 0
    %1682 = vmatpush1.bf16.msra.mxu0 %v1656
    %1683 = vmatprep.subr.bf16.mxu0 0
    %1684 = vmatpush1.bf16.msra.mxu0 %v1655
    %1685 = vmatprep.subr.bf16.mxu0 0
    %1686 = vmatpush2.bf16.msra.mxu0 0
    %1687 = vmatprep.subr.bf16.mxu0 0
    %1688 = vmatpush2.bf16.msra.mxu0 0
    %1689 = vmatprep.subr.bf16.mxu0 0
    %1690 = vmatpush2.bf16.msra.mxu0 0
    %1691 = vmatprep.subr.bf16.mxu0 0
    %1692 = vmatpush2.bf16.msra.mxu0 0
    %1693 = vmatprep.subr.bf16.mxu0 0
    %1694 = vmatpush2.bf16.msra.mxu0 0
    %1695 = vmatprep.subr.bf16.mxu0 0
    %1696 = vmatpush2.bf16.msra.mxu0 0
    %1697 = vmatprep.subr.bf16.mxu0 0
    %1698 = vmatpush2.bf16.msra.mxu0 0
    %1699 = vmatprep.subr.bf16.mxu0 0
    %1700 = vmatpush2.bf16.msra.mxu0 0
    %1701 = vmatprep.mubr.bf16.mxu0 0
    %1702 = vmatmul.mubr.bf16.gmra.mxu0 %v1664
    %v1703 = vpop.f32.mrf.mxu0
    %v1704 = vadd.f32 %v1638, %v1703
    %v1705 = vpop.f32.mrf.mxu0
    %v1706 = vpop.f32.mrf.mxu0
    %v1707 = vadd.f32 %v1638, %v1706
    %v1708 = vpop.f32.mrf.mxu0
    %1709 = vmatprep.mubr.bf16.mxu0 0
    %1710 = vmatmul.mubr.bf16.gmra.mxu0 %v1667
    %v1711 = vpop.f32.mrf.mxu0
    %v1712 = vadd.f32 %v1638, %v1711
    %v1713 = vpop.f32.mrf.mxu0
    %v1714 = vpop.f32.mrf.mxu0
    %v1715 = vpop.f32.mrf.mxu0
    %1716 = vdwg.mxu0
    %v1717 = vmul.f32 %v1704, 0.25
    %v1718 = vmul.f32 %v1707, 0.25
    %v1719 = vmul.f32 %v1712, 0.25
    %v1720 = vpack.c.bf16 %v1718, %v1717
    %v1721 = vpack.c.bf16 %v1719, %v1719
    %v1722 = vld [vmem:[%s6 + $0x218] sm:$0xf]
    %v1723 = vld [vmem:[%s6 + $0x21c] sm:$0xf]
    %v1724 = vld [vmem:[%s6 + $0x220] sm:$0xf]
    %v1725 = vld [vmem:[%s6 + $0x224] sm:$0xf]
    %v1726 = vld [vmem:[%s6 + $0x228] sm:$0xf]
    %v1727 = vld [vmem:[%s6 + $0x22c] sm:$0xf]
    %v1728 = vld [vmem:[%s6 + $0x230] sm:$0xf]
    %v1729 = vld [vmem:[%s6 + $0x234] sm:$0xf]
    %v1730 = vld [vmem:[%s6 + $0x54c] sm:$0x8]
    %v1731 = vunpack.c.l.bf16 %v1730
    %v1732 = vlaneseq
    %v1733 = vshrl.u32 %v1732, 7
    %v1734 = vsub.s32 6, %v1733
    %v1735 = vrot.slane %v1731, %v1734
    %v1744 = vunpack.c.l.b16 %v1722
    %v1745 = vunpack.c.l.b16 %v1723
    %v1746 = vunpack.c.l.b16 %v1724
    %v1747 = vunpack.c.l.b16 %v1725
    %v1748 = vunpack.c.l.b16 %v1726
    %v1749 = vunpack.c.l.b16 %v1727
    %v1750 = vunpack.c.l.b16 %v1728
    %v1751 = vunpack.c.l.b16 %v1729
    %v1752 = vpack.c.b16 %v1745, %v1744
    %v1753 = vpack.c.b16 %v1747, %v1746
    %v1754 = vpack.c.b16 %v1749, %v1748
    %v1755 = vpack.c.b16 %v1751, %v1750
    %1760 = vmatprep.subr.bf16.mxu0 0
    %1761 = vmatpush1.bf16.msra.mxu0 0
    %1762 = vmatprep.subr.bf16.mxu0 0
    %1763 = vmatpush1.bf16.msra.mxu0 0
    %1764 = vmatprep.subr.bf16.mxu0 0
    %1765 = vmatpush1.bf16.msra.mxu0 0
    %1766 = vmatprep.subr.bf16.mxu0 0
    %1767 = vmatpush1.bf16.msra.mxu0 0
    %1768 = vmatprep.subr.bf16.mxu0 0
    %1769 = vmatpush1.bf16.msra.mxu0 %v1755
    %1770 = vmatprep.subr.bf16.mxu0 0
    %1771 = vmatpush1.bf16.msra.mxu0 %v1754
    %1772 = vmatprep.subr.bf16.mxu0 0
    %1773 = vmatpush1.bf16.msra.mxu0 %v1753
    %1774 = vmatprep.subr.bf16.mxu0 0
    %1775 = vmatpush1.bf16.msra.mxu0 %v1752
    %1776 = vmatprep.subr.bf16.mxu0 0
    %1777 = vmatpush2.bf16.msra.mxu0 0
    %1778 = vmatprep.subr.bf16.mxu0 0
    %1779 = vmatpush2.bf16.msra.mxu0 0
    %1780 = vmatprep.subr.bf16.mxu0 0
    %1781 = vmatpush2.bf16.msra.mxu0 0
    %1782 = vmatprep.subr.bf16.mxu0 0
    %1783 = vmatpush2.bf16.msra.mxu0 0
    %1784 = vmatprep.subr.bf16.mxu0 0
    %1785 = vmatpush2.bf16.msra.mxu0 0
    %1786 = vmatprep.subr.bf16.mxu0 0
    %1787 = vmatpush2.bf16.msra.mxu0 0
    %1788 = vmatprep.subr.bf16.mxu0 0
    %1789 = vmatpush2.bf16.msra.mxu0 0
    %1790 = vmatprep.subr.bf16.mxu0 0
    %1791 = vmatpush2.bf16.msra.mxu0 0
    %1792 = vmatprep.mubr.bf16.mxu0 0
    %1793 = vmatmul.mubr.bf16.gmra.mxu0 %v1664
    %v1794 = vpop.f32.mrf.mxu0
    %v1795 = vadd.f32 %v1735, %v1794
    %v1796 = vpop.f32.mrf.mxu0
    %v1797 = vpop.f32.mrf.mxu0
    %v1798 = vadd.f32 %v1735, %v1797
    %v1799 = vpop.f32.mrf.mxu0
    %1800 = vmatprep.mubr.bf16.mxu0 0
    %1801 = vmatmul.mubr.bf16.gmra.mxu0 %v1667
    %v1802 = vpop.f32.mrf.mxu0
    %v1803 = vadd.f32 %v1735, %v1802
    %v1804 = vpop.f32.mrf.mxu0
    %v1805 = vpop.f32.mrf.mxu0
    %v1806 = vpop.f32.mrf.mxu0
    %1807 = vdwg.mxu0
    %v1808 = vpack.c.bf16 %v1798, %v1795
    %v1809 = vpack.c.bf16 %v1803, %v1803
    %v1810 = vld [vmem:[%s6 + $0x238] sm:$0xf]
    %v1811 = vld [vmem:[%s6 + $0x23c] sm:$0xf]
    %v1812 = vld [vmem:[%s6 + $0x240] sm:$0xf]
    %v1813 = vld [vmem:[%s6 + $0x244] sm:$0xf]
    %v1814 = vld [vmem:[%s6 + $0x248] sm:$0xf]
    %v1815 = vld [vmem:[%s6 + $0x24c] sm:$0xf]
    %v1816 = vld [vmem:[%s6 + $0x250] sm:$0xf]
    %v1817 = vld [vmem:[%s6 + $0x254] sm:$0xf]
    %v1818 = vlaneseq
    %v1819 = vshrl.u32 %v1818, 7
    %v1820 = vsub.s32 7, %v1819
    %v1821 = vrot.slane %v1731, %v1820
    %v1830 = vunpack.c.l.b16 %v1810
    %v1831 = vunpack.c.l.b16 %v1811
    %v1832 = vunpack.c.l.b16 %v1812
    %v1833 = vunpack.c.l.b16 %v1813
    %v1834 = vunpack.c.l.b16 %v1814
    %v1835 = vunpack.c.l.b16 %v1815
    %v1836 = vunpack.c.l.b16 %v1816
    %v1837 = vunpack.c.l.b16 %v1817
    %v1838 = vpack.c.b16 %v1831, %v1830
    %v1839 = vpack.c.b16 %v1833, %v1832
    %v1840 = vpack.c.b16 %v1835, %v1834
    %v1841 = vpack.c.b16 %v1837, %v1836
    %1846 = vmatprep.subr.bf16.mxu0 0
    %1847 = vmatpush1.bf16.msra.mxu0 0
    %1848 = vmatprep.subr.bf16.mxu0 0
    %1849 = vmatpush1.bf16.msra.mxu0 0
    %1850 = vmatprep.subr.bf16.mxu0 0
    %1851 = vmatpush1.bf16.msra.mxu0 0
    %1852 = vmatprep.subr.bf16.mxu0 0
    %1853 = vmatpush1.bf16.msra.mxu0 0
    %1854 = vmatprep.subr.bf16.mxu0 0
    %1855 = vmatpush1.bf16.msra.mxu0 %v1841
    %1856 = vmatprep.subr.bf16.mxu0 0
    %1857 = vmatpush1.bf16.msra.mxu0 %v1840
    %1858 = vmatprep.subr.bf16.mxu0 0
    %1859 = vmatpush1.bf16.msra.mxu0 %v1839
    %1860 = vmatprep.subr.bf16.mxu0 0
    %1861 = vmatpush1.bf16.msra.mxu0 %v1838
    %1862 = vmatprep.subr.bf16.mxu0 0
    %1863 = vmatpush2.bf16.msra.mxu0 0
    %1864 = vmatprep.subr.bf16.mxu0 0
    %1865 = vmatpush2.bf16.msra.mxu0 0
    %1866 = vmatprep.subr.bf16.mxu0 0
    %1867 = vmatpush2.bf16.msra.mxu0 0
    %1868 = vmatprep.subr.bf16.mxu0 0
    %1869 = vmatpush2.bf16.msra.mxu0 0
    %1870 = vmatprep.subr.bf16.mxu0 0
    %1871 = vmatpush2.bf16.msra.mxu0 0
    %1872 = vmatprep.subr.bf16.mxu0 0
    %1873 = vmatpush2.bf16.msra.mxu0 0
    %1874 = vmatprep.subr.bf16.mxu0 0
    %1875 = vmatpush2.bf16.msra.mxu0 0
    %1876 = vmatprep.subr.bf16.mxu0 0
    %1877 = vmatpush2.bf16.msra.mxu0 0
    %1878 = vmatprep.mubr.bf16.mxu0 0
    %1879 = vmatmul.mubr.bf16.gmra.mxu0 %v1664
    %v1880 = vpop.f32.mrf.mxu0
    %v1881 = vadd.f32 %v1821, %v1880
    %v1882 = vpop.f32.mrf.mxu0
    %v1883 = vpop.f32.mrf.mxu0
    %v1884 = vadd.f32 %v1821, %v1883
    %v1885 = vpop.f32.mrf.mxu0
    %1886 = vmatprep.mubr.bf16.mxu0 0
    %1887 = vmatmul.mubr.bf16.gmra.mxu0 %v1667
    %v1888 = vpop.f32.mrf.mxu0
    %v1889 = vadd.f32 %v1821, %v1888
    %v1890 = vpop.f32.mrf.mxu0
    %v1891 = vpop.f32.mrf.mxu0
    %v1892 = vpop.f32.mrf.mxu0
    %1893 = vdwg.mxu0
    %v1894 = vpack.c.bf16 %v1884, %v1881
    %v1895 = vpack.c.bf16 %v1889, %v1889
    %v1897 = vsel %vm114, %v1720, 0
    %v1900 = vsel %vm114, %v1721, 0
    %v1903 = vsel %vm114, %v1808, 0
    %v1906 = vsel %vm114, %v1809, 0
    %1908 = vmatprep.subr.bf16.mxu0 0
    %1909 = vmatpush1.bf16.xpose.msra.mxu0 0
    %1910 = vmatprep.subr.bf16.mxu0 0
    %1911 = vmatpush1.bf16.xpose.msra.mxu0 0
    %1912 = vmatprep.subr.bf16.mxu0 0
    %1913 = vmatpush1.bf16.xpose.msra.mxu0 0
    %1914 = vmatprep.subr.bf16.mxu0 0
    %1915 = vmatpush1.bf16.xpose.msra.mxu0 0
    %1916 = vmatprep.subr.bf16.mxu0 0
    %1917 = vmatpush1.bf16.xpose.msra.mxu0 0
    %1918 = vmatprep.subr.bf16.mxu0 0
    %1919 = vmatpush1.bf16.xpose.msra.mxu0 0
    %1920 = vmatprep.subr.bf16.mxu0 0
    %1921 = vmatpush1.bf16.xpose.msra.mxu0 %v1906
    %1922 = vmatprep.subr.bf16.mxu0 0
    %1923 = vmatpush1.bf16.xpose.msra.mxu0 %v1903
    %1924 = vmatprep.subr.bf16.mxu0 0
    %1925 = vmatpush2.bf16.xpose.msra.mxu0 0
    %1926 = vmatprep.subr.bf16.mxu0 0
    %1927 = vmatpush2.bf16.xpose.msra.mxu0 0
    %1928 = vmatprep.subr.bf16.mxu0 0
    %1929 = vmatpush2.bf16.xpose.msra.mxu0 0
    %1930 = vmatprep.subr.bf16.mxu0 0
    %1931 = vmatpush2.bf16.xpose.msra.mxu0 0
    %1932 = vmatprep.subr.bf16.mxu0 0
    %1933 = vmatpush2.bf16.xpose.msra.mxu0 0
    %1934 = vmatprep.subr.bf16.mxu0 0
    %1935 = vmatpush2.bf16.xpose.msra.mxu0 0
    %1936 = vmatprep.subr.bf16.mxu0 0
    %1937 = vmatpush2.bf16.xpose.msra.mxu0 0
    %1938 = vmatprep.subr.bf16.mxu0 0
    %1939 = vmatpush2.bf16.xpose.msra.mxu0 0
    %1940 = vmatprep.mubr.bf16.mxu0 0
    %1941 = vmatmul.mubr.bf16.gmra.mxu0 %v1897
    %v1942 = vpop.f32.mrf.mxu0
    %v1943 = vadd.f32 0.0, %v1942
    %v1944 = vpop.f32.mrf.mxu0
    %v1945 = vpop.f32.mrf.mxu0
    %v1946 = vadd.f32 0.0, %v1945
    %v1947 = vpop.f32.mrf.mxu0
    %1948 = vmatprep.mubr.bf16.mxu0 0
    %1949 = vmatmul.mubr.bf16.gmra.mxu0 %v1900
    %v1950 = vpop.f32.mrf.mxu0
    %v1951 = vadd.f32 0.0, %v1950
    %v1952 = vpop.f32.mrf.mxu0
    %v1953 = vpop.f32.mrf.mxu0
    %v1954 = vpop.f32.mrf.mxu0
    %1955 = vdwg.mxu0
    %1958 = vrot.lane.b32.xlu0 %v1720, 112
    %v1959 = vpop.permute.xlu0 %1958
    %1960 = vrot.lane.b32.xlu0 %v1721, 112
    %v1961 = vpop.permute.xlu0 %1960
    %1964 = vrot.lane.b32.xlu0 %v1808, 112
    %v1965 = vpop.permute.xlu0 %1964
    %1966 = vrot.lane.b32.xlu0 %v1809, 112
    %v1967 = vpop.permute.xlu0 %1966
    %v1969 = vsel %vm114, %v1959, 0
    %v1972 = vsel %vm114, %v1961, 0
    %v1975 = vsel %vm114, %v1965, 0
    %v1978 = vsel %vm114, %v1967, 0
    %1980 = vmatprep.subr.bf16.mxu0 0
    %1981 = vmatpush1.bf16.xpose.msra.mxu0 0
    %1982 = vmatprep.subr.bf16.mxu0 0
    %1983 = vmatpush1.bf16.xpose.msra.mxu0 0
    %1984 = vmatprep.subr.bf16.mxu0 0
    %1985 = vmatpush1.bf16.xpose.msra.mxu0 0
    %1986 = vmatprep.subr.bf16.mxu0 0
    %1987 = vmatpush1.bf16.xpose.msra.mxu0 0
    %1988 = vmatprep.subr.bf16.mxu0 0
    %1989 = vmatpush1.bf16.xpose.msra.mxu0 0
    %1990 = vmatprep.subr.bf16.mxu0 0
    %1991 = vmatpush1.bf16.xpose.msra.mxu0 0
    %1992 = vmatprep.subr.bf16.mxu0 0
    %1993 = vmatpush1.bf16.xpose.msra.mxu0 %v1978
    %1994 = vmatprep.subr.bf16.mxu0 0
    %1995 = vmatpush1.bf16.xpose.msra.mxu0 %v1975
    %1996 = vmatprep.subr.bf16.mxu0 0
    %1997 = vmatpush2.bf16.xpose.msra.mxu0 0
    %1998 = vmatprep.subr.bf16.mxu0 0
    %1999 = vmatpush2.bf16.xpose.msra.mxu0 0
    %2000 = vmatprep.subr.bf16.mxu0 0
    %2001 = vmatpush2.bf16.xpose.msra.mxu0 0
    %2002 = vmatprep.subr.bf16.mxu0 0
    %2003 = vmatpush2.bf16.xpose.msra.mxu0 0
    %2004 = vmatprep.subr.bf16.mxu0 0
    %2005 = vmatpush2.bf16.xpose.msra.mxu0 0
    %2006 = vmatprep.subr.bf16.mxu0 0
    %2007 = vmatpush2.bf16.xpose.msra.mxu0 0
    %2008 = vmatprep.subr.bf16.mxu0 0
    %2009 = vmatpush2.bf16.xpose.msra.mxu0 0
    %2010 = vmatprep.subr.bf16.mxu0 0
    %2011 = vmatpush2.bf16.xpose.msra.mxu0 0
    %2012 = vmatprep.mubr.bf16.mxu0 0
    %2013 = vmatmul.mubr.bf16.gmra.mxu0 %v1969
    %v2014 = vpop.f32.mrf.mxu0
    %v2015 = vadd.f32 0.0, %v2014
    %v2016 = vpop.f32.mrf.mxu0
    %v2017 = vpop.f32.mrf.mxu0
    %v2018 = vadd.f32 0.0, %v2017
    %v2019 = vpop.f32.mrf.mxu0
    %2020 = vmatprep.mubr.bf16.mxu0 0
    %2021 = vmatmul.mubr.bf16.gmra.mxu0 %v1972
    %v2022 = vpop.f32.mrf.mxu0
    %v2023 = vadd.f32 0.0, %v2022
    %v2024 = vpop.f32.mrf.mxu0
    %v2025 = vpop.f32.mrf.mxu0
    %v2026 = vpop.f32.mrf.mxu0
    %2027 = vdwg.mxu0
    %2028 = vrot.lane.b32.xlu0 %v1720, 96
    %v2029 = vpop.permute.xlu0 %2028
    %2030 = vrot.lane.b32.xlu0 %v1721, 96
    %v2031 = vpop.permute.xlu0 %2030
    %2032 = vrot.lane.b32.xlu0 %v1808, 96
    %v2033 = vpop.permute.xlu0 %2032
    %2034 = vrot.lane.b32.xlu0 %v1809, 96
    %v2035 = vpop.permute.xlu0 %2034
    %v2037 = vsel %vm114, %v2029, 0
    %v2040 = vsel %vm114, %v2031, 0
    %v2043 = vsel %vm114, %v2033, 0
    %v2046 = vsel %vm114, %v2035, 0
    %2048 = vmatprep.subr.bf16.mxu0 0
    %2049 = vmatpush1.bf16.xpose.msra.mxu0 0
    %2050 = vmatprep.subr.bf16.mxu0 0
    %2051 = vmatpush1.bf16.xpose.msra.mxu0 0
    %2052 = vmatprep.subr.bf16.mxu0 0
    %2053 = vmatpush1.bf16.xpose.msra.mxu0 0
    %2054 = vmatprep.subr.bf16.mxu0 0
    %2055 = vmatpush1.bf16.xpose.msra.mxu0 0
    %2056 = vmatprep.subr.bf16.mxu0 0
    %2057 = vmatpush1.bf16.xpose.msra.mxu0 0
    %2058 = vmatprep.subr.bf16.mxu0 0
    %2059 = vmatpush1.bf16.xpose.msra.mxu0 0
    %2060 = vmatprep.subr.bf16.mxu0 0
    %2061 = vmatpush1.bf16.xpose.msra.mxu0 %v2046
    %2062 = vmatprep.subr.bf16.mxu0 0
    %2063 = vmatpush1.bf16.xpose.msra.mxu0 %v2043
    %2064 = vmatprep.subr.bf16.mxu0 0
    %2065 = vmatpush2.bf16.xpose.msra.mxu0 0
    %2066 = vmatprep.subr.bf16.mxu0 0
    %2067 = vmatpush2.bf16.xpose.msra.mxu0 0
    %2068 = vmatprep.subr.bf16.mxu0 0
    %2069 = vmatpush2.bf16.xpose.msra.mxu0 0
    %2070 = vmatprep.subr.bf16.mxu0 0
    %2071 = vmatpush2.bf16.xpose.msra.mxu0 0
    %2072 = vmatprep.subr.bf16.mxu0 0
    %2073 = vmatpush2.bf16.xpose.msra.mxu0 0
    %2074 = vmatprep.subr.bf16.mxu0 0
    %2075 = vmatpush2.bf16.xpose.msra.mxu0 0
    %2076 = vmatprep.subr.bf16.mxu0 0
    %2077 = vmatpush2.bf16.xpose.msra.mxu0 0
    %2078 = vmatprep.subr.bf16.mxu0 0
    %2079 = vmatpush2.bf16.xpose.msra.mxu0 0
    %2080 = vmatprep.mubr.bf16.mxu0 0
    %2081 = vmatmul.mubr.bf16.gmra.mxu0 %v2037
    %v2082 = vpop.f32.mrf.mxu0
    %v2083 = vadd.f32 0.0, %v2082
    %v2084 = vpop.f32.mrf.mxu0
    %v2085 = vpop.f32.mrf.mxu0
    %v2086 = vadd.f32 0.0, %v2085
    %v2087 = vpop.f32.mrf.mxu0
    %2088 = vmatprep.mubr.bf16.mxu0 0
    %2089 = vmatmul.mubr.bf16.gmra.mxu0 %v2040
    %v2090 = vpop.f32.mrf.mxu0
    %v2091 = vadd.f32 0.0, %v2090
    %v2092 = vpop.f32.mrf.mxu0
    %v2093 = vpop.f32.mrf.mxu0
    %v2094 = vpop.f32.mrf.mxu0
    %2095 = vdwg.mxu0
    %2096 = vrot.lane.b32.xlu0 %v1720, 80
    %v2097 = vpop.permute.xlu0 %2096
    %2098 = vrot.lane.b32.xlu0 %v1721, 80
    %v2099 = vpop.permute.xlu0 %2098
    %2100 = vrot.lane.b32.xlu0 %v1808, 80
    %v2101 = vpop.permute.xlu0 %2100
    %2102 = vrot.lane.b32.xlu0 %v1809, 80
    %v2103 = vpop.permute.xlu0 %2102
    %v2105 = vsel %vm114, %v2097, 0
    %v2108 = vsel %vm114, %v2099, 0
    %v2111 = vsel %vm114, %v2101, 0
    %v2114 = vsel %vm114, %v2103, 0
    %2116 = vmatprep.subr.bf16.mxu0 0
    %2117 = vmatpush1.bf16.xpose.msra.mxu0 0
    %2118 = vmatprep.subr.bf16.mxu0 0
    %2119 = vmatpush1.bf16.xpose.msra.mxu0 0
    %2120 = vmatprep.subr.bf16.mxu0 0
    %2121 = vmatpush1.bf16.xpose.msra.mxu0 0
    %2122 = vmatprep.subr.bf16.mxu0 0
    %2123 = vmatpush1.bf16.xpose.msra.mxu0 0
    %2124 = vmatprep.subr.bf16.mxu0 0
    %2125 = vmatpush1.bf16.xpose.msra.mxu0 0
    %2126 = vmatprep.subr.bf16.mxu0 0
    %2127 = vmatpush1.bf16.xpose.msra.mxu0 0
    %2128 = vmatprep.subr.bf16.mxu0 0
    %2129 = vmatpush1.bf16.xpose.msra.mxu0 %v2114
    %2130 = vmatprep.subr.bf16.mxu0 0
    %2131 = vmatpush1.bf16.xpose.msra.mxu0 %v2111
    %2132 = vmatprep.subr.bf16.mxu0 0
    %2133 = vmatpush2.bf16.xpose.msra.mxu0 0
    %2134 = vmatprep.subr.bf16.mxu0 0
    %2135 = vmatpush2.bf16.xpose.msra.mxu0 0
    %2136 = vmatprep.subr.bf16.mxu0 0
    %2137 = vmatpush2.bf16.xpose.msra.mxu0 0
    %2138 = vmatprep.subr.bf16.mxu0 0
    %2139 = vmatpush2.bf16.xpose.msra.mxu0 0
    %2140 = vmatprep.subr.bf16.mxu0 0
    %2141 = vmatpush2.bf16.xpose.msra.mxu0 0
    %2142 = vmatprep.subr.bf16.mxu0 0
    %2143 = vmatpush2.bf16.xpose.msra.mxu0 0
    %2144 = vmatprep.subr.bf16.mxu0 0
    %2145 = vmatpush2.bf16.xpose.msra.mxu0 0
    %2146 = vmatprep.subr.bf16.mxu0 0
    %2147 = vmatpush2.bf16.xpose.msra.mxu0 0
    %2148 = vmatprep.mubr.bf16.mxu0 0
    %2149 = vmatmul.mubr.bf16.gmra.mxu0 %v2105
    %v2150 = vpop.f32.mrf.mxu0
    %v2151 = vadd.f32 0.0, %v2150
    %v2152 = vpop.f32.mrf.mxu0
    %v2153 = vpop.f32.mrf.mxu0
    %v2154 = vadd.f32 0.0, %v2153
    %v2155 = vpop.f32.mrf.mxu0
    %2156 = vmatprep.mubr.bf16.mxu0 0
    %2157 = vmatmul.mubr.bf16.gmra.mxu0 %v2108
    %v2158 = vpop.f32.mrf.mxu0
    %v2159 = vadd.f32 0.0, %v2158
    %v2160 = vpop.f32.mrf.mxu0
    %v2161 = vpop.f32.mrf.mxu0
    %v2162 = vpop.f32.mrf.mxu0
    %2163 = vdwg.mxu0
    %v2164 = vadd.f32 %v1943, %v1565
    %v2165 = vadd.f32 %v1946, %v1566
    %v2166 = vadd.f32 %v1951, %v1567
    %v2167 = vadd.f32 %v2015, %v1565
    %v2168 = vadd.f32 %v2018, %v1566
    %v2169 = vadd.f32 %v2023, %v1567
    %v2170 = vadd.f32 %v2083, %v1565
    %v2171 = vadd.f32 %v2086, %v1566
    %v2172 = vadd.f32 %v2091, %v1567
    %v2173 = vadd.f32 %v2151, %v1565
    %v2174 = vadd.f32 %v2154, %v1566
    %v2175 = vadd.f32 %v2159, %v1567
    %vm2176 = vcmask 179200
    %v2177 = vsel %vm2176, %v2164, -inf
    %2178 = vmax.xlane.f32.xlu0 %v2177
    %v2179 = vpop.xlane.xlu0 %2178
    %v2180 = vsel %vm2176, %v2165, -inf
    %2181 = vmax.xlane.f32.xlu0 %v2180
    %v2182 = vpop.xlane.xlu0 %2181
    %vm2183 = vcmask 177152
    %v2184 = vsel %vm2183, %v2166, -inf
    %2185 = vmax.xlane.f32.xlu0 %v2184
    %v2186 = vpop.xlane.xlu0 %2185
    %v2187 = vsel %vm2176, %v2167, -inf
    %2188 = vmax.xlane.f32.xlu0 %v2187
    %v2189 = vpop.xlane.xlu0 %2188
    %v2190 = vsel %vm2176, %v2168, -inf
    %2191 = vmax.xlane.f32.xlu0 %v2190
    %v2192 = vpop.xlane.xlu0 %2191
    %v2193 = vsel %vm2183, %v2169, -inf
    %2194 = vmax.xlane.f32.xlu0 %v2193
    %v2195 = vpop.xlane.xlu0 %2194
    %v2196 = vsel %vm2176, %v2170, -inf
    %2197 = vmax.xlane.f32.xlu0 %v2196
    %v2198 = vpop.xlane.xlu0 %2197
    %v2199 = vsel %vm2176, %v2171, -inf
    %2200 = vmax.xlane.f32.xlu0 %v2199
    %v2201 = vpop.xlane.xlu0 %2200
    %v2202 = vsel %vm2183, %v2172, -inf
    %2203 = vmax.xlane.f32.xlu0 %v2202
    %v2204 = vpop.xlane.xlu0 %2203
    %v2205 = vsel %vm2176, %v2173, -inf
    %2206 = vmax.xlane.f32.xlu0 %v2205
    %v2207 = vpop.xlane.xlu0 %2206
    %v2208 = vsel %vm2176, %v2174, -inf
    %2209 = vmax.xlane.f32.xlu0 %v2208
    %v2210 = vpop.xlane.xlu0 %2209
    %v2211 = vsel %vm2183, %v2175, -inf
    %2212 = vmax.xlane.f32.xlu0 %v2211
    %v2213 = vpop.xlane.xlu0 %2212
    %v2214 = vsub.f32 %v2164, %v2179
    %v2215 = vsub.f32 %v2165, %v2182
    %v2216 = vsub.f32 %v2166, %v2186
    %v2217 = vsub.f32 %v2167, %v2189
    %v2218 = vsub.f32 %v2168, %v2192
    %v2219 = vsub.f32 %v2169, %v2195
    %v2220 = vsub.f32 %v2170, %v2198
    %v2221 = vsub.f32 %v2171, %v2201
    %v2222 = vsub.f32 %v2172, %v2204
    %v2223 = vsub.f32 %v2173, %v2207
    %v2224 = vsub.f32 %v2174, %v2210
    %v2225 = vsub.f32 %v2175, %v2213
    %v2226 = vmul.f32 %v2214, 1.442695
    %v2227 = vpow.pop %v2226
    %v2228 = vmul.f32 %v2215, 1.442695
    %v2229 = vpow.pop %v2228
    %v2230 = vmul.f32 %v2216, 1.442695
    %v2231 = vpow.pop %v2230
    %v2232 = vmul.f32 %v2217, 1.442695
    %v2233 = vpow.pop %v2232
    %v2234 = vmul.f32 %v2218, 1.442695
    %v2235 = vpow.pop %v2234
    %v2236 = vmul.f32 %v2219, 1.442695
    %v2237 = vpow.pop %v2236
    %v2238 = vmul.f32 %v2220, 1.442695
    %v2239 = vpow.pop %v2238
    %v2240 = vmul.f32 %v2221, 1.442695
    %v2241 = vpow.pop %v2240
    %v2242 = vmul.f32 %v2222, 1.442695
    %v2243 = vpow.pop %v2242
    %v2244 = vmul.f32 %v2223, 1.442695
    %v2245 = vpow.pop %v2244
    %v2246 = vmul.f32 %v2224, 1.442695
    %v2247 = vpow.pop %v2246
    %v2248 = vmul.f32 %v2225, 1.442695
    %v2249 = vpow.pop %v2248
    %v2250 = vsel %vm2176, %v2227, 0.0
    %2251 = vadd.xlane.f32.xlu0 %v2250
    %v2252 = vpop.xlane.xlu0 %2251
    %v2253 = vsel %vm2176, %v2229, 0.0
    %2254 = vadd.xlane.f32.xlu0 %v2253
    %v2255 = vpop.xlane.xlu0 %2254
    %v2256 = vsel %vm2183, %v2231, 0.0
    %2257 = vadd.xlane.f32.xlu0 %v2256
    %v2258 = vpop.xlane.xlu0 %2257
    %v2259 = vsel %vm2176, %v2233, 0.0
    %2260 = vadd.xlane.f32.xlu0 %v2259
    %v2261 = vpop.xlane.xlu0 %2260
    %v2262 = vsel %vm2176, %v2235, 0.0
    %2263 = vadd.xlane.f32.xlu0 %v2262
    %v2264 = vpop.xlane.xlu0 %2263
    %v2265 = vsel %vm2183, %v2237, 0.0
    %2266 = vadd.xlane.f32.xlu0 %v2265
    %v2267 = vpop.xlane.xlu0 %2266
    %v2268 = vsel %vm2176, %v2239, 0.0
    %2269 = vadd.xlane.f32.xlu0 %v2268
    %v2270 = vpop.xlane.xlu0 %2269
    %v2271 = vsel %vm2176, %v2241, 0.0
    %2272 = vadd.xlane.f32.xlu0 %v2271
    %v2273 = vpop.xlane.xlu0 %2272
    %v2274 = vsel %vm2183, %v2243, 0.0
    %2275 = vadd.xlane.f32.xlu0 %v2274
    %v2276 = vpop.xlane.xlu0 %2275
    %v2277 = vsel %vm2176, %v2245, 0.0
    %2278 = vadd.xlane.f32.xlu0 %v2277
    %v2279 = vpop.xlane.xlu0 %2278
    %v2280 = vsel %vm2176, %v2247, 0.0
    %2281 = vadd.xlane.f32.xlu0 %v2280
    %v2282 = vpop.xlane.xlu0 %2281
    %v2283 = vsel %vm2183, %v2249, 0.0
    %2284 = vadd.xlane.f32.xlu0 %v2283
    %v2285 = vpop.xlane.xlu0 %2284
    %v2286 = vrcp.pop %v2252
    %v2287 = vrcp.pop %v2255
    %v2288 = vrcp.pop %v2258
    %v2289 = vrcp.pop %v2261
    %v2290 = vrcp.pop %v2264
    %v2291 = vrcp.pop %v2267
    %v2292 = vrcp.pop %v2270
    %v2293 = vrcp.pop %v2273
    %v2294 = vrcp.pop %v2276
    %v2295 = vrcp.pop %v2279
    %v2296 = vrcp.pop %v2282
    %v2297 = vrcp.pop %v2285
    %v2298 = vmul.f32 %v2227, %v2286
    %v2299 = vmul.f32 %v2229, %v2287
    %v2300 = vmul.f32 %v2231, %v2288
    %v2301 = vmul.f32 %v2233, %v2289
    %v2302 = vmul.f32 %v2235, %v2290
    %v2303 = vmul.f32 %v2237, %v2291
    %v2304 = vmul.f32 %v2239, %v2292
    %v2305 = vmul.f32 %v2241, %v2293
    %v2306 = vmul.f32 %v2243, %v2294
    %v2307 = vmul.f32 %v2245, %v2295
    %v2308 = vmul.f32 %v2247, %v2296
    %v2309 = vmul.f32 %v2249, %v2297
    %v2310 = vpack.c.bf16 %v2299, %v2298
    %v2311 = vpack.c.bf16 %v2300, %v2300
    %v2312 = vpack.c.bf16 %v2302, %v2301
    %v2313 = vpack.c.bf16 %v2303, %v2303
    %v2314 = vpack.c.bf16 %v2305, %v2304
    %v2315 = vpack.c.bf16 %v2306, %v2306
    %v2316 = vpack.c.bf16 %v2308, %v2307
    %v2317 = vpack.c.bf16 %v2309, %v2309
    %v2319 = vsel %vm2176, %v2310, 0
    %v2322 = vsel %vm2176, %v2311, 0
    %vm2324 = vcmask 1042432
    %v2326 = vsel %vm2324, %v1895, 0
    %2328 = vmatprep.subr.bf16.mxu0 0
    %2329 = vmatpush1.bf16.msra.mxu0 0
    %2330 = vmatprep.subr.bf16.mxu0 0
    %2331 = vmatpush1.bf16.msra.mxu0 0
    %2332 = vmatprep.subr.bf16.mxu0 0
    %2333 = vmatpush1.bf16.msra.mxu0 0
    %2334 = vmatprep.subr.bf16.mxu0 0
    %2335 = vmatpush1.bf16.msra.mxu0 0
    %2336 = vmatprep.subr.bf16.mxu0 0
    %2337 = vmatpush1.bf16.msra.mxu0 0
    %2338 = vmatprep.subr.bf16.mxu0 0
    %2339 = vmatpush1.bf16.msra.mxu0 0
    %2340 = vmatprep.subr.bf16.mxu0 0
    %2341 = vmatpush1.bf16.msra.mxu0 %v2326
    %2342 = vmatprep.subr.bf16.mxu0 0
    %2343 = vmatpush1.bf16.msra.mxu0 %v1894
    %2344 = vmatprep.subr.bf16.mxu0 0
    %2345 = vmatpush2.bf16.msra.mxu0 0
    %2346 = vmatprep.subr.bf16.mxu0 0
    %2347 = vmatpush2.bf16.msra.mxu0 0
    %2348 = vmatprep.subr.bf16.mxu0 0
    %2349 = vmatpush2.bf16.msra.mxu0 0
    %2350 = vmatprep.subr.bf16.mxu0 0
    %2351 = vmatpush2.bf16.msra.mxu0 0
    %2352 = vmatprep.subr.bf16.mxu0 0
    %2353 = vmatpush2.bf16.msra.mxu0 0
    %2354 = vmatprep.subr.bf16.mxu0 0
    %2355 = vmatpush2.bf16.msra.mxu0 0
    %2356 = vmatprep.subr.bf16.mxu0 0
    %2357 = vmatpush2.bf16.msra.mxu0 0
    %2358 = vmatprep.subr.bf16.mxu0 0
    %2359 = vmatpush2.bf16.msra.mxu0 0
    %2360 = vmatprep.mubr.bf16.mxu0 0
    %2361 = vmatmul.mubr.bf16.gmra.mxu0 %v2319
    %v2362 = vpop.f32.mrf.mxu0
    %v2363 = vadd.f32 0.0, %v2362
    %v2364 = vpop.f32.mrf.mxu0
    %v2365 = vpop.f32.mrf.mxu0
    %v2366 = vadd.f32 0.0, %v2365
    %v2367 = vpop.f32.mrf.mxu0
    %2368 = vmatprep.mubr.bf16.mxu0 0
    %2369 = vmatmul.mubr.bf16.gmra.mxu0 %v2322
    %v2370 = vpop.f32.mrf.mxu0
    %v2371 = vadd.f32 0.0, %v2370
    %v2372 = vpop.f32.mrf.mxu0
    %v2373 = vpop.f32.mrf.mxu0
    %v2374 = vpop.f32.mrf.mxu0
    %2375 = vdwg.mxu0
    %2378 = vrot.lane.b32.xlu0 %v1894, 112
    %v2379 = vpop.permute.xlu0 %2378
    %2380 = vrot.lane.b32.xlu0 %v1895, 112
    %v2381 = vpop.permute.xlu0 %2380
    %v2384 = vsel %vm2176, %v2312, 0
    %v2387 = vsel %vm2176, %v2313, 0
    %v2390 = vsel %vm2324, %v2381, 0
    %2392 = vmatprep.subr.bf16.mxu0 0
    %2393 = vmatpush1.bf16.msra.mxu0 0
    %2394 = vmatprep.subr.bf16.mxu0 0
    %2395 = vmatpush1.bf16.msra.mxu0 0
    %2396 = vmatprep.subr.bf16.mxu0 0
    %2397 = vmatpush1.bf16.msra.mxu0 0
    %2398 = vmatprep.subr.bf16.mxu0 0
    %2399 = vmatpush1.bf16.msra.mxu0 0
    %2400 = vmatprep.subr.bf16.mxu0 0
    %2401 = vmatpush1.bf16.msra.mxu0 0
    %2402 = vmatprep.subr.bf16.mxu0 0
    %2403 = vmatpush1.bf16.msra.mxu0 0
    %2404 = vmatprep.subr.bf16.mxu0 0
    %2405 = vmatpush1.bf16.msra.mxu0 %v2390
    %2406 = vmatprep.subr.bf16.mxu0 0
    %2407 = vmatpush1.bf16.msra.mxu0 %v2379
    %2408 = vmatprep.subr.bf16.mxu0 0
    %2409 = vmatpush2.bf16.msra.mxu0 0
    %2410 = vmatprep.subr.bf16.mxu0 0
    %2411 = vmatpush2.bf16.msra.mxu0 0
    %2412 = vmatprep.subr.bf16.mxu0 0
    %2413 = vmatpush2.bf16.msra.mxu0 0
    %2414 = vmatprep.subr.bf16.mxu0 0
    %2415 = vmatpush2.bf16.msra.mxu0 0
    %2416 = vmatprep.subr.bf16.mxu0 0
    %2417 = vmatpush2.bf16.msra.mxu0 0
    %2418 = vmatprep.subr.bf16.mxu0 0
    %2419 = vmatpush2.bf16.msra.mxu0 0
    %2420 = vmatprep.subr.bf16.mxu0 0
    %2421 = vmatpush2.bf16.msra.mxu0 0
    %2422 = vmatprep.subr.bf16.mxu0 0
    %2423 = vmatpush2.bf16.msra.mxu0 0
    %2424 = vmatprep.mubr.bf16.mxu0 0
    %2425 = vmatmul.mubr.bf16.gmra.mxu0 %v2384
    %v2426 = vpop.f32.mrf.mxu0
    %v2427 = vadd.f32 0.0, %v2426
    %v2428 = vpop.f32.mrf.mxu0
    %v2429 = vpop.f32.mrf.mxu0
    %v2430 = vadd.f32 0.0, %v2429
    %v2431 = vpop.f32.mrf.mxu0
    %2432 = vmatprep.mubr.bf16.mxu0 0
    %2433 = vmatmul.mubr.bf16.gmra.mxu0 %v2387
    %v2434 = vpop.f32.mrf.mxu0
    %v2435 = vadd.f32 0.0, %v2434
    %v2436 = vpop.f32.mrf.mxu0
    %v2437 = vpop.f32.mrf.mxu0
    %v2438 = vpop.f32.mrf.mxu0
    %2439 = vdwg.mxu0
    %2440 = vrot.lane.b32.xlu0 %v1894, 96
    %v2441 = vpop.permute.xlu0 %2440
    %2442 = vrot.lane.b32.xlu0 %v1895, 96
    %v2443 = vpop.permute.xlu0 %2442
    %v2446 = vsel %vm2176, %v2314, 0
    %v2449 = vsel %vm2176, %v2315, 0
    %v2452 = vsel %vm2324, %v2443, 0
    %2454 = vmatprep.subr.bf16.mxu0 0
    %2455 = vmatpush1.bf16.msra.mxu0 0
    %2456 = vmatprep.subr.bf16.mxu0 0
    %2457 = vmatpush1.bf16.msra.mxu0 0
    %2458 = vmatprep.subr.bf16.mxu0 0
    %2459 = vmatpush1.bf16.msra.mxu0 0
    %2460 = vmatprep.subr.bf16.mxu0 0
    %2461 = vmatpush1.bf16.msra.mxu0 0
    %2462 = vmatprep.subr.bf16.mxu0 0
    %2463 = vmatpush1.bf16.msra.mxu0 0
    %2464 = vmatprep.subr.bf16.mxu0 0
    %2465 = vmatpush1.bf16.msra.mxu0 0
    %2466 = vmatprep.subr.bf16.mxu0 0
    %2467 = vmatpush1.bf16.msra.mxu0 %v2452
    %2468 = vmatprep.subr.bf16.mxu0 0
    %2469 = vmatpush1.bf16.msra.mxu0 %v2441
    %2470 = vmatprep.subr.bf16.mxu0 0
    %2471 = vmatpush2.bf16.msra.mxu0 0
    %2472 = vmatprep.subr.bf16.mxu0 0
    %2473 = vmatpush2.bf16.msra.mxu0 0
    %2474 = vmatprep.subr.bf16.mxu0 0
    %2475 = vmatpush2.bf16.msra.mxu0 0
    %2476 = vmatprep.subr.bf16.mxu0 0
    %2477 = vmatpush2.bf16.msra.mxu0 0
    %2478 = vmatprep.subr.bf16.mxu0 0
    %2479 = vmatpush2.bf16.msra.mxu0 0
    %2480 = vmatprep.subr.bf16.mxu0 0
    %2481 = vmatpush2.bf16.msra.mxu0 0
    %2482 = vmatprep.subr.bf16.mxu0 0
    %2483 = vmatpush2.bf16.msra.mxu0 0
    %2484 = vmatprep.subr.bf16.mxu0 0
    %2485 = vmatpush2.bf16.msra.mxu0 0
    %2486 = vmatprep.mubr.bf16.mxu0 0
    %2487 = vmatmul.mubr.bf16.gmra.mxu0 %v2446
    %v2488 = vpop.f32.mrf.mxu0
    %v2489 = vadd.f32 0.0, %v2488
    %v2490 = vpop.f32.mrf.mxu0
    %v2491 = vpop.f32.mrf.mxu0
    %v2492 = vadd.f32 0.0, %v2491
    %v2493 = vpop.f32.mrf.mxu0
    %2494 = vmatprep.mubr.bf16.mxu0 0
    %2495 = vmatmul.mubr.bf16.gmra.mxu0 %v2449
    %v2496 = vpop.f32.mrf.mxu0
    %v2497 = vadd.f32 0.0, %v2496
    %v2498 = vpop.f32.mrf.mxu0
    %v2499 = vpop.f32.mrf.mxu0
    %v2500 = vpop.f32.mrf.mxu0
    %2501 = vdwg.mxu0
    %2502 = vrot.lane.b32.xlu0 %v1894, 80
    %v2503 = vpop.permute.xlu0 %2502
    %2504 = vrot.lane.b32.xlu0 %v1895, 80
    %v2505 = vpop.permute.xlu0 %2504
    %v2508 = vsel %vm2176, %v2316, 0
    %v2511 = vsel %vm2176, %v2317, 0
    %v2514 = vsel %vm2324, %v2505, 0
    %2516 = vmatprep.subr.bf16.mxu0 0
    %2517 = vmatpush1.bf16.msra.mxu0 0
    %2518 = vmatprep.subr.bf16.mxu0 0
    %2519 = vmatpush1.bf16.msra.mxu0 0
    %2520 = vmatprep.subr.bf16.mxu0 0
    %2521 = vmatpush1.bf16.msra.mxu0 0
    %2522 = vmatprep.subr.bf16.mxu0 0
    %2523 = vmatpush1.bf16.msra.mxu0 0
    %2524 = vmatprep.subr.bf16.mxu0 0
    %2525 = vmatpush1.bf16.msra.mxu0 0
    %2526 = vmatprep.subr.bf16.mxu0 0
    %2527 = vmatpush1.bf16.msra.mxu0 0
    %2528 = vmatprep.subr.bf16.mxu0 0
    %2529 = vmatpush1.bf16.msra.mxu0 %v2514
    %2530 = vmatprep.subr.bf16.mxu0 0
    %2531 = vmatpush1.bf16.msra.mxu0 %v2503
    %2532 = vmatprep.subr.bf16.mxu0 0
    %2533 = vmatpush2.bf16.msra.mxu0 0
    %2534 = vmatprep.subr.bf16.mxu0 0
    %2535 = vmatpush2.bf16.msra.mxu0 0
    %2536 = vmatprep.subr.bf16.mxu0 0
    %2537 = vmatpush2.bf16.msra.mxu0 0
    %2538 = vmatprep.subr.bf16.mxu0 0
    %2539 = vmatpush2.bf16.msra.mxu0 0
    %2540 = vmatprep.subr.bf16.mxu0 0
    %2541 = vmatpush2.bf16.msra.mxu0 0
    %2542 = vmatprep.subr.bf16.mxu0 0
    %2543 = vmatpush2.bf16.msra.mxu0 0
    %2544 = vmatprep.subr.bf16.mxu0 0
    %2545 = vmatpush2.bf16.msra.mxu0 0
    %2546 = vmatprep.subr.bf16.mxu0 0
    %2547 = vmatpush2.bf16.msra.mxu0 0
    %2548 = vmatprep.mubr.bf16.mxu0 0
    %2549 = vmatmul.mubr.bf16.gmra.mxu0 %v2508
    %v2550 = vpop.f32.mrf.mxu0
    %v2551 = vadd.f32 0.0, %v2550
    %v2552 = vpop.f32.mrf.mxu0
    %v2553 = vpop.f32.mrf.mxu0
    %v2554 = vadd.f32 0.0, %v2553
    %v2555 = vpop.f32.mrf.mxu0
    %2556 = vmatprep.mubr.bf16.mxu0 0
    %2557 = vmatmul.mubr.bf16.gmra.mxu0 %v2511
    %v2558 = vpop.f32.mrf.mxu0
    %v2559 = vadd.f32 0.0, %v2558
    %v2560 = vpop.f32.mrf.mxu0
    %v2561 = vpop.f32.mrf.mxu0
    %v2562 = vpop.f32.mrf.mxu0
    %2563 = vdwg.mxu0
    %2567 = vrot.lane.b32.xlu0 %v2427, 16
    %v2568 = vpop.permute.xlu0 %2567
    %2569 = vrot.lane.b32.xlu0 %v2430, 16
    %v2570 = vpop.permute.xlu0 %2569
    %2571 = vrot.lane.b32.xlu0 %v2435, 16
    %v2572 = vpop.permute.xlu0 %2571
    %2579 = vrot.lane.b32.xlu0 %v2489, 32
    %v2580 = vpop.permute.xlu0 %2579
    %2581 = vrot.lane.b32.xlu0 %v2492, 32
    %v2582 = vpop.permute.xlu0 %2581
    %2583 = vrot.lane.b32.xlu0 %v2497, 32
    %v2584 = vpop.permute.xlu0 %2583
    %2591 = vrot.lane.b32.xlu0 %v2551, 48
    %v2592 = vpop.permute.xlu0 %2591
    %2593 = vrot.lane.b32.xlu0 %v2554, 48
    %v2594 = vpop.permute.xlu0 %2593
    %2595 = vrot.lane.b32.xlu0 %v2559, 48
    %v2596 = vpop.permute.xlu0 %2595
    %v2600 = vsel %vm114, %v2363, %v2568
    %v2601 = vsel %vm114, %v2366, %v2570
    %v2602 = vsel %vm114, %v2371, %v2572
    %v2603 = vsel %vm508, %v2600, %v2580
    %v2604 = vsel %vm508, %v2601, %v2582
    %v2605 = vsel %vm508, %v2602, %v2584
    %v2606 = vsel %vm696, %v2603, %v2592
    %v2607 = vsel %vm696, %v2604, %v2594
    %v2608 = vsel %vm696, %v2605, %v2596
    %v2609 = vpack.c.bf16 %v2607, %v2606
    %v2610 = vpack.c.bf16 %v2608, %v2608
    %v2611 = vld [vmem:[%s6 + $0x258] sm:$0xf]
    %v2612 = vld [vmem:[%s6 + $0x25c] sm:$0xf]
    %v2613 = vld [vmem:[%s6 + $0x260] sm:$0xf]
    %v2614 = vld [vmem:[%s6 + $0x264] sm:$0xf]
    %v2615 = vld [vmem:[%s6 + $0x268] sm:$0xf]
    %v2616 = vld [vmem:[%s6 + $0x26c] sm:$0xf]
    %v2617 = vld [vmem:[%s6 + $0x270] sm:$0xf]
    %v2618 = vld [vmem:[%s6 + $0x274] sm:$0xf]
    %v2619 = vld [vmem:[%s6 + $0x550] sm:$0x1]
    %v2620 = vunpack.c.l.bf16 %v2619
    %v2621 = vlaneseq
    %v2622 = vshrl.u32 %v2621, 7
    %v2623 = vsub.s32 0, %v2622
    %v2624 = vrot.slane %v2620, %v2623
    %v2633 = vunpack.c.l.b16 %v2611
    %v2634 = vunpack.c.l.b16 %v2612
    %v2635 = vunpack.c.l.b16 %v2613
    %v2636 = vunpack.c.l.b16 %v2614
    %v2637 = vunpack.c.l.b16 %v2615
    %v2638 = vunpack.c.l.b16 %v2616
    %v2639 = vunpack.c.l.b16 %v2617
    %v2640 = vunpack.c.l.b16 %v2618
    %v2641 = vpack.c.b16 %v2634, %v2633
    %v2642 = vpack.c.b16 %v2636, %v2635
    %v2643 = vpack.c.b16 %v2638, %v2637
    %v2644 = vpack.c.b16 %v2640, %v2639
    %v2650 = vsel %vm303, %v2609, 0
    %v2653 = vsel %vm303, %v2610, 0
    %2655 = vmatprep.subr.bf16.mxu0 0
    %2656 = vmatpush1.bf16.msra.mxu0 0
    %2657 = vmatprep.subr.bf16.mxu0 0
    %2658 = vmatpush1.bf16.msra.mxu0 0
    %2659 = vmatprep.subr.bf16.mxu0 0
    %2660 = vmatpush1.bf16.msra.mxu0 0
    %2661 = vmatprep.subr.bf16.mxu0 0
    %2662 = vmatpush1.bf16.msra.mxu0 0
    %2663 = vmatprep.subr.bf16.mxu0 0
    %2664 = vmatpush1.bf16.msra.mxu0 %v2644
    %2665 = vmatprep.subr.bf16.mxu0 0
    %2666 = vmatpush1.bf16.msra.mxu0 %v2643
    %2667 = vmatprep.subr.bf16.mxu0 0
    %2668 = vmatpush1.bf16.msra.mxu0 %v2642
    %2669 = vmatprep.subr.bf16.mxu0 0
    %2670 = vmatpush1.bf16.msra.mxu0 %v2641
    %2671 = vmatprep.subr.bf16.mxu0 0
    %2672 = vmatpush2.bf16.msra.mxu0 0
    %2673 = vmatprep.subr.bf16.mxu0 0
    %2674 = vmatpush2.bf16.msra.mxu0 0
    %2675 = vmatprep.subr.bf16.mxu0 0
    %2676 = vmatpush2.bf16.msra.mxu0 0
    %2677 = vmatprep.subr.bf16.mxu0 0
    %2678 = vmatpush2.bf16.msra.mxu0 0
    %2679 = vmatprep.subr.bf16.mxu0 0
    %2680 = vmatpush2.bf16.msra.mxu0 0
    %2681 = vmatprep.subr.bf16.mxu0 0
    %2682 = vmatpush2.bf16.msra.mxu0 0
    %2683 = vmatprep.subr.bf16.mxu0 0
    %2684 = vmatpush2.bf16.msra.mxu0 0
    %2685 = vmatprep.subr.bf16.mxu0 0
    %2686 = vmatpush2.bf16.msra.mxu0 0
    %2687 = vmatprep.mubr.bf16.mxu0 0
    %2688 = vmatmul.mubr.bf16.gmra.mxu0 %v2650
    %v2689 = vpop.f32.mrf.mxu0
    %v2690 = vadd.f32 %v2624, %v2689
    %v2691 = vpop.f32.mrf.mxu0
    %v2692 = vpop.f32.mrf.mxu0
    %v2693 = vadd.f32 %v2624, %v2692
    %v2694 = vpop.f32.mrf.mxu0
    %2695 = vmatprep.mubr.bf16.mxu0 0
    %2696 = vmatmul.mubr.bf16.gmra.mxu0 %v2653
    %v2697 = vpop.f32.mrf.mxu0
    %v2698 = vadd.f32 %v2624, %v2697
    %v2699 = vpop.f32.mrf.mxu0
    %v2700 = vpop.f32.mrf.mxu0
    %v2701 = vpop.f32.mrf.mxu0
    %2702 = vdwg.mxu0
    %v2703 = vadd.f32 %v1562, %v2690
    %v2704 = vadd.f32 %v1563, %v2693
    %v2705 = vadd.f32 %v1564, %v2698
    %v2706 = vsel %vm303, %v2703, 0.0
    %2707 = vadd.xlane.f32.xlu0 %v2706
    %v2708 = vpop.xlane.xlu0 %2707
    %v2709 = vsel %vm303, %v2704, 0.0
    %2710 = vadd.xlane.f32.xlu0 %v2709
    %v2711 = vpop.xlane.xlu0 %2710
    %v2712 = vsel %vm1574, %v2705, 0.0
    %2713 = vadd.xlane.f32.xlu0 %v2712
    %v2714 = vpop.xlane.xlu0 %2713
    %v2715 = vmul.f32 %v2708, %v1578
    %v2716 = vmul.f32 %v2711, %v1578
    %v2717 = vmul.f32 %v2714, %v1578
    %v2718 = vsub.f32 %v2703, %v2715
    %v2719 = vsub.f32 %v2704, %v2716
    %v2720 = vsub.f32 %v2705, %v2717
    %v2721 = vmul.f32 %v2718, %v2718
    %v2722 = vmul.f32 %v2719, %v2719
    %v2723 = vmul.f32 %v2720, %v2720
    %v2724 = vsel %vm303, %v2721, 0.0
    %2725 = vadd.xlane.f32.xlu0 %v2724
    %v2726 = vpop.xlane.xlu0 %2725
    %v2727 = vsel %vm303, %v2722, 0.0
    %2728 = vadd.xlane.f32.xlu0 %v2727
    %v2729 = vpop.xlane.xlu0 %2728
    %v2730 = vsel %vm1574, %v2723, 0.0
    %2731 = vadd.xlane.f32.xlu0 %v2730
    %v2732 = vpop.xlane.xlu0 %2731
    %v2733 = vmul.f32 %v2726, %v1578
    %v2734 = vmul.f32 %v2729, %v1578
    %v2735 = vmul.f32 %v2732, %v1578
    %v2736 = vadd.f32 %v2733, 1e-05
    %v2737 = vadd.f32 %v2734, 1e-05
    %v2738 = vadd.f32 %v2735, 1e-05
    %v2739 = vrsqrt.pop %v2736
    %v2740 = vrsqrt.pop %v2737
    %v2741 = vrsqrt.pop %v2738
    %v2742 = vmul.f32 %v2718, %v2739
    %v2743 = vmul.f32 %v2719, %v2740
    %v2744 = vmul.f32 %v2720, %v2741
    %v2745 = vlaneseq
    %v2746 = vshrl.u32 %v2745, 7
    %v2747 = vsub.s32 1, %v2746
    %v2748 = vrot.slane %v2620, %v2747
    %v2749 = vmul.f32 %v2742, %v2748
    %v2750 = vmul.f32 %v2743, %v2748
    %v2751 = vmul.f32 %v2744, %v2748
    %v2752 = vld [vmem:[%s6 + $0x550] sm:$0x2]
    %v2753 = vunpack.c.l.bf16 %v2752
    %v2754 = vlaneseq
    %v2755 = vshrl.u32 %v2754, 7
    %v2756 = vsub.s32 2, %v2755
    %v2757 = vrot.slane %v2753, %v2756
    %v2758 = vadd.f32 %v2749, %v2757
    %v2759 = vadd.f32 %v2750, %v2757
    %v2760 = vadd.f32 %v2751, %v2757
    %v2761 = vpack.c.bf16 %v2759, %v2758
    %v2762 = vpack.c.bf16 %v2760, %v2760
    %v2763 = vld [vmem:[%s6 + $0x278] sm:$0xf]
    %v2764 = vld [vmem:[%s6 + $0x27c] sm:$0xf]
    %v2765 = vld [vmem:[%s6 + $0x280] sm:$0xf]
    %v2766 = vld [vmem:[%s6 + $0x284] sm:$0xf]
    %v2767 = vld [vmem:[%s6 + $0x288] sm:$0xf]
    %v2768 = vld [vmem:[%s6 + $0x28c] sm:$0xf]
    %v2769 = vld [vmem:[%s6 + $0x290] sm:$0xf]
    %v2770 = vld [vmem:[%s6 + $0x294] sm:$0xf]
    %v2771 = vlaneseq
    %v2772 = vshrl.u32 %v2771, 7
    %v2773 = vsub.s32 3, %v2772
    %v2774 = vrot.slane %v2753, %v2773
    %v2783 = vunpack.c.l.b16 %v2763
    %v2784 = vunpack.c.l.b16 %v2764
    %v2785 = vunpack.c.l.b16 %v2765
    %v2786 = vunpack.c.l.b16 %v2766
    %v2787 = vunpack.c.l.b16 %v2767
    %v2788 = vunpack.c.l.b16 %v2768
    %v2789 = vunpack.c.l.b16 %v2769
    %v2790 = vunpack.c.l.b16 %v2770
    %v2791 = vpack.c.b16 %v2784, %v2783
    %v2792 = vpack.c.b16 %v2786, %v2785
    %v2793 = vpack.c.b16 %v2788, %v2787
    %v2794 = vpack.c.b16 %v2790, %v2789
    %v2800 = vsel %vm303, %v2761, 0
    %v2803 = vsel %vm303, %v2762, 0
    %2805 = vmatprep.subr.bf16.mxu0 0
    %2806 = vmatpush1.bf16.msra.mxu0 0
    %2807 = vmatprep.subr.bf16.mxu0 0
    %2808 = vmatpush1.bf16.msra.mxu0 0
    %2809 = vmatprep.subr.bf16.mxu0 0
    %2810 = vmatpush1.bf16.msra.mxu0 0
    %2811 = vmatprep.subr.bf16.mxu0 0
    %2812 = vmatpush1.bf16.msra.mxu0 0
    %2813 = vmatprep.subr.bf16.mxu0 0
    %2814 = vmatpush1.bf16.msra.mxu0 %v2794
    %2815 = vmatprep.subr.bf16.mxu0 0
    %2816 = vmatpush1.bf16.msra.mxu0 %v2793
    %2817 = vmatprep.subr.bf16.mxu0 0
    %2818 = vmatpush1.bf16.msra.mxu0 %v2792
    %2819 = vmatprep.subr.bf16.mxu0 0
    %2820 = vmatpush1.bf16.msra.mxu0 %v2791
    %2821 = vmatprep.subr.bf16.mxu0 0
    %2822 = vmatpush2.bf16.msra.mxu0 0
    %2823 = vmatprep.subr.bf16.mxu0 0
    %2824 = vmatpush2.bf16.msra.mxu0 0
    %2825 = vmatprep.subr.bf16.mxu0 0
    %2826 = vmatpush2.bf16.msra.mxu0 0
    %2827 = vmatprep.subr.bf16.mxu0 0
    %2828 = vmatpush2.bf16.msra.mxu0 0
    %2829 = vmatprep.subr.bf16.mxu0 0
    %2830 = vmatpush2.bf16.msra.mxu0 0
    %2831 = vmatprep.subr.bf16.mxu0 0
    %2832 = vmatpush2.bf16.msra.mxu0 0
    %2833 = vmatprep.subr.bf16.mxu0 0
    %2834 = vmatpush2.bf16.msra.mxu0 0
    %2835 = vmatprep.subr.bf16.mxu0 0
    %2836 = vmatpush2.bf16.msra.mxu0 0
    %2837 = vmatprep.mubr.bf16.mxu0 0
    %2838 = vmatmul.mubr.bf16.gmra.mxu0 %v2800
    %v2839 = vpop.f32.mrf.mxu0
    %v2840 = vadd.f32 %v2774, %v2839
    %v2841 = vpop.f32.mrf.mxu0
    %v2842 = vpop.f32.mrf.mxu0
    %v2843 = vadd.f32 %v2774, %v2842
    %v2844 = vpop.f32.mrf.mxu0
    %2845 = vmatprep.mubr.bf16.mxu0 0
    %2846 = vmatmul.mubr.bf16.gmra.mxu0 %v2803
    %v2847 = vpop.f32.mrf.mxu0
    %v2848 = vadd.f32 %v2774, %v2847
    %v2849 = vpop.f32.mrf.mxu0
    %v2850 = vpop.f32.mrf.mxu0
    %v2851 = vpop.f32.mrf.mxu0
    %2852 = vdwg.mxu0
    %v2853 = vmul.f32 %v2840, 0.25
    %v2854 = vmul.f32 %v2843, 0.25
    %v2855 = vmul.f32 %v2848, 0.25
    %v2856 = vpack.c.bf16 %v2854, %v2853
    %v2857 = vpack.c.bf16 %v2855, %v2855
    %v2858 = vld [vmem:[%s6 + $0x298] sm:$0xf]
    %v2859 = vld [vmem:[%s6 + $0x29c] sm:$0xf]
    %v2860 = vld [vmem:[%s6 + $0x2a0] sm:$0xf]
    %v2861 = vld [vmem:[%s6 + $0x2a4] sm:$0xf]
    %v2862 = vld [vmem:[%s6 + $0x2a8] sm:$0xf]
    %v2863 = vld [vmem:[%s6 + $0x2ac] sm:$0xf]
    %v2864 = vld [vmem:[%s6 + $0x2b0] sm:$0xf]
    %v2865 = vld [vmem:[%s6 + $0x2b4] sm:$0xf]
    %v2866 = vld [vmem:[%s6 + $0x550] sm:$0x4]
    %v2867 = vunpack.c.l.bf16 %v2866
    %v2868 = vlaneseq
    %v2869 = vshrl.u32 %v2868, 7
    %v2870 = vsub.s32 4, %v2869
    %v2871 = vrot.slane %v2867, %v2870
    %v2880 = vunpack.c.l.b16 %v2858
    %v2881 = vunpack.c.l.b16 %v2859
    %v2882 = vunpack.c.l.b16 %v2860
    %v2883 = vunpack.c.l.b16 %v2861
    %v2884 = vunpack.c.l.b16 %v2862
    %v2885 = vunpack.c.l.b16 %v2863
    %v2886 = vunpack.c.l.b16 %v2864
    %v2887 = vunpack.c.l.b16 %v2865
    %v2888 = vpack.c.b16 %v2881, %v2880
    %v2889 = vpack.c.b16 %v2883, %v2882
    %v2890 = vpack.c.b16 %v2885, %v2884
    %v2891 = vpack.c.b16 %v2887, %v2886
    %v2897 = vsel %vm303, %v658, 0
    %2899 = vmatprep.subr.bf16.mxu0 0
    %2900 = vmatpush1.bf16.msra.mxu0 0
    %2901 = vmatprep.subr.bf16.mxu0 0
    %2902 = vmatpush1.bf16.msra.mxu0 0
    %2903 = vmatprep.subr.bf16.mxu0 0
    %2904 = vmatpush1.bf16.msra.mxu0 0
    %2905 = vmatprep.subr.bf16.mxu0 0
    %2906 = vmatpush1.bf16.msra.mxu0 0
    %2907 = vmatprep.subr.bf16.mxu0 0
    %2908 = vmatpush1.bf16.msra.mxu0 %v2891
    %2909 = vmatprep.subr.bf16.mxu0 0
    %2910 = vmatpush1.bf16.msra.mxu0 %v2890
    %2911 = vmatprep.subr.bf16.mxu0 0
    %2912 = vmatpush1.bf16.msra.mxu0 %v2889
    %2913 = vmatprep.subr.bf16.mxu0 0
    %2914 = vmatpush1.bf16.msra.mxu0 %v2888
    %2915 = vmatprep.subr.bf16.mxu0 0
    %2916 = vmatpush2.bf16.msra.mxu0 0
    %2917 = vmatprep.subr.bf16.mxu0 0
    %2918 = vmatpush2.bf16.msra.mxu0 0
    %2919 = vmatprep.subr.bf16.mxu0 0
    %2920 = vmatpush2.bf16.msra.mxu0 0
    %2921 = vmatprep.subr.bf16.mxu0 0
    %2922 = vmatpush2.bf16.msra.mxu0 0
    %2923 = vmatprep.subr.bf16.mxu0 0
    %2924 = vmatpush2.bf16.msra.mxu0 0
    %2925 = vmatprep.subr.bf16.mxu0 0
    %2926 = vmatpush2.bf16.msra.mxu0 0
    %2927 = vmatprep.subr.bf16.mxu0 0
    %2928 = vmatpush2.bf16.msra.mxu0 0
    %2929 = vmatprep.subr.bf16.mxu0 0
    %2930 = vmatpush2.bf16.msra.mxu0 0
    %2931 = vmatprep.mubr.bf16.mxu0 0
    %2932 = vmatmul.mubr.bf16.gmra.mxu0 %v2897
    %v2933 = vpop.f32.mrf.mxu0
    %v2934 = vadd.f32 %v2871, %v2933
    %v2935 = vpop.f32.mrf.mxu0
    %v2936 = vpop.f32.mrf.mxu0
    %v2937 = vadd.f32 %v2871, %v2936
    %v2938 = vpop.f32.mrf.mxu0
    %2939 = vdwg.mxu0
    %v2940 = vpack.c.bf16 %v2937, %v2934
    %v2941 = vld [vmem:[%s6 + $0x2b8] sm:$0xf]
    %v2942 = vld [vmem:[%s6 + $0x2bc] sm:$0xf]
    %v2943 = vld [vmem:[%s6 + $0x2c0] sm:$0xf]
    %v2944 = vld [vmem:[%s6 + $0x2c4] sm:$0xf]
    %v2945 = vld [vmem:[%s6 + $0x2c8] sm:$0xf]
    %v2946 = vld [vmem:[%s6 + $0x2cc] sm:$0xf]
    %v2947 = vld [vmem:[%s6 + $0x2d0] sm:$0xf]
    %v2948 = vld [vmem:[%s6 + $0x2d4] sm:$0xf]
    %v2949 = vlaneseq
    %v2950 = vshrl.u32 %v2949, 7
    %v2951 = vsub.s32 5, %v2950
    %v2952 = vrot.slane %v2867, %v2951
    %v2961 = vunpack.c.l.b16 %v2941
    %v2962 = vunpack.c.l.b16 %v2942
    %v2963 = vunpack.c.l.b16 %v2943
    %v2964 = vunpack.c.l.b16 %v2944
    %v2965 = vunpack.c.l.b16 %v2945
    %v2966 = vunpack.c.l.b16 %v2946
    %v2967 = vunpack.c.l.b16 %v2947
    %v2968 = vunpack.c.l.b16 %v2948
    %v2969 = vpack.c.b16 %v2962, %v2961
    %v2970 = vpack.c.b16 %v2964, %v2963
    %v2971 = vpack.c.b16 %v2966, %v2965
    %v2972 = vpack.c.b16 %v2968, %v2967
    %2977 = vmatprep.subr.bf16.mxu0 0
    %2978 = vmatpush1.bf16.msra.mxu0 0
    %2979 = vmatprep.subr.bf16.mxu0 0
    %2980 = vmatpush1.bf16.msra.mxu0 0
    %2981 = vmatprep.subr.bf16.mxu0 0
    %2982 = vmatpush1.bf16.msra.mxu0 0
    %2983 = vmatprep.subr.bf16.mxu0 0
    %2984 = vmatpush1.bf16.msra.mxu0 0
    %2985 = vmatprep.subr.bf16.mxu0 0
    %2986 = vmatpush1.bf16.msra.mxu0 %v2972
    %2987 = vmatprep.subr.bf16.mxu0 0
    %2988 = vmatpush1.bf16.msra.mxu0 %v2971
    %2989 = vmatprep.subr.bf16.mxu0 0
    %2990 = vmatpush1.bf16.msra.mxu0 %v2970
    %2991 = vmatprep.subr.bf16.mxu0 0
    %2992 = vmatpush1.bf16.msra.mxu0 %v2969
    %2993 = vmatprep.subr.bf16.mxu0 0
    %2994 = vmatpush2.bf16.msra.mxu0 0
    %2995 = vmatprep.subr.bf16.mxu0 0
    %2996 = vmatpush2.bf16.msra.mxu0 0
    %2997 = vmatprep.subr.bf16.mxu0 0
    %2998 = vmatpush2.bf16.msra.mxu0 0
    %2999 = vmatprep.subr.bf16.mxu0 0
    %3000 = vmatpush2.bf16.msra.mxu0 0
    %3001 = vmatprep.subr.bf16.mxu0 0
    %3002 = vmatpush2.bf16.msra.mxu0 0
    %3003 = vmatprep.subr.bf16.mxu0 0
    %3004 = vmatpush2.bf16.msra.mxu0 0
    %3005 = vmatprep.subr.bf16.mxu0 0
    %3006 = vmatpush2.bf16.msra.mxu0 0
    %3007 = vmatprep.subr.bf16.mxu0 0
    %3008 = vmatpush2.bf16.msra.mxu0 0
    %3009 = vmatprep.mubr.bf16.mxu0 0
    %3010 = vmatmul.mubr.bf16.gmra.mxu0 %v2897
    %v3011 = vpop.f32.mrf.mxu0
    %v3012 = vadd.f32 %v2952, %v3011
    %v3013 = vpop.f32.mrf.mxu0
    %v3014 = vpop.f32.mrf.mxu0
    %v3015 = vadd.f32 %v2952, %v3014
    %v3016 = vpop.f32.mrf.mxu0
    %3017 = vdwg.mxu0
    %v3018 = vpack.c.bf16 %v3015, %v3012
    %v3020 = vsel %vm114, %v2856, 0
    %v3023 = vsel %vm114, %v2857, 0
    %v3026 = vsel %vm114, %v2940, 0
    %3028 = vmatprep.subr.bf16.mxu0 0
    %3029 = vmatpush1.bf16.xpose.msra.mxu0 0
    %3030 = vmatprep.subr.bf16.mxu0 0
    %3031 = vmatpush1.bf16.xpose.msra.mxu0 0
    %3032 = vmatprep.subr.bf16.mxu0 0
    %3033 = vmatpush1.bf16.xpose.msra.mxu0 0
    %3034 = vmatprep.subr.bf16.mxu0 0
    %3035 = vmatpush1.bf16.xpose.msra.mxu0 0
    %3036 = vmatprep.subr.bf16.mxu0 0
    %3037 = vmatpush1.bf16.xpose.msra.mxu0 0
    %3038 = vmatprep.subr.bf16.mxu0 0
    %3039 = vmatpush1.bf16.xpose.msra.mxu0 0
    %3040 = vmatprep.subr.bf16.mxu0 0
    %3041 = vmatpush1.bf16.xpose.msra.mxu0 0
    %3042 = vmatprep.subr.bf16.mxu0 0
    %3043 = vmatpush1.bf16.xpose.msra.mxu0 %v3026
    %3044 = vmatprep.subr.bf16.mxu0 0
    %3045 = vmatpush2.bf16.xpose.msra.mxu0 0
    %3046 = vmatprep.subr.bf16.mxu0 0
    %3047 = vmatpush2.bf16.xpose.msra.mxu0 0
    %3048 = vmatprep.subr.bf16.mxu0 0
    %3049 = vmatpush2.bf16.xpose.msra.mxu0 0
    %3050 = vmatprep.subr.bf16.mxu0 0
    %3051 = vmatpush2.bf16.xpose.msra.mxu0 0
    %3052 = vmatprep.subr.bf16.mxu0 0
    %3053 = vmatpush2.bf16.xpose.msra.mxu0 0
    %3054 = vmatprep.subr.bf16.mxu0 0
    %3055 = vmatpush2.bf16.xpose.msra.mxu0 0
    %3056 = vmatprep.subr.bf16.mxu0 0
    %3057 = vmatpush2.bf16.xpose.msra.mxu0 0
    %3058 = vmatprep.subr.bf16.mxu0 0
    %3059 = vmatpush2.bf16.xpose.msra.mxu0 0
    %3060 = vmatprep.mubr.bf16.mxu0 0
    %3061 = vmatmul.mubr.bf16.gmra.mxu0 %v3020
    %v3062 = vpop.f32.mrf.mxu0
    %v3063 = vadd.f32 0.0, %v3062
    %v3064 = vpop.f32.mrf.mxu0
    %v3065 = vpop.f32.mrf.mxu0
    %v3066 = vadd.f32 0.0, %v3065
    %v3067 = vpop.f32.mrf.mxu0
    %3068 = vmatprep.mubr.bf16.mxu0 0
    %3069 = vmatmul.mubr.bf16.gmra.mxu0 %v3023
    %v3070 = vpop.f32.mrf.mxu0
    %v3071 = vadd.f32 0.0, %v3070
    %v3072 = vpop.f32.mrf.mxu0
    %v3073 = vpop.f32.mrf.mxu0
    %v3074 = vpop.f32.mrf.mxu0
    %3075 = vdwg.mxu0
    %3078 = vrot.lane.b32.xlu0 %v2856, 112
    %v3079 = vpop.permute.xlu0 %3078
    %3080 = vrot.lane.b32.xlu0 %v2857, 112
    %v3081 = vpop.permute.xlu0 %3080
    %3083 = vrot.lane.b32.xlu0 %v2940, 112
    %v3084 = vpop.permute.xlu0 %3083
    %v3086 = vsel %vm114, %v3079, 0
    %v3089 = vsel %vm114, %v3081, 0
    %v3092 = vsel %vm114, %v3084, 0
    %3094 = vmatprep.subr.bf16.mxu0 0
    %3095 = vmatpush1.bf16.xpose.msra.mxu0 0
    %3096 = vmatprep.subr.bf16.mxu0 0
    %3097 = vmatpush1.bf16.xpose.msra.mxu0 0
    %3098 = vmatprep.subr.bf16.mxu0 0
    %3099 = vmatpush1.bf16.xpose.msra.mxu0 0
    %3100 = vmatprep.subr.bf16.mxu0 0
    %3101 = vmatpush1.bf16.xpose.msra.mxu0 0
    %3102 = vmatprep.subr.bf16.mxu0 0
    %3103 = vmatpush1.bf16.xpose.msra.mxu0 0
    %3104 = vmatprep.subr.bf16.mxu0 0
    %3105 = vmatpush1.bf16.xpose.msra.mxu0 0
    %3106 = vmatprep.subr.bf16.mxu0 0
    %3107 = vmatpush1.bf16.xpose.msra.mxu0 0
    %3108 = vmatprep.subr.bf16.mxu0 0
    %3109 = vmatpush1.bf16.xpose.msra.mxu0 %v3092
    %3110 = vmatprep.subr.bf16.mxu0 0
    %3111 = vmatpush2.bf16.xpose.msra.mxu0 0
    %3112 = vmatprep.subr.bf16.mxu0 0
    %3113 = vmatpush2.bf16.xpose.msra.mxu0 0
    %3114 = vmatprep.subr.bf16.mxu0 0
    %3115 = vmatpush2.bf16.xpose.msra.mxu0 0
    %3116 = vmatprep.subr.bf16.mxu0 0
    %3117 = vmatpush2.bf16.xpose.msra.mxu0 0
    %3118 = vmatprep.subr.bf16.mxu0 0
    %3119 = vmatpush2.bf16.xpose.msra.mxu0 0
    %3120 = vmatprep.subr.bf16.mxu0 0
    %3121 = vmatpush2.bf16.xpose.msra.mxu0 0
    %3122 = vmatprep.subr.bf16.mxu0 0
    %3123 = vmatpush2.bf16.xpose.msra.mxu0 0
    %3124 = vmatprep.subr.bf16.mxu0 0
    %3125 = vmatpush2.bf16.xpose.msra.mxu0 0
    %3126 = vmatprep.mubr.bf16.mxu0 0
    %3127 = vmatmul.mubr.bf16.gmra.mxu0 %v3086
    %v3128 = vpop.f32.mrf.mxu0
    %v3129 = vadd.f32 0.0, %v3128
    %v3130 = vpop.f32.mrf.mxu0
    %v3131 = vpop.f32.mrf.mxu0
    %v3132 = vadd.f32 0.0, %v3131
    %v3133 = vpop.f32.mrf.mxu0
    %3134 = vmatprep.mubr.bf16.mxu0 0
    %3135 = vmatmul.mubr.bf16.gmra.mxu0 %v3089
    %v3136 = vpop.f32.mrf.mxu0
    %v3137 = vadd.f32 0.0, %v3136
    %v3138 = vpop.f32.mrf.mxu0
    %v3139 = vpop.f32.mrf.mxu0
    %v3140 = vpop.f32.mrf.mxu0
    %3141 = vdwg.mxu0
    %3142 = vrot.lane.b32.xlu0 %v2856, 96
    %v3143 = vpop.permute.xlu0 %3142
    %3144 = vrot.lane.b32.xlu0 %v2857, 96
    %v3145 = vpop.permute.xlu0 %3144
    %3146 = vrot.lane.b32.xlu0 %v2940, 96
    %v3147 = vpop.permute.xlu0 %3146
    %v3149 = vsel %vm114, %v3143, 0
    %v3152 = vsel %vm114, %v3145, 0
    %v3155 = vsel %vm114, %v3147, 0
    %3157 = vmatprep.subr.bf16.mxu0 0
    %3158 = vmatpush1.bf16.xpose.msra.mxu0 0
    %3159 = vmatprep.subr.bf16.mxu0 0
    %3160 = vmatpush1.bf16.xpose.msra.mxu0 0
    %3161 = vmatprep.subr.bf16.mxu0 0
    %3162 = vmatpush1.bf16.xpose.msra.mxu0 0
    %3163 = vmatprep.subr.bf16.mxu0 0
    %3164 = vmatpush1.bf16.xpose.msra.mxu0 0
    %3165 = vmatprep.subr.bf16.mxu0 0
    %3166 = vmatpush1.bf16.xpose.msra.mxu0 0
    %3167 = vmatprep.subr.bf16.mxu0 0
    %3168 = vmatpush1.bf16.xpose.msra.mxu0 0
    %3169 = vmatprep.subr.bf16.mxu0 0
    %3170 = vmatpush1.bf16.xpose.msra.mxu0 0
    %3171 = vmatprep.subr.bf16.mxu0 0
    %3172 = vmatpush1.bf16.xpose.msra.mxu0 %v3155
    %3173 = vmatprep.subr.bf16.mxu0 0
    %3174 = vmatpush2.bf16.xpose.msra.mxu0 0
    %3175 = vmatprep.subr.bf16.mxu0 0
    %3176 = vmatpush2.bf16.xpose.msra.mxu0 0
    %3177 = vmatprep.subr.bf16.mxu0 0
    %3178 = vmatpush2.bf16.xpose.msra.mxu0 0
    %3179 = vmatprep.subr.bf16.mxu0 0
    %3180 = vmatpush2.bf16.xpose.msra.mxu0 0
    %3181 = vmatprep.subr.bf16.mxu0 0
    %3182 = vmatpush2.bf16.xpose.msra.mxu0 0
    %3183 = vmatprep.subr.bf16.mxu0 0
    %3184 = vmatpush2.bf16.xpose.msra.mxu0 0
    %3185 = vmatprep.subr.bf16.mxu0 0
    %3186 = vmatpush2.bf16.xpose.msra.mxu0 0
    %3187 = vmatprep.subr.bf16.mxu0 0
    %3188 = vmatpush2.bf16.xpose.msra.mxu0 0
    %3189 = vmatprep.mubr.bf16.mxu0 0
    %3190 = vmatmul.mubr.bf16.gmra.mxu0 %v3149
    %v3191 = vpop.f32.mrf.mxu0
    %v3192 = vadd.f32 0.0, %v3191
    %v3193 = vpop.f32.mrf.mxu0
    %v3194 = vpop.f32.mrf.mxu0
    %v3195 = vadd.f32 0.0, %v3194
    %v3196 = vpop.f32.mrf.mxu0
    %3197 = vmatprep.mubr.bf16.mxu0 0
    %3198 = vmatmul.mubr.bf16.gmra.mxu0 %v3152
    %v3199 = vpop.f32.mrf.mxu0
    %v3200 = vadd.f32 0.0, %v3199
    %v3201 = vpop.f32.mrf.mxu0
    %v3202 = vpop.f32.mrf.mxu0
    %v3203 = vpop.f32.mrf.mxu0
    %3204 = vdwg.mxu0
    %3205 = vrot.lane.b32.xlu0 %v2856, 80
    %v3206 = vpop.permute.xlu0 %3205
    %3207 = vrot.lane.b32.xlu0 %v2857, 80
    %v3208 = vpop.permute.xlu0 %3207
    %3209 = vrot.lane.b32.xlu0 %v2940, 80
    %v3210 = vpop.permute.xlu0 %3209
    %v3212 = vsel %vm114, %v3206, 0
    %v3215 = vsel %vm114, %v3208, 0
    %v3218 = vsel %vm114, %v3210, 0
    %3220 = vmatprep.subr.bf16.mxu0 0
    %3221 = vmatpush1.bf16.xpose.msra.mxu0 0
    %3222 = vmatprep.subr.bf16.mxu0 0
    %3223 = vmatpush1.bf16.xpose.msra.mxu0 0
    %3224 = vmatprep.subr.bf16.mxu0 0
    %3225 = vmatpush1.bf16.xpose.msra.mxu0 0
    %3226 = vmatprep.subr.bf16.mxu0 0
    %3227 = vmatpush1.bf16.xpose.msra.mxu0 0
    %3228 = vmatprep.subr.bf16.mxu0 0
    %3229 = vmatpush1.bf16.xpose.msra.mxu0 0
    %3230 = vmatprep.subr.bf16.mxu0 0
    %3231 = vmatpush1.bf16.xpose.msra.mxu0 0
    %3232 = vmatprep.subr.bf16.mxu0 0
    %3233 = vmatpush1.bf16.xpose.msra.mxu0 0
    %3234 = vmatprep.subr.bf16.mxu0 0
    %3235 = vmatpush1.bf16.xpose.msra.mxu0 %v3218
    %3236 = vmatprep.subr.bf16.mxu0 0
    %3237 = vmatpush2.bf16.xpose.msra.mxu0 0
    %3238 = vmatprep.subr.bf16.mxu0 0
    %3239 = vmatpush2.bf16.xpose.msra.mxu0 0
    %3240 = vmatprep.subr.bf16.mxu0 0
    %3241 = vmatpush2.bf16.xpose.msra.mxu0 0
    %3242 = vmatprep.subr.bf16.mxu0 0
    %3243 = vmatpush2.bf16.xpose.msra.mxu0 0
    %3244 = vmatprep.subr.bf16.mxu0 0
    %3245 = vmatpush2.bf16.xpose.msra.mxu0 0
    %3246 = vmatprep.subr.bf16.mxu0 0
    %3247 = vmatpush2.bf16.xpose.msra.mxu0 0
    %3248 = vmatprep.subr.bf16.mxu0 0
    %3249 = vmatpush2.bf16.xpose.msra.mxu0 0
    %3250 = vmatprep.subr.bf16.mxu0 0
    %3251 = vmatpush2.bf16.xpose.msra.mxu0 0
    %3252 = vmatprep.mubr.bf16.mxu0 0
    %3253 = vmatmul.mubr.bf16.gmra.mxu0 %v3212
    %v3254 = vpop.f32.mrf.mxu0
    %v3255 = vadd.f32 0.0, %v3254
    %v3256 = vpop.f32.mrf.mxu0
    %v3257 = vpop.f32.mrf.mxu0
    %v3258 = vadd.f32 0.0, %v3257
    %v3259 = vpop.f32.mrf.mxu0
    %3260 = vmatprep.mubr.bf16.mxu0 0
    %3261 = vmatmul.mubr.bf16.gmra.mxu0 %v3215
    %v3262 = vpop.f32.mrf.mxu0
    %v3263 = vadd.f32 0.0, %v3262
    %v3264 = vpop.f32.mrf.mxu0
    %v3265 = vpop.f32.mrf.mxu0
    %v3266 = vpop.f32.mrf.mxu0
    %3267 = vdwg.mxu0
    %3271 = vrot.lane.b32.xlu0 %v1565, 106
    %v3272 = vpop.permute.xlu0 %3271
    %3273 = vrot.lane.b32.xlu0 %v1566, 106
    %v3274 = vpop.permute.xlu0 %3273
    %3275 = vrot.lane.b32.xlu0 %v1567, 106
    %v3276 = vpop.permute.xlu0 %3275
    %v3280 = vadd.f32 %v3063, %v3272
    %v3281 = vadd.f32 %v3066, %v3274
    %v3282 = vadd.f32 %v3071, %v3276
    %v3283 = vadd.f32 %v3129, %v3272
    %v3284 = vadd.f32 %v3132, %v3274
    %v3285 = vadd.f32 %v3137, %v3276
    %v3286 = vadd.f32 %v3192, %v3272
    %v3287 = vadd.f32 %v3195, %v3274
    %v3288 = vadd.f32 %v3200, %v3276
    %v3289 = vadd.f32 %v3255, %v3272
    %v3290 = vadd.f32 %v3258, %v3274
    %v3291 = vadd.f32 %v3263, %v3276
    %v3292 = vsel %vm114, %v3280, -inf
    %3293 = vmax.xlane.f32.xlu0 %v3292
    %v3294 = vpop.xlane.xlu0 %3293
    %v3295 = vsel %vm114, %v3281, -inf
    %3296 = vmax.xlane.f32.xlu0 %v3295
    %v3297 = vpop.xlane.xlu0 %3296
    %vm3298 = vcmask 128000
    %v3299 = vsel %vm3298, %v3282, -inf
    %3300 = vmax.xlane.f32.xlu0 %v3299
    %v3301 = vpop.xlane.xlu0 %3300
    %v3302 = vsel %vm114, %v3283, -inf
    %3303 = vmax.xlane.f32.xlu0 %v3302
    %v3304 = vpop.xlane.xlu0 %3303
    %v3305 = vsel %vm114, %v3284, -inf
    %3306 = vmax.xlane.f32.xlu0 %v3305
    %v3307 = vpop.xlane.xlu0 %3306
    %v3308 = vsel %vm3298, %v3285, -inf
    %3309 = vmax.xlane.f32.xlu0 %v3308
    %v3310 = vpop.xlane.xlu0 %3309
    %v3311 = vsel %vm114, %v3286, -inf
    %3312 = vmax.xlane.f32.xlu0 %v3311
    %v3313 = vpop.xlane.xlu0 %3312
    %v3314 = vsel %vm114, %v3287, -inf
    %3315 = vmax.xlane.f32.xlu0 %v3314
    %v3316 = vpop.xlane.xlu0 %3315
    %v3317 = vsel %vm3298, %v3288, -inf
    %3318 = vmax.xlane.f32.xlu0 %v3317
    %v3319 = vpop.xlane.xlu0 %3318
    %v3320 = vsel %vm114, %v3289, -inf
    %3321 = vmax.xlane.f32.xlu0 %v3320
    %v3322 = vpop.xlane.xlu0 %3321
    %v3323 = vsel %vm114, %v3290, -inf
    %3324 = vmax.xlane.f32.xlu0 %v3323
    %v3325 = vpop.xlane.xlu0 %3324
    %v3326 = vsel %vm3298, %v3291, -inf
    %3327 = vmax.xlane.f32.xlu0 %v3326
    %v3328 = vpop.xlane.xlu0 %3327
    %v3329 = vsub.f32 %v3280, %v3294
    %v3330 = vsub.f32 %v3281, %v3297
    %v3331 = vsub.f32 %v3282, %v3301
    %v3332 = vsub.f32 %v3283, %v3304
    %v3333 = vsub.f32 %v3284, %v3307
    %v3334 = vsub.f32 %v3285, %v3310
    %v3335 = vsub.f32 %v3286, %v3313
    %v3336 = vsub.f32 %v3287, %v3316
    %v3337 = vsub.f32 %v3288, %v3319
    %v3338 = vsub.f32 %v3289, %v3322
    %v3339 = vsub.f32 %v3290, %v3325
    %v3340 = vsub.f32 %v3291, %v3328
    %v3341 = vmul.f32 %v3329, 1.442695
    %v3342 = vpow.pop %v3341
    %v3343 = vmul.f32 %v3330, 1.442695
    %v3344 = vpow.pop %v3343
    %v3345 = vmul.f32 %v3331, 1.442695
    %v3346 = vpow.pop %v3345
    %v3347 = vmul.f32 %v3332, 1.442695
    %v3348 = vpow.pop %v3347
    %v3349 = vmul.f32 %v3333, 1.442695
    %v3350 = vpow.pop %v3349
    %v3351 = vmul.f32 %v3334, 1.442695
    %v3352 = vpow.pop %v3351
    %v3353 = vmul.f32 %v3335, 1.442695
    %v3354 = vpow.pop %v3353
    %v3355 = vmul.f32 %v3336, 1.442695
    %v3356 = vpow.pop %v3355
    %v3357 = vmul.f32 %v3337, 1.442695
    %v3358 = vpow.pop %v3357
    %v3359 = vmul.f32 %v3338, 1.442695
    %v3360 = vpow.pop %v3359
    %v3361 = vmul.f32 %v3339, 1.442695
    %v3362 = vpow.pop %v3361
    %v3363 = vmul.f32 %v3340, 1.442695
    %v3364 = vpow.pop %v3363
    %v3365 = vsel %vm114, %v3342, 0.0
    %3366 = vadd.xlane.f32.xlu0 %v3365
    %v3367 = vpop.xlane.xlu0 %3366
    %v3368 = vsel %vm114, %v3344, 0.0
    %3369 = vadd.xlane.f32.xlu0 %v3368
    %v3370 = vpop.xlane.xlu0 %3369
    %v3371 = vsel %vm3298, %v3346, 0.0
    %3372 = vadd.xlane.f32.xlu0 %v3371
    %v3373 = vpop.xlane.xlu0 %3372
    %v3374 = vsel %vm114, %v3348, 0.0
    %3375 = vadd.xlane.f32.xlu0 %v3374
    %v3376 = vpop.xlane.xlu0 %3375
    %v3377 = vsel %vm114, %v3350, 0.0
    %3378 = vadd.xlane.f32.xlu0 %v3377
    %v3379 = vpop.xlane.xlu0 %3378
    %v3380 = vsel %vm3298, %v3352, 0.0
    %3381 = vadd.xlane.f32.xlu0 %v3380
    %v3382 = vpop.xlane.xlu0 %3381
    %v3383 = vsel %vm114, %v3354, 0.0
    %3384 = vadd.xlane.f32.xlu0 %v3383
    %v3385 = vpop.xlane.xlu0 %3384
    %v3386 = vsel %vm114, %v3356, 0.0
    %3387 = vadd.xlane.f32.xlu0 %v3386
    %v3388 = vpop.xlane.xlu0 %3387
    %v3389 = vsel %vm3298, %v3358, 0.0
    %3390 = vadd.xlane.f32.xlu0 %v3389
    %v3391 = vpop.xlane.xlu0 %3390
    %v3392 = vsel %vm114, %v3360, 0.0
    %3393 = vadd.xlane.f32.xlu0 %v3392
    %v3394 = vpop.xlane.xlu0 %3393
    %v3395 = vsel %vm114, %v3362, 0.0
    %3396 = vadd.xlane.f32.xlu0 %v3395
    %v3397 = vpop.xlane.xlu0 %3396
    %v3398 = vsel %vm3298, %v3364, 0.0
    %3399 = vadd.xlane.f32.xlu0 %v3398
    %v3400 = vpop.xlane.xlu0 %3399
    %v3401 = vrcp.pop %v3367
    %v3402 = vrcp.pop %v3370
    %v3403 = vrcp.pop %v3373
    %v3404 = vrcp.pop %v3376
    %v3405 = vrcp.pop %v3379
    %v3406 = vrcp.pop %v3382
    %v3407 = vrcp.pop %v3385
    %v3408 = vrcp.pop %v3388
    %v3409 = vrcp.pop %v3391
    %v3410 = vrcp.pop %v3394
    %v3411 = vrcp.pop %v3397
    %v3412 = vrcp.pop %v3400
    %v3413 = vmul.f32 %v3342, %v3401
    %v3414 = vmul.f32 %v3344, %v3402
    %v3415 = vmul.f32 %v3346, %v3403
    %v3416 = vmul.f32 %v3348, %v3404
    %v3417 = vmul.f32 %v3350, %v3405
    %v3418 = vmul.f32 %v3352, %v3406
    %v3419 = vmul.f32 %v3354, %v3407
    %v3420 = vmul.f32 %v3356, %v3408
    %v3421 = vmul.f32 %v3358, %v3409
    %v3422 = vmul.f32 %v3360, %v3410
    %v3423 = vmul.f32 %v3362, %v3411
    %v3424 = vmul.f32 %v3364, %v3412
    %v3425 = vpack.c.bf16 %v3414, %v3413
    %v3426 = vpack.c.bf16 %v3415, %v3415
    %v3427 = vpack.c.bf16 %v3417, %v3416
    %v3428 = vpack.c.bf16 %v3418, %v3418
    %v3429 = vpack.c.bf16 %v3420, %v3419
    %v3430 = vpack.c.bf16 %v3421, %v3421
    %v3431 = vpack.c.bf16 %v3423, %v3422
    %v3432 = vpack.c.bf16 %v3424, %v3424
    %v3434 = vsel %vm114, %v3425, 0
    %v3437 = vsel %vm114, %v3426, 0
    %3439 = vmatprep.subr.bf16.mxu0 0
    %3440 = vmatpush1.bf16.msra.mxu0 0
    %3441 = vmatprep.subr.bf16.mxu0 0
    %3442 = vmatpush1.bf16.msra.mxu0 0
    %3443 = vmatprep.subr.bf16.mxu0 0
    %3444 = vmatpush1.bf16.msra.mxu0 0
    %3445 = vmatprep.subr.bf16.mxu0 0
    %3446 = vmatpush1.bf16.msra.mxu0 0
    %3447 = vmatprep.subr.bf16.mxu0 0
    %3448 = vmatpush1.bf16.msra.mxu0 0
    %3449 = vmatprep.subr.bf16.mxu0 0
    %3450 = vmatpush1.bf16.msra.mxu0 0
    %3451 = vmatprep.subr.bf16.mxu0 0
    %3452 = vmatpush1.bf16.msra.mxu0 0
    %3453 = vmatprep.subr.bf16.mxu0 0
    %3454 = vmatpush1.bf16.msra.mxu0 %v3018
    %3455 = vmatprep.subr.bf16.mxu0 0
    %3456 = vmatpush2.bf16.msra.mxu0 0
    %3457 = vmatprep.subr.bf16.mxu0 0
    %3458 = vmatpush2.bf16.msra.mxu0 0
    %3459 = vmatprep.subr.bf16.mxu0 0
    %3460 = vmatpush2.bf16.msra.mxu0 0
    %3461 = vmatprep.subr.bf16.mxu0 0
    %3462 = vmatpush2.bf16.msra.mxu0 0
    %3463 = vmatprep.subr.bf16.mxu0 0
    %3464 = vmatpush2.bf16.msra.mxu0 0
    %3465 = vmatprep.subr.bf16.mxu0 0
    %3466 = vmatpush2.bf16.msra.mxu0 0
    %3467 = vmatprep.subr.bf16.mxu0 0
    %3468 = vmatpush2.bf16.msra.mxu0 0
    %3469 = vmatprep.subr.bf16.mxu0 0
    %3470 = vmatpush2.bf16.msra.mxu0 0
    %3471 = vmatprep.mubr.bf16.mxu0 0
    %3472 = vmatmul.mubr.bf16.gmra.mxu0 %v3434
    %v3473 = vpop.f32.mrf.mxu0
    %v3474 = vadd.f32 0.0, %v3473
    %v3475 = vpop.f32.mrf.mxu0
    %v3476 = vpop.f32.mrf.mxu0
    %v3477 = vadd.f32 0.0, %v3476
    %v3478 = vpop.f32.mrf.mxu0
    %3479 = vmatprep.mubr.bf16.mxu0 0
    %3480 = vmatmul.mubr.bf16.gmra.mxu0 %v3437
    %v3481 = vpop.f32.mrf.mxu0
    %v3482 = vadd.f32 0.0, %v3481
    %v3483 = vpop.f32.mrf.mxu0
    %v3484 = vpop.f32.mrf.mxu0
    %v3485 = vpop.f32.mrf.mxu0
    %3486 = vdwg.mxu0
    %3488 = vrot.lane.b32.xlu0 %v3018, 112
    %v3489 = vpop.permute.xlu0 %3488
    %v3492 = vsel %vm114, %v3427, 0
    %v3495 = vsel %vm114, %v3428, 0
    %3497 = vmatprep.subr.bf16.mxu0 0
    %3498 = vmatpush1.bf16.msra.mxu0 0
    %3499 = vmatprep.subr.bf16.mxu0 0
    %3500 = vmatpush1.bf16.msra.mxu0 0
    %3501 = vmatprep.subr.bf16.mxu0 0
    %3502 = vmatpush1.bf16.msra.mxu0 0
    %3503 = vmatprep.subr.bf16.mxu0 0
    %3504 = vmatpush1.bf16.msra.mxu0 0
    %3505 = vmatprep.subr.bf16.mxu0 0
    %3506 = vmatpush1.bf16.msra.mxu0 0
    %3507 = vmatprep.subr.bf16.mxu0 0
    %3508 = vmatpush1.bf16.msra.mxu0 0
    %3509 = vmatprep.subr.bf16.mxu0 0
    %3510 = vmatpush1.bf16.msra.mxu0 0
    %3511 = vmatprep.subr.bf16.mxu0 0
    %3512 = vmatpush1.bf16.msra.mxu0 %v3489
    %3513 = vmatprep.subr.bf16.mxu0 0
    %3514 = vmatpush2.bf16.msra.mxu0 0
    %3515 = vmatprep.subr.bf16.mxu0 0
    %3516 = vmatpush2.bf16.msra.mxu0 0
    %3517 = vmatprep.subr.bf16.mxu0 0
    %3518 = vmatpush2.bf16.msra.mxu0 0
    %3519 = vmatprep.subr.bf16.mxu0 0
    %3520 = vmatpush2.bf16.msra.mxu0 0
    %3521 = vmatprep.subr.bf16.mxu0 0
    %3522 = vmatpush2.bf16.msra.mxu0 0
    %3523 = vmatprep.subr.bf16.mxu0 0
    %3524 = vmatpush2.bf16.msra.mxu0 0
    %3525 = vmatprep.subr.bf16.mxu0 0
    %3526 = vmatpush2.bf16.msra.mxu0 0
    %3527 = vmatprep.subr.bf16.mxu0 0
    %3528 = vmatpush2.bf16.msra.mxu0 0
    %3529 = vmatprep.mubr.bf16.mxu0 0
    %3530 = vmatmul.mubr.bf16.gmra.mxu0 %v3492
    %v3531 = vpop.f32.mrf.mxu0
    %v3532 = vadd.f32 0.0, %v3531
    %v3533 = vpop.f32.mrf.mxu0
    %v3534 = vpop.f32.mrf.mxu0
    %v3535 = vadd.f32 0.0, %v3534
    %v3536 = vpop.f32.mrf.mxu0
    %3537 = vmatprep.mubr.bf16.mxu0 0
    %3538 = vmatmul.mubr.bf16.gmra.mxu0 %v3495
    %v3539 = vpop.f32.mrf.mxu0
    %v3540 = vadd.f32 0.0, %v3539
    %v3541 = vpop.f32.mrf.mxu0
    %v3542 = vpop.f32.mrf.mxu0
    %v3543 = vpop.f32.mrf.mxu0
    %3544 = vdwg.mxu0
    %3545 = vrot.lane.b32.xlu0 %v3018, 96
    %v3546 = vpop.permute.xlu0 %3545
    %v3549 = vsel %vm114, %v3429, 0
    %v3552 = vsel %vm114, %v3430, 0
    %3554 = vmatprep.subr.bf16.mxu0 0
    %3555 = vmatpush1.bf16.msra.mxu0 0
    %3556 = vmatprep.subr.bf16.mxu0 0
    %3557 = vmatpush1.bf16.msra.mxu0 0
    %3558 = vmatprep.subr.bf16.mxu0 0
    %3559 = vmatpush1.bf16.msra.mxu0 0
    %3560 = vmatprep.subr.bf16.mxu0 0
    %3561 = vmatpush1.bf16.msra.mxu0 0
    %3562 = vmatprep.subr.bf16.mxu0 0
    %3563 = vmatpush1.bf16.msra.mxu0 0
    %3564 = vmatprep.subr.bf16.mxu0 0
    %3565 = vmatpush1.bf16.msra.mxu0 0
    %3566 = vmatprep.subr.bf16.mxu0 0
    %3567 = vmatpush1.bf16.msra.mxu0 0
    %3568 = vmatprep.subr.bf16.mxu0 0
    %3569 = vmatpush1.bf16.msra.mxu0 %v3546
    %3570 = vmatprep.subr.bf16.mxu0 0
    %3571 = vmatpush2.bf16.msra.mxu0 0
    %3572 = vmatprep.subr.bf16.mxu0 0
    %3573 = vmatpush2.bf16.msra.mxu0 0
    %3574 = vmatprep.subr.bf16.mxu0 0
    %3575 = vmatpush2.bf16.msra.mxu0 0
    %3576 = vmatprep.subr.bf16.mxu0 0
    %3577 = vmatpush2.bf16.msra.mxu0 0
    %3578 = vmatprep.subr.bf16.mxu0 0
    %3579 = vmatpush2.bf16.msra.mxu0 0
    %3580 = vmatprep.subr.bf16.mxu0 0
    %3581 = vmatpush2.bf16.msra.mxu0 0
    %3582 = vmatprep.subr.bf16.mxu0 0
    %3583 = vmatpush2.bf16.msra.mxu0 0
    %3584 = vmatprep.subr.bf16.mxu0 0
    %3585 = vmatpush2.bf16.msra.mxu0 0
    %3586 = vmatprep.mubr.bf16.mxu0 0
    %3587 = vmatmul.mubr.bf16.gmra.mxu0 %v3549
    %v3588 = vpop.f32.mrf.mxu0
    %v3589 = vadd.f32 0.0, %v3588
    %v3590 = vpop.f32.mrf.mxu0
    %v3591 = vpop.f32.mrf.mxu0
    %v3592 = vadd.f32 0.0, %v3591
    %v3593 = vpop.f32.mrf.mxu0
    %3594 = vmatprep.mubr.bf16.mxu0 0
    %3595 = vmatmul.mubr.bf16.gmra.mxu0 %v3552
    %v3596 = vpop.f32.mrf.mxu0
    %v3597 = vadd.f32 0.0, %v3596
    %v3598 = vpop.f32.mrf.mxu0
    %v3599 = vpop.f32.mrf.mxu0
    %v3600 = vpop.f32.mrf.mxu0
    %3601 = vdwg.mxu0
    %3602 = vrot.lane.b32.xlu0 %v3018, 80
    %v3603 = vpop.permute.xlu0 %3602
    %v3606 = vsel %vm114, %v3431, 0
    %v3609 = vsel %vm114, %v3432, 0
    %3611 = vmatprep.subr.bf16.mxu0 0
    %3612 = vmatpush1.bf16.msra.mxu0 0
    %3613 = vmatprep.subr.bf16.mxu0 0
    %3614 = vmatpush1.bf16.msra.mxu0 0
    %3615 = vmatprep.subr.bf16.mxu0 0
    %3616 = vmatpush1.bf16.msra.mxu0 0
    %3617 = vmatprep.subr.bf16.mxu0 0
    %3618 = vmatpush1.bf16.msra.mxu0 0
    %3619 = vmatprep.subr.bf16.mxu0 0
    %3620 = vmatpush1.bf16.msra.mxu0 0
    %3621 = vmatprep.subr.bf16.mxu0 0
    %3622 = vmatpush1.bf16.msra.mxu0 0
    %3623 = vmatprep.subr.bf16.mxu0 0
    %3624 = vmatpush1.bf16.msra.mxu0 0
    %3625 = vmatprep.subr.bf16.mxu0 0
    %3626 = vmatpush1.bf16.msra.mxu0 %v3603
    %3627 = vmatprep.subr.bf16.mxu0 0
    %3628 = vmatpush2.bf16.msra.mxu0 0
    %3629 = vmatprep.subr.bf16.mxu0 0
    %3630 = vmatpush2.bf16.msra.mxu0 0
    %3631 = vmatprep.subr.bf16.mxu0 0
    %3632 = vmatpush2.bf16.msra.mxu0 0
    %3633 = vmatprep.subr.bf16.mxu0 0
    %3634 = vmatpush2.bf16.msra.mxu0 0
    %3635 = vmatprep.subr.bf16.mxu0 0
    %3636 = vmatpush2.bf16.msra.mxu0 0
    %3637 = vmatprep.subr.bf16.mxu0 0
    %3638 = vmatpush2.bf16.msra.mxu0 0
    %3639 = vmatprep.subr.bf16.mxu0 0
    %3640 = vmatpush2.bf16.msra.mxu0 0
    %3641 = vmatprep.subr.bf16.mxu0 0
    %3642 = vmatpush2.bf16.msra.mxu0 0
    %3643 = vmatprep.mubr.bf16.mxu0 0
    %3644 = vmatmul.mubr.bf16.gmra.mxu0 %v3606
    %v3645 = vpop.f32.mrf.mxu0
    %v3646 = vadd.f32 0.0, %v3645
    %v3647 = vpop.f32.mrf.mxu0
    %v3648 = vpop.f32.mrf.mxu0
    %v3649 = vadd.f32 0.0, %v3648
    %v3650 = vpop.f32.mrf.mxu0
    %3651 = vmatprep.mubr.bf16.mxu0 0
    %3652 = vmatmul.mubr.bf16.gmra.mxu0 %v3609
    %v3653 = vpop.f32.mrf.mxu0
    %v3654 = vadd.f32 0.0, %v3653
    %v3655 = vpop.f32.mrf.mxu0
    %v3656 = vpop.f32.mrf.mxu0
    %v3657 = vpop.f32.mrf.mxu0
    %3658 = vdwg.mxu0
    %3662 = vrot.lane.b32.xlu0 %v3532, 16
    %v3663 = vpop.permute.xlu0 %3662
    %3664 = vrot.lane.b32.xlu0 %v3535, 16
    %v3665 = vpop.permute.xlu0 %3664
    %3666 = vrot.lane.b32.xlu0 %v3540, 16
    %v3667 = vpop.permute.xlu0 %3666
    %3674 = vrot.lane.b32.xlu0 %v3589, 32
    %v3675 = vpop.permute.xlu0 %3674
    %3676 = vrot.lane.b32.xlu0 %v3592, 32
    %v3677 = vpop.permute.xlu0 %3676
    %3678 = vrot.lane.b32.xlu0 %v3597, 32
    %v3679 = vpop.permute.xlu0 %3678
    %3686 = vrot.lane.b32.xlu0 %v3646, 48
    %v3687 = vpop.permute.xlu0 %3686
    %3688 = vrot.lane.b32.xlu0 %v3649, 48
    %v3689 = vpop.permute.xlu0 %3688
    %3690 = vrot.lane.b32.xlu0 %v3654, 48
    %v3691 = vpop.permute.xlu0 %3690
    %v3695 = vsel %vm114, %v3474, %v3663
    %v3696 = vsel %vm114, %v3477, %v3665
    %v3697 = vsel %vm114, %v3482, %v3667
    %v3698 = vsel %vm508, %v3695, %v3675
    %v3699 = vsel %vm508, %v3696, %v3677
    %v3700 = vsel %vm508, %v3697, %v3679
    %v3701 = vsel %vm696, %v3698, %v3687
    %v3702 = vsel %vm696, %v3699, %v3689
    %v3703 = vsel %vm696, %v3700, %v3691
    %v3704 = vpack.c.bf16 %v3702, %v3701
    %v3705 = vpack.c.bf16 %v3703, %v3703
    %v3706 = vld [vmem:[%s6 + $0x2d8] sm:$0xf]
    %v3707 = vld [vmem:[%s6 + $0x2dc] sm:$0xf]
    %v3708 = vld [vmem:[%s6 + $0x2e0] sm:$0xf]
    %v3709 = vld [vmem:[%s6 + $0x2e4] sm:$0xf]
    %v3710 = vld [vmem:[%s6 + $0x2e8] sm:$0xf]
    %v3711 = vld [vmem:[%s6 + $0x2ec] sm:$0xf]
    %v3712 = vld [vmem:[%s6 + $0x2f0] sm:$0xf]
    %v3713 = vld [vmem:[%s6 + $0x2f4] sm:$0xf]
    %v3714 = vld [vmem:[%s6 + $0x550] sm:$0x8]
    %v3715 = vunpack.c.l.bf16 %v3714
    %v3716 = vlaneseq
    %v3717 = vshrl.u32 %v3716, 7
    %v3718 = vsub.s32 6, %v3717
    %v3719 = vrot.slane %v3715, %v3718
    %v3728 = vunpack.c.l.b16 %v3706
    %v3729 = vunpack.c.l.b16 %v3707
    %v3730 = vunpack.c.l.b16 %v3708
    %v3731 = vunpack.c.l.b16 %v3709
    %v3732 = vunpack.c.l.b16 %v3710
    %v3733 = vunpack.c.l.b16 %v3711
    %v3734 = vunpack.c.l.b16 %v3712
    %v3735 = vunpack.c.l.b16 %v3713
    %v3736 = vpack.c.b16 %v3729, %v3728
    %v3737 = vpack.c.b16 %v3731, %v3730
    %v3738 = vpack.c.b16 %v3733, %v3732
    %v3739 = vpack.c.b16 %v3735, %v3734
    %v3745 = vsel %vm303, %v3704, 0
    %v3748 = vsel %vm303, %v3705, 0
    %3750 = vmatprep.subr.bf16.mxu0 0
    %3751 = vmatpush1.bf16.msra.mxu0 0
    %3752 = vmatprep.subr.bf16.mxu0 0
    %3753 = vmatpush1.bf16.msra.mxu0 0
    %3754 = vmatprep.subr.bf16.mxu0 0
    %3755 = vmatpush1.bf16.msra.mxu0 0
    %3756 = vmatprep.subr.bf16.mxu0 0
    %3757 = vmatpush1.bf16.msra.mxu0 0
    %3758 = vmatprep.subr.bf16.mxu0 0
    %3759 = vmatpush1.bf16.msra.mxu0 %v3739
    %3760 = vmatprep.subr.bf16.mxu0 0
    %3761 = vmatpush1.bf16.msra.mxu0 %v3738
    %3762 = vmatprep.subr.bf16.mxu0 0
    %3763 = vmatpush1.bf16.msra.mxu0 %v3737
    %3764 = vmatprep.subr.bf16.mxu0 0
    %3765 = vmatpush1.bf16.msra.mxu0 %v3736
    %3766 = vmatprep.subr.bf16.mxu0 0
    %3767 = vmatpush2.bf16.msra.mxu0 0
    %3768 = vmatprep.subr.bf16.mxu0 0
    %3769 = vmatpush2.bf16.msra.mxu0 0
    %3770 = vmatprep.subr.bf16.mxu0 0
    %3771 = vmatpush2.bf16.msra.mxu0 0
    %3772 = vmatprep.subr.bf16.mxu0 0
    %3773 = vmatpush2.bf16.msra.mxu0 0
    %3774 = vmatprep.subr.bf16.mxu0 0
    %3775 = vmatpush2.bf16.msra.mxu0 0
    %3776 = vmatprep.subr.bf16.mxu0 0
    %3777 = vmatpush2.bf16.msra.mxu0 0
    %3778 = vmatprep.subr.bf16.mxu0 0
    %3779 = vmatpush2.bf16.msra.mxu0 0
    %3780 = vmatprep.subr.bf16.mxu0 0
    %3781 = vmatpush2.bf16.msra.mxu0 0
    %3782 = vmatprep.mubr.bf16.mxu0 0
    %3783 = vmatmul.mubr.bf16.gmra.mxu0 %v3745
    %v3784 = vpop.f32.mrf.mxu0
    %v3785 = vadd.f32 %v3719, %v3784
    %v3786 = vpop.f32.mrf.mxu0
    %v3787 = vpop.f32.mrf.mxu0
    %v3788 = vadd.f32 %v3719, %v3787
    %v3789 = vpop.f32.mrf.mxu0
    %3790 = vmatprep.mubr.bf16.mxu0 0
    %3791 = vmatmul.mubr.bf16.gmra.mxu0 %v3748
    %v3792 = vpop.f32.mrf.mxu0
    %v3793 = vadd.f32 %v3719, %v3792
    %v3794 = vpop.f32.mrf.mxu0
    %v3795 = vpop.f32.mrf.mxu0
    %v3796 = vpop.f32.mrf.mxu0
    %3797 = vdwg.mxu0
    %v3798 = vadd.f32 %v2703, %v3785
    %v3799 = vadd.f32 %v2704, %v3788
    %v3800 = vadd.f32 %v2705, %v3793
    %v3801 = vsel %vm303, %v3798, 0.0
    %3802 = vadd.xlane.f32.xlu0 %v3801
    %v3803 = vpop.xlane.xlu0 %3802
    %v3804 = vsel %vm303, %v3799, 0.0
    %3805 = vadd.xlane.f32.xlu0 %v3804
    %v3806 = vpop.xlane.xlu0 %3805
    %v3807 = vsel %vm1574, %v3800, 0.0
    %3808 = vadd.xlane.f32.xlu0 %v3807
    %v3809 = vpop.xlane.xlu0 %3808
    %v3810 = vmul.f32 %v3803, %v1578
    %v3811 = vmul.f32 %v3806, %v1578
    %v3812 = vmul.f32 %v3809, %v1578
    %v3813 = vsub.f32 %v3798, %v3810
    %v3814 = vsub.f32 %v3799, %v3811
    %v3815 = vsub.f32 %v3800, %v3812
    %v3816 = vmul.f32 %v3813, %v3813
    %v3817 = vmul.f32 %v3814, %v3814
    %v3818 = vmul.f32 %v3815, %v3815
    %v3819 = vsel %vm303, %v3816, 0.0
    %3820 = vadd.xlane.f32.xlu0 %v3819
    %v3821 = vpop.xlane.xlu0 %3820
    %v3822 = vsel %vm303, %v3817, 0.0
    %3823 = vadd.xlane.f32.xlu0 %v3822
    %v3824 = vpop.xlane.xlu0 %3823
    %v3825 = vsel %vm1574, %v3818, 0.0
    %3826 = vadd.xlane.f32.xlu0 %v3825
    %v3827 = vpop.xlane.xlu0 %3826
    %v3828 = vmul.f32 %v3821, %v1578
    %v3829 = vmul.f32 %v3824, %v1578
    %v3830 = vmul.f32 %v3827, %v1578
    %v3831 = vadd.f32 %v3828, 1e-05
    %v3832 = vadd.f32 %v3829, 1e-05
    %v3833 = vadd.f32 %v3830, 1e-05
    %v3834 = vrsqrt.pop %v3831
    %v3835 = vrsqrt.pop %v3832
    %v3836 = vrsqrt.pop %v3833
    %v3837 = vmul.f32 %v3813, %v3834
    %v3838 = vmul.f32 %v3814, %v3835
    %v3839 = vmul.f32 %v3815, %v3836
    %v3840 = vlaneseq
    %v3841 = vshrl.u32 %v3840, 7
    %v3842 = vsub.s32 7, %v3841
    %v3843 = vrot.slane %v3715, %v3842
    %v3844 = vmul.f32 %v3837, %v3843
    %v3845 = vmul.f32 %v3838, %v3843
    %v3846 = vmul.f32 %v3839, %v3843
    %v3847 = vld [vmem:[%s6 + $0x554] sm:$0x1]
    %v3848 = vunpack.c.l.bf16 %v3847
    %v3849 = vlaneseq
    %v3850 = vshrl.u32 %v3849, 7
    %v3851 = vsub.s32 0, %v3850
    %v3852 = vrot.slane %v3848, %v3851
    %v3853 = vadd.f32 %v3844, %v3852
    %v3854 = vadd.f32 %v3845, %v3852
    %v3855 = vadd.f32 %v3846, %v3852
    %v3856 = vpack.c.bf16 %v3854, %v3853
    %v3857 = vpack.c.bf16 %v3855, %v3855
    %v3858 = vld [vmem:[%s7] sm:$0xff]
    %v3859 = vld [vmem:[%s7 + $0x8] sm:$0xff]
    %v3860 = vld [vmem:[%s7 + $0x10] sm:$0xff]
    %v3861 = vld [vmem:[%s7 + $0x18] sm:$0xff]
    %v3862 = vld [vmem:[%s7 + $0x20] sm:$0xff]
    %v3863 = vld [vmem:[%s7 + $0x28] sm:$0xff]
    %v3864 = vld [vmem:[%s7 + $0x30] sm:$0xff]
    %v3865 = vld [vmem:[%s7 + $0x38] sm:$0xff]
    %v3866 = vld [vmem:[%s7 + $0x40] sm:$0x11]
    %v3867 = vunpack.c.l.bf16 %v3866
    %v3868 = vunpack.c.h.bf16 %v3866
    %v3869 = vlaneseq
    %v3870 = vshrl.u32 %v3869, 7
    %v3871 = vsub.s32 0, %v3870
    %v3872 = vrot.slane %v3867, %v3871
    %v3873 = vlaneseq
    %v3874 = vshrl.u32 %v3873, 7
    %v3875 = vsub.s32 0, %v3874
    %v3876 = vrot.slane %v3868, %v3875
    %v3885 = vunpack.c.l.b16 %v3858
    %v3886 = vunpack.c.h.b16 %v3858
    %v3887 = vunpack.c.l.b16 %v3859
    %v3888 = vunpack.c.h.b16 %v3859
    %v3889 = vunpack.c.l.b16 %v3860
    %v3890 = vunpack.c.h.b16 %v3860
    %v3891 = vunpack.c.l.b16 %v3861
    %v3892 = vunpack.c.h.b16 %v3861
    %v3893 = vunpack.c.l.b16 %v3862
    %v3894 = vunpack.c.h.b16 %v3862
    %v3895 = vunpack.c.l.b16 %v3863
    %v3896 = vunpack.c.h.b16 %v3863
    %v3897 = vunpack.c.l.b16 %v3864
    %v3898 = vunpack.c.h.b16 %v3864
    %v3899 = vunpack.c.l.b16 %v3865
    %v3900 = vunpack.c.h.b16 %v3865
    %v3901 = vpack.c.b16 %v3887, %v3885
    %v3902 = vpack.c.b16 %v3888, %v3886
    %v3903 = vpack.c.b16 %v3891, %v3889
    %v3904 = vpack.c.b16 %v3892, %v3890
    %v3905 = vpack.c.b16 %v3895, %v3893
    %v3906 = vpack.c.b16 %v3896, %v3894
    %v3907 = vpack.c.b16 %v3899, %v3897
    %v3908 = vpack.c.b16 %v3900, %v3898
    %v3918 = vsel %vm303, %v3856, 0
    %v3921 = vsel %vm303, %v3857, 0
    %3923 = vmatprep.subr.bf16.mxu0 0
    %3924 = vmatpush1.bf16.msra.mxu0 0
    %3925 = vmatprep.subr.bf16.mxu0 0
    %3926 = vmatpush1.bf16.msra.mxu0 0
    %3927 = vmatprep.subr.bf16.mxu0 0
    %3928 = vmatpush1.bf16.msra.mxu0 0
    %3929 = vmatprep.subr.bf16.mxu0 0
    %3930 = vmatpush1.bf16.msra.mxu0 0
    %3931 = vmatprep.subr.bf16.mxu0 %v3908
    %3932 = vmatpush1.bf16.msra.mxu0 %v3907
    %3933 = vmatprep.subr.bf16.mxu0 %v3906
    %3934 = vmatpush1.bf16.msra.mxu0 %v3905
    %3935 = vmatprep.subr.bf16.mxu0 %v3904
    %3936 = vmatpush1.bf16.msra.mxu0 %v3903
    %3937 = vmatprep.subr.bf16.mxu0 %v3902
    %3938 = vmatpush1.bf16.msra.mxu0 %v3901
    %3939 = vmatprep.subr.bf16.mxu0 0
    %3940 = vmatpush2.bf16.msra.mxu0 0
    %3941 = vmatprep.subr.bf16.mxu0 0
    %3942 = vmatpush2.bf16.msra.mxu0 0
    %3943 = vmatprep.subr.bf16.mxu0 0
    %3944 = vmatpush2.bf16.msra.mxu0 0
    %3945 = vmatprep.subr.bf16.mxu0 0
    %3946 = vmatpush2.bf16.msra.mxu0 0
    %3947 = vmatprep.subr.bf16.mxu0 0
    %3948 = vmatpush2.bf16.msra.mxu0 0
    %3949 = vmatprep.subr.bf16.mxu0 0
    %3950 = vmatpush2.bf16.msra.mxu0 0
    %3951 = vmatprep.subr.bf16.mxu0 0
    %3952 = vmatpush2.bf16.msra.mxu0 0
    %3953 = vmatprep.subr.bf16.mxu0 0
    %3954 = vmatpush2.bf16.msra.mxu0 0
    %3955 = vmatprep.mubr.bf16.mxu0 0
    %3956 = vmatmul.mubr.bf16.gmra.mxu0 %v3918
    %v3957 = vpop.f32.mrf.mxu0
    %v3958 = vadd.f32 %v3872, %v3957
    %v3959 = vpop.f32.mrf.mxu0
    %v3960 = vadd.f32 %v3876, %v3959
    %v3961 = vpop.f32.mrf.mxu0
    %v3962 = vadd.f32 %v3872, %v3961
    %v3963 = vpop.f32.mrf.mxu0
    %v3964 = vadd.f32 %v3876, %v3963
    %3965 = vmatprep.mubr.bf16.mxu0 0
    %3966 = vmatmul.mubr.bf16.gmra.mxu0 %v3921
    %v3967 = vpop.f32.mrf.mxu0
    %v3968 = vadd.f32 %v3872, %v3967
    %v3969 = vpop.f32.mrf.mxu0
    %v3970 = vadd.f32 %v3876, %v3969
    %v3971 = vpop.f32.mrf.mxu0
    %v3972 = vpop.f32.mrf.mxu0
    %3973 = vdwg.mxu0
    %v3974 = vmul.f32 %v3958, 0.5
    %v3975 = vmul.f32 %v3960, 0.5
    %v3976 = vmul.f32 %v3962, 0.5
    %v3977 = vmul.f32 %v3964, 0.5
    %v3978 = vmul.f32 %v3968, 0.5
    %v3979 = vmul.f32 %v3970, 0.5
    %v3980 = vmul.f32 %v3958, 0.044715
    %v3981 = vmul.f32 %v3960, 0.044715
    %v3982 = vmul.f32 %v3962, 0.044715
    %v3983 = vmul.f32 %v3964, 0.044715
    %v3984 = vmul.f32 %v3968, 0.044715
    %v3985 = vmul.f32 %v3970, 0.044715
    %v3986 = vmul.f32 %v3980, %v3958
    %v3987 = vmul.f32 %v3981, %v3960
    %v3988 = vmul.f32 %v3982, %v3962
    %v3989 = vmul.f32 %v3983, %v3964
    %v3990 = vmul.f32 %v3984, %v3968
    %v3991 = vmul.f32 %v3985, %v3970
    %v3992 = vmul.f32 %v3986, %v3958
    %v3993 = vmul.f32 %v3987, %v3960
    %v3994 = vmul.f32 %v3988, %v3962
    %v3995 = vmul.f32 %v3989, %v3964
    %v3996 = vmul.f32 %v3990, %v3968
    %v3997 = vmul.f32 %v3991, %v3970
    %v3998 = vadd.f32 %v3958, %v3992
    %v3999 = vadd.f32 %v3960, %v3993
    %v4000 = vadd.f32 %v3962, %v3994
    %v4001 = vadd.f32 %v3964, %v3995
    %v4002 = vadd.f32 %v3968, %v3996
    %v4003 = vadd.f32 %v3970, %v3997
    %v4004 = vmul.f32 %v3998, 0.7978846
    %v4005 = vmul.f32 %v3999, 0.7978846
    %v4006 = vmul.f32 %v4000, 0.7978846
    %v4007 = vmul.f32 %v4001, 0.7978846
    %v4008 = vmul.f32 %v4002, 0.7978846
    %v4009 = vmul.f32 %v4003, 0.7978846
    %v4010 = vtanh.pop %v4004
    %v4011 = vtanh.pop %v4005
    %v4012 = vtanh.pop %v4006
    %v4013 = vtanh.pop %v4007
    %v4014 = vtanh.pop %v4008
    %v4015 = vtanh.pop %v4009
    %v4016 = vadd.f32 %v4010, 1.0
    %v4017 = vadd.f32 %v4011, 1.0
    %v4018 = vadd.f32 %v4012, 1.0
    %v4019 = vadd.f32 %v4013, 1.0
    %v4020 = vadd.f32 %v4014, 1.0
    %v4021 = vadd.f32 %v4015, 1.0
    %v4022 = vmul.f32 %v3974, %v4016
    %v4023 = vmul.f32 %v3975, %v4017
    %v4024 = vmul.f32 %v3976, %v4018
    %v4025 = vmul.f32 %v3977, %v4019
    %v4026 = vmul.f32 %v3978, %v4020
    %v4027 = vmul.f32 %v3979, %v4021
    %v4028 = vpack.c.bf16 %v4024, %v4022
    %v4029 = vpack.c.bf16 %v4025, %v4023
    %v4030 = vpack.c.bf16 %v4026, %v4026
    %v4031 = vpack.c.bf16 %v4027, %v4027
    %v4032 = vld [vmem:[%s6 + $0x2f8] sm:$0xf]
    %v4033 = vld [vmem:[%s6 + $0x2fc] sm:$0xf]
    %v4034 = vld [vmem:[%s6 + $0x300] sm:$0xf]
    %v4035 = vld [vmem:[%s6 + $0x304] sm:$0xf]
    %v4036 = vld [vmem:[%s6 + $0x308] sm:$0xf]
    %v4037 = vld [vmem:[%s6 + $0x30c] sm:$0xf]
    %v4038 = vld [vmem:[%s6 + $0x310] sm:$0xf]
    %v4039 = vld [vmem:[%s6 + $0x314] sm:$0xf]
    %v4040 = vld [vmem:[%s6 + $0x318] sm:$0xf]
    %v4041 = vld [vmem:[%s6 + $0x31c] sm:$0xf]
    %v4042 = vld [vmem:[%s6 + $0x320] sm:$0xf]
    %v4043 = vld [vmem:[%s6 + $0x324] sm:$0xf]
    %v4044 = vld [vmem:[%s6 + $0x328] sm:$0xf]
    %v4045 = vld [vmem:[%s6 + $0x32c] sm:$0xf]
    %v4046 = vld [vmem:[%s6 + $0x330] sm:$0xf]
    %v4047 = vld [vmem:[%s6 + $0x334] sm:$0xf]
    %v4048 = vld [vmem:[%s6 + $0x338] sm:$0xf]
    %v4049 = vld [vmem:[%s6 + $0x33c] sm:$0xf]
    %v4050 = vld [vmem:[%s6 + $0x340] sm:$0xf]
    %v4051 = vld [vmem:[%s6 + $0x344] sm:$0xf]
    %v4052 = vld [vmem:[%s6 + $0x348] sm:$0xf]
    %v4053 = vld [vmem:[%s6 + $0x34c] sm:$0xf]
    %v4054 = vld [vmem:[%s6 + $0x350] sm:$0xf]
    %v4055 = vld [vmem:[%s6 + $0x354] sm:$0xf]
    %v4056 = vld [vmem:[%s6 + $0x358] sm:$0xf]
    %v4057 = vld [vmem:[%s6 + $0x35c] sm:$0xf]
    %v4058 = vld [vmem:[%s6 + $0x360] sm:$0xf]
    %v4059 = vld [vmem:[%s6 + $0x364] sm:$0xf]
    %v4060 = vld [vmem:[%s6 + $0x368] sm:$0xf]
    %v4061 = vld [vmem:[%s6 + $0x36c] sm:$0xf]
    %v4062 = vld [vmem:[%s6 + $0x370] sm:$0xf]
    %v4063 = vld [vmem:[%s6 + $0x374] sm:$0xf]
    %v4064 = vlaneseq
    %v4065 = vshrl.u32 %v4064, 7
    %v4066 = vsub.s32 1, %v4065
    %v4067 = vrot.slane %v3848, %v4066
    %v4100 = vunpack.c.l.b16 %v4032
    %v4101 = vunpack.c.l.b16 %v4033
    %v4102 = vunpack.c.l.b16 %v4034
    %v4103 = vunpack.c.l.b16 %v4035
    %v4104 = vunpack.c.l.b16 %v4036
    %v4105 = vunpack.c.l.b16 %v4037
    %v4106 = vunpack.c.l.b16 %v4038
    %v4107 = vunpack.c.l.b16 %v4039
    %v4108 = vunpack.c.l.b16 %v4040
    %v4109 = vunpack.c.l.b16 %v4041
    %v4110 = vunpack.c.l.b16 %v4042
    %v4111 = vunpack.c.l.b16 %v4043
    %v4112 = vunpack.c.l.b16 %v4044
    %v4113 = vunpack.c.l.b16 %v4045
    %v4114 = vunpack.c.l.b16 %v4046
    %v4115 = vunpack.c.l.b16 %v4047
    %v4116 = vunpack.c.l.b16 %v4048
    %v4117 = vunpack.c.l.b16 %v4049
    %v4118 = vunpack.c.l.b16 %v4050
    %v4119 = vunpack.c.l.b16 %v4051
    %v4120 = vunpack.c.l.b16 %v4052
    %v4121 = vunpack.c.l.b16 %v4053
    %v4122 = vunpack.c.l.b16 %v4054
    %v4123 = vunpack.c.l.b16 %v4055
    %v4124 = vunpack.c.l.b16 %v4056
    %v4125 = vunpack.c.l.b16 %v4057
    %v4126 = vunpack.c.l.b16 %v4058
    %v4127 = vunpack.c.l.b16 %v4059
    %v4128 = vunpack.c.l.b16 %v4060
    %v4129 = vunpack.c.l.b16 %v4061
    %v4130 = vunpack.c.l.b16 %v4062
    %v4131 = vunpack.c.l.b16 %v4063
    %v4132 = vpack.c.b16 %v4101, %v4100
    %v4133 = vpack.c.b16 %v4103, %v4102
    %v4134 = vpack.c.b16 %v4105, %v4104
    %v4135 = vpack.c.b16 %v4107, %v4106
    %v4136 = vpack.c.b16 %v4109, %v4108
    %v4137 = vpack.c.b16 %v4111, %v4110
    %v4138 = vpack.c.b16 %v4113, %v4112
    %v4139 = vpack.c.b16 %v4115, %v4114
    %v4140 = vpack.c.b16 %v4117, %v4116
    %v4141 = vpack.c.b16 %v4119, %v4118
    %v4142 = vpack.c.b16 %v4121, %v4120
    %v4143 = vpack.c.b16 %v4123, %v4122
    %v4144 = vpack.c.b16 %v4125, %v4124
    %v4145 = vpack.c.b16 %v4127, %v4126
    %v4146 = vpack.c.b16 %v4129, %v4128
    %v4147 = vpack.c.b16 %v4131, %v4130
    %4164 = vmatprep.subr.bf16.mxu0 0
    %4165 = vmatpush1.bf16.msra.mxu0 %v4139
    %4166 = vmatprep.subr.bf16.mxu0 0
    %4167 = vmatpush1.bf16.msra.mxu0 %v4138
    %4168 = vmatprep.subr.bf16.mxu0 0
    %4169 = vmatpush1.bf16.msra.mxu0 %v4137
    %4170 = vmatprep.subr.bf16.mxu0 0
    %4171 = vmatpush1.bf16.msra.mxu0 %v4136
    %4172 = vmatprep.subr.bf16.mxu0 0
    %4173 = vmatpush1.bf16.msra.mxu0 %v4135
    %4174 = vmatprep.subr.bf16.mxu0 0
    %4175 = vmatpush1.bf16.msra.mxu0 %v4134
    %4176 = vmatprep.subr.bf16.mxu0 0
    %4177 = vmatpush1.bf16.msra.mxu0 %v4133
    %4178 = vmatprep.subr.bf16.mxu0 0
    %4179 = vmatpush1.bf16.msra.mxu0 %v4132
    %4180 = vmatprep.subr.bf16.mxu0 0
    %4181 = vmatpush2.bf16.msra.mxu0 %v4147
    %4182 = vmatprep.subr.bf16.mxu0 0
    %4183 = vmatpush2.bf16.msra.mxu0 %v4146
    %4184 = vmatprep.subr.bf16.mxu0 0
    %4185 = vmatpush2.bf16.msra.mxu0 %v4145
    %4186 = vmatprep.subr.bf16.mxu0 0
    %4187 = vmatpush2.bf16.msra.mxu0 %v4144
    %4188 = vmatprep.subr.bf16.mxu0 0
    %4189 = vmatpush2.bf16.msra.mxu0 %v4143
    %4190 = vmatprep.subr.bf16.mxu0 0
    %4191 = vmatpush2.bf16.msra.mxu0 %v4142
    %4192 = vmatprep.subr.bf16.mxu0 0
    %4193 = vmatpush2.bf16.msra.mxu0 %v4141
    %4194 = vmatprep.subr.bf16.mxu0 0
    %4195 = vmatpush2.bf16.msra.mxu0 %v4140
    %4196 = vmatprep.mubr.bf16.mxu0 %v4029
    %4197 = vmatmul.mubr.bf16.gmra.mxu0 %v4028
    %v4198 = vpop.f32.mrf.mxu0
    %v4199 = vadd.f32 %v4067, %v4198
    %v4200 = vpop.f32.mrf.mxu0
    %v4201 = vpop.f32.mrf.mxu0
    %v4202 = vadd.f32 %v4067, %v4201
    %v4203 = vpop.f32.mrf.mxu0
    %4204 = vmatprep.mubr.bf16.mxu0 %v4031
    %4205 = vmatmul.mubr.bf16.gmra.mxu0 %v4030
    %v4206 = vpop.f32.mrf.mxu0
    %v4207 = vadd.f32 %v4067, %v4206
    %v4208 = vpop.f32.mrf.mxu0
    %v4209 = vpop.f32.mrf.mxu0
    %v4210 = vpop.f32.mrf.mxu0
    %4211 = vdwg.mxu0
    %v4212 = vadd.f32 %v3798, %v4199
    %v4213 = vadd.f32 %v3799, %v4202
    %v4214 = vadd.f32 %v3800, %v4207
    %v4215 = vsel %vm303, %v4212, 0.0
    %4216 = vadd.xlane.f32.xlu0 %v4215
    %v4217 = vpop.xlane.xlu0 %4216
    %v4218 = vsel %vm303, %v4213, 0.0
    %4219 = vadd.xlane.f32.xlu0 %v4218
    %v4220 = vpop.xlane.xlu0 %4219
    %v4221 = vsel %vm1574, %v4214, 0.0
    %4222 = vadd.xlane.f32.xlu0 %v4221
    %v4223 = vpop.xlane.xlu0 %4222
    %v4224 = vmul.f32 %v4217, %v1578
    %v4225 = vmul.f32 %v4220, %v1578
    %v4226 = vmul.f32 %v4223, %v1578
    %v4227 = vsub.f32 %v4212, %v4224
    %v4228 = vsub.f32 %v4213, %v4225
    %v4229 = vsub.f32 %v4214, %v4226
    %v4230 = vmul.f32 %v4227, %v4227
    %v4231 = vmul.f32 %v4228, %v4228
    %v4232 = vmul.f32 %v4229, %v4229
    %v4233 = vsel %vm303, %v4230, 0.0
    %4234 = vadd.xlane.f32.xlu0 %v4233
    %v4235 = vpop.xlane.xlu0 %4234
    %v4236 = vsel %vm303, %v4231, 0.0
    %4237 = vadd.xlane.f32.xlu0 %v4236
    %v4238 = vpop.xlane.xlu0 %4237
    %v4239 = vsel %vm1574, %v4232, 0.0
    %4240 = vadd.xlane.f32.xlu0 %v4239
    %v4241 = vpop.xlane.xlu0 %4240
    %v4242 = vmul.f32 %v4235, %v1578
    %v4243 = vmul.f32 %v4238, %v1578
    %v4244 = vmul.f32 %v4241, %v1578
    %v4245 = vadd.f32 %v4242, 1e-05
    %v4246 = vadd.f32 %v4243, 1e-05
    %v4247 = vadd.f32 %v4244, 1e-05
    %v4248 = vrsqrt.pop %v4245
    %v4249 = vrsqrt.pop %v4246
    %v4250 = vrsqrt.pop %v4247
    %v4251 = vmul.f32 %v4227, %v4248
    %v4252 = vmul.f32 %v4228, %v4249
    %v4253 = vmul.f32 %v4229, %v4250
    %v4254 = vld [vmem:[%s6 + $0x554] sm:$0x2]
    %v4255 = vunpack.c.l.bf16 %v4254
    %v4256 = vlaneseq
    %v4257 = vshrl.u32 %v4256, 7
    %v4258 = vsub.s32 2, %v4257
    %v4259 = vrot.slane %v4255, %v4258
    %v4260 = vmul.f32 %v4251, %v4259
    %v4261 = vmul.f32 %v4252, %v4259
    %v4262 = vmul.f32 %v4253, %v4259
    %v4263 = vlaneseq
    %v4264 = vshrl.u32 %v4263, 7
    %v4265 = vsub.s32 3, %v4264
    %v4266 = vrot.slane %v4255, %v4265
    %v4267 = vadd.f32 %v4260, %v4266
    %v4268 = vadd.f32 %v4261, %v4266
    %v4269 = vadd.f32 %v4262, %v4266
    %v4270 = vpack.c.bf16 %v4268, %v4267
    %v4271 = vpack.c.bf16 %v4269, %v4269
    %v4272 = vld [vmem:[%s6 + $0x378] sm:$0xf]
    %v4273 = vld [vmem:[%s6 + $0x37c] sm:$0xf]
    %v4274 = vld [vmem:[%s6 + $0x380] sm:$0xf]
    %v4275 = vld [vmem:[%s6 + $0x384] sm:$0xf]
    %v4276 = vld [vmem:[%s6 + $0x388] sm:$0xf]
    %v4277 = vld [vmem:[%s6 + $0x38c] sm:$0xf]
    %v4278 = vld [vmem:[%s6 + $0x390] sm:$0xf]
    %v4279 = vld [vmem:[%s6 + $0x394] sm:$0xf]
    %v4280 = vld [vmem:[%s6 + $0x554] sm:$0x4]
    %v4281 = vunpack.c.l.bf16 %v4280
    %v4282 = vlaneseq
    %v4283 = vshrl.u32 %v4282, 7
    %v4284 = vsub.s32 4, %v4283
    %v4285 = vrot.slane %v4281, %v4284
    %v4294 = vunpack.c.l.b16 %v4272
    %v4295 = vunpack.c.l.b16 %v4273
    %v4296 = vunpack.c.l.b16 %v4274
    %v4297 = vunpack.c.l.b16 %v4275
    %v4298 = vunpack.c.l.b16 %v4276
    %v4299 = vunpack.c.l.b16 %v4277
    %v4300 = vunpack.c.l.b16 %v4278
    %v4301 = vunpack.c.l.b16 %v4279
    %v4302 = vpack.c.b16 %v4295, %v4294
    %v4303 = vpack.c.b16 %v4297, %v4296
    %v4304 = vpack.c.b16 %v4299, %v4298
    %v4305 = vpack.c.b16 %v4301, %v4300
    %v4311 = vsel %vm303, %v4270, 0
    %v4314 = vsel %vm303, %v4271, 0
    %4316 = vmatprep.subr.bf16.mxu0 0
    %4317 = vmatpush1.bf16.msra.mxu0 0
    %4318 = vmatprep.subr.bf16.mxu0 0
    %4319 = vmatpush1.bf16.msra.mxu0 0
    %4320 = vmatprep.subr.bf16.mxu0 0
    %4321 = vmatpush1.bf16.msra.mxu0 0
    %4322 = vmatprep.subr.bf16.mxu0 0
    %4323 = vmatpush1.bf16.msra.mxu0 0
    %4324 = vmatprep.subr.bf16.mxu0 0
    %4325 = vmatpush1.bf16.msra.mxu0 %v4305
    %4326 = vmatprep.subr.bf16.mxu0 0
    %4327 = vmatpush1.bf16.msra.mxu0 %v4304
    %4328 = vmatprep.subr.bf16.mxu0 0
    %4329 = vmatpush1.bf16.msra.mxu0 %v4303
    %4330 = vmatprep.subr.bf16.mxu0 0
    %4331 = vmatpush1.bf16.msra.mxu0 %v4302
    %4332 = vmatprep.subr.bf16.mxu0 0
    %4333 = vmatpush2.bf16.msra.mxu0 0
    %4334 = vmatprep.subr.bf16.mxu0 0
    %4335 = vmatpush2.bf16.msra.mxu0 0
    %4336 = vmatprep.subr.bf16.mxu0 0
    %4337 = vmatpush2.bf16.msra.mxu0 0
    %4338 = vmatprep.subr.bf16.mxu0 0
    %4339 = vmatpush2.bf16.msra.mxu0 0
    %4340 = vmatprep.subr.bf16.mxu0 0
    %4341 = vmatpush2.bf16.msra.mxu0 0
    %4342 = vmatprep.subr.bf16.mxu0 0
    %4343 = vmatpush2.bf16.msra.mxu0 0
    %4344 = vmatprep.subr.bf16.mxu0 0
    %4345 = vmatpush2.bf16.msra.mxu0 0
    %4346 = vmatprep.subr.bf16.mxu0 0
    %4347 = vmatpush2.bf16.msra.mxu0 0
    %4348 = vmatprep.mubr.bf16.mxu0 0
    %4349 = vmatmul.mubr.bf16.gmra.mxu0 %v4311
    %v4350 = vpop.f32.mrf.mxu0
    %v4351 = vadd.f32 %v4285, %v4350
    %v4352 = vpop.f32.mrf.mxu0
    %v4353 = vpop.f32.mrf.mxu0
    %v4354 = vadd.f32 %v4285, %v4353
    %v4355 = vpop.f32.mrf.mxu0
    %4356 = vmatprep.mubr.bf16.mxu0 0
    %4357 = vmatmul.mubr.bf16.gmra.mxu0 %v4314
    %v4358 = vpop.f32.mrf.mxu0
    %v4359 = vadd.f32 %v4285, %v4358
    %v4360 = vpop.f32.mrf.mxu0
    %v4361 = vpop.f32.mrf.mxu0
    %v4362 = vpop.f32.mrf.mxu0
    %4363 = vdwg.mxu0
    %v4364 = vmul.f32 %v4351, 0.25
    %v4365 = vmul.f32 %v4354, 0.25
    %v4366 = vmul.f32 %v4359, 0.25
    %v4367 = vpack.c.bf16 %v4365, %v4364
    %v4368 = vpack.c.bf16 %v4366, %v4366
    %v4369 = vld [vmem:[%s6 + $0x398] sm:$0xf]
    %v4370 = vld [vmem:[%s6 + $0x39c] sm:$0xf]
    %v4371 = vld [vmem:[%s6 + $0x3a0] sm:$0xf]
    %v4372 = vld [vmem:[%s6 + $0x3a4] sm:$0xf]
    %v4373 = vld [vmem:[%s6 + $0x3a8] sm:$0xf]
    %v4374 = vld [vmem:[%s6 + $0x3ac] sm:$0xf]
    %v4375 = vld [vmem:[%s6 + $0x3b0] sm:$0xf]
    %v4376 = vld [vmem:[%s6 + $0x3b4] sm:$0xf]
    %v4377 = vlaneseq
    %v4378 = vshrl.u32 %v4377, 7
    %v4379 = vsub.s32 5, %v4378
    %v4380 = vrot.slane %v4281, %v4379
    %v4389 = vunpack.c.l.b16 %v4369
    %v4390 = vunpack.c.l.b16 %v4370
    %v4391 = vunpack.c.l.b16 %v4371
    %v4392 = vunpack.c.l.b16 %v4372
    %v4393 = vunpack.c.l.b16 %v4373
    %v4394 = vunpack.c.l.b16 %v4374
    %v4395 = vunpack.c.l.b16 %v4375
    %v4396 = vunpack.c.l.b16 %v4376
    %v4397 = vpack.c.b16 %v4390, %v4389
    %v4398 = vpack.c.b16 %v4392, %v4391
    %v4399 = vpack.c.b16 %v4394, %v4393
    %v4400 = vpack.c.b16 %v4396, %v4395
    %4405 = vmatprep.subr.bf16.mxu0 0
    %4406 = vmatpush1.bf16.msra.mxu0 0
    %4407 = vmatprep.subr.bf16.mxu0 0
    %4408 = vmatpush1.bf16.msra.mxu0 0
    %4409 = vmatprep.subr.bf16.mxu0 0
    %4410 = vmatpush1.bf16.msra.mxu0 0
    %4411 = vmatprep.subr.bf16.mxu0 0
    %4412 = vmatpush1.bf16.msra.mxu0 0
    %4413 = vmatprep.subr.bf16.mxu0 0
    %4414 = vmatpush1.bf16.msra.mxu0 %v4400
    %4415 = vmatprep.subr.bf16.mxu0 0
    %4416 = vmatpush1.bf16.msra.mxu0 %v4399
    %4417 = vmatprep.subr.bf16.mxu0 0
    %4418 = vmatpush1.bf16.msra.mxu0 %v4398
    %4419 = vmatprep.subr.bf16.mxu0 0
    %4420 = vmatpush1.bf16.msra.mxu0 %v4397
    %4421 = vmatprep.subr.bf16.mxu0 0
    %4422 = vmatpush2.bf16.msra.mxu0 0
    %4423 = vmatprep.subr.bf16.mxu0 0
    %4424 = vmatpush2.bf16.msra.mxu0 0
    %4425 = vmatprep.subr.bf16.mxu0 0
    %4426 = vmatpush2.bf16.msra.mxu0 0
    %4427 = vmatprep.subr.bf16.mxu0 0
    %4428 = vmatpush2.bf16.msra.mxu0 0
    %4429 = vmatprep.subr.bf16.mxu0 0
    %4430 = vmatpush2.bf16.msra.mxu0 0
    %4431 = vmatprep.subr.bf16.mxu0 0
    %4432 = vmatpush2.bf16.msra.mxu0 0
    %4433 = vmatprep.subr.bf16.mxu0 0
    %4434 = vmatpush2.bf16.msra.mxu0 0
    %4435 = vmatprep.subr.bf16.mxu0 0
    %4436 = vmatpush2.bf16.msra.mxu0 0
    %4437 = vmatprep.mubr.bf16.mxu0 0
    %4438 = vmatmul.mubr.bf16.gmra.mxu0 %v4311
    %v4439 = vpop.f32.mrf.mxu0
    %v4440 = vadd.f32 %v4380, %v4439
    %v4441 = vpop.f32.mrf.mxu0
    %v4442 = vpop.f32.mrf.mxu0
    %v4443 = vadd.f32 %v4380, %v4442
    %v4444 = vpop.f32.mrf.mxu0
    %4445 = vmatprep.mubr.bf16.mxu0 0
    %4446 = vmatmul.mubr.bf16.gmra.mxu0 %v4314
    %v4447 = vpop.f32.mrf.mxu0
    %v4448 = vadd.f32 %v4380, %v4447
    %v4449 = vpop.f32.mrf.mxu0
    %v4450 = vpop.f32.mrf.mxu0
    %v4451 = vpop.f32.mrf.mxu0
    %4452 = vdwg.mxu0
    %v4453 = vpack.c.bf16 %v4443, %v4440
    %v4454 = vpack.c.bf16 %v4448, %v4448
    %v4455 = vld [vmem:[%s6 + $0x3b8] sm:$0xf]
    %v4456 = vld [vmem:[%s6 + $0x3bc] sm:$0xf]
    %v4457 = vld [vmem:[%s6 + $0x3c0] sm:$0xf]
    %v4458 = vld [vmem:[%s6 + $0x3c4] sm:$0xf]
    %v4459 = vld [vmem:[%s6 + $0x3c8] sm:$0xf]
    %v4460 = vld [vmem:[%s6 + $0x3cc] sm:$0xf]
    %v4461 = vld [vmem:[%s6 + $0x3d0] sm:$0xf]
    %v4462 = vld [vmem:[%s6 + $0x3d4] sm:$0xf]
    %v4463 = vld [vmem:[%s6 + $0x554] sm:$0x8]
    %v4464 = vunpack.c.l.bf16 %v4463
    %v4465 = vlaneseq
    %v4466 = vshrl.u32 %v4465, 7
    %v4467 = vsub.s32 6, %v4466
    %v4468 = vrot.slane %v4464, %v4467
    %v4477 = vunpack.c.l.b16 %v4455
    %v4478 = vunpack.c.l.b16 %v4456
    %v4479 = vunpack.c.l.b16 %v4457
    %v4480 = vunpack.c.l.b16 %v4458
    %v4481 = vunpack.c.l.b16 %v4459
    %v4482 = vunpack.c.l.b16 %v4460
    %v4483 = vunpack.c.l.b16 %v4461
    %v4484 = vunpack.c.l.b16 %v4462
    %v4485 = vpack.c.b16 %v4478, %v4477
    %v4486 = vpack.c.b16 %v4480, %v4479
    %v4487 = vpack.c.b16 %v4482, %v4481
    %v4488 = vpack.c.b16 %v4484, %v4483
    %4493 = vmatprep.subr.bf16.mxu0 0
    %4494 = vmatpush1.bf16.msra.mxu0 0
    %4495 = vmatprep.subr.bf16.mxu0 0
    %4496 = vmatpush1.bf16.msra.mxu0 0
    %4497 = vmatprep.subr.bf16.mxu0 0
    %4498 = vmatpush1.bf16.msra.mxu0 0
    %4499 = vmatprep.subr.bf16.mxu0 0
    %4500 = vmatpush1.bf16.msra.mxu0 0
    %4501 = vmatprep.subr.bf16.mxu0 0
    %4502 = vmatpush1.bf16.msra.mxu0 %v4488
    %4503 = vmatprep.subr.bf16.mxu0 0
    %4504 = vmatpush1.bf16.msra.mxu0 %v4487
    %4505 = vmatprep.subr.bf16.mxu0 0
    %4506 = vmatpush1.bf16.msra.mxu0 %v4486
    %4507 = vmatprep.subr.bf16.mxu0 0
    %4508 = vmatpush1.bf16.msra.mxu0 %v4485
    %4509 = vmatprep.subr.bf16.mxu0 0
    %4510 = vmatpush2.bf16.msra.mxu0 0
    %4511 = vmatprep.subr.bf16.mxu0 0
    %4512 = vmatpush2.bf16.msra.mxu0 0
    %4513 = vmatprep.subr.bf16.mxu0 0
    %4514 = vmatpush2.bf16.msra.mxu0 0
    %4515 = vmatprep.subr.bf16.mxu0 0
    %4516 = vmatpush2.bf16.msra.mxu0 0
    %4517 = vmatprep.subr.bf16.mxu0 0
    %4518 = vmatpush2.bf16.msra.mxu0 0
    %4519 = vmatprep.subr.bf16.mxu0 0
    %4520 = vmatpush2.bf16.msra.mxu0 0
    %4521 = vmatprep.subr.bf16.mxu0 0
    %4522 = vmatpush2.bf16.msra.mxu0 0
    %4523 = vmatprep.subr.bf16.mxu0 0
    %4524 = vmatpush2.bf16.msra.mxu0 0
    %4525 = vmatprep.mubr.bf16.mxu0 0
    %4526 = vmatmul.mubr.bf16.gmra.mxu0 %v4311
    %v4527 = vpop.f32.mrf.mxu0
    %v4528 = vadd.f32 %v4468, %v4527
    %v4529 = vpop.f32.mrf.mxu0
    %v4530 = vpop.f32.mrf.mxu0
    %v4531 = vadd.f32 %v4468, %v4530
    %v4532 = vpop.f32.mrf.mxu0
    %4533 = vmatprep.mubr.bf16.mxu0 0
    %4534 = vmatmul.mubr.bf16.gmra.mxu0 %v4314
    %v4535 = vpop.f32.mrf.mxu0
    %v4536 = vadd.f32 %v4468, %v4535
    %v4537 = vpop.f32.mrf.mxu0
    %v4538 = vpop.f32.mrf.mxu0
    %v4539 = vpop.f32.mrf.mxu0
    %4540 = vdwg.mxu0
    %v4541 = vpack.c.bf16 %v4531, %v4528
    %v4542 = vpack.c.bf16 %v4536, %v4536
    %v4544 = vsel %vm114, %v4367, 0
    %v4547 = vsel %vm114, %v4368, 0
    %v4550 = vsel %vm114, %v4453, 0
    %v4553 = vsel %vm114, %v4454, 0
    %4555 = vmatprep.subr.bf16.mxu0 0
    %4556 = vmatpush1.bf16.xpose.msra.mxu0 0
    %4557 = vmatprep.subr.bf16.mxu0 0
    %4558 = vmatpush1.bf16.xpose.msra.mxu0 0
    %4559 = vmatprep.subr.bf16.mxu0 0
    %4560 = vmatpush1.bf16.xpose.msra.mxu0 0
    %4561 = vmatprep.subr.bf16.mxu0 0
    %4562 = vmatpush1.bf16.xpose.msra.mxu0 0
    %4563 = vmatprep.subr.bf16.mxu0 0
    %4564 = vmatpush1.bf16.xpose.msra.mxu0 0
    %4565 = vmatprep.subr.bf16.mxu0 0
    %4566 = vmatpush1.bf16.xpose.msra.mxu0 0
    %4567 = vmatprep.subr.bf16.mxu0 0
    %4568 = vmatpush1.bf16.xpose.msra.mxu0 %v4553
    %4569 = vmatprep.subr.bf16.mxu0 0
    %4570 = vmatpush1.bf16.xpose.msra.mxu0 %v4550
    %4571 = vmatprep.subr.bf16.mxu0 0
    %4572 = vmatpush2.bf16.xpose.msra.mxu0 0
    %4573 = vmatprep.subr.bf16.mxu0 0
    %4574 = vmatpush2.bf16.xpose.msra.mxu0 0
    %4575 = vmatprep.subr.bf16.mxu0 0
    %4576 = vmatpush2.bf16.xpose.msra.mxu0 0
    %4577 = vmatprep.subr.bf16.mxu0 0
    %4578 = vmatpush2.bf16.xpose.msra.mxu0 0
    %4579 = vmatprep.subr.bf16.mxu0 0
    %4580 = vmatpush2.bf16.xpose.msra.mxu0 0
    %4581 = vmatprep.subr.bf16.mxu0 0
    %4582 = vmatpush2.bf16.xpose.msra.mxu0 0
    %4583 = vmatprep.subr.bf16.mxu0 0
    %4584 = vmatpush2.bf16.xpose.msra.mxu0 0
    %4585 = vmatprep.subr.bf16.mxu0 0
    %4586 = vmatpush2.bf16.xpose.msra.mxu0 0
    %4587 = vmatprep.mubr.bf16.mxu0 0
    %4588 = vmatmul.mubr.bf16.gmra.mxu0 %v4544
    %v4589 = vpop.f32.mrf.mxu0
    %v4590 = vadd.f32 0.0, %v4589
    %v4591 = vpop.f32.mrf.mxu0
    %v4592 = vpop.f32.mrf.mxu0
    %v4593 = vadd.f32 0.0, %v4592
    %v4594 = vpop.f32.mrf.mxu0
    %4595 = vmatprep.mubr.bf16.mxu0 0
    %4596 = vmatmul.mubr.bf16.gmra.mxu0 %v4547
    %v4597 = vpop.f32.mrf.mxu0
    %v4598 = vadd.f32 0.0, %v4597
    %v4599 = vpop.f32.mrf.mxu0
    %v4600 = vpop.f32.mrf.mxu0
    %v4601 = vpop.f32.mrf.mxu0
    %4602 = vdwg.mxu0
    %4605 = vrot.lane.b32.xlu0 %v4367, 112
    %v4606 = vpop.permute.xlu0 %4605
    %4607 = vrot.lane.b32.xlu0 %v4368, 112
    %v4608 = vpop.permute.xlu0 %4607
    %4611 = vrot.lane.b32.xlu0 %v4453, 112
    %v4612 = vpop.permute.xlu0 %4611
    %4613 = vrot.lane.b32.xlu0 %v4454, 112
    %v4614 = vpop.permute.xlu0 %4613
    %v4616 = vsel %vm114, %v4606, 0
    %v4619 = vsel %vm114, %v4608, 0
    %v4622 = vsel %vm114, %v4612, 0
    %v4625 = vsel %vm114, %v4614, 0
    %4627 = vmatprep.subr.bf16.mxu0 0
    %4628 = vmatpush1.bf16.xpose.msra.mxu0 0
    %4629 = vmatprep.subr.bf16.mxu0 0
    %4630 = vmatpush1.bf16.xpose.msra.mxu0 0
    %4631 = vmatprep.subr.bf16.mxu0 0
    %4632 = vmatpush1.bf16.xpose.msra.mxu0 0
    %4633 = vmatprep.subr.bf16.mxu0 0
    %4634 = vmatpush1.bf16.xpose.msra.mxu0 0
    %4635 = vmatprep.subr.bf16.mxu0 0
    %4636 = vmatpush1.bf16.xpose.msra.mxu0 0
    %4637 = vmatprep.subr.bf16.mxu0 0
    %4638 = vmatpush1.bf16.xpose.msra.mxu0 0
    %4639 = vmatprep.subr.bf16.mxu0 0
    %4640 = vmatpush1.bf16.xpose.msra.mxu0 %v4625
    %4641 = vmatprep.subr.bf16.mxu0 0
    %4642 = vmatpush1.bf16.xpose.msra.mxu0 %v4622
    %4643 = vmatprep.subr.bf16.mxu0 0
    %4644 = vmatpush2.bf16.xpose.msra.mxu0 0
    %4645 = vmatprep.subr.bf16.mxu0 0
    %4646 = vmatpush2.bf16.xpose.msra.mxu0 0
    %4647 = vmatprep.subr.bf16.mxu0 0
    %4648 = vmatpush2.bf16.xpose.msra.mxu0 0
    %4649 = vmatprep.subr.bf16.mxu0 0
    %4650 = vmatpush2.bf16.xpose.msra.mxu0 0
    %4651 = vmatprep.subr.bf16.mxu0 0
    %4652 = vmatpush2.bf16.xpose.msra.mxu0 0
    %4653 = vmatprep.subr.bf16.mxu0 0
    %4654 = vmatpush2.bf16.xpose.msra.mxu0 0
    %4655 = vmatprep.subr.bf16.mxu0 0
    %4656 = vmatpush2.bf16.xpose.msra.mxu0 0
    %4657 = vmatprep.subr.bf16.mxu0 0
    %4658 = vmatpush2.bf16.xpose.msra.mxu0 0
    %4659 = vmatprep.mubr.bf16.mxu0 0
    %4660 = vmatmul.mubr.bf16.gmra.mxu0 %v4616
    %v4661 = vpop.f32.mrf.mxu0
    %v4662 = vadd.f32 0.0, %v4661
    %v4663 = vpop.f32.mrf.mxu0
    %v4664 = vpop.f32.mrf.mxu0
    %v4665 = vadd.f32 0.0, %v4664
    %v4666 = vpop.f32.mrf.mxu0
    %4667 = vmatprep.mubr.bf16.mxu0 0
    %4668 = vmatmul.mubr.bf16.gmra.mxu0 %v4619
    %v4669 = vpop.f32.mrf.mxu0
    %v4670 = vadd.f32 0.0, %v4669
    %v4671 = vpop.f32.mrf.mxu0
    %v4672 = vpop.f32.mrf.mxu0
    %v4673 = vpop.f32.mrf.mxu0
    %4674 = vdwg.mxu0
    %4675 = vrot.lane.b32.xlu0 %v4367, 96
    %v4676 = vpop.permute.xlu0 %4675
    %4677 = vrot.lane.b32.xlu0 %v4368, 96
    %v4678 = vpop.permute.xlu0 %4677
    %4679 = vrot.lane.b32.xlu0 %v4453, 96
    %v4680 = vpop.permute.xlu0 %4679
    %4681 = vrot.lane.b32.xlu0 %v4454, 96
    %v4682 = vpop.permute.xlu0 %4681
    %v4684 = vsel %vm114, %v4676, 0
    %v4687 = vsel %vm114, %v4678, 0
    %v4690 = vsel %vm114, %v4680, 0
    %v4693 = vsel %vm114, %v4682, 0
    %4695 = vmatprep.subr.bf16.mxu0 0
    %4696 = vmatpush1.bf16.xpose.msra.mxu0 0
    %4697 = vmatprep.subr.bf16.mxu0 0
    %4698 = vmatpush1.bf16.xpose.msra.mxu0 0
    %4699 = vmatprep.subr.bf16.mxu0 0
    %4700 = vmatpush1.bf16.xpose.msra.mxu0 0
    %4701 = vmatprep.subr.bf16.mxu0 0
    %4702 = vmatpush1.bf16.xpose.msra.mxu0 0
    %4703 = vmatprep.subr.bf16.mxu0 0
    %4704 = vmatpush1.bf16.xpose.msra.mxu0 0
    %4705 = vmatprep.subr.bf16.mxu0 0
    %4706 = vmatpush1.bf16.xpose.msra.mxu0 0
    %4707 = vmatprep.subr.bf16.mxu0 0
    %4708 = vmatpush1.bf16.xpose.msra.mxu0 %v4693
    %4709 = vmatprep.subr.bf16.mxu0 0
    %4710 = vmatpush1.bf16.xpose.msra.mxu0 %v4690
    %4711 = vmatprep.subr.bf16.mxu0 0
    %4712 = vmatpush2.bf16.xpose.msra.mxu0 0
    %4713 = vmatprep.subr.bf16.mxu0 0
    %4714 = vmatpush2.bf16.xpose.msra.mxu0 0
    %4715 = vmatprep.subr.bf16.mxu0 0
    %4716 = vmatpush2.bf16.xpose.msra.mxu0 0
    %4717 = vmatprep.subr.bf16.mxu0 0
    %4718 = vmatpush2.bf16.xpose.msra.mxu0 0
    %4719 = vmatprep.subr.bf16.mxu0 0
    %4720 = vmatpush2.bf16.xpose.msra.mxu0 0
    %4721 = vmatprep.subr.bf16.mxu0 0
    %4722 = vmatpush2.bf16.xpose.msra.mxu0 0
    %4723 = vmatprep.subr.bf16.mxu0 0
    %4724 = vmatpush2.bf16.xpose.msra.mxu0 0
    %4725 = vmatprep.subr.bf16.mxu0 0
    %4726 = vmatpush2.bf16.xpose.msra.mxu0 0
    %4727 = vmatprep.mubr.bf16.mxu0 0
    %4728 = vmatmul.mubr.bf16.gmra.mxu0 %v4684
    %v4729 = vpop.f32.mrf.mxu0
    %v4730 = vadd.f32 0.0, %v4729
    %v4731 = vpop.f32.mrf.mxu0
    %v4732 = vpop.f32.mrf.mxu0
    %v4733 = vadd.f32 0.0, %v4732
    %v4734 = vpop.f32.mrf.mxu0
    %4735 = vmatprep.mubr.bf16.mxu0 0
    %4736 = vmatmul.mubr.bf16.gmra.mxu0 %v4687
    %v4737 = vpop.f32.mrf.mxu0
    %v4738 = vadd.f32 0.0, %v4737
    %v4739 = vpop.f32.mrf.mxu0
    %v4740 = vpop.f32.mrf.mxu0
    %v4741 = vpop.f32.mrf.mxu0
    %4742 = vdwg.mxu0
    %4743 = vrot.lane.b32.xlu0 %v4367, 80
    %v4744 = vpop.permute.xlu0 %4743
    %4745 = vrot.lane.b32.xlu0 %v4368, 80
    %v4746 = vpop.permute.xlu0 %4745
    %4747 = vrot.lane.b32.xlu0 %v4453, 80
    %v4748 = vpop.permute.xlu0 %4747
    %4749 = vrot.lane.b32.xlu0 %v4454, 80
    %v4750 = vpop.permute.xlu0 %4749
    %v4752 = vsel %vm114, %v4744, 0
    %v4755 = vsel %vm114, %v4746, 0
    %v4758 = vsel %vm114, %v4748, 0
    %v4761 = vsel %vm114, %v4750, 0
    %4763 = vmatprep.subr.bf16.mxu0 0
    %4764 = vmatpush1.bf16.xpose.msra.mxu0 0
    %4765 = vmatprep.subr.bf16.mxu0 0
    %4766 = vmatpush1.bf16.xpose.msra.mxu0 0
    %4767 = vmatprep.subr.bf16.mxu0 0
    %4768 = vmatpush1.bf16.xpose.msra.mxu0 0
    %4769 = vmatprep.subr.bf16.mxu0 0
    %4770 = vmatpush1.bf16.xpose.msra.mxu0 0
    %4771 = vmatprep.subr.bf16.mxu0 0
    %4772 = vmatpush1.bf16.xpose.msra.mxu0 0
    %4773 = vmatprep.subr.bf16.mxu0 0
    %4774 = vmatpush1.bf16.xpose.msra.mxu0 0
    %4775 = vmatprep.subr.bf16.mxu0 0
    %4776 = vmatpush1.bf16.xpose.msra.mxu0 %v4761
    %4777 = vmatprep.subr.bf16.mxu0 0
    %4778 = vmatpush1.bf16.xpose.msra.mxu0 %v4758
    %4779 = vmatprep.subr.bf16.mxu0 0
    %4780 = vmatpush2.bf16.xpose.msra.mxu0 0
    %4781 = vmatprep.subr.bf16.mxu0 0
    %4782 = vmatpush2.bf16.xpose.msra.mxu0 0
    %4783 = vmatprep.subr.bf16.mxu0 0
    %4784 = vmatpush2.bf16.xpose.msra.mxu0 0
    %4785 = vmatprep.subr.bf16.mxu0 0
    %4786 = vmatpush2.bf16.xpose.msra.mxu0 0
    %4787 = vmatprep.subr.bf16.mxu0 0
    %4788 = vmatpush2.bf16.xpose.msra.mxu0 0
    %4789 = vmatprep.subr.bf16.mxu0 0
    %4790 = vmatpush2.bf16.xpose.msra.mxu0 0
    %4791 = vmatprep.subr.bf16.mxu0 0
    %4792 = vmatpush2.bf16.xpose.msra.mxu0 0
    %4793 = vmatprep.subr.bf16.mxu0 0
    %4794 = vmatpush2.bf16.xpose.msra.mxu0 0
    %4795 = vmatprep.mubr.bf16.mxu0 0
    %4796 = vmatmul.mubr.bf16.gmra.mxu0 %v4752
    %v4797 = vpop.f32.mrf.mxu0
    %v4798 = vadd.f32 0.0, %v4797
    %v4799 = vpop.f32.mrf.mxu0
    %v4800 = vpop.f32.mrf.mxu0
    %v4801 = vadd.f32 0.0, %v4800
    %v4802 = vpop.f32.mrf.mxu0
    %4803 = vmatprep.mubr.bf16.mxu0 0
    %4804 = vmatmul.mubr.bf16.gmra.mxu0 %v4755
    %v4805 = vpop.f32.mrf.mxu0
    %v4806 = vadd.f32 0.0, %v4805
    %v4807 = vpop.f32.mrf.mxu0
    %v4808 = vpop.f32.mrf.mxu0
    %v4809 = vpop.f32.mrf.mxu0
    %4810 = vdwg.mxu0
    %v4811 = vadd.f32 %v4590, %v1565
    %v4812 = vadd.f32 %v4593, %v1566
    %v4813 = vadd.f32 %v4598, %v1567
    %v4814 = vadd.f32 %v4662, %v1565
    %v4815 = vadd.f32 %v4665, %v1566
    %v4816 = vadd.f32 %v4670, %v1567
    %v4817 = vadd.f32 %v4730, %v1565
    %v4818 = vadd.f32 %v4733, %v1566
    %v4819 = vadd.f32 %v4738, %v1567
    %v4820 = vadd.f32 %v4798, %v1565
    %v4821 = vadd.f32 %v4801, %v1566
    %v4822 = vadd.f32 %v4806, %v1567
    %v4823 = vsel %vm2176, %v4811, -inf
    %4824 = vmax.xlane.f32.xlu0 %v4823
    %v4825 = vpop.xlane.xlu0 %4824
    %v4826 = vsel %vm2176, %v4812, -inf
    %4827 = vmax.xlane.f32.xlu0 %v4826
    %v4828 = vpop.xlane.xlu0 %4827
    %v4829 = vsel %vm2183, %v4813, -inf
    %4830 = vmax.xlane.f32.xlu0 %v4829
    %v4831 = vpop.xlane.xlu0 %4830
    %v4832 = vsel %vm2176, %v4814, -inf
    %4833 = vmax.xlane.f32.xlu0 %v4832
    %v4834 = vpop.xlane.xlu0 %4833
    %v4835 = vsel %vm2176, %v4815, -inf
    %4836 = vmax.xlane.f32.xlu0 %v4835
    %v4837 = vpop.xlane.xlu0 %4836
    %v4838 = vsel %vm2183, %v4816, -inf
    %4839 = vmax.xlane.f32.xlu0 %v4838
    %v4840 = vpop.xlane.xlu0 %4839
    %v4841 = vsel %vm2176, %v4817, -inf
    %4842 = vmax.xlane.f32.xlu0 %v4841
    %v4843 = vpop.xlane.xlu0 %4842
    %v4844 = vsel %vm2176, %v4818, -inf
    %4845 = vmax.xlane.f32.xlu0 %v4844
    %v4846 = vpop.xlane.xlu0 %4845
    %v4847 = vsel %vm2183, %v4819, -inf
    %4848 = vmax.xlane.f32.xlu0 %v4847
    %v4849 = vpop.xlane.xlu0 %4848
    %v4850 = vsel %vm2176, %v4820, -inf
    %4851 = vmax.xlane.f32.xlu0 %v4850
    %v4852 = vpop.xlane.xlu0 %4851
    %v4853 = vsel %vm2176, %v4821, -inf
    %4854 = vmax.xlane.f32.xlu0 %v4853
    %v4855 = vpop.xlane.xlu0 %4854
    %v4856 = vsel %vm2183, %v4822, -inf
    %4857 = vmax.xlane.f32.xlu0 %v4856
    %v4858 = vpop.xlane.xlu0 %4857
    %v4859 = vsub.f32 %v4811, %v4825
    %v4860 = vsub.f32 %v4812, %v4828
    %v4861 = vsub.f32 %v4813, %v4831
    %v4862 = vsub.f32 %v4814, %v4834
    %v4863 = vsub.f32 %v4815, %v4837
    %v4864 = vsub.f32 %v4816, %v4840
    %v4865 = vsub.f32 %v4817, %v4843
    %v4866 = vsub.f32 %v4818, %v4846
    %v4867 = vsub.f32 %v4819, %v4849
    %v4868 = vsub.f32 %v4820, %v4852
    %v4869 = vsub.f32 %v4821, %v4855
    %v4870 = vsub.f32 %v4822, %v4858
    %v4871 = vmul.f32 %v4859, 1.442695
    %v4872 = vpow.pop %v4871
    %v4873 = vmul.f32 %v4860, 1.442695
    %v4874 = vpow.pop %v4873
    %v4875 = vmul.f32 %v4861, 1.442695
    %v4876 = vpow.pop %v4875
    %v4877 = vmul.f32 %v4862, 1.442695
    %v4878 = vpow.pop %v4877
    %v4879 = vmul.f32 %v4863, 1.442695
    %v4880 = vpow.pop %v4879
    %v4881 = vmul.f32 %v4864, 1.442695
    %v4882 = vpow.pop %v4881
    %v4883 = vmul.f32 %v4865, 1.442695
    %v4884 = vpow.pop %v4883
    %v4885 = vmul.f32 %v4866, 1.442695
    %v4886 = vpow.pop %v4885
    %v4887 = vmul.f32 %v4867, 1.442695
    %v4888 = vpow.pop %v4887
    %v4889 = vmul.f32 %v4868, 1.442695
    %v4890 = vpow.pop %v4889
    %v4891 = vmul.f32 %v4869, 1.442695
    %v4892 = vpow.pop %v4891
    %v4893 = vmul.f32 %v4870, 1.442695
    %v4894 = vpow.pop %v4893
    %v4895 = vsel %vm2176, %v4872, 0.0
    %4896 = vadd.xlane.f32.xlu0 %v4895
    %v4897 = vpop.xlane.xlu0 %4896
    %v4898 = vsel %vm2176, %v4874, 0.0
    %4899 = vadd.xlane.f32.xlu0 %v4898
    %v4900 = vpop.xlane.xlu0 %4899
    %v4901 = vsel %vm2183, %v4876, 0.0
    %4902 = vadd.xlane.f32.xlu0 %v4901
    %v4903 = vpop.xlane.xlu0 %4902
    %v4904 = vsel %vm2176, %v4878, 0.0
    %4905 = vadd.xlane.f32.xlu0 %v4904
    %v4906 = vpop.xlane.xlu0 %4905
    %v4907 = vsel %vm2176, %v4880, 0.0
    %4908 = vadd.xlane.f32.xlu0 %v4907
    %v4909 = vpop.xlane.xlu0 %4908
    %v4910 = vsel %vm2183, %v4882, 0.0
    %4911 = vadd.xlane.f32.xlu0 %v4910
    %v4912 = vpop.xlane.xlu0 %4911
    %v4913 = vsel %vm2176, %v4884, 0.0
    %4914 = vadd.xlane.f32.xlu0 %v4913
    %v4915 = vpop.xlane.xlu0 %4914
    %v4916 = vsel %vm2176, %v4886, 0.0
    %4917 = vadd.xlane.f32.xlu0 %v4916
    %v4918 = vpop.xlane.xlu0 %4917
    %v4919 = vsel %vm2183, %v4888, 0.0
    %4920 = vadd.xlane.f32.xlu0 %v4919
    %v4921 = vpop.xlane.xlu0 %4920
    %v4922 = vsel %vm2176, %v4890, 0.0
    %4923 = vadd.xlane.f32.xlu0 %v4922
    %v4924 = vpop.xlane.xlu0 %4923
    %v4925 = vsel %vm2176, %v4892, 0.0
    %4926 = vadd.xlane.f32.xlu0 %v4925
    %v4927 = vpop.xlane.xlu0 %4926
    %v4928 = vsel %vm2183, %v4894, 0.0
    %4929 = vadd.xlane.f32.xlu0 %v4928
    %v4930 = vpop.xlane.xlu0 %4929
    %v4931 = vrcp.pop %v4897
    %v4932 = vrcp.pop %v4900
    %v4933 = vrcp.pop %v4903
    %v4934 = vrcp.pop %v4906
    %v4935 = vrcp.pop %v4909
    %v4936 = vrcp.pop %v4912
    %v4937 = vrcp.pop %v4915
    %v4938 = vrcp.pop %v4918
    %v4939 = vrcp.pop %v4921
    %v4940 = vrcp.pop %v4924
    %v4941 = vrcp.pop %v4927
    %v4942 = vrcp.pop %v4930
    %v4943 = vmul.f32 %v4872, %v4931
    %v4944 = vmul.f32 %v4874, %v4932
    %v4945 = vmul.f32 %v4876, %v4933
    %v4946 = vmul.f32 %v4878, %v4934
    %v4947 = vmul.f32 %v4880, %v4935
    %v4948 = vmul.f32 %v4882, %v4936
    %v4949 = vmul.f32 %v4884, %v4937
    %v4950 = vmul.f32 %v4886, %v4938
    %v4951 = vmul.f32 %v4888, %v4939
    %v4952 = vmul.f32 %v4890, %v4940
    %v4953 = vmul.f32 %v4892, %v4941
    %v4954 = vmul.f32 %v4894, %v4942
    %v4955 = vpack.c.bf16 %v4944, %v4943
    %v4956 = vpack.c.bf16 %v4945, %v4945
    %v4957 = vpack.c.bf16 %v4947, %v4946
    %v4958 = vpack.c.bf16 %v4948, %v4948
    %v4959 = vpack.c.bf16 %v4950, %v4949
    %v4960 = vpack.c.bf16 %v4951, %v4951
    %v4961 = vpack.c.bf16 %v4953, %v4952
    %v4962 = vpack.c.bf16 %v4954, %v4954
    %v4964 = vsel %vm2176, %v4955, 0
    %v4967 = vsel %vm2176, %v4956, 0
    %v4970 = vsel %vm2324, %v4542, 0
    %4972 = vmatprep.subr.bf16.mxu0 0
    %4973 = vmatpush1.bf16.msra.mxu0 0
    %4974 = vmatprep.subr.bf16.mxu0 0
    %4975 = vmatpush1.bf16.msra.mxu0 0
    %4976 = vmatprep.subr.bf16.mxu0 0
    %4977 = vmatpush1.bf16.msra.mxu0 0
    %4978 = vmatprep.subr.bf16.mxu0 0
    %4979 = vmatpush1.bf16.msra.mxu0 0
    %4980 = vmatprep.subr.bf16.mxu0 0
    %4981 = vmatpush1.bf16.msra.mxu0 0
    %4982 = vmatprep.subr.bf16.mxu0 0
    %4983 = vmatpush1.bf16.msra.mxu0 0
    %4984 = vmatprep.subr.bf16.mxu0 0
    %4985 = vmatpush1.bf16.msra.mxu0 %v4970
    %4986 = vmatprep.subr.bf16.mxu0 0
    %4987 = vmatpush1.bf16.msra.mxu0 %v4541
    %4988 = vmatprep.subr.bf16.mxu0 0
    %4989 = vmatpush2.bf16.msra.mxu0 0
    %4990 = vmatprep.subr.bf16.mxu0 0
    %4991 = vmatpush2.bf16.msra.mxu0 0
    %4992 = vmatprep.subr.bf16.mxu0 0
    %4993 = vmatpush2.bf16.msra.mxu0 0
    %4994 = vmatprep.subr.bf16.mxu0 0
    %4995 = vmatpush2.bf16.msra.mxu0 0
    %4996 = vmatprep.subr.bf16.mxu0 0
    %4997 = vmatpush2.bf16.msra.mxu0 0
    %4998 = vmatprep.subr.bf16.mxu0 0
    %4999 = vmatpush2.bf16.msra.mxu0 0
    %5000 = vmatprep.subr.bf16.mxu0 0
    %5001 = vmatpush2.bf16.msra.mxu0 0
    %5002 = vmatprep.subr.bf16.mxu0 0
    %5003 = vmatpush2.bf16.msra.mxu0 0
    %5004 = vmatprep.mubr.bf16.mxu0 0
    %5005 = vmatmul.mubr.bf16.gmra.mxu0 %v4964
    %v5006 = vpop.f32.mrf.mxu0
    %v5007 = vadd.f32 0.0, %v5006
    %v5008 = vpop.f32.mrf.mxu0
    %v5009 = vpop.f32.mrf.mxu0
    %v5010 = vadd.f32 0.0, %v5009
    %v5011 = vpop.f32.mrf.mxu0
    %5012 = vmatprep.mubr.bf16.mxu0 0
    %5013 = vmatmul.mubr.bf16.gmra.mxu0 %v4967
    %v5014 = vpop.f32.mrf.mxu0
    %v5015 = vadd.f32 0.0, %v5014
    %v5016 = vpop.f32.mrf.mxu0
    %v5017 = vpop.f32.mrf.mxu0
    %v5018 = vpop.f32.mrf.mxu0
    %5019 = vdwg.mxu0
    %5022 = vrot.lane.b32.xlu0 %v4541, 112
    %v5023 = vpop.permute.xlu0 %5022
    %5024 = vrot.lane.b32.xlu0 %v4542, 112
    %v5025 = vpop.permute.xlu0 %5024
    %v5028 = vsel %vm2176, %v4957, 0
    %v5031 = vsel %vm2176, %v4958, 0
    %v5034 = vsel %vm2324, %v5025, 0
    %5036 = vmatprep.subr.bf16.mxu0 0
    %5037 = vmatpush1.bf16.msra.mxu0 0
    %5038 = vmatprep.subr.bf16.mxu0 0
    %5039 = vmatpush1.bf16.msra.mxu0 0
    %5040 = vmatprep.subr.bf16.mxu0 0
    %5041 = vmatpush1.bf16.msra.mxu0 0
    %5042 = vmatprep.subr.bf16.mxu0 0
    %5043 = vmatpush1.bf16.msra.mxu0 0
    %5044 = vmatprep.subr.bf16.mxu0 0
    %5045 = vmatpush1.bf16.msra.mxu0 0
    %5046 = vmatprep.subr.bf16.mxu0 0
    %5047 = vmatpush1.bf16.msra.mxu0 0
    %5048 = vmatprep.subr.bf16.mxu0 0
    %5049 = vmatpush1.bf16.msra.mxu0 %v5034
    %5050 = vmatprep.subr.bf16.mxu0 0
    %5051 = vmatpush1.bf16.msra.mxu0 %v5023
    %5052 = vmatprep.subr.bf16.mxu0 0
    %5053 = vmatpush2.bf16.msra.mxu0 0
    %5054 = vmatprep.subr.bf16.mxu0 0
    %5055 = vmatpush2.bf16.msra.mxu0 0
    %5056 = vmatprep.subr.bf16.mxu0 0
    %5057 = vmatpush2.bf16.msra.mxu0 0
    %5058 = vmatprep.subr.bf16.mxu0 0
    %5059 = vmatpush2.bf16.msra.mxu0 0
    %5060 = vmatprep.subr.bf16.mxu0 0
    %5061 = vmatpush2.bf16.msra.mxu0 0
    %5062 = vmatprep.subr.bf16.mxu0 0
    %5063 = vmatpush2.bf16.msra.mxu0 0
    %5064 = vmatprep.subr.bf16.mxu0 0
    %5065 = vmatpush2.bf16.msra.mxu0 0
    %5066 = vmatprep.subr.bf16.mxu0 0
    %5067 = vmatpush2.bf16.msra.mxu0 0
    %5068 = vmatprep.mubr.bf16.mxu0 0
    %5069 = vmatmul.mubr.bf16.gmra.mxu0 %v5028
    %v5070 = vpop.f32.mrf.mxu0
    %v5071 = vadd.f32 0.0, %v5070
    %v5072 = vpop.f32.mrf.mxu0
    %v5073 = vpop.f32.mrf.mxu0
    %v5074 = vadd.f32 0.0, %v5073
    %v5075 = vpop.f32.mrf.mxu0
    %5076 = vmatprep.mubr.bf16.mxu0 0
    %5077 = vmatmul.mubr.bf16.gmra.mxu0 %v5031
    %v5078 = vpop.f32.mrf.mxu0
    %v5079 = vadd.f32 0.0, %v5078
    %v5080 = vpop.f32.mrf.mxu0
    %v5081 = vpop.f32.mrf.mxu0
    %v5082 = vpop.f32.mrf.mxu0
    %5083 = vdwg.mxu0
    %5084 = vrot.lane.b32.xlu0 %v4541, 96
    %v5085 = vpop.permute.xlu0 %5084
    %5086 = vrot.lane.b32.xlu0 %v4542, 96
    %v5087 = vpop.permute.xlu0 %5086
    %v5090 = vsel %vm2176, %v4959, 0
    %v5093 = vsel %vm2176, %v4960, 0
    %v5096 = vsel %vm2324, %v5087, 0
    %5098 = vmatprep.subr.bf16.mxu0 0
    %5099 = vmatpush1.bf16.msra.mxu0 0
    %5100 = vmatprep.subr.bf16.mxu0 0
    %5101 = vmatpush1.bf16.msra.mxu0 0
    %5102 = vmatprep.subr.bf16.mxu0 0
    %5103 = vmatpush1.bf16.msra.mxu0 0
    %5104 = vmatprep.subr.bf16.mxu0 0
    %5105 = vmatpush1.bf16.msra.mxu0 0
    %5106 = vmatprep.subr.bf16.mxu0 0
    %5107 = vmatpush1.bf16.msra.mxu0 0
    %5108 = vmatprep.subr.bf16.mxu0 0
    %5109 = vmatpush1.bf16.msra.mxu0 0
    %5110 = vmatprep.subr.bf16.mxu0 0
    %5111 = vmatpush1.bf16.msra.mxu0 %v5096
    %5112 = vmatprep.subr.bf16.mxu0 0
    %5113 = vmatpush1.bf16.msra.mxu0 %v5085
    %5114 = vmatprep.subr.bf16.mxu0 0
    %5115 = vmatpush2.bf16.msra.mxu0 0
    %5116 = vmatprep.subr.bf16.mxu0 0
    %5117 = vmatpush2.bf16.msra.mxu0 0
    %5118 = vmatprep.subr.bf16.mxu0 0
    %5119 = vmatpush2.bf16.msra.mxu0 0
    %5120 = vmatprep.subr.bf16.mxu0 0
    %5121 = vmatpush2.bf16.msra.mxu0 0
    %5122 = vmatprep.subr.bf16.mxu0 0
    %5123 = vmatpush2.bf16.msra.mxu0 0
    %5124 = vmatprep.subr.bf16.mxu0 0
    %5125 = vmatpush2.bf16.msra.mxu0 0
    %5126 = vmatprep.subr.bf16.mxu0 0
    %5127 = vmatpush2.bf16.msra.mxu0 0
    %5128 = vmatprep.subr.bf16.mxu0 0
    %5129 = vmatpush2.bf16.msra.mxu0 0
    %5130 = vmatprep.mubr.bf16.mxu0 0
    %5131 = vmatmul.mubr.bf16.gmra.mxu0 %v5090
    %v5132 = vpop.f32.mrf.mxu0
    %v5133 = vadd.f32 0.0, %v5132
    %v5134 = vpop.f32.mrf.mxu0
    %v5135 = vpop.f32.mrf.mxu0
    %v5136 = vadd.f32 0.0, %v5135
    %v5137 = vpop.f32.mrf.mxu0
    %5138 = vmatprep.mubr.bf16.mxu0 0
    %5139 = vmatmul.mubr.bf16.gmra.mxu0 %v5093
    %v5140 = vpop.f32.mrf.mxu0
    %v5141 = vadd.f32 0.0, %v5140
    %v5142 = vpop.f32.mrf.mxu0
    %v5143 = vpop.f32.mrf.mxu0
    %v5144 = vpop.f32.mrf.mxu0
    %5145 = vdwg.mxu0
    %5146 = vrot.lane.b32.xlu0 %v4541, 80
    %v5147 = vpop.permute.xlu0 %5146
    %5148 = vrot.lane.b32.xlu0 %v4542, 80
    %v5149 = vpop.permute.xlu0 %5148
    %v5152 = vsel %vm2176, %v4961, 0
    %v5155 = vsel %vm2176, %v4962, 0
    %v5158 = vsel %vm2324, %v5149, 0
    %5160 = vmatprep.subr.bf16.mxu0 0
    %5161 = vmatpush1.bf16.msra.mxu0 0
    %5162 = vmatprep.subr.bf16.mxu0 0
    %5163 = vmatpush1.bf16.msra.mxu0 0
    %5164 = vmatprep.subr.bf16.mxu0 0
    %5165 = vmatpush1.bf16.msra.mxu0 0
    %5166 = vmatprep.subr.bf16.mxu0 0
    %5167 = vmatpush1.bf16.msra.mxu0 0
    %5168 = vmatprep.subr.bf16.mxu0 0
    %5169 = vmatpush1.bf16.msra.mxu0 0
    %5170 = vmatprep.subr.bf16.mxu0 0
    %5171 = vmatpush1.bf16.msra.mxu0 0
    %5172 = vmatprep.subr.bf16.mxu0 0
    %5173 = vmatpush1.bf16.msra.mxu0 %v5158
    %5174 = vmatprep.subr.bf16.mxu0 0
    %5175 = vmatpush1.bf16.msra.mxu0 %v5147
    %5176 = vmatprep.subr.bf16.mxu0 0
    %5177 = vmatpush2.bf16.msra.mxu0 0
    %5178 = vmatprep.subr.bf16.mxu0 0
    %5179 = vmatpush2.bf16.msra.mxu0 0
    %5180 = vmatprep.subr.bf16.mxu0 0
    %5181 = vmatpush2.bf16.msra.mxu0 0
    %5182 = vmatprep.subr.bf16.mxu0 0
    %5183 = vmatpush2.bf16.msra.mxu0 0
    %5184 = vmatprep.subr.bf16.mxu0 0
    %5185 = vmatpush2.bf16.msra.mxu0 0
    %5186 = vmatprep.subr.bf16.mxu0 0
    %5187 = vmatpush2.bf16.msra.mxu0 0
    %5188 = vmatprep.subr.bf16.mxu0 0
    %5189 = vmatpush2.bf16.msra.mxu0 0
    %5190 = vmatprep.subr.bf16.mxu0 0
    %5191 = vmatpush2.bf16.msra.mxu0 0
    %5192 = vmatprep.mubr.bf16.mxu0 0
    %5193 = vmatmul.mubr.bf16.gmra.mxu0 %v5152
    %v5194 = vpop.f32.mrf.mxu0
    %v5195 = vadd.f32 0.0, %v5194
    %v5196 = vpop.f32.mrf.mxu0
    %v5197 = vpop.f32.mrf.mxu0
    %v5198 = vadd.f32 0.0, %v5197
    %v5199 = vpop.f32.mrf.mxu0
    %5200 = vmatprep.mubr.bf16.mxu0 0
    %5201 = vmatmul.mubr.bf16.gmra.mxu0 %v5155
    %v5202 = vpop.f32.mrf.mxu0
    %v5203 = vadd.f32 0.0, %v5202
    %v5204 = vpop.f32.mrf.mxu0
    %v5205 = vpop.f32.mrf.mxu0
    %v5206 = vpop.f32.mrf.mxu0
    %5207 = vdwg.mxu0
    %5211 = vrot.lane.b32.xlu0 %v5071, 16
    %v5212 = vpop.permute.xlu0 %5211
    %5213 = vrot.lane.b32.xlu0 %v5074, 16
    %v5214 = vpop.permute.xlu0 %5213
    %5215 = vrot.lane.b32.xlu0 %v5079, 16
    %v5216 = vpop.permute.xlu0 %5215
    %5223 = vrot.lane.b32.xlu0 %v5133, 32
    %v5224 = vpop.permute.xlu0 %5223
    %5225 = vrot.lane.b32.xlu0 %v5136, 32
    %v5226 = vpop.permute.xlu0 %5225
    %5227 = vrot.lane.b32.xlu0 %v5141, 32
    %v5228 = vpop.permute.xlu0 %5227
    %5235 = vrot.lane.b32.xlu0 %v5195, 48
    %v5236 = vpop.permute.xlu0 %5235
    %5237 = vrot.lane.b32.xlu0 %v5198, 48
    %v5238 = vpop.permute.xlu0 %5237
    %5239 = vrot.lane.b32.xlu0 %v5203, 48
    %v5240 = vpop.permute.xlu0 %5239
    %v5244 = vsel %vm114, %v5007, %v5212
    %v5245 = vsel %vm114, %v5010, %v5214
    %v5246 = vsel %vm114, %v5015, %v5216
    %v5247 = vsel %vm508, %v5244, %v5224
    %v5248 = vsel %vm508, %v5245, %v5226
    %v5249 = vsel %vm508, %v5246, %v5228
    %v5250 = vsel %vm696, %v5247, %v5236
    %v5251 = vsel %vm696, %v5248, %v5238
    %v5252 = vsel %vm696, %v5249, %v5240
    %v5253 = vpack.c.bf16 %v5251, %v5250
    %v5254 = vpack.c.bf16 %v5252, %v5252
    %v5255 = vld [vmem:[%s6 + $0x3d8] sm:$0xf]
    %v5256 = vld [vmem:[%s6 + $0x3dc] sm:$0xf]
    %v5257 = vld [vmem:[%s6 + $0x3e0] sm:$0xf]
    %v5258 = vld [vmem:[%s6 + $0x3e4] sm:$0xf]
    %v5259 = vld [vmem:[%s6 + $0x3e8] sm:$0xf]
    %v5260 = vld [vmem:[%s6 + $0x3ec] sm:$0xf]
    %v5261 = vld [vmem:[%s6 + $0x3f0] sm:$0xf]
    %v5262 = vld [vmem:[%s6 + $0x3f4] sm:$0xf]
    %v5263 = vlaneseq
    %v5264 = vshrl.u32 %v5263, 7
    %v5265 = vsub.s32 7, %v5264
    %v5266 = vrot.slane %v4464, %v5265
    %v5275 = vunpack.c.l.b16 %v5255
    %v5276 = vunpack.c.l.b16 %v5256
    %v5277 = vunpack.c.l.b16 %v5257
    %v5278 = vunpack.c.l.b16 %v5258
    %v5279 = vunpack.c.l.b16 %v5259
    %v5280 = vunpack.c.l.b16 %v5260
    %v5281 = vunpack.c.l.b16 %v5261
    %v5282 = vunpack.c.l.b16 %v5262
    %v5283 = vpack.c.b16 %v5276, %v5275
    %v5284 = vpack.c.b16 %v5278, %v5277
    %v5285 = vpack.c.b16 %v5280, %v5279
    %v5286 = vpack.c.b16 %v5282, %v5281
    %v5292 = vsel %vm303, %v5253, 0
    %v5295 = vsel %vm303, %v5254, 0
    %5297 = vmatprep.subr.bf16.mxu0 0
    %5298 = vmatpush1.bf16.msra.mxu0 0
    %5299 = vmatprep.subr.bf16.mxu0 0
    %5300 = vmatpush1.bf16.msra.mxu0 0
    %5301 = vmatprep.subr.bf16.mxu0 0
    %5302 = vmatpush1.bf16.msra.mxu0 0
    %5303 = vmatprep.subr.bf16.mxu0 0
    %5304 = vmatpush1.bf16.msra.mxu0 0
    %5305 = vmatprep.subr.bf16.mxu0 0
    %5306 = vmatpush1.bf16.msra.mxu0 %v5286
    %5307 = vmatprep.subr.bf16.mxu0 0
    %5308 = vmatpush1.bf16.msra.mxu0 %v5285
    %5309 = vmatprep.subr.bf16.mxu0 0
    %5310 = vmatpush1.bf16.msra.mxu0 %v5284
    %5311 = vmatprep.subr.bf16.mxu0 0
    %5312 = vmatpush1.bf16.msra.mxu0 %v5283
    %5313 = vmatprep.subr.bf16.mxu0 0
    %5314 = vmatpush2.bf16.msra.mxu0 0
    %5315 = vmatprep.subr.bf16.mxu0 0
    %5316 = vmatpush2.bf16.msra.mxu0 0
    %5317 = vmatprep.subr.bf16.mxu0 0
    %5318 = vmatpush2.bf16.msra.mxu0 0
    %5319 = vmatprep.subr.bf16.mxu0 0
    %5320 = vmatpush2.bf16.msra.mxu0 0
    %5321 = vmatprep.subr.bf16.mxu0 0
    %5322 = vmatpush2.bf16.msra.mxu0 0
    %5323 = vmatprep.subr.bf16.mxu0 0
    %5324 = vmatpush2.bf16.msra.mxu0 0
    %5325 = vmatprep.subr.bf16.mxu0 0
    %5326 = vmatpush2.bf16.msra.mxu0 0
    %5327 = vmatprep.subr.bf16.mxu0 0
    %5328 = vmatpush2.bf16.msra.mxu0 0
    %5329 = vmatprep.mubr.bf16.mxu0 0
    %5330 = vmatmul.mubr.bf16.gmra.mxu0 %v5292
    %v5331 = vpop.f32.mrf.mxu0
    %v5332 = vadd.f32 %v5266, %v5331
    %v5333 = vpop.f32.mrf.mxu0
    %v5334 = vpop.f32.mrf.mxu0
    %v5335 = vadd.f32 %v5266, %v5334
    %v5336 = vpop.f32.mrf.mxu0
    %5337 = vmatprep.mubr.bf16.mxu0 0
    %5338 = vmatmul.mubr.bf16.gmra.mxu0 %v5295
    %v5339 = vpop.f32.mrf.mxu0
    %v5340 = vadd.f32 %v5266, %v5339
    %v5341 = vpop.f32.mrf.mxu0
    %v5342 = vpop.f32.mrf.mxu0
    %v5343 = vpop.f32.mrf.mxu0
    %5344 = vdwg.mxu0
    %v5345 = vadd.f32 %v4212, %v5332
    %v5346 = vadd.f32 %v4213, %v5335
    %v5347 = vadd.f32 %v4214, %v5340
    %v5348 = vsel %vm303, %v5345, 0.0
    %5349 = vadd.xlane.f32.xlu0 %v5348
    %v5350 = vpop.xlane.xlu0 %5349
    %v5351 = vsel %vm303, %v5346, 0.0
    %5352 = vadd.xlane.f32.xlu0 %v5351
    %v5353 = vpop.xlane.xlu0 %5352
    %v5354 = vsel %vm1574, %v5347, 0.0
    %5355 = vadd.xlane.f32.xlu0 %v5354
    %v5356 = vpop.xlane.xlu0 %5355
    %v5357 = vmul.f32 %v5350, %v1578
    %v5358 = vmul.f32 %v5353, %v1578
    %v5359 = vmul.f32 %v5356, %v1578
    %v5360 = vsub.f32 %v5345, %v5357
    %v5361 = vsub.f32 %v5346, %v5358
    %v5362 = vsub.f32 %v5347, %v5359
    %v5363 = vmul.f32 %v5360, %v5360
    %v5364 = vmul.f32 %v5361, %v5361
    %v5365 = vmul.f32 %v5362, %v5362
    %v5366 = vsel %vm303, %v5363, 0.0
    %5367 = vadd.xlane.f32.xlu0 %v5366
    %v5368 = vpop.xlane.xlu0 %5367
    %v5369 = vsel %vm303, %v5364, 0.0
    %5370 = vadd.xlane.f32.xlu0 %v5369
    %v5371 = vpop.xlane.xlu0 %5370
    %v5372 = vsel %vm1574, %v5365, 0.0
    %5373 = vadd.xlane.f32.xlu0 %v5372
    %v5374 = vpop.xlane.xlu0 %5373
    %v5375 = vmul.f32 %v5368, %v1578
    %v5376 = vmul.f32 %v5371, %v1578
    %v5377 = vmul.f32 %v5374, %v1578
    %v5378 = vadd.f32 %v5375, 1e-05
    %v5379 = vadd.f32 %v5376, 1e-05
    %v5380 = vadd.f32 %v5377, 1e-05
    %v5381 = vrsqrt.pop %v5378
    %v5382 = vrsqrt.pop %v5379
    %v5383 = vrsqrt.pop %v5380
    %v5384 = vmul.f32 %v5360, %v5381
    %v5385 = vmul.f32 %v5361, %v5382
    %v5386 = vmul.f32 %v5362, %v5383
    %v5387 = vld [vmem:[%s6 + $0x558] sm:$0x1]
    %v5388 = vunpack.c.l.bf16 %v5387
    %v5389 = vlaneseq
    %v5390 = vshrl.u32 %v5389, 7
    %v5391 = vsub.s32 0, %v5390
    %v5392 = vrot.slane %v5388, %v5391
    %v5393 = vmul.f32 %v5384, %v5392
    %v5394 = vmul.f32 %v5385, %v5392
    %v5395 = vmul.f32 %v5386, %v5392
    %v5396 = vlaneseq
    %v5397 = vshrl.u32 %v5396, 7
    %v5398 = vsub.s32 1, %v5397
    %v5399 = vrot.slane %v5388, %v5398
    %v5400 = vadd.f32 %v5393, %v5399
    %v5401 = vadd.f32 %v5394, %v5399
    %v5402 = vadd.f32 %v5395, %v5399
    %v5403 = vpack.c.bf16 %v5401, %v5400
    %v5404 = vpack.c.bf16 %v5402, %v5402
    %v5405 = vld [vmem:[%s6 + $0x3f8] sm:$0xf]
    %v5406 = vld [vmem:[%s6 + $0x3fc] sm:$0xf]
    %v5407 = vld [vmem:[%s6 + $0x400] sm:$0xf]
    %v5408 = vld [vmem:[%s6 + $0x404] sm:$0xf]
    %v5409 = vld [vmem:[%s6 + $0x408] sm:$0xf]
    %v5410 = vld [vmem:[%s6 + $0x40c] sm:$0xf]
    %v5411 = vld [vmem:[%s6 + $0x410] sm:$0xf]
    %v5412 = vld [vmem:[%s6 + $0x414] sm:$0xf]
    %v5413 = vld [vmem:[%s6 + $0x558] sm:$0x2]
    %v5414 = vunpack.c.l.bf16 %v5413
    %v5415 = vlaneseq
    %v5416 = vshrl.u32 %v5415, 7
    %v5417 = vsub.s32 2, %v5416
    %v5418 = vrot.slane %v5414, %v5417
    %v5427 = vunpack.c.l.b16 %v5405
    %v5428 = vunpack.c.l.b16 %v5406
    %v5429 = vunpack.c.l.b16 %v5407
    %v5430 = vunpack.c.l.b16 %v5408
    %v5431 = vunpack.c.l.b16 %v5409
    %v5432 = vunpack.c.l.b16 %v5410
    %v5433 = vunpack.c.l.b16 %v5411
    %v5434 = vunpack.c.l.b16 %v5412
    %v5435 = vpack.c.b16 %v5428, %v5427
    %v5436 = vpack.c.b16 %v5430, %v5429
    %v5437 = vpack.c.b16 %v5432, %v5431
    %v5438 = vpack.c.b16 %v5434, %v5433
    %v5444 = vsel %vm303, %v5403, 0
    %v5447 = vsel %vm303, %v5404, 0
    %5449 = vmatprep.subr.bf16.mxu0 0
    %5450 = vmatpush1.bf16.msra.mxu0 0
    %5451 = vmatprep.subr.bf16.mxu0 0
    %5452 = vmatpush1.bf16.msra.mxu0 0
    %5453 = vmatprep.subr.bf16.mxu0 0
    %5454 = vmatpush1.bf16.msra.mxu0 0
    %5455 = vmatprep.subr.bf16.mxu0 0
    %5456 = vmatpush1.bf16.msra.mxu0 0
    %5457 = vmatprep.subr.bf16.mxu0 0
    %5458 = vmatpush1.bf16.msra.mxu0 %v5438
    %5459 = vmatprep.subr.bf16.mxu0 0
    %5460 = vmatpush1.bf16.msra.mxu0 %v5437
    %5461 = vmatprep.subr.bf16.mxu0 0
    %5462 = vmatpush1.bf16.msra.mxu0 %v5436
    %5463 = vmatprep.subr.bf16.mxu0 0
    %5464 = vmatpush1.bf16.msra.mxu0 %v5435
    %5465 = vmatprep.subr.bf16.mxu0 0
    %5466 = vmatpush2.bf16.msra.mxu0 0
    %5467 = vmatprep.subr.bf16.mxu0 0
    %5468 = vmatpush2.bf16.msra.mxu0 0
    %5469 = vmatprep.subr.bf16.mxu0 0
    %5470 = vmatpush2.bf16.msra.mxu0 0
    %5471 = vmatprep.subr.bf16.mxu0 0
    %5472 = vmatpush2.bf16.msra.mxu0 0
    %5473 = vmatprep.subr.bf16.mxu0 0
    %5474 = vmatpush2.bf16.msra.mxu0 0
    %5475 = vmatprep.subr.bf16.mxu0 0
    %5476 = vmatpush2.bf16.msra.mxu0 0
    %5477 = vmatprep.subr.bf16.mxu0 0
    %5478 = vmatpush2.bf16.msra.mxu0 0
    %5479 = vmatprep.subr.bf16.mxu0 0
    %5480 = vmatpush2.bf16.msra.mxu0 0
    %5481 = vmatprep.mubr.bf16.mxu0 0
    %5482 = vmatmul.mubr.bf16.gmra.mxu0 %v5444
    %v5483 = vpop.f32.mrf.mxu0
    %v5484 = vadd.f32 %v5418, %v5483
    %v5485 = vpop.f32.mrf.mxu0
    %v5486 = vpop.f32.mrf.mxu0
    %v5487 = vadd.f32 %v5418, %v5486
    %v5488 = vpop.f32.mrf.mxu0
    %5489 = vmatprep.mubr.bf16.mxu0 0
    %5490 = vmatmul.mubr.bf16.gmra.mxu0 %v5447
    %v5491 = vpop.f32.mrf.mxu0
    %v5492 = vadd.f32 %v5418, %v5491
    %v5493 = vpop.f32.mrf.mxu0
    %v5494 = vpop.f32.mrf.mxu0
    %v5495 = vpop.f32.mrf.mxu0
    %5496 = vdwg.mxu0
    %v5497 = vmul.f32 %v5484, 0.25
    %v5498 = vmul.f32 %v5487, 0.25
    %v5499 = vmul.f32 %v5492, 0.25
    %v5500 = vpack.c.bf16 %v5498, %v5497
    %v5501 = vpack.c.bf16 %v5499, %v5499
    %v5502 = vld [vmem:[%s6 + $0x418] sm:$0xf]
    %v5503 = vld [vmem:[%s6 + $0x41c] sm:$0xf]
    %v5504 = vld [vmem:[%s6 + $0x420] sm:$0xf]
    %v5505 = vld [vmem:[%s6 + $0x424] sm:$0xf]
    %v5506 = vld [vmem:[%s6 + $0x428] sm:$0xf]
    %v5507 = vld [vmem:[%s6 + $0x42c] sm:$0xf]
    %v5508 = vld [vmem:[%s6 + $0x430] sm:$0xf]
    %v5509 = vld [vmem:[%s6 + $0x434] sm:$0xf]
    %v5510 = vlaneseq
    %v5511 = vshrl.u32 %v5510, 7
    %v5512 = vsub.s32 3, %v5511
    %v5513 = vrot.slane %v5414, %v5512
    %v5522 = vunpack.c.l.b16 %v5502
    %v5523 = vunpack.c.l.b16 %v5503
    %v5524 = vunpack.c.l.b16 %v5504
    %v5525 = vunpack.c.l.b16 %v5505
    %v5526 = vunpack.c.l.b16 %v5506
    %v5527 = vunpack.c.l.b16 %v5507
    %v5528 = vunpack.c.l.b16 %v5508
    %v5529 = vunpack.c.l.b16 %v5509
    %v5530 = vpack.c.b16 %v5523, %v5522
    %v5531 = vpack.c.b16 %v5525, %v5524
    %v5532 = vpack.c.b16 %v5527, %v5526
    %v5533 = vpack.c.b16 %v5529, %v5528
    %v5539 = vsel %vm303, %v846, 0
    %5541 = vmatprep.subr.bf16.mxu0 0
    %5542 = vmatpush1.bf16.msra.mxu0 0
    %5543 = vmatprep.subr.bf16.mxu0 0
    %5544 = vmatpush1.bf16.msra.mxu0 0
    %5545 = vmatprep.subr.bf16.mxu0 0
    %5546 = vmatpush1.bf16.msra.mxu0 0
    %5547 = vmatprep.subr.bf16.mxu0 0
    %5548 = vmatpush1.bf16.msra.mxu0 0
    %5549 = vmatprep.subr.bf16.mxu0 0
    %5550 = vmatpush1.bf16.msra.mxu0 %v5533
    %5551 = vmatprep.subr.bf16.mxu0 0
    %5552 = vmatpush1.bf16.msra.mxu0 %v5532
    %5553 = vmatprep.subr.bf16.mxu0 0
    %5554 = vmatpush1.bf16.msra.mxu0 %v5531
    %5555 = vmatprep.subr.bf16.mxu0 0
    %5556 = vmatpush1.bf16.msra.mxu0 %v5530
    %5557 = vmatprep.subr.bf16.mxu0 0
    %5558 = vmatpush2.bf16.msra.mxu0 0
    %5559 = vmatprep.subr.bf16.mxu0 0
    %5560 = vmatpush2.bf16.msra.mxu0 0
    %5561 = vmatprep.subr.bf16.mxu0 0
    %5562 = vmatpush2.bf16.msra.mxu0 0
    %5563 = vmatprep.subr.bf16.mxu0 0
    %5564 = vmatpush2.bf16.msra.mxu0 0
    %5565 = vmatprep.subr.bf16.mxu0 0
    %5566 = vmatpush2.bf16.msra.mxu0 0
    %5567 = vmatprep.subr.bf16.mxu0 0
    %5568 = vmatpush2.bf16.msra.mxu0 0
    %5569 = vmatprep.subr.bf16.mxu0 0
    %5570 = vmatpush2.bf16.msra.mxu0 0
    %5571 = vmatprep.subr.bf16.mxu0 0
    %5572 = vmatpush2.bf16.msra.mxu0 0
    %5573 = vmatprep.mubr.bf16.mxu0 0
    %5574 = vmatmul.mubr.bf16.gmra.mxu0 %v5539
    %v5575 = vpop.f32.mrf.mxu0
    %v5576 = vadd.f32 %v5513, %v5575
    %v5577 = vpop.f32.mrf.mxu0
    %v5578 = vpop.f32.mrf.mxu0
    %v5579 = vadd.f32 %v5513, %v5578
    %v5580 = vpop.f32.mrf.mxu0
    %5581 = vdwg.mxu0
    %v5582 = vpack.c.bf16 %v5579, %v5576
    %v5583 = vld [vmem:[%s6 + $0x438] sm:$0xf]
    %v5584 = vld [vmem:[%s6 + $0x43c] sm:$0xf]
    %v5585 = vld [vmem:[%s6 + $0x440] sm:$0xf]
    %v5586 = vld [vmem:[%s6 + $0x444] sm:$0xf]
    %v5587 = vld [vmem:[%s6 + $0x448] sm:$0xf]
    %v5588 = vld [vmem:[%s6 + $0x44c] sm:$0xf]
    %v5589 = vld [vmem:[%s6 + $0x450] sm:$0xf]
    %v5590 = vld [vmem:[%s6 + $0x454] sm:$0xf]
    %v5591 = vld [vmem:[%s6 + $0x558] sm:$0x4]
    %v5592 = vunpack.c.l.bf16 %v5591
    %v5593 = vlaneseq
    %v5594 = vshrl.u32 %v5593, 7
    %v5595 = vsub.s32 4, %v5594
    %v5596 = vrot.slane %v5592, %v5595
    %v5605 = vunpack.c.l.b16 %v5583
    %v5606 = vunpack.c.l.b16 %v5584
    %v5607 = vunpack.c.l.b16 %v5585
    %v5608 = vunpack.c.l.b16 %v5586
    %v5609 = vunpack.c.l.b16 %v5587
    %v5610 = vunpack.c.l.b16 %v5588
    %v5611 = vunpack.c.l.b16 %v5589
    %v5612 = vunpack.c.l.b16 %v5590
    %v5613 = vpack.c.b16 %v5606, %v5605
    %v5614 = vpack.c.b16 %v5608, %v5607
    %v5615 = vpack.c.b16 %v5610, %v5609
    %v5616 = vpack.c.b16 %v5612, %v5611
    %5621 = vmatprep.subr.bf16.mxu0 0
    %5622 = vmatpush1.bf16.msra.mxu0 0
    %5623 = vmatprep.subr.bf16.mxu0 0
    %5624 = vmatpush1.bf16.msra.mxu0 0
    %5625 = vmatprep.subr.bf16.mxu0 0
    %5626 = vmatpush1.bf16.msra.mxu0 0
    %5627 = vmatprep.subr.bf16.mxu0 0
    %5628 = vmatpush1.bf16.msra.mxu0 0
    %5629 = vmatprep.subr.bf16.mxu0 0
    %5630 = vmatpush1.bf16.msra.mxu0 %v5616
    %5631 = vmatprep.subr.bf16.mxu0 0
    %5632 = vmatpush1.bf16.msra.mxu0 %v5615
    %5633 = vmatprep.subr.bf16.mxu0 0
    %5634 = vmatpush1.bf16.msra.mxu0 %v5614
    %5635 = vmatprep.subr.bf16.mxu0 0
    %5636 = vmatpush1.bf16.msra.mxu0 %v5613
    %5637 = vmatprep.subr.bf16.mxu0 0
    %5638 = vmatpush2.bf16.msra.mxu0 0
    %5639 = vmatprep.subr.bf16.mxu0 0
    %5640 = vmatpush2.bf16.msra.mxu0 0
    %5641 = vmatprep.subr.bf16.mxu0 0
    %5642 = vmatpush2.bf16.msra.mxu0 0
    %5643 = vmatprep.subr.bf16.mxu0 0
    %5644 = vmatpush2.bf16.msra.mxu0 0
    %5645 = vmatprep.subr.bf16.mxu0 0
    %5646 = vmatpush2.bf16.msra.mxu0 0
    %5647 = vmatprep.subr.bf16.mxu0 0
    %5648 = vmatpush2.bf16.msra.mxu0 0
    %5649 = vmatprep.subr.bf16.mxu0 0
    %5650 = vmatpush2.bf16.msra.mxu0 0
    %5651 = vmatprep.subr.bf16.mxu0 0
    %5652 = vmatpush2.bf16.msra.mxu0 0
    %5653 = vmatprep.mubr.bf16.mxu0 0
    %5654 = vmatmul.mubr.bf16.gmra.mxu0 %v5539
    %v5655 = vpop.f32.mrf.mxu0
    %v5656 = vadd.f32 %v5596, %v5655
    %v5657 = vpop.f32.mrf.mxu0
    %v5658 = vpop.f32.mrf.mxu0
    %v5659 = vadd.f32 %v5596, %v5658
    %v5660 = vpop.f32.mrf.mxu0
    %5661 = vdwg.mxu0
    %v5662 = vpack.c.bf16 %v5659, %v5656
    %v5664 = vsel %vm114, %v5500, 0
    %v5667 = vsel %vm114, %v5501, 0
    %v5670 = vsel %vm114, %v5582, 0
    %5672 = vmatprep.subr.bf16.mxu0 0
    %5673 = vmatpush1.bf16.xpose.msra.mxu0 0
    %5674 = vmatprep.subr.bf16.mxu0 0
    %5675 = vmatpush1.bf16.xpose.msra.mxu0 0
    %5676 = vmatprep.subr.bf16.mxu0 0
    %5677 = vmatpush1.bf16.xpose.msra.mxu0 0
    %5678 = vmatprep.subr.bf16.mxu0 0
    %5679 = vmatpush1.bf16.xpose.msra.mxu0 0
    %5680 = vmatprep.subr.bf16.mxu0 0
    %5681 = vmatpush1.bf16.xpose.msra.mxu0 0
    %5682 = vmatprep.subr.bf16.mxu0 0
    %5683 = vmatpush1.bf16.xpose.msra.mxu0 0
    %5684 = vmatprep.subr.bf16.mxu0 0
    %5685 = vmatpush1.bf16.xpose.msra.mxu0 0
    %5686 = vmatprep.subr.bf16.mxu0 0
    %5687 = vmatpush1.bf16.xpose.msra.mxu0 %v5670
    %5688 = vmatprep.subr.bf16.mxu0 0
    %5689 = vmatpush2.bf16.xpose.msra.mxu0 0
    %5690 = vmatprep.subr.bf16.mxu0 0
    %5691 = vmatpush2.bf16.xpose.msra.mxu0 0
    %5692 = vmatprep.subr.bf16.mxu0 0
    %5693 = vmatpush2.bf16.xpose.msra.mxu0 0
    %5694 = vmatprep.subr.bf16.mxu0 0
    %5695 = vmatpush2.bf16.xpose.msra.mxu0 0
    %5696 = vmatprep.subr.bf16.mxu0 0
    %5697 = vmatpush2.bf16.xpose.msra.mxu0 0
    %5698 = vmatprep.subr.bf16.mxu0 0
    %5699 = vmatpush2.bf16.xpose.msra.mxu0 0
    %5700 = vmatprep.subr.bf16.mxu0 0
    %5701 = vmatpush2.bf16.xpose.msra.mxu0 0
    %5702 = vmatprep.subr.bf16.mxu0 0
    %5703 = vmatpush2.bf16.xpose.msra.mxu0 0
    %5704 = vmatprep.mubr.bf16.mxu0 0
    %5705 = vmatmul.mubr.bf16.gmra.mxu0 %v5664
    %v5706 = vpop.f32.mrf.mxu0
    %v5707 = vadd.f32 0.0, %v5706
    %v5708 = vpop.f32.mrf.mxu0
    %v5709 = vpop.f32.mrf.mxu0
    %v5710 = vadd.f32 0.0, %v5709
    %v5711 = vpop.f32.mrf.mxu0
    %5712 = vmatprep.mubr.bf16.mxu0 0
    %5713 = vmatmul.mubr.bf16.gmra.mxu0 %v5667
    %v5714 = vpop.f32.mrf.mxu0
    %v5715 = vadd.f32 0.0, %v5714
    %v5716 = vpop.f32.mrf.mxu0
    %v5717 = vpop.f32.mrf.mxu0
    %v5718 = vpop.f32.mrf.mxu0
    %5719 = vdwg.mxu0
    %5722 = vrot.lane.b32.xlu0 %v5500, 112
    %v5723 = vpop.permute.xlu0 %5722
    %5724 = vrot.lane.b32.xlu0 %v5501, 112
    %v5725 = vpop.permute.xlu0 %5724
    %5727 = vrot.lane.b32.xlu0 %v5582, 112
    %v5728 = vpop.permute.xlu0 %5727
    %v5730 = vsel %vm114, %v5723, 0
    %v5733 = vsel %vm114, %v5725, 0
    %v5736 = vsel %vm114, %v5728, 0
    %5738 = vmatprep.subr.bf16.mxu0 0
    %5739 = vmatpush1.bf16.xpose.msra.mxu0 0
    %5740 = vmatprep.subr.bf16.mxu0 0
    %5741 = vmatpush1.bf16.xpose.msra.mxu0 0
    %5742 = vmatprep.subr.bf16.mxu0 0
    %5743 = vmatpush1.bf16.xpose.msra.mxu0 0
    %5744 = vmatprep.subr.bf16.mxu0 0
    %5745 = vmatpush1.bf16.xpose.msra.mxu0 0
    %5746 = vmatprep.subr.bf16.mxu0 0
    %5747 = vmatpush1.bf16.xpose.msra.mxu0 0
    %5748 = vmatprep.subr.bf16.mxu0 0
    %5749 = vmatpush1.bf16.xpose.msra.mxu0 0
    %5750 = vmatprep.subr.bf16.mxu0 0
    %5751 = vmatpush1.bf16.xpose.msra.mxu0 0
    %5752 = vmatprep.subr.bf16.mxu0 0
    %5753 = vmatpush1.bf16.xpose.msra.mxu0 %v5736
    %5754 = vmatprep.subr.bf16.mxu0 0
    %5755 = vmatpush2.bf16.xpose.msra.mxu0 0
    %5756 = vmatprep.subr.bf16.mxu0 0
    %5757 = vmatpush2.bf16.xpose.msra.mxu0 0
    %5758 = vmatprep.subr.bf16.mxu0 0
    %5759 = vmatpush2.bf16.xpose.msra.mxu0 0
    %5760 = vmatprep.subr.bf16.mxu0 0
    %5761 = vmatpush2.bf16.xpose.msra.mxu0 0
    %5762 = vmatprep.subr.bf16.mxu0 0
    %5763 = vmatpush2.bf16.xpose.msra.mxu0 0
    %5764 = vmatprep.subr.bf16.mxu0 0
    %5765 = vmatpush2.bf16.xpose.msra.mxu0 0
    %5766 = vmatprep.subr.bf16.mxu0 0
    %5767 = vmatpush2.bf16.xpose.msra.mxu0 0
    %5768 = vmatprep.subr.bf16.mxu0 0
    %5769 = vmatpush2.bf16.xpose.msra.mxu0 0
    %5770 = vmatprep.mubr.bf16.mxu0 0
    %5771 = vmatmul.mubr.bf16.gmra.mxu0 %v5730
    %v5772 = vpop.f32.mrf.mxu0
    %v5773 = vadd.f32 0.0, %v5772
    %v5774 = vpop.f32.mrf.mxu0
    %v5775 = vpop.f32.mrf.mxu0
    %v5776 = vadd.f32 0.0, %v5775
    %v5777 = vpop.f32.mrf.mxu0
    %5778 = vmatprep.mubr.bf16.mxu0 0
    %5779 = vmatmul.mubr.bf16.gmra.mxu0 %v5733
    %v5780 = vpop.f32.mrf.mxu0
    %v5781 = vadd.f32 0.0, %v5780
    %v5782 = vpop.f32.mrf.mxu0
    %v5783 = vpop.f32.mrf.mxu0
    %v5784 = vpop.f32.mrf.mxu0
    %5785 = vdwg.mxu0
    %5786 = vrot.lane.b32.xlu0 %v5500, 96
    %v5787 = vpop.permute.xlu0 %5786
    %5788 = vrot.lane.b32.xlu0 %v5501, 96
    %v5789 = vpop.permute.xlu0 %5788
    %5790 = vrot.lane.b32.xlu0 %v5582, 96
    %v5791 = vpop.permute.xlu0 %5790
    %v5793 = vsel %vm114, %v5787, 0
    %v5796 = vsel %vm114, %v5789, 0
    %v5799 = vsel %vm114, %v5791, 0
    %5801 = vmatprep.subr.bf16.mxu0 0
    %5802 = vmatpush1.bf16.xpose.msra.mxu0 0
    %5803 = vmatprep.subr.bf16.mxu0 0
    %5804 = vmatpush1.bf16.xpose.msra.mxu0 0
    %5805 = vmatprep.subr.bf16.mxu0 0
    %5806 = vmatpush1.bf16.xpose.msra.mxu0 0
    %5807 = vmatprep.subr.bf16.mxu0 0
    %5808 = vmatpush1.bf16.xpose.msra.mxu0 0
    %5809 = vmatprep.subr.bf16.mxu0 0
    %5810 = vmatpush1.bf16.xpose.msra.mxu0 0
    %5811 = vmatprep.subr.bf16.mxu0 0
    %5812 = vmatpush1.bf16.xpose.msra.mxu0 0
    %5813 = vmatprep.subr.bf16.mxu0 0
    %5814 = vmatpush1.bf16.xpose.msra.mxu0 0
    %5815 = vmatprep.subr.bf16.mxu0 0
    %5816 = vmatpush1.bf16.xpose.msra.mxu0 %v5799
    %5817 = vmatprep.subr.bf16.mxu0 0
    %5818 = vmatpush2.bf16.xpose.msra.mxu0 0
    %5819 = vmatprep.subr.bf16.mxu0 0
    %5820 = vmatpush2.bf16.xpose.msra.mxu0 0
    %5821 = vmatprep.subr.bf16.mxu0 0
    %5822 = vmatpush2.bf16.xpose.msra.mxu0 0
    %5823 = vmatprep.subr.bf16.mxu0 0
    %5824 = vmatpush2.bf16.xpose.msra.mxu0 0
    %5825 = vmatprep.subr.bf16.mxu0 0
    %5826 = vmatpush2.bf16.xpose.msra.mxu0 0
    %5827 = vmatprep.subr.bf16.mxu0 0
    %5828 = vmatpush2.bf16.xpose.msra.mxu0 0
    %5829 = vmatprep.subr.bf16.mxu0 0
    %5830 = vmatpush2.bf16.xpose.msra.mxu0 0
    %5831 = vmatprep.subr.bf16.mxu0 0
    %5832 = vmatpush2.bf16.xpose.msra.mxu0 0
    %5833 = vmatprep.mubr.bf16.mxu0 0
    %5834 = vmatmul.mubr.bf16.gmra.mxu0 %v5793
    %v5835 = vpop.f32.mrf.mxu0
    %v5836 = vadd.f32 0.0, %v5835
    %v5837 = vpop.f32.mrf.mxu0
    %v5838 = vpop.f32.mrf.mxu0
    %v5839 = vadd.f32 0.0, %v5838
    %v5840 = vpop.f32.mrf.mxu0
    %5841 = vmatprep.mubr.bf16.mxu0 0
    %5842 = vmatmul.mubr.bf16.gmra.mxu0 %v5796
    %v5843 = vpop.f32.mrf.mxu0
    %v5844 = vadd.f32 0.0, %v5843
    %v5845 = vpop.f32.mrf.mxu0
    %v5846 = vpop.f32.mrf.mxu0
    %v5847 = vpop.f32.mrf.mxu0
    %5848 = vdwg.mxu0
    %5849 = vrot.lane.b32.xlu0 %v5500, 80
    %v5850 = vpop.permute.xlu0 %5849
    %5851 = vrot.lane.b32.xlu0 %v5501, 80
    %v5852 = vpop.permute.xlu0 %5851
    %5853 = vrot.lane.b32.xlu0 %v5582, 80
    %v5854 = vpop.permute.xlu0 %5853
    %v5856 = vsel %vm114, %v5850, 0
    %v5859 = vsel %vm114, %v5852, 0
    %v5862 = vsel %vm114, %v5854, 0
    %5864 = vmatprep.subr.bf16.mxu0 0
    %5865 = vmatpush1.bf16.xpose.msra.mxu0 0
    %5866 = vmatprep.subr.bf16.mxu0 0
    %5867 = vmatpush1.bf16.xpose.msra.mxu0 0
    %5868 = vmatprep.subr.bf16.mxu0 0
    %5869 = vmatpush1.bf16.xpose.msra.mxu0 0
    %5870 = vmatprep.subr.bf16.mxu0 0
    %5871 = vmatpush1.bf16.xpose.msra.mxu0 0
    %5872 = vmatprep.subr.bf16.mxu0 0
    %5873 = vmatpush1.bf16.xpose.msra.mxu0 0
    %5874 = vmatprep.subr.bf16.mxu0 0
    %5875 = vmatpush1.bf16.xpose.msra.mxu0 0
    %5876 = vmatprep.subr.bf16.mxu0 0
    %5877 = vmatpush1.bf16.xpose.msra.mxu0 0
    %5878 = vmatprep.subr.bf16.mxu0 0
    %5879 = vmatpush1.bf16.xpose.msra.mxu0 %v5862
    %5880 = vmatprep.subr.bf16.mxu0 0
    %5881 = vmatpush2.bf16.xpose.msra.mxu0 0
    %5882 = vmatprep.subr.bf16.mxu0 0
    %5883 = vmatpush2.bf16.xpose.msra.mxu0 0
    %5884 = vmatprep.subr.bf16.mxu0 0
    %5885 = vmatpush2.bf16.xpose.msra.mxu0 0
    %5886 = vmatprep.subr.bf16.mxu0 0
    %5887 = vmatpush2.bf16.xpose.msra.mxu0 0
    %5888 = vmatprep.subr.bf16.mxu0 0
    %5889 = vmatpush2.bf16.xpose.msra.mxu0 0
    %5890 = vmatprep.subr.bf16.mxu0 0
    %5891 = vmatpush2.bf16.xpose.msra.mxu0 0
    %5892 = vmatprep.subr.bf16.mxu0 0
    %5893 = vmatpush2.bf16.xpose.msra.mxu0 0
    %5894 = vmatprep.subr.bf16.mxu0 0
    %5895 = vmatpush2.bf16.xpose.msra.mxu0 0
    %5896 = vmatprep.mubr.bf16.mxu0 0
    %5897 = vmatmul.mubr.bf16.gmra.mxu0 %v5856
    %v5898 = vpop.f32.mrf.mxu0
    %v5899 = vadd.f32 0.0, %v5898
    %v5900 = vpop.f32.mrf.mxu0
    %v5901 = vpop.f32.mrf.mxu0
    %v5902 = vadd.f32 0.0, %v5901
    %v5903 = vpop.f32.mrf.mxu0
    %5904 = vmatprep.mubr.bf16.mxu0 0
    %5905 = vmatmul.mubr.bf16.gmra.mxu0 %v5859
    %v5906 = vpop.f32.mrf.mxu0
    %v5907 = vadd.f32 0.0, %v5906
    %v5908 = vpop.f32.mrf.mxu0
    %v5909 = vpop.f32.mrf.mxu0
    %v5910 = vpop.f32.mrf.mxu0
    %5911 = vdwg.mxu0
    %5912 = vrot.lane.b32.xlu0 %v1565, 90
    %v5913 = vpop.permute.xlu0 %5912
    %5914 = vrot.lane.b32.xlu0 %v1566, 90
    %v5915 = vpop.permute.xlu0 %5914
    %5916 = vrot.lane.b32.xlu0 %v1567, 90
    %v5917 = vpop.permute.xlu0 %5916
    %v5921 = vadd.f32 %v5707, %v5913
    %v5922 = vadd.f32 %v5710, %v5915
    %v5923 = vadd.f32 %v5715, %v5917
    %v5924 = vadd.f32 %v5773, %v5913
    %v5925 = vadd.f32 %v5776, %v5915
    %v5926 = vadd.f32 %v5781, %v5917
    %v5927 = vadd.f32 %v5836, %v5913
    %v5928 = vadd.f32 %v5839, %v5915
    %v5929 = vadd.f32 %v5844, %v5917
    %v5930 = vadd.f32 %v5899, %v5913
    %v5931 = vadd.f32 %v5902, %v5915
    %v5932 = vadd.f32 %v5907, %v5917
    %v5933 = vsel %vm114, %v5921, -inf
    %5934 = vmax.xlane.f32.xlu0 %v5933
    %v5935 = vpop.xlane.xlu0 %5934
    %v5936 = vsel %vm114, %v5922, -inf
    %5937 = vmax.xlane.f32.xlu0 %v5936
    %v5938 = vpop.xlane.xlu0 %5937
    %v5939 = vsel %vm3298, %v5923, -inf
    %5940 = vmax.xlane.f32.xlu0 %v5939
    %v5941 = vpop.xlane.xlu0 %5940
    %v5942 = vsel %vm114, %v5924, -inf
    %5943 = vmax.xlane.f32.xlu0 %v5942
    %v5944 = vpop.xlane.xlu0 %5943
    %v5945 = vsel %vm114, %v5925, -inf
    %5946 = vmax.xlane.f32.xlu0 %v5945
    %v5947 = vpop.xlane.xlu0 %5946
    %v5948 = vsel %vm3298, %v5926, -inf
    %5949 = vmax.xlane.f32.xlu0 %v5948
    %v5950 = vpop.xlane.xlu0 %5949
    %v5951 = vsel %vm114, %v5927, -inf
    %5952 = vmax.xlane.f32.xlu0 %v5951
    %v5953 = vpop.xlane.xlu0 %5952
    %v5954 = vsel %vm114, %v5928, -inf
    %5955 = vmax.xlane.f32.xlu0 %v5954
    %v5956 = vpop.xlane.xlu0 %5955
    %v5957 = vsel %vm3298, %v5929, -inf
    %5958 = vmax.xlane.f32.xlu0 %v5957
    %v5959 = vpop.xlane.xlu0 %5958
    %v5960 = vsel %vm114, %v5930, -inf
    %5961 = vmax.xlane.f32.xlu0 %v5960
    %v5962 = vpop.xlane.xlu0 %5961
    %v5963 = vsel %vm114, %v5931, -inf
    %5964 = vmax.xlane.f32.xlu0 %v5963
    %v5965 = vpop.xlane.xlu0 %5964
    %v5966 = vsel %vm3298, %v5932, -inf
    %5967 = vmax.xlane.f32.xlu0 %v5966
    %v5968 = vpop.xlane.xlu0 %5967
    %v5969 = vsub.f32 %v5921, %v5935
    %v5970 = vsub.f32 %v5922, %v5938
    %v5971 = vsub.f32 %v5923, %v5941
    %v5972 = vsub.f32 %v5924, %v5944
    %v5973 = vsub.f32 %v5925, %v5947
    %v5974 = vsub.f32 %v5926, %v5950
    %v5975 = vsub.f32 %v5927, %v5953
    %v5976 = vsub.f32 %v5928, %v5956
    %v5977 = vsub.f32 %v5929, %v5959
    %v5978 = vsub.f32 %v5930, %v5962
    %v5979 = vsub.f32 %v5931, %v5965
    %v5980 = vsub.f32 %v5932, %v5968
    %v5981 = vmul.f32 %v5969, 1.442695
    %v5982 = vpow.pop %v5981
    %v5983 = vmul.f32 %v5970, 1.442695
    %v5984 = vpow.pop %v5983
    %v5985 = vmul.f32 %v5971, 1.442695
    %v5986 = vpow.pop %v5985
    %v5987 = vmul.f32 %v5972, 1.442695
    %v5988 = vpow.pop %v5987
    %v5989 = vmul.f32 %v5973, 1.442695
    %v5990 = vpow.pop %v5989
    %v5991 = vmul.f32 %v5974, 1.442695
    %v5992 = vpow.pop %v5991
    %v5993 = vmul.f32 %v5975, 1.442695
    %v5994 = vpow.pop %v5993
    %v5995 = vmul.f32 %v5976, 1.442695
    %v5996 = vpow.pop %v5995
    %v5997 = vmul.f32 %v5977, 1.442695
    %v5998 = vpow.pop %v5997
    %v5999 = vmul.f32 %v5978, 1.442695
    %v6000 = vpow.pop %v5999
    %v6001 = vmul.f32 %v5979, 1.442695
    %v6002 = vpow.pop %v6001
    %v6003 = vmul.f32 %v5980, 1.442695
    %v6004 = vpow.pop %v6003
    %v6005 = vsel %vm114, %v5982, 0.0
    %6006 = vadd.xlane.f32.xlu0 %v6005
    %v6007 = vpop.xlane.xlu0 %6006
    %v6008 = vsel %vm114, %v5984, 0.0
    %6009 = vadd.xlane.f32.xlu0 %v6008
    %v6010 = vpop.xlane.xlu0 %6009
    %v6011 = vsel %vm3298, %v5986, 0.0
    %6012 = vadd.xlane.f32.xlu0 %v6011
    %v6013 = vpop.xlane.xlu0 %6012
    %v6014 = vsel %vm114, %v5988, 0.0
    %6015 = vadd.xlane.f32.xlu0 %v6014
    %v6016 = vpop.xlane.xlu0 %6015
    %v6017 = vsel %vm114, %v5990, 0.0
    %6018 = vadd.xlane.f32.xlu0 %v6017
    %v6019 = vpop.xlane.xlu0 %6018
    %v6020 = vsel %vm3298, %v5992, 0.0
    %6021 = vadd.xlane.f32.xlu0 %v6020
    %v6022 = vpop.xlane.xlu0 %6021
    %v6023 = vsel %vm114, %v5994, 0.0
    %6024 = vadd.xlane.f32.xlu0 %v6023
    %v6025 = vpop.xlane.xlu0 %6024
    %v6026 = vsel %vm114, %v5996, 0.0
    %6027 = vadd.xlane.f32.xlu0 %v6026
    %v6028 = vpop.xlane.xlu0 %6027
    %v6029 = vsel %vm3298, %v5998, 0.0
    %6030 = vadd.xlane.f32.xlu0 %v6029
    %v6031 = vpop.xlane.xlu0 %6030
    %v6032 = vsel %vm114, %v6000, 0.0
    %6033 = vadd.xlane.f32.xlu0 %v6032
    %v6034 = vpop.xlane.xlu0 %6033
    %v6035 = vsel %vm114, %v6002, 0.0
    %6036 = vadd.xlane.f32.xlu0 %v6035
    %v6037 = vpop.xlane.xlu0 %6036
    %v6038 = vsel %vm3298, %v6004, 0.0
    %6039 = vadd.xlane.f32.xlu0 %v6038
    %v6040 = vpop.xlane.xlu0 %6039
    %v6041 = vrcp.pop %v6007
    %v6042 = vrcp.pop %v6010
    %v6043 = vrcp.pop %v6013
    %v6044 = vrcp.pop %v6016
    %v6045 = vrcp.pop %v6019
    %v6046 = vrcp.pop %v6022
    %v6047 = vrcp.pop %v6025
    %v6048 = vrcp.pop %v6028
    %v6049 = vrcp.pop %v6031
    %v6050 = vrcp.pop %v6034
    %v6051 = vrcp.pop %v6037
    %v6052 = vrcp.pop %v6040
    %v6053 = vmul.f32 %v5982, %v6041
    %v6054 = vmul.f32 %v5984, %v6042
    %v6055 = vmul.f32 %v5986, %v6043
    %v6056 = vmul.f32 %v5988, %v6044
    %v6057 = vmul.f32 %v5990, %v6045
    %v6058 = vmul.f32 %v5992, %v6046
    %v6059 = vmul.f32 %v5994, %v6047
    %v6060 = vmul.f32 %v5996, %v6048
    %v6061 = vmul.f32 %v5998, %v6049
    %v6062 = vmul.f32 %v6000, %v6050
    %v6063 = vmul.f32 %v6002, %v6051
    %v6064 = vmul.f32 %v6004, %v6052
    %v6065 = vpack.c.bf16 %v6054, %v6053
    %v6066 = vpack.c.bf16 %v6055, %v6055
    %v6067 = vpack.c.bf16 %v6057, %v6056
    %v6068 = vpack.c.bf16 %v6058, %v6058
    %v6069 = vpack.c.bf16 %v6060, %v6059
    %v6070 = vpack.c.bf16 %v6061, %v6061
    %v6071 = vpack.c.bf16 %v6063, %v6062
    %v6072 = vpack.c.bf16 %v6064, %v6064
    %v6074 = vsel %vm114, %v6065, 0
    %v6077 = vsel %vm114, %v6066, 0
    %6079 = vmatprep.subr.bf16.mxu0 0
    %6080 = vmatpush1.bf16.msra.mxu0 0
    %6081 = vmatprep.subr.bf16.mxu0 0
    %6082 = vmatpush1.bf16.msra.mxu0 0
    %6083 = vmatprep.subr.bf16.mxu0 0
    %6084 = vmatpush1.bf16.msra.mxu0 0
    %6085 = vmatprep.subr.bf16.mxu0 0
    %6086 = vmatpush1.bf16.msra.mxu0 0
    %6087 = vmatprep.subr.bf16.mxu0 0
    %6088 = vmatpush1.bf16.msra.mxu0 0
    %6089 = vmatprep.subr.bf16.mxu0 0
    %6090 = vmatpush1.bf16.msra.mxu0 0
    %6091 = vmatprep.subr.bf16.mxu0 0
    %6092 = vmatpush1.bf16.msra.mxu0 0
    %6093 = vmatprep.subr.bf16.mxu0 0
    %6094 = vmatpush1.bf16.msra.mxu0 %v5662
    %6095 = vmatprep.subr.bf16.mxu0 0
    %6096 = vmatpush2.bf16.msra.mxu0 0
    %6097 = vmatprep.subr.bf16.mxu0 0
    %6098 = vmatpush2.bf16.msra.mxu0 0
    %6099 = vmatprep.subr.bf16.mxu0 0
    %6100 = vmatpush2.bf16.msra.mxu0 0
    %6101 = vmatprep.subr.bf16.mxu0 0
    %6102 = vmatpush2.bf16.msra.mxu0 0
    %6103 = vmatprep.subr.bf16.mxu0 0
    %6104 = vmatpush2.bf16.msra.mxu0 0
    %6105 = vmatprep.subr.bf16.mxu0 0
    %6106 = vmatpush2.bf16.msra.mxu0 0
    %6107 = vmatprep.subr.bf16.mxu0 0
    %6108 = vmatpush2.bf16.msra.mxu0 0
    %6109 = vmatprep.subr.bf16.mxu0 0
    %6110 = vmatpush2.bf16.msra.mxu0 0
    %6111 = vmatprep.mubr.bf16.mxu0 0
    %6112 = vmatmul.mubr.bf16.gmra.mxu0 %v6074
    %v6113 = vpop.f32.mrf.mxu0
    %v6114 = vadd.f32 0.0, %v6113
    %v6115 = vpop.f32.mrf.mxu0
    %v6116 = vpop.f32.mrf.mxu0
    %v6117 = vadd.f32 0.0, %v6116
    %v6118 = vpop.f32.mrf.mxu0
    %6119 = vmatprep.mubr.bf16.mxu0 0
    %6120 = vmatmul.mubr.bf16.gmra.mxu0 %v6077
    %v6121 = vpop.f32.mrf.mxu0
    %v6122 = vadd.f32 0.0, %v6121
    %v6123 = vpop.f32.mrf.mxu0
    %v6124 = vpop.f32.mrf.mxu0
    %v6125 = vpop.f32.mrf.mxu0
    %6126 = vdwg.mxu0
    %6128 = vrot.lane.b32.xlu0 %v5662, 112
    %v6129 = vpop.permute.xlu0 %6128
    %v6132 = vsel %vm114, %v6067, 0
    %v6135 = vsel %vm114, %v6068, 0
    %6137 = vmatprep.subr.bf16.mxu0 0
    %6138 = vmatpush1.bf16.msra.mxu0 0
    %6139 = vmatprep.subr.bf16.mxu0 0
    %6140 = vmatpush1.bf16.msra.mxu0 0
    %6141 = vmatprep.subr.bf16.mxu0 0
    %6142 = vmatpush1.bf16.msra.mxu0 0
    %6143 = vmatprep.subr.bf16.mxu0 0
    %6144 = vmatpush1.bf16.msra.mxu0 0
    %6145 = vmatprep.subr.bf16.mxu0 0
    %6146 = vmatpush1.bf16.msra.mxu0 0
    %6147 = vmatprep.subr.bf16.mxu0 0
    %6148 = vmatpush1.bf16.msra.mxu0 0
    %6149 = vmatprep.subr.bf16.mxu0 0
    %6150 = vmatpush1.bf16.msra.mxu0 0
    %6151 = vmatprep.subr.bf16.mxu0 0
    %6152 = vmatpush1.bf16.msra.mxu0 %v6129
    %6153 = vmatprep.subr.bf16.mxu0 0
    %6154 = vmatpush2.bf16.msra.mxu0 0
    %6155 = vmatprep.subr.bf16.mxu0 0
    %6156 = vmatpush2.bf16.msra.mxu0 0
    %6157 = vmatprep.subr.bf16.mxu0 0
    %6158 = vmatpush2.bf16.msra.mxu0 0
    %6159 = vmatprep.subr.bf16.mxu0 0
    %6160 = vmatpush2.bf16.msra.mxu0 0
    %6161 = vmatprep.subr.bf16.mxu0 0
    %6162 = vmatpush2.bf16.msra.mxu0 0
    %6163 = vmatprep.subr.bf16.mxu0 0
    %6164 = vmatpush2.bf16.msra.mxu0 0
    %6165 = vmatprep.subr.bf16.mxu0 0
    %6166 = vmatpush2.bf16.msra.mxu0 0
    %6167 = vmatprep.subr.bf16.mxu0 0
    %6168 = vmatpush2.bf16.msra.mxu0 0
    %6169 = vmatprep.mubr.bf16.mxu0 0
    %6170 = vmatmul.mubr.bf16.gmra.mxu0 %v6132
    %v6171 = vpop.f32.mrf.mxu0
    %v6172 = vadd.f32 0.0, %v6171
    %v6173 = vpop.f32.mrf.mxu0
    %v6174 = vpop.f32.mrf.mxu0
    %v6175 = vadd.f32 0.0, %v6174
    %v6176 = vpop.f32.mrf.mxu0
    %6177 = vmatprep.mubr.bf16.mxu0 0
    %6178 = vmatmul.mubr.bf16.gmra.mxu0 %v6135
    %v6179 = vpop.f32.mrf.mxu0
    %v6180 = vadd.f32 0.0, %v6179
    %v6181 = vpop.f32.mrf.mxu0
    %v6182 = vpop.f32.mrf.mxu0
    %v6183 = vpop.f32.mrf.mxu0
    %6184 = vdwg.mxu0
    %6185 = vrot.lane.b32.xlu0 %v5662, 96
    %v6186 = vpop.permute.xlu0 %6185
    %v6189 = vsel %vm114, %v6069, 0
    %v6192 = vsel %vm114, %v6070, 0
    %6194 = vmatprep.subr.bf16.mxu0 0
    %6195 = vmatpush1.bf16.msra.mxu0 0
    %6196 = vmatprep.subr.bf16.mxu0 0
    %6197 = vmatpush1.bf16.msra.mxu0 0
    %6198 = vmatprep.subr.bf16.mxu0 0
    %6199 = vmatpush1.bf16.msra.mxu0 0
    %6200 = vmatprep.subr.bf16.mxu0 0
    %6201 = vmatpush1.bf16.msra.mxu0 0
    %6202 = vmatprep.subr.bf16.mxu0 0
    %6203 = vmatpush1.bf16.msra.mxu0 0
    %6204 = vmatprep.subr.bf16.mxu0 0
    %6205 = vmatpush1.bf16.msra.mxu0 0
    %6206 = vmatprep.subr.bf16.mxu0 0
    %6207 = vmatpush1.bf16.msra.mxu0 0
    %6208 = vmatprep.subr.bf16.mxu0 0
    %6209 = vmatpush1.bf16.msra.mxu0 %v6186
    %6210 = vmatprep.subr.bf16.mxu0 0
    %6211 = vmatpush2.bf16.msra.mxu0 0
    %6212 = vmatprep.subr.bf16.mxu0 0
    %6213 = vmatpush2.bf16.msra.mxu0 0
    %6214 = vmatprep.subr.bf16.mxu0 0
    %6215 = vmatpush2.bf16.msra.mxu0 0
    %6216 = vmatprep.subr.bf16.mxu0 0
    %6217 = vmatpush2.bf16.msra.mxu0 0
    %6218 = vmatprep.subr.bf16.mxu0 0
    %6219 = vmatpush2.bf16.msra.mxu0 0
    %6220 = vmatprep.subr.bf16.mxu0 0
    %6221 = vmatpush2.bf16.msra.mxu0 0
    %6222 = vmatprep.subr.bf16.mxu0 0
    %6223 = vmatpush2.bf16.msra.mxu0 0
    %6224 = vmatprep.subr.bf16.mxu0 0
    %6225 = vmatpush2.bf16.msra.mxu0 0
    %6226 = vmatprep.mubr.bf16.mxu0 0
    %6227 = vmatmul.mubr.bf16.gmra.mxu0 %v6189
    %v6228 = vpop.f32.mrf.mxu0
    %v6229 = vadd.f32 0.0, %v6228
    %v6230 = vpop.f32.mrf.mxu0
    %v6231 = vpop.f32.mrf.mxu0
    %v6232 = vadd.f32 0.0, %v6231
    %v6233 = vpop.f32.mrf.mxu0
    %6234 = vmatprep.mubr.bf16.mxu0 0
    %6235 = vmatmul.mubr.bf16.gmra.mxu0 %v6192
    %v6236 = vpop.f32.mrf.mxu0
    %v6237 = vadd.f32 0.0, %v6236
    %v6238 = vpop.f32.mrf.mxu0
    %v6239 = vpop.f32.mrf.mxu0
    %v6240 = vpop.f32.mrf.mxu0
    %6241 = vdwg.mxu0
    %6242 = vrot.lane.b32.xlu0 %v5662, 80
    %v6243 = vpop.permute.xlu0 %6242
    %v6246 = vsel %vm114, %v6071, 0
    %v6249 = vsel %vm114, %v6072, 0
    %6251 = vmatprep.subr.bf16.mxu0 0
    %6252 = vmatpush1.bf16.msra.mxu0 0
    %6253 = vmatprep.subr.bf16.mxu0 0
    %6254 = vmatpush1.bf16.msra.mxu0 0
    %6255 = vmatprep.subr.bf16.mxu0 0
    %6256 = vmatpush1.bf16.msra.mxu0 0
    %6257 = vmatprep.subr.bf16.mxu0 0
    %6258 = vmatpush1.bf16.msra.mxu0 0
    %6259 = vmatprep.subr.bf16.mxu0 0
    %6260 = vmatpush1.bf16.msra.mxu0 0
    %6261 = vmatprep.subr.bf16.mxu0 0
    %6262 = vmatpush1.bf16.msra.mxu0 0
    %6263 = vmatprep.subr.bf16.mxu0 0
    %6264 = vmatpush1.bf16.msra.mxu0 0
    %6265 = vmatprep.subr.bf16.mxu0 0
    %6266 = vmatpush1.bf16.msra.mxu0 %v6243
    %6267 = vmatprep.subr.bf16.mxu0 0
    %6268 = vmatpush2.bf16.msra.mxu0 0
    %6269 = vmatprep.subr.bf16.mxu0 0
    %6270 = vmatpush2.bf16.msra.mxu0 0
    %6271 = vmatprep.subr.bf16.mxu0 0
    %6272 = vmatpush2.bf16.msra.mxu0 0
    %6273 = vmatprep.subr.bf16.mxu0 0
    %6274 = vmatpush2.bf16.msra.mxu0 0
    %6275 = vmatprep.subr.bf16.mxu0 0
    %6276 = vmatpush2.bf16.msra.mxu0 0
    %6277 = vmatprep.subr.bf16.mxu0 0
    %6278 = vmatpush2.bf16.msra.mxu0 0
    %6279 = vmatprep.subr.bf16.mxu0 0
    %6280 = vmatpush2.bf16.msra.mxu0 0
    %6281 = vmatprep.subr.bf16.mxu0 0
    %6282 = vmatpush2.bf16.msra.mxu0 0
    %6283 = vmatprep.mubr.bf16.mxu0 0
    %6284 = vmatmul.mubr.bf16.gmra.mxu0 %v6246
    %v6285 = vpop.f32.mrf.mxu0
    %v6286 = vadd.f32 0.0, %v6285
    %v6287 = vpop.f32.mrf.mxu0
    %v6288 = vpop.f32.mrf.mxu0
    %v6289 = vadd.f32 0.0, %v6288
    %v6290 = vpop.f32.mrf.mxu0
    %6291 = vmatprep.mubr.bf16.mxu0 0
    %6292 = vmatmul.mubr.bf16.gmra.mxu0 %v6249
    %v6293 = vpop.f32.mrf.mxu0
    %v6294 = vadd.f32 0.0, %v6293
    %v6295 = vpop.f32.mrf.mxu0
    %v6296 = vpop.f32.mrf.mxu0
    %v6297 = vpop.f32.mrf.mxu0
    %6298 = vdwg.mxu0
    %6302 = vrot.lane.b32.xlu0 %v6172, 16
    %v6303 = vpop.permute.xlu0 %6302
    %6304 = vrot.lane.b32.xlu0 %v6175, 16
    %v6305 = vpop.permute.xlu0 %6304
    %6306 = vrot.lane.b32.xlu0 %v6180, 16
    %v6307 = vpop.permute.xlu0 %6306
    %6314 = vrot.lane.b32.xlu0 %v6229, 32
    %v6315 = vpop.permute.xlu0 %6314
    %6316 = vrot.lane.b32.xlu0 %v6232, 32
    %v6317 = vpop.permute.xlu0 %6316
    %6318 = vrot.lane.b32.xlu0 %v6237, 32
    %v6319 = vpop.permute.xlu0 %6318
    %6326 = vrot.lane.b32.xlu0 %v6286, 48
    %v6327 = vpop.permute.xlu0 %6326
    %6328 = vrot.lane.b32.xlu0 %v6289, 48
    %v6329 = vpop.permute.xlu0 %6328
    %6330 = vrot.lane.b32.xlu0 %v6294, 48
    %v6331 = vpop.permute.xlu0 %6330
    %v6335 = vsel %vm114, %v6114, %v6303
    %v6336 = vsel %vm114, %v6117, %v6305
    %v6337 = vsel %vm114, %v6122, %v6307
    %v6338 = vsel %vm508, %v6335, %v6315
    %v6339 = vsel %vm508, %v6336, %v6317
    %v6340 = vsel %vm508, %v6337, %v6319
    %v6341 = vsel %vm696, %v6338, %v6327
    %v6342 = vsel %vm696, %v6339, %v6329
    %v6343 = vsel %vm696, %v6340, %v6331
    %v6344 = vpack.c.bf16 %v6342, %v6341
    %v6345 = vpack.c.bf16 %v6343, %v6343
    %v6346 = vld [vmem:[%s6 + $0x458] sm:$0xf]
    %v6347 = vld [vmem:[%s6 + $0x45c] sm:$0xf]
    %v6348 = vld [vmem:[%s6 + $0x460] sm:$0xf]
    %v6349 = vld [vmem:[%s6 + $0x464] sm:$0xf]
    %v6350 = vld [vmem:[%s6 + $0x468] sm:$0xf]
    %v6351 = vld [vmem:[%s6 + $0x46c] sm:$0xf]
    %v6352 = vld [vmem:[%s6 + $0x470] sm:$0xf]
    %v6353 = vld [vmem:[%s6 + $0x474] sm:$0xf]
    %v6354 = vlaneseq
    %v6355 = vshrl.u32 %v6354, 7
    %v6356 = vsub.s32 5, %v6355
    %v6357 = vrot.slane %v5592, %v6356
    %v6366 = vunpack.c.l.b16 %v6346
    %v6367 = vunpack.c.l.b16 %v6347
    %v6368 = vunpack.c.l.b16 %v6348
    %v6369 = vunpack.c.l.b16 %v6349
    %v6370 = vunpack.c.l.b16 %v6350
    %v6371 = vunpack.c.l.b16 %v6351
    %v6372 = vunpack.c.l.b16 %v6352
    %v6373 = vunpack.c.l.b16 %v6353
    %v6374 = vpack.c.b16 %v6367, %v6366
    %v6375 = vpack.c.b16 %v6369, %v6368
    %v6376 = vpack.c.b16 %v6371, %v6370
    %v6377 = vpack.c.b16 %v6373, %v6372
    %v6383 = vsel %vm303, %v6344, 0
    %v6386 = vsel %vm303, %v6345, 0
    %6388 = vmatprep.subr.bf16.mxu0 0
    %6389 = vmatpush1.bf16.msra.mxu0 0
    %6390 = vmatprep.subr.bf16.mxu0 0
    %6391 = vmatpush1.bf16.msra.mxu0 0
    %6392 = vmatprep.subr.bf16.mxu0 0
    %6393 = vmatpush1.bf16.msra.mxu0 0
    %6394 = vmatprep.subr.bf16.mxu0 0
    %6395 = vmatpush1.bf16.msra.mxu0 0
    %6396 = vmatprep.subr.bf16.mxu0 0
    %6397 = vmatpush1.bf16.msra.mxu0 %v6377
    %6398 = vmatprep.subr.bf16.mxu0 0
    %6399 = vmatpush1.bf16.msra.mxu0 %v6376
    %6400 = vmatprep.subr.bf16.mxu0 0
    %6401 = vmatpush1.bf16.msra.mxu0 %v6375
    %6402 = vmatprep.subr.bf16.mxu0 0
    %6403 = vmatpush1.bf16.msra.mxu0 %v6374
    %6404 = vmatprep.subr.bf16.mxu0 0
    %6405 = vmatpush2.bf16.msra.mxu0 0
    %6406 = vmatprep.subr.bf16.mxu0 0
    %6407 = vmatpush2.bf16.msra.mxu0 0
    %6408 = vmatprep.subr.bf16.mxu0 0
    %6409 = vmatpush2.bf16.msra.mxu0 0
    %6410 = vmatprep.subr.bf16.mxu0 0
    %6411 = vmatpush2.bf16.msra.mxu0 0
    %6412 = vmatprep.subr.bf16.mxu0 0
    %6413 = vmatpush2.bf16.msra.mxu0 0
    %6414 = vmatprep.subr.bf16.mxu0 0
    %6415 = vmatpush2.bf16.msra.mxu0 0
    %6416 = vmatprep.subr.bf16.mxu0 0
    %6417 = vmatpush2.bf16.msra.mxu0 0
    %6418 = vmatprep.subr.bf16.mxu0 0
    %6419 = vmatpush2.bf16.msra.mxu0 0
    %6420 = vmatprep.mubr.bf16.mxu0 0
    %6421 = vmatmul.mubr.bf16.gmra.mxu0 %v6383
    %v6422 = vpop.f32.mrf.mxu0
    %v6423 = vadd.f32 %v6357, %v6422
    %v6424 = vpop.f32.mrf.mxu0
    %v6425 = vpop.f32.mrf.mxu0
    %v6426 = vadd.f32 %v6357, %v6425
    %v6427 = vpop.f32.mrf.mxu0
    %6428 = vmatprep.mubr.bf16.mxu0 0
    %6429 = vmatmul.mubr.bf16.gmra.mxu0 %v6386
    %v6430 = vpop.f32.mrf.mxu0
    %v6431 = vadd.f32 %v6357, %v6430
    %v6432 = vpop.f32.mrf.mxu0
    %v6433 = vpop.f32.mrf.mxu0
    %v6434 = vpop.f32.mrf.mxu0
    %6435 = vdwg.mxu0
    %v6436 = vadd.f32 %v5345, %v6423
    %v6437 = vadd.f32 %v5346, %v6426
    %v6438 = vadd.f32 %v5347, %v6431
    %v6439 = vsel %vm303, %v6436, 0.0
    %6440 = vadd.xlane.f32.xlu0 %v6439
    %v6441 = vpop.xlane.xlu0 %6440
    %v6442 = vsel %vm303, %v6437, 0.0
    %6443 = vadd.xlane.f32.xlu0 %v6442
    %v6444 = vpop.xlane.xlu0 %6443
    %v6445 = vsel %vm1574, %v6438, 0.0
    %6446 = vadd.xlane.f32.xlu0 %v6445
    %v6447 = vpop.xlane.xlu0 %6446
    %v6448 = vmul.f32 %v6441, %v1578
    %v6449 = vmul.f32 %v6444, %v1578
    %v6450 = vmul.f32 %v6447, %v1578
    %v6451 = vsub.f32 %v6436, %v6448
    %v6452 = vsub.f32 %v6437, %v6449
    %v6453 = vsub.f32 %v6438, %v6450
    %v6454 = vmul.f32 %v6451, %v6451
    %v6455 = vmul.f32 %v6452, %v6452
    %v6456 = vmul.f32 %v6453, %v6453
    %v6457 = vsel %vm303, %v6454, 0.0
    %6458 = vadd.xlane.f32.xlu0 %v6457
    %v6459 = vpop.xlane.xlu0 %6458
    %v6460 = vsel %vm303, %v6455, 0.0
    %6461 = vadd.xlane.f32.xlu0 %v6460
    %v6462 = vpop.xlane.xlu0 %6461
    %v6463 = vsel %vm1574, %v6456, 0.0
    %6464 = vadd.xlane.f32.xlu0 %v6463
    %v6465 = vpop.xlane.xlu0 %6464
    %v6466 = vmul.f32 %v6459, %v1578
    %v6467 = vmul.f32 %v6462, %v1578
    %v6468 = vmul.f32 %v6465, %v1578
    %v6469 = vadd.f32 %v6466, 1e-05
    %v6470 = vadd.f32 %v6467, 1e-05
    %v6471 = vadd.f32 %v6468, 1e-05
    %v6472 = vrsqrt.pop %v6469
    %v6473 = vrsqrt.pop %v6470
    %v6474 = vrsqrt.pop %v6471
    %v6475 = vmul.f32 %v6451, %v6472
    %v6476 = vmul.f32 %v6452, %v6473
    %v6477 = vmul.f32 %v6453, %v6474
    %v6478 = vld [vmem:[%s6 + $0x558] sm:$0x8]
    %v6479 = vunpack.c.l.bf16 %v6478
    %v6480 = vlaneseq
    %v6481 = vshrl.u32 %v6480, 7
    %v6482 = vsub.s32 6, %v6481
    %v6483 = vrot.slane %v6479, %v6482
    %v6484 = vmul.f32 %v6475, %v6483
    %v6485 = vmul.f32 %v6476, %v6483
    %v6486 = vmul.f32 %v6477, %v6483
    %v6487 = vlaneseq
    %v6488 = vshrl.u32 %v6487, 7
    %v6489 = vsub.s32 7, %v6488
    %v6490 = vrot.slane %v6479, %v6489
    %v6491 = vadd.f32 %v6484, %v6490
    %v6492 = vadd.f32 %v6485, %v6490
    %v6493 = vadd.f32 %v6486, %v6490
    %v6494 = vpack.c.bf16 %v6492, %v6491
    %v6495 = vpack.c.bf16 %v6493, %v6493
    %s6496 = scalar_lea.vmem %s7, 72
    %v6497 = vld [vmem:[%s6496] sm:$0xff]
    %v6498 = vld [vmem:[%s6496 + $0x8] sm:$0xff]
    %v6499 = vld [vmem:[%s6496 + $0x10] sm:$0xff]
    %v6500 = vld [vmem:[%s6496 + $0x18] sm:$0xff]
    %v6501 = vld [vmem:[%s6496 + $0x20] sm:$0xff]
    %v6502 = vld [vmem:[%s6496 + $0x28] sm:$0xff]
    %v6503 = vld [vmem:[%s6496 + $0x30] sm:$0xff]
    %v6504 = vld [vmem:[%s6496 + $0x38] sm:$0xff]
    %v6505 = vld [vmem:[%s6496 + $0x40] sm:$0x11]
    %v6506 = vunpack.c.l.bf16 %v6505
    %v6507 = vunpack.c.h.bf16 %v6505
    %v6508 = vlaneseq
    %v6509 = vshrl.u32 %v6508, 7
    %v6510 = vsub.s32 0, %v6509
    %v6511 = vrot.slane %v6506, %v6510
    %v6512 = vlaneseq
    %v6513 = vshrl.u32 %v6512, 7
    %v6514 = vsub.s32 0, %v6513
    %v6515 = vrot.slane %v6507, %v6514
    %v6524 = vunpack.c.l.b16 %v6497
    %v6525 = vunpack.c.h.b16 %v6497
    %v6526 = vunpack.c.l.b16 %v6498
    %v6527 = vunpack.c.h.b16 %v6498
    %v6528 = vunpack.c.l.b16 %v6499
    %v6529 = vunpack.c.h.b16 %v6499
    %v6530 = vunpack.c.l.b16 %v6500
    %v6531 = vunpack.c.h.b16 %v6500
    %v6532 = vunpack.c.l.b16 %v6501
    %v6533 = vunpack.c.h.b16 %v6501
    %v6534 = vunpack.c.l.b16 %v6502
    %v6535 = vunpack.c.h.b16 %v6502
    %v6536 = vunpack.c.l.b16 %v6503
    %v6537 = vunpack.c.h.b16 %v6503
    %v6538 = vunpack.c.l.b16 %v6504
    %v6539 = vunpack.c.h.b16 %v6504
    %v6540 = vpack.c.b16 %v6526, %v6524
    %v6541 = vpack.c.b16 %v6527, %v6525
    %v6542 = vpack.c.b16 %v6530, %v6528
    %v6543 = vpack.c.b16 %v6531, %v6529
    %v6544 = vpack.c.b16 %v6534, %v6532
    %v6545 = vpack.c.b16 %v6535, %v6533
    %v6546 = vpack.c.b16 %v6538, %v6536
    %v6547 = vpack.c.b16 %v6539, %v6537
    %v6557 = vsel %vm303, %v6494, 0
    %v6560 = vsel %vm303, %v6495, 0
    %6562 = vmatprep.subr.bf16.mxu0 0
    %6563 = vmatpush1.bf16.msra.mxu0 0
    %6564 = vmatprep.subr.bf16.mxu0 0
    %6565 = vmatpush1.bf16.msra.mxu0 0
    %6566 = vmatprep.subr.bf16.mxu0 0
    %6567 = vmatpush1.bf16.msra.mxu0 0
    %6568 = vmatprep.subr.bf16.mxu0 0
    %6569 = vmatpush1.bf16.msra.mxu0 0
    %6570 = vmatprep.subr.bf16.mxu0 %v6547
    %6571 = vmatpush1.bf16.msra.mxu0 %v6546
    %6572 = vmatprep.subr.bf16.mxu0 %v6545
    %6573 = vmatpush1.bf16.msra.mxu0 %v6544
    %6574 = vmatprep.subr.bf16.mxu0 %v6543
    %6575 = vmatpush1.bf16.msra.mxu0 %v6542
    %6576 = vmatprep.subr.bf16.mxu0 %v6541
    %6577 = vmatpush1.bf16.msra.mxu0 %v6540
    %6578 = vmatprep.subr.bf16.mxu0 0
    %6579 = vmatpush2.bf16.msra.mxu0 0
    %6580 = vmatprep.subr.bf16.mxu0 0
    %6581 = vmatpush2.bf16.msra.mxu0 0
    %6582 = vmatprep.subr.bf16.mxu0 0
    %6583 = vmatpush2.bf16.msra.mxu0 0
    %6584 = vmatprep.subr.bf16.mxu0 0
    %6585 = vmatpush2.bf16.msra.mxu0 0
    %6586 = vmatprep.subr.bf16.mxu0 0
    %6587 = vmatpush2.bf16.msra.mxu0 0
    %6588 = vmatprep.subr.bf16.mxu0 0
    %6589 = vmatpush2.bf16.msra.mxu0 0
    %6590 = vmatprep.subr.bf16.mxu0 0
    %6591 = vmatpush2.bf16.msra.mxu0 0
    %6592 = vmatprep.subr.bf16.mxu0 0
    %6593 = vmatpush2.bf16.msra.mxu0 0
    %6594 = vmatprep.mubr.bf16.mxu0 0
    %6595 = vmatmul.mubr.bf16.gmra.mxu0 %v6557
    %v6596 = vpop.f32.mrf.mxu0
    %v6597 = vadd.f32 %v6511, %v6596
    %v6598 = vpop.f32.mrf.mxu0
    %v6599 = vadd.f32 %v6515, %v6598
    %v6600 = vpop.f32.mrf.mxu0
    %v6601 = vadd.f32 %v6511, %v6600
    %v6602 = vpop.f32.mrf.mxu0
    %v6603 = vadd.f32 %v6515, %v6602
    %6604 = vmatprep.mubr.bf16.mxu0 0
    %6605 = vmatmul.mubr.bf16.gmra.mxu0 %v6560
    %v6606 = vpop.f32.mrf.mxu0
    %v6607 = vadd.f32 %v6511, %v6606
    %v6608 = vpop.f32.mrf.mxu0
    %v6609 = vadd.f32 %v6515, %v6608
    %v6610 = vpop.f32.mrf.mxu0
    %v6611 = vpop.f32.mrf.mxu0
    %6612 = vdwg.mxu0
    %v6613 = vmul.f32 %v6597, 0.5
    %v6614 = vmul.f32 %v6599, 0.5
    %v6615 = vmul.f32 %v6601, 0.5
    %v6616 = vmul.f32 %v6603, 0.5
    %v6617 = vmul.f32 %v6607, 0.5
    %v6618 = vmul.f32 %v6609, 0.5
    %v6619 = vmul.f32 %v6597, 0.044715
    %v6620 = vmul.f32 %v6599, 0.044715
    %v6621 = vmul.f32 %v6601, 0.044715
    %v6622 = vmul.f32 %v6603, 0.044715
    %v6623 = vmul.f32 %v6607, 0.044715
    %v6624 = vmul.f32 %v6609, 0.044715
    %v6625 = vmul.f32 %v6619, %v6597
    %v6626 = vmul.f32 %v6620, %v6599
    %v6627 = vmul.f32 %v6621, %v6601
    %v6628 = vmul.f32 %v6622, %v6603
    %v6629 = vmul.f32 %v6623, %v6607
    %v6630 = vmul.f32 %v6624, %v6609
    %v6631 = vmul.f32 %v6625, %v6597
    %v6632 = vmul.f32 %v6626, %v6599
    %v6633 = vmul.f32 %v6627, %v6601
    %v6634 = vmul.f32 %v6628, %v6603
    %v6635 = vmul.f32 %v6629, %v6607
    %v6636 = vmul.f32 %v6630, %v6609
    %v6637 = vadd.f32 %v6597, %v6631
    %v6638 = vadd.f32 %v6599, %v6632
    %v6639 = vadd.f32 %v6601, %v6633
    %v6640 = vadd.f32 %v6603, %v6634
    %v6641 = vadd.f32 %v6607, %v6635
    %v6642 = vadd.f32 %v6609, %v6636
    %v6643 = vmul.f32 %v6637, 0.7978846
    %v6644 = vmul.f32 %v6638, 0.7978846
    %v6645 = vmul.f32 %v6639, 0.7978846
    %v6646 = vmul.f32 %v6640, 0.7978846
    %v6647 = vmul.f32 %v6641, 0.7978846
    %v6648 = vmul.f32 %v6642, 0.7978846
    %v6649 = vtanh.pop %v6643
    %v6650 = vtanh.pop %v6644
    %v6651 = vtanh.pop %v6645
    %v6652 = vtanh.pop %v6646
    %v6653 = vtanh.pop %v6647
    %v6654 = vtanh.pop %v6648
    %v6655 = vadd.f32 %v6649, 1.0
    %v6656 = vadd.f32 %v6650, 1.0
    %v6657 = vadd.f32 %v6651, 1.0
    %v6658 = vadd.f32 %v6652, 1.0
    %v6659 = vadd.f32 %v6653, 1.0
    %v6660 = vadd.f32 %v6654, 1.0
    %v6661 = vmul.f32 %v6613, %v6655
    %v6662 = vmul.f32 %v6614, %v6656
    %v6663 = vmul.f32 %v6615, %v6657
    %v6664 = vmul.f32 %v6616, %v6658
    %v6665 = vmul.f32 %v6617, %v6659
    %v6666 = vmul.f32 %v6618, %v6660
    %v6667 = vpack.c.bf16 %v6663, %v6661
    %v6668 = vpack.c.bf16 %v6664, %v6662
    %v6669 = vpack.c.bf16 %v6665, %v6665
    %v6670 = vpack.c.bf16 %v6666, %v6666
    %v6671 = vld [vmem:[%s6 + $0x478] sm:$0xf]
    %v6672 = vld [vmem:[%s6 + $0x47c] sm:$0xf]
    %v6673 = vld [vmem:[%s6 + $0x480] sm:$0xf]
    %v6674 = vld [vmem:[%s6 + $0x484] sm:$0xf]
    %v6675 = vld [vmem:[%s6 + $0x488] sm:$0xf]
    %v6676 = vld [vmem:[%s6 + $0x48c] sm:$0xf]
    %v6677 = vld [vmem:[%s6 + $0x490] sm:$0xf]
    %v6678 = vld [vmem:[%s6 + $0x494] sm:$0xf]
    %v6679 = vld [vmem:[%s6 + $0x498] sm:$0xf]
    %v6680 = vld [vmem:[%s6 + $0x49c] sm:$0xf]
    %v6681 = vld [vmem:[%s6 + $0x4a0] sm:$0xf]
    %v6682 = vld [vmem:[%s6 + $0x4a4] sm:$0xf]
    %v6683 = vld [vmem:[%s6 + $0x4a8] sm:$0xf]
    %v6684 = vld [vmem:[%s6 + $0x4ac] sm:$0xf]
    %v6685 = vld [vmem:[%s6 + $0x4b0] sm:$0xf]
    %v6686 = vld [vmem:[%s6 + $0x4b4] sm:$0xf]
    %v6687 = vld [vmem:[%s6 + $0x4b8] sm:$0xf]
    %v6688 = vld [vmem:[%s6 + $0x4bc] sm:$0xf]
    %v6689 = vld [vmem:[%s6 + $0x4c0] sm:$0xf]
    %v6690 = vld [vmem:[%s6 + $0x4c4] sm:$0xf]
    %v6691 = vld [vmem:[%s6 + $0x4c8] sm:$0xf]
    %v6692 = vld [vmem:[%s6 + $0x4cc] sm:$0xf]
    %v6693 = vld [vmem:[%s6 + $0x4d0] sm:$0xf]
    %v6694 = vld [vmem:[%s6 + $0x4d4] sm:$0xf]
    %v6695 = vld [vmem:[%s6 + $0x4d8] sm:$0xf]
    %v6696 = vld [vmem:[%s6 + $0x4dc] sm:$0xf]
    %v6697 = vld [vmem:[%s6 + $0x4e0] sm:$0xf]
    %v6698 = vld [vmem:[%s6 + $0x4e4] sm:$0xf]
    %v6699 = vld [vmem:[%s6 + $0x4e8] sm:$0xf]
    %v6700 = vld [vmem:[%s6 + $0x4ec] sm:$0xf]
    %v6701 = vld [vmem:[%s6 + $0x4f0] sm:$0xf]
    %v6702 = vld [vmem:[%s6 + $0x4f4] sm:$0xf]
    %v6703 = vld [vmem:[%s6 + $0x55c] sm:$0x1]
    %v6704 = vunpack.c.l.bf16 %v6703
    %v6705 = vlaneseq
    %v6706 = vshrl.u32 %v6705, 7
    %v6707 = vsub.s32 0, %v6706
    %v6708 = vrot.slane %v6704, %v6707
    %v6741 = vunpack.c.l.b16 %v6671
    %v6742 = vunpack.c.l.b16 %v6672
    %v6743 = vunpack.c.l.b16 %v6673
    %v6744 = vunpack.c.l.b16 %v6674
    %v6745 = vunpack.c.l.b16 %v6675
    %v6746 = vunpack.c.l.b16 %v6676
    %v6747 = vunpack.c.l.b16 %v6677
    %v6748 = vunpack.c.l.b16 %v6678
    %v6749 = vunpack.c.l.b16 %v6679
    %v6750 = vunpack.c.l.b16 %v6680
    %v6751 = vunpack.c.l.b16 %v6681
    %v6752 = vunpack.c.l.b16 %v6682
    %v6753 = vunpack.c.l.b16 %v6683
    %v6754 = vunpack.c.l.b16 %v6684
    %v6755 = vunpack.c.l.b16 %v6685
    %v6756 = vunpack.c.l.b16 %v6686
    %v6757 = vunpack.c.l.b16 %v6687
    %v6758 = vunpack.c.l.b16 %v6688
    %v6759 = vunpack.c.l.b16 %v6689
    %v6760 = vunpack.c.l.b16 %v6690
    %v6761 = vunpack.c.l.b16 %v6691
    %v6762 = vunpack.c.l.b16 %v6692
    %v6763 = vunpack.c.l.b16 %v6693
    %v6764 = vunpack.c.l.b16 %v6694
    %v6765 = vunpack.c.l.b16 %v6695
    %v6766 = vunpack.c.l.b16 %v6696
    %v6767 = vunpack.c.l.b16 %v6697
    %v6768 = vunpack.c.l.b16 %v6698
    %v6769 = vunpack.c.l.b16 %v6699
    %v6770 = vunpack.c.l.b16 %v6700
    %v6771 = vunpack.c.l.b16 %v6701
    %v6772 = vunpack.c.l.b16 %v6702
    %v6773 = vpack.c.b16 %v6742, %v6741
    %v6774 = vpack.c.b16 %v6744, %v6743
    %v6775 = vpack.c.b16 %v6746, %v6745
    %v6776 = vpack.c.b16 %v6748, %v6747
    %v6777 = vpack.c.b16 %v6750, %v6749
    %v6778 = vpack.c.b16 %v6752, %v6751
    %v6779 = vpack.c.b16 %v6754, %v6753
    %v6780 = vpack.c.b16 %v6756, %v6755
    %v6781 = vpack.c.b16 %v6758, %v6757
    %v6782 = vpack.c.b16 %v6760, %v6759
    %v6783 = vpack.c.b16 %v6762, %v6761
    %v6784 = vpack.c.b16 %v6764, %v6763
    %v6785 = vpack.c.b16 %v6766, %v6765
    %v6786 = vpack.c.b16 %v6768, %v6767
    %v6787 = vpack.c.b16 %v6770, %v6769
    %v6788 = vpack.c.b16 %v6772, %v6771
    %6805 = vmatprep.subr.bf16.mxu0 0
    %6806 = vmatpush1.bf16.msra.mxu0 %v6780
    %6807 = vmatprep.subr.bf16.mxu0 0
    %6808 = vmatpush1.bf16.msra.mxu0 %v6779
    %6809 = vmatprep.subr.bf16.mxu0 0
    %6810 = vmatpush1.bf16.msra.mxu0 %v6778
    %6811 = vmatprep.subr.bf16.mxu0 0
    %6812 = vmatpush1.bf16.msra.mxu0 %v6777
    %6813 = vmatprep.subr.bf16.mxu0 0
    %6814 = vmatpush1.bf16.msra.mxu0 %v6776
    %6815 = vmatprep.subr.bf16.mxu0 0
    %6816 = vmatpush1.bf16.msra.mxu0 %v6775
    %6817 = vmatprep.subr.bf16.mxu0 0
    %6818 = vmatpush1.bf16.msra.mxu0 %v6774
    %6819 = vmatprep.subr.bf16.mxu0 0
    %6820 = vmatpush1.bf16.msra.mxu0 %v6773
    %6821 = vmatprep.subr.bf16.mxu0 0
    %6822 = vmatpush2.bf16.msra.mxu0 %v6788
    %6823 = vmatprep.subr.bf16.mxu0 0
    %6824 = vmatpush2.bf16.msra.mxu0 %v6787
    %6825 = vmatprep.subr.bf16.mxu0 0
    %6826 = vmatpush2.bf16.msra.mxu0 %v6786
    %6827 = vmatprep.subr.bf16.mxu0 0
    %6828 = vmatpush2.bf16.msra.mxu0 %v6785
    %6829 = vmatprep.subr.bf16.mxu0 0
    %6830 = vmatpush2.bf16.msra.mxu0 %v6784
    %6831 = vmatprep.subr.bf16.mxu0 0
    %6832 = vmatpush2.bf16.msra.mxu0 %v6783
    %6833 = vmatprep.subr.bf16.mxu0 0
    %6834 = vmatpush2.bf16.msra.mxu0 %v6782
    %6835 = vmatprep.subr.bf16.mxu0 0
    %6836 = vmatpush2.bf16.msra.mxu0 %v6781
    %6837 = vmatprep.mubr.bf16.mxu0 %v6668
    %6838 = vmatmul.mubr.bf16.gmra.mxu0 %v6667
    %v6839 = vpop.f32.mrf.mxu0
    %v6840 = vadd.f32 %v6708, %v6839
    %v6841 = vpop.f32.mrf.mxu0
    %v6842 = vpop.f32.mrf.mxu0
    %v6843 = vadd.f32 %v6708, %v6842
    %v6844 = vpop.f32.mrf.mxu0
    %6845 = vmatprep.mubr.bf16.mxu0 %v6670
    %6846 = vmatmul.mubr.bf16.gmra.mxu0 %v6669
    %v6847 = vpop.f32.mrf.mxu0
    %v6848 = vadd.f32 %v6708, %v6847
    %v6849 = vpop.f32.mrf.mxu0
    %v6850 = vpop.f32.mrf.mxu0
    %v6851 = vpop.f32.mrf.mxu0
    %6852 = vdwg.mxu0
    %v6853 = vadd.f32 %v6436, %v6840
    %v6854 = vadd.f32 %v6437, %v6843
    %v6855 = vadd.f32 %v6438, %v6848
    %v6856 = vsel %vm303, %v6853, 0.0
    %6857 = vadd.xlane.f32.xlu0 %v6856
    %v6858 = vpop.xlane.xlu0 %6857
    %v6859 = vsel %vm303, %v6854, 0.0
    %6860 = vadd.xlane.f32.xlu0 %v6859
    %v6861 = vpop.xlane.xlu0 %6860
    %v6862 = vsel %vm1574, %v6855, 0.0
    %6863 = vadd.xlane.f32.xlu0 %v6862
    %v6864 = vpop.xlane.xlu0 %6863
    %v6865 = vmul.f32 %v6858, %v1578
    %v6866 = vmul.f32 %v6861, %v1578
    %v6867 = vmul.f32 %v6864, %v1578
    %v6868 = vsub.f32 %v6853, %v6865
    %v6869 = vsub.f32 %v6854, %v6866
    %v6870 = vsub.f32 %v6855, %v6867
    %v6871 = vmul.f32 %v6868, %v6868
    %v6872 = vmul.f32 %v6869, %v6869
    %v6873 = vmul.f32 %v6870, %v6870
    %v6874 = vsel %vm303, %v6871, 0.0
    %6875 = vadd.xlane.f32.xlu0 %v6874
    %v6876 = vpop.xlane.xlu0 %6875
    %v6877 = vsel %vm303, %v6872, 0.0
    %6878 = vadd.xlane.f32.xlu0 %v6877
    %v6879 = vpop.xlane.xlu0 %6878
    %v6880 = vsel %vm1574, %v6873, 0.0
    %6881 = vadd.xlane.f32.xlu0 %v6880
    %v6882 = vpop.xlane.xlu0 %6881
    %v6883 = vmul.f32 %v6876, %v1578
    %v6884 = vmul.f32 %v6879, %v1578
    %v6885 = vmul.f32 %v6882, %v1578
    %v6886 = vadd.f32 %v6883, 1e-05
    %v6887 = vadd.f32 %v6884, 1e-05
    %v6888 = vadd.f32 %v6885, 1e-05
    %v6889 = vrsqrt.pop %v6886
    %v6890 = vrsqrt.pop %v6887
    %v6891 = vrsqrt.pop %v6888
    %v6892 = vmul.f32 %v6868, %v6889
    %v6893 = vmul.f32 %v6869, %v6890
    %v6894 = vmul.f32 %v6870, %v6891
    %v6895 = vlaneseq
    %v6896 = vshrl.u32 %v6895, 7
    %v6897 = vsub.s32 1, %v6896
    %v6898 = vrot.slane %v6704, %v6897
    %v6899 = vmul.f32 %v6892, %v6898
    %v6900 = vmul.f32 %v6893, %v6898
    %v6901 = vmul.f32 %v6894, %v6898
    %v6902 = vld [vmem:[%s6 + $0x55c] sm:$0x2]
    %v6903 = vunpack.c.l.bf16 %v6902
    %v6904 = vlaneseq
    %v6905 = vshrl.u32 %v6904, 7
    %v6906 = vsub.s32 2, %v6905
    %v6907 = vrot.slane %v6903, %v6906
    %v6908 = vadd.f32 %v6899, %v6907
    %v6909 = vadd.f32 %v6900, %v6907
    %v6910 = vadd.f32 %v6901, %v6907
    %v6911 = vpack.c.bf16 %v6909, %v6908
    %v6912 = vpack.c.bf16 %v6910, %v6910
    %v6913 = vld [vmem:[%s6 + $0x4f8] sm:$0xf]
    %v6914 = vld [vmem:[%s6 + $0x4fc] sm:$0xf]
    %v6915 = vld [vmem:[%s6 + $0x500] sm:$0xf]
    %v6916 = vld [vmem:[%s6 + $0x504] sm:$0xf]
    %v6917 = vld [vmem:[%s6 + $0x508] sm:$0xf]
    %v6918 = vld [vmem:[%s6 + $0x50c] sm:$0xf]
    %v6919 = vld [vmem:[%s6 + $0x510] sm:$0xf]
    %v6920 = vld [vmem:[%s6 + $0x514] sm:$0xf]
    %v6921 = vlaneseq
    %v6922 = vshrl.u32 %v6921, 7
    %v6923 = vsub.s32 3, %v6922
    %v6924 = vrot.slane %v6903, %v6923
    %v6933 = vunpack.c.l.b16 %v6913
    %v6934 = vunpack.c.l.b16 %v6914
    %v6935 = vunpack.c.l.b16 %v6915
    %v6936 = vunpack.c.l.b16 %v6916
    %v6937 = vunpack.c.l.b16 %v6917
    %v6938 = vunpack.c.l.b16 %v6918
    %v6939 = vunpack.c.l.b16 %v6919
    %v6940 = vunpack.c.l.b16 %v6920
    %v6941 = vpack.c.b16 %v6934, %v6933
    %v6942 = vpack.c.b16 %v6936, %v6935
    %v6943 = vpack.c.b16 %v6938, %v6937
    %v6944 = vpack.c.b16 %v6940, %v6939
    %v6950 = vsel %vm303, %v6911, 0
    %v6953 = vsel %vm303, %v6912, 0
    %6955 = vmatprep.subr.bf16.mxu0 0
    %6956 = vmatpush1.bf16.msra.mxu0 0
    %6957 = vmatprep.subr.bf16.mxu0 0
    %6958 = vmatpush1.bf16.msra.mxu0 0
    %6959 = vmatprep.subr.bf16.mxu0 0
    %6960 = vmatpush1.bf16.msra.mxu0 0
    %6961 = vmatprep.subr.bf16.mxu0 0
    %6962 = vmatpush1.bf16.msra.mxu0 0
    %6963 = vmatprep.subr.bf16.mxu0 0
    %6964 = vmatpush1.bf16.msra.mxu0 %v6944
    %6965 = vmatprep.subr.bf16.mxu0 0
    %6966 = vmatpush1.bf16.msra.mxu0 %v6943
    %6967 = vmatprep.subr.bf16.mxu0 0
    %6968 = vmatpush1.bf16.msra.mxu0 %v6942
    %6969 = vmatprep.subr.bf16.mxu0 0
    %6970 = vmatpush1.bf16.msra.mxu0 %v6941
    %6971 = vmatprep.subr.bf16.mxu0 0
    %6972 = vmatpush2.bf16.msra.mxu0 0
    %6973 = vmatprep.subr.bf16.mxu0 0
    %6974 = vmatpush2.bf16.msra.mxu0 0
    %6975 = vmatprep.subr.bf16.mxu0 0
    %6976 = vmatpush2.bf16.msra.mxu0 0
    %6977 = vmatprep.subr.bf16.mxu0 0
    %6978 = vmatpush2.bf16.msra.mxu0 0
    %6979 = vmatprep.subr.bf16.mxu0 0
    %6980 = vmatpush2.bf16.msra.mxu0 0
    %6981 = vmatprep.subr.bf16.mxu0 0
    %6982 = vmatpush2.bf16.msra.mxu0 0
    %6983 = vmatprep.subr.bf16.mxu0 0
    %6984 = vmatpush2.bf16.msra.mxu0 0
    %6985 = vmatprep.subr.bf16.mxu0 0
    %6986 = vmatpush2.bf16.msra.mxu0 0
    %6987 = vmatprep.mubr.bf16.mxu0 0
    %6988 = vmatmul.mubr.bf16.gmra.mxu0 %v6950
    %v6989 = vpop.f32.mrf.mxu0
    %v6990 = vadd.f32 %v6924, %v6989
    %v6991 = vpop.f32.mrf.mxu0
    %v6992 = vpop.f32.mrf.mxu0
    %v6993 = vadd.f32 %v6924, %v6992
    %v6994 = vpop.f32.mrf.mxu0
    %6995 = vmatprep.mubr.bf16.mxu0 0
    %6996 = vmatmul.mubr.bf16.gmra.mxu0 %v6953
    %v6997 = vpop.f32.mrf.mxu0
    %v6998 = vadd.f32 %v6924, %v6997
    %v6999 = vpop.f32.mrf.mxu0
    %v7000 = vpop.f32.mrf.mxu0
    %v7001 = vpop.f32.mrf.mxu0
    %7002 = vdwg.mxu0
    %v7003 = vpack.c.bf16 %v6993, %v6990
    %v7004 = vpack.c.bf16 %v6998, %v6998
    %v7005 = vunpack.c.l.bf16 %v7003
    %v7006 = vunpack.c.h.bf16 %v7003
    %v7007 = vunpack.c.l.bf16 %v7004
    %v7008 = vsub.f32 %v7005, %v52
    %v7009 = vsub.f32 %v7006, %v53
    %v7010 = vsub.f32 %v7007, %v54
    %7011 = vset.pattern.permute.xlu0 1
    %7012 = vperm.xlu0 %7011, %v1398
    %v7013 = vpop.permute.xlu0 %7012
    %7015 = vset.pattern.permute.xlu0 1
    %7016 = vperm.xlu0 %7015, %v1399
    %v7017 = vpop.permute.xlu0 %7016
    %7019 = vset.pattern.permute.xlu0 1
    %7020 = vperm.xlu0 %7019, %v1400
    %v7021 = vpop.permute.xlu0 %7020
    %v7023 = vmul.f32 %v7008, %v7013
    %v7024 = vmul.f32 %v7009, %v7017
    %v7025 = vmul.f32 %v7010, %v7021
    %v7026 = vmul.f32 %v7023, %v7023
    %v7027 = vmul.f32 %v7024, %v7024
    %v7028 = vmul.f32 %v7025, %v7025
    %v7029 = vsel %vm114, %v7026, 0.0
    %v7030 = vsel %vm114, %v7027, 0.0
    %v7031 = vadd.f32 %v7029, %v7030
    %v7032 = vsel %vm3298, %v7028, 0.0
    %v7033 = vadd.f32 %v7031, %v7032
    %7034 = vadd.xlane.f32.xlu0 %v7033
    %v7035 = vpop.xlane.xlu0 %7034
    %v7036 = vrot.slane %v7035, 4
    %v7037 = vadd.f32 %v7035, %v7036
    %v7038 = vrot.slane %v7037, 2
    %v7039 = vadd.f32 %v7037, %v7038
    %v7040 = vrot.slane %v7039, 1
    %v7041 = vadd.f32 %v7039, %v7040
    %s7042 = vtos %v7041
    %v7043 = vstv %s7042
    %vm7044 = vcmask 0
    %7045 = vst.msk [vmem:[#allocation2] sm:$0x1] %vm7044, %v7043
    // Predicated region
    $region34: #{compute_loss.21} parent=1 // pred_check
      _
    $region35: #{compute_loss.21} parent=1 // pred_check_branch
      %7047 = sbr.rel (0) target = $region37
    $region36: #{compute_loss.21} parent=1 // pred_region
      %s7049 = ssub.s32 16, 16
      %7050 = vsyncadd [#allocation3], %s7049
      %s7052 = sshll.u32 [#allocation2], 4
      %s7053 = int_to_ptr.vmem [resolvable:$true] %s7052
      %7055 = dma.vmem_to_hbm [thread:$0]  %s7053, 16, %s8, [#allocation3]
    $region37: #{compute_loss.21} parent=1 // pred_fallthru
      _
    // Predicated region
    $region38: #{compute_loss.21} parent=1 // pred_check
      _
    $region39: #{compute_loss.21} parent=1 // pred_check_branch
      %7057 = sbr.rel (0) target = $region41
    $region40: #{compute_loss.21} parent=1 // pred_region
      %7058 = dma.done [#allocation3], 16
    $region41: #{compute_loss.21} parent=1 // pred_fallthru
      _
    %7059 = vsyncpa [#allocation3], 1

</llo_original>
